<compile_context>
chip_gen: v6e
topology: v6e:2x2x1
jax: 0.10.0
libtpu: 0.0.40
codegen_flags: <defaults>
</compile_context>

<pallas_src>
import jax
import jax.numpy as jnp
from jax import lax
from jax.experimental import pallas as pl
from jax.experimental.pallas import tpu as pltpu


# ----------------------------- Pallas kernel ------------------------------ #

def _conv_mxu(x_bf16, s_ref, t_ref):
    """sum_kh (S_kh @ X) @ T_kh  ->  (N*Ho, Wo*Cout) f32 accumulator."""
    m = s_ref.shape[1]
    ncol = t_ref.shape[2]
    acc = jnp.zeros((m, ncol), jnp.float32)
    for kh in range(s_ref.shape[0]):
        rows = jnp.dot(s_ref[kh], x_bf16, preferred_element_type=jnp.float32)
        acc = acc + jnp.dot(rows.astype(jnp.bfloat16), t_ref[kh],
                            preferred_element_type=jnp.float32)
    return acc


def _bn_lrelu(acc, gamma_ref, beta_ref, g_ref, gt_ref):
    """Training-mode BatchNorm2d + LeakyReLU(0.2) on a (N*Ho, Wo*Cout) block."""
    cout = g_ref.shape[1]
    count = acc.shape[0] * (acc.shape[1] // cout)        # N * Ho * Wo (static)
    inv_count = 1.0 / float(count)
    # single pass: sum and sum-of-squares over rows (f32)
    colsum = jnp.sum(acc, axis=0, keepdims=True)              # (1, Wo*Cout)
    colsq = jnp.sum(acc * acc, axis=0, keepdims=True)         # (1, Wo*Cout)
    # reduce the packed (ow, co) lane layout to per-channel stats via 0/1 matmul
    ch_sum = jnp.dot(colsum, g_ref[...], preferred_element_type=jnp.float32)
    ch_sq = jnp.dot(colsq, g_ref[...], preferred_element_type=jnp.float32)
    mean = ch_sum * inv_count                                  # (1, Cout)
    var = ch_sq * inv_count - mean * mean                      # biased variance
    inv_std = lax.rsqrt(var + 1e-5)
    scale_c = gamma_ref[...] * inv_std                         # (1, Cout)
    shift_c = beta_ref[...] - mean * scale_c
    # broadcast per-channel scale/shift back to packed lanes (0/1 matmul)
    scale_row = jnp.dot(scale_c, gt_ref[...], preferred_element_type=jnp.float32)
    shift_row = jnp.dot(shift_c, gt_ref[...], preferred_element_type=jnp.float32)
    y = acc * scale_row + shift_row
    return jnp.where(y >= 0.0, y, 0.2 * y)                     # LeakyReLU(0.2)


def _disc_kernel(x_ref,
                 s1_ref, t1_ref, sh1_ref,
                 s2_ref, t2_ref, g2_ref, b2_ref, G2_ref, Gt2_ref,
                 s3_ref, t3_ref, g3_ref, b3_ref, G3_ref, Gt3_ref,
                 s4_ref, t4_ref, g4_ref, b4_ref, G4_ref, Gt4_ref,
                 s5_ref, t5_ref, bias5_ref,
                 o_ref):
    # Layer 1: Conv(C+1 -> fd, 4, 2, 1) + bias + LeakyReLU(0.2)
    a = _conv_mxu(x_ref[...], s1_ref, t1_ref)
    a = a + sh1_ref[...]
    a = jnp.where(a >= 0.0, a, 0.2 * a)
    # Layers 2-4: Conv (bias-free) + BatchNorm(batch stats) + LeakyReLU(0.2)
    a = _conv_mxu(a.astype(jnp.bfloat16), s2_ref, t2_ref)
    a = _bn_lrelu(a, g2_ref, b2_ref, G2_ref, Gt2_ref)
    a = _conv_mxu(a.astype(jnp.bfloat16), s3_ref, t3_ref)
    a = _bn_lrelu(a, g3_ref, b3_ref, G3_ref, Gt3_ref)
    a = _conv_mxu(a.astype(jnp.bfloat16), s4_ref, t4_ref)
    a = _bn_lrelu(a, g4_ref, b4_ref, G4_ref, Gt4_ref)
    # Layer 5: Conv(8fd -> 1, 4, 2, 0) + bias + Sigmoid
    a = _conv_mxu(a.astype(jnp.bfloat16), s5_ref, t5_ref)
    a = a + bias5_ref[...]
    o_ref[...] = jax.nn.sigmoid(a)


# -------------------- host-side (tiny) operand preparation ----------------- #

def _conv_plan(w_oihw, H, W, stride, pad, N):
    """Turn a PyTorch OIHW conv weight into the S (row-gather) / T (Toeplitz)
    MXU operands used by the in-kernel conv."""
    Cout, Cin, KH, KW = w_oihw.shape
    Ho = (H + 2 * pad - KH) // stride + 1
    Wo = (W + 2 * pad - KW) // stride + 1

    # S[kh] (N*Ho, N*H): 0/1 stride-`stride` row gather (zero rows = padding).
    kh = jnp.arange(KH)
    oh = jnp.arange(Ho)
    h = stride * oh[None, :] + kh[:, None] - pad                      # (KH, Ho)
    valid_h = (h >= 0) & (h < H)
    onehot = (h[..., None] == jnp.arange(H)[None, None, :]) & valid_h[..., None]
    S = jnp.einsum("koh,nm->knomh", onehot.astype(jnp.float32),
                   jnp.eye(N, dtype=jnp.float32))
    S = S.reshape(KH, N * Ho, N * H).astype(jnp.bfloat16)

    # T[kh] (W*Cin, Wo*Cout): block-Toeplitz weights folding kw taps, the Cin
    # contraction, the stride-2 column gather and the zero column padding.
    w_ix = jnp.arange(W)
    ow = jnp.arange(Wo)
    kw = w_ix[:, None] + pad - stride * ow[None, :]                   # (W, Wo)
    valid_w = (kw >= 0) & (kw < KW)
    kw_c = jnp.clip(kw, 0, KW - 1)
    wk = jnp.transpose(w_oihw, (2, 3, 1, 0))                          # (KH,KW,Cin,Cout)
    T = wk[:, kw_c] * valid_w[None, :, :, None, None].astype(w_oihw.dtype)
    T = jnp.transpose(T, (0, 1, 3, 2, 4)).reshape(KH, W * Cin, Wo * Cout)
    return S, T.astype(jnp.bfloat16), Ho, Wo


def _bn_bcast(Cout, Wo):
    """0/1 matrices mapping packed (ow, co) lanes <-> channels."""
    G = jnp.tile(jnp.eye(Cout, dtype=jnp.float32), (Wo, 1))           # (Wo*Cout, Cout)
    return G, G.T


def discriminator_forward(params, x_nchw, labels, img_size):
    N, Cimg, H, W = x_nchw.shape
    # Embedding lookup + concat as an extra image channel (host/XLA glue).
    emb = jnp.take(params["embed_w"], labels, axis=0).reshape(N, 1, img_size, img_size)
    x = jnp.concatenate([x_nchw, emb], axis=1)                        # (N, C+1, H, W)
    x = jnp.transpose(x, (0, 2, 3, 1))                                # NHWC
    x2 = x.reshape(N * H, W * (Cimg + 1)).astype(jnp.bfloat16)        # (N*H, W*Cin)

    S1, T1, H1, W1 = _conv_plan(params["w1"], H, W, 2, 1, N)
    sh1 = jnp.tile(params["b1"], W1).reshape(1, -1).astype(jnp.float32)
    S2, T2, H2, W2 = _conv_plan(params["w2"], H1, W1, 2, 1, N)
    G2, Gt2 = _bn_bcast(params["w2"].shape[0], W2)
    S3, T3, H3, W3 = _conv_plan(params["w3"], H2, W2, 2, 1, N)
    G3, Gt3 = _bn_bcast(params["w3"].shape[0], W3)
    S4, T4, H4, W4 = _conv_plan(params["w4"], H3, W3, 2, 1, N)
    G4, Gt4 = _bn_bcast(params["w4"].shape[0], W4)
    S5, T5, H5, W5 = _conv_plan(params["w5"], H4, W4, 2, 0, N)
    bias5 = params["b5"].reshape(1, 1).astype(jnp.float32)

    row = lambda v: v.reshape(1, -1).astype(jnp.float32)
    inputs = [
        x2,
        S1, T1, sh1,
        S2, T2, row(params["g2"]), row(params["be2"]), G2, Gt2,
        S3, T3, row(params["g3"]), row(params["be3"]), G3, Gt3,
        S4, T4, row(params["g4"]), row(params["be4"]), G4, Gt4,
        S5, T5, bias5,
    ]
    out = pl.pallas_call(
        _disc_kernel,
        out_shape=jax.ShapeDtypeStruct((N * H5, W5 * 1), jnp.float32),
        in_specs=[pl.BlockSpec(memory_space=pltpu.MemorySpace.VMEM)] * len(inputs),
        out_specs=pl.BlockSpec(memory_space=pltpu.MemorySpace.VMEM),
    )(*inputs)
    # (N*Ho5, Wo5*1) -> NCHW (N, 1, Ho5, Wo5)
    return jnp.transpose(out.reshape(N, H5, W5, 1), (0, 3, 1, 2))


# --------------------------- params & reference ---------------------------- #

def init_params(key, channels_img, features_d, num_classes, img_size):
    fd = features_d
    ks = jax.random.split(key, 14)
    conv_w = lambda k, co, ci: 0.05 * jax.random.normal(k, (co, ci, 4, 4), jnp.float32)
    return {
        "embed_w": jax.random.normal(ks[0], (num_classes, img_size * img_size), jnp.float32),
        "w1": conv_w(ks[1], fd, channels_img + 1),
        "b1": 0.2 * jax.random.normal(ks[2], (fd,), jnp.float32),
        "w2": conv_w(ks[3], fd * 2, fd),
        "g2": 1.0 + 0.1 * jax.random.normal(ks[4], (fd * 2,), jnp.float32),
        "be2": 0.1 * jax.random.normal(ks[5], (fd * 2,), jnp.float32),
        "w3": conv_w(ks[6], fd * 4, fd * 2),
        "g3": 1.0 + 0.1 * jax.random.normal(ks[7], (fd * 4,), jnp.float32),
        "be3": 0.1 * jax.random.normal(ks[8], (fd * 4,), jnp.float32),
        "w4": conv_w(ks[9], fd * 8, fd * 4),
        "g4": 1.0 + 0.1 * jax.random.normal(ks[10], (fd * 8,), jnp.float32),
        "be4": 0.1 * jax.random.normal(ks[11], (fd * 8,), jnp.float32),
        "w5": conv_w(ks[12], 1, fd * 8),
        "b5": 0.2 * jax.random.normal(ks[13], (1,), jnp.float32),
    }


def _ref_forward(params, x_nchw, labels, img_size):
    """Pure-JAX/XLA reference (matches the PyTorch module in f32)."""
    N = x_nchw.shape[0]
    emb = jnp.take(params["embed_w"], labels, axis=0).reshape(N, 1, img_size, img_size)
    x = jnp.concatenate([x_nchw, emb], axis=1)

    def conv(v, w, stride, pad):
        return lax.conv_general_dilated(
            v, w, (stride, stride), [(pad, pad), (pad, pad)],
            dimension_numbers=("NCHW", "OIHW", "NCHW"),
            precision=lax.Precision.HIGHEST)

    def bn_lrelu(v, g, b):
        mean = jnp.mean(v, axis=(0, 2, 3), keepdims=True)
        var = jnp.mean(jnp.square(v - mean), axis=(0, 2, 3), keepdims=True)
        y = (v - mean) * lax.rsqrt(var + 1e-5)
        y = y * g.reshape(1, -1, 1, 1) + b.reshape(1, -1, 1, 1)
        return jnp.where(y >= 0.0, y, 0.2 * y)

    y = conv(x, params["w1"], 2, 1) + params["b1"].reshape(1, -1, 1, 1)
    y = jnp.where(y >= 0.0, y, 0.2 * y)
    y = bn_lrelu(conv(y, params["w2"], 2, 1), params["g2"], params["be2"])
    y = bn_lrelu(conv(y, params["w3"], 2, 1), params["g3"], params["be3"])
    y = bn_lrelu(conv(y, params["w4"], 2, 1), params["g4"], params["be4"])
    y = conv(y, params["w5"], 2, 0) + params["b5"].reshape(1, -1, 1, 1)
    return jax.nn.sigmoid(y)


# -------------------------------- main ------------------------------------ #

if __name__ == "__main__":
    channels_img, features_d, num_classes, img_size = 1, 8, 10, 64
    batch = 2

    key = jax.random.PRNGKey(0)
    kx, kl, kp = jax.random.split(key, 3)
    x = jax.random.normal(kx, (batch, channels_img, img_size, img_size), jnp.float32)
    labels = jax.random.randint(kl, (batch,), 0, num_classes)
    params = init_params(kp, channels_img, features_d, num_classes, img_size)

    fwd = jax.jit(lambda p, xx, ll: discriminator_forward(p, xx, ll, img_size))
    out = jax.block_until_ready(fwd(params, x, labels))

    assert out.shape == (batch, 1, 1, 1), out.shape
    assert bool(jnp.all(jnp.isfinite(out)))
    assert bool(jnp.all((out >= 0.0) & (out <= 1.0)))   # sigmoid range

    # Loose numerical check vs the XLA reference (kernel uses bf16 MXU operands).
    ref = jax.jit(lambda p, xx, ll: _ref_forward(p, xx, ll, img_size))(params, x, labels)
    max_diff = float(jnp.max(jnp.abs(out - ref)))
    assert max_diff < 5e-2, f"mismatch vs reference: {max_diff}"

    print("KERNEL_OK")
</pallas_src>

<mosaic_0001>
module attributes {stable_mosaic.version = 11 : i64} {
  func.func @_disc_kernel(%arg0: memref<128x128xbf16, #tpu.memory_space<vmem>>, %arg1: memref<4x64x128xbf16, #tpu.memory_space<vmem>>, %arg2: memref<4x128x256xbf16, #tpu.memory_space<vmem>>, %arg3: memref<1x256xf32, #tpu.memory_space<vmem>>, %arg4: memref<4x32x64xbf16, #tpu.memory_space<vmem>>, %arg5: memref<4x256x256xbf16, #tpu.memory_space<vmem>>, %arg6: memref<1x16xf32, #tpu.memory_space<vmem>>, %arg7: memref<1x16xf32, #tpu.memory_space<vmem>>, %arg8: memref<256x16xf32, #tpu.memory_space<vmem>>, %arg9: memref<16x256xf32, #tpu.memory_space<vmem>>, %arg10: memref<4x16x32xbf16, #tpu.memory_space<vmem>>, %arg11: memref<4x256x256xbf16, #tpu.memory_space<vmem>>, %arg12: memref<1x32xf32, #tpu.memory_space<vmem>>, %arg13: memref<1x32xf32, #tpu.memory_space<vmem>>, %arg14: memref<256x32xf32, #tpu.memory_space<vmem>>, %arg15: memref<32x256xf32, #tpu.memory_space<vmem>>, %arg16: memref<4x8x16xbf16, #tpu.memory_space<vmem>>, %arg17: memref<4x256x256xbf16, #tpu.memory_space<vmem>>, %arg18: memref<1x64xf32, #tpu.memory_space<vmem>>, %arg19: memref<1x64xf32, #tpu.memory_space<vmem>>, %arg20: memref<256x64xf32, #tpu.memory_space<vmem>>, %arg21: memref<64x256xf32, #tpu.memory_space<vmem>>, %arg22: memref<4x2x8xbf16, #tpu.memory_space<vmem>>, %arg23: memref<4x256x1xbf16, #tpu.memory_space<vmem>>, %arg24: memref<1x1xf32, #tpu.memory_space<vmem>>, %arg25: memref<2x1xf32, #tpu.memory_space<vmem>>) attributes {dimension_semantics = [], scalar_prefetch = 0 : i64, scratch_operands = 0 : i64, tpu.core_type = #tpu.core_type<tc>} {
    %c0 = arith.constant 0 : index
    %c0_0 = arith.constant 0 : index
    %0 = vector.load %arg0[%c0, %c0_0] : memref<128x128xbf16, #tpu.memory_space<vmem>>, vector<128x128xbf16>
    %cst = arith.constant 0.000000e+00 : f32
    %1 = vector.broadcast %cst : f32 to vector<64x256xf32>
    %c0_1 = arith.constant 0 : index
    %c0_2 = arith.constant 0 : index
    %c0_3 = arith.constant 0 : index
    %2 = vector.load %arg1[%c0_1, %c0_2, %c0_3] : memref<4x64x128xbf16, #tpu.memory_space<vmem>>, vector<1x64x128xbf16>
    %3 = vector.shape_cast %2 : vector<1x64x128xbf16> to vector<64x128xbf16>
    %cst_4 = arith.constant dense<0.000000e+00> : vector<64x128xf32>
    %4 = tpu.matmul %3, %0, %cst_4 {dimension_numbers = #tpu.dot_dimension_numbers<[1], [0], [0], [1], [0, 0, 1, 1], [], []>} : vector<64x128xbf16>, vector<128x128xbf16>, vector<64x128xf32> -> vector<64x128xf32>
    %5 = arith.truncf %4 : vector<64x128xf32> to vector<64x128xbf16>
    %c0_5 = arith.constant 0 : index
    %c0_6 = arith.constant 0 : index
    %c0_7 = arith.constant 0 : index
    %6 = vector.load %arg2[%c0_5, %c0_6, %c0_7] : memref<4x128x256xbf16, #tpu.memory_space<vmem>>, vector<1x128x256xbf16>
    %7 = vector.shape_cast %6 : vector<1x128x256xbf16> to vector<128x256xbf16>
    %cst_8 = arith.constant dense<0.000000e+00> : vector<64x256xf32>
    %8 = tpu.matmul %5, %7, %cst_8 {dimension_numbers = #tpu.dot_dimension_numbers<[1], [0], [0], [1], [0, 0, 1, 1], [], []>} : vector<64x128xbf16>, vector<128x256xbf16>, vector<64x256xf32> -> vector<64x256xf32>
    %9 = arith.addf %1, %8 : vector<64x256xf32>
    %c1 = arith.constant 1 : index
    %c0_9 = arith.constant 0 : index
    %c0_10 = arith.constant 0 : index
    %10 = vector.load %arg1[%c1, %c0_9, %c0_10] : memref<4x64x128xbf16, #tpu.memory_space<vmem>>, vector<1x64x128xbf16>
    %11 = vector.shape_cast %10 : vector<1x64x128xbf16> to vector<64x128xbf16>
    %cst_11 = arith.constant dense<0.000000e+00> : vector<64x128xf32>
    %12 = tpu.matmul %11, %0, %cst_11 {dimension_numbers = #tpu.dot_dimension_numbers<[1], [0], [0], [1], [0, 0, 1, 1], [], []>} : vector<64x128xbf16>, vector<128x128xbf16>, vector<64x128xf32> -> vector<64x128xf32>
    %13 = arith.truncf %12 : vector<64x128xf32> to vector<64x128xbf16>
    %c1_12 = arith.constant 1 : index
    %c0_13 = arith.constant 0 : index
    %c0_14 = arith.constant 0 : index
    %14 = vector.load %arg2[%c1_12, %c0_13, %c0_14] : memref<4x128x256xbf16, #tpu.memory_space<vmem>>, vector<1x128x256xbf16>
    %15 = vector.shape_cast %14 : vector<1x128x256xbf16> to vector<128x256xbf16>
    %cst_15 = arith.constant dense<0.000000e+00> : vector<64x256xf32>
    %16 = tpu.matmul %13, %15, %cst_15 {dimension_numbers = #tpu.dot_dimension_numbers<[1], [0], [0], [1], [0, 0, 1, 1], [], []>} : vector<64x128xbf16>, vector<128x256xbf16>, vector<64x256xf32> -> vector<64x256xf32>
    %17 = arith.addf %9, %16 : vector<64x256xf32>
    %c2 = arith.constant 2 : index
    %c0_16 = arith.constant 0 : index
    %c0_17 = arith.constant 0 : index
    %18 = vector.load %arg1[%c2, %c0_16, %c0_17] : memref<4x64x128xbf16, #tpu.memory_space<vmem>>, vector<1x64x128xbf16>
    %19 = vector.shape_cast %18 : vector<1x64x128xbf16> to vector<64x128xbf16>
    %cst_18 = arith.constant dense<0.000000e+00> : vector<64x128xf32>
    %20 = tpu.matmul %19, %0, %cst_18 {dimension_numbers = #tpu.dot_dimension_numbers<[1], [0], [0], [1], [0, 0, 1, 1], [], []>} : vector<64x128xbf16>, vector<128x128xbf16>, vector<64x128xf32> -> vector<64x128xf32>
    %21 = arith.truncf %20 : vector<64x128xf32> to vector<64x128xbf16>
    %c2_19 = arith.constant 2 : index
    %c0_20 = arith.constant 0 : index
    %c0_21 = arith.constant 0 : index
    %22 = vector.load %arg2[%c2_19, %c0_20, %c0_21] : memref<4x128x256xbf16, #tpu.memory_space<vmem>>, vector<1x128x256xbf16>
    %23 = vector.shape_cast %22 : vector<1x128x256xbf16> to vector<128x256xbf16>
    %cst_22 = arith.constant dense<0.000000e+00> : vector<64x256xf32>
    %24 = tpu.matmul %21, %23, %cst_22 {dimension_numbers = #tpu.dot_dimension_numbers<[1], [0], [0], [1], [0, 0, 1, 1], [], []>} : vector<64x128xbf16>, vector<128x256xbf16>, vector<64x256xf32> -> vector<64x256xf32>
    %25 = arith.addf %17, %24 : vector<64x256xf32>
    %c3 = arith.constant 3 : index
    %c0_23 = arith.constant 0 : index
    %c0_24 = arith.constant 0 : index
    %26 = vector.load %arg1[%c3, %c0_23, %c0_24] : memref<4x64x128xbf16, #tpu.memory_space<vmem>>, vector<1x64x128xbf16>
    %27 = vector.shape_cast %26 : vector<1x64x128xbf16> to vector<64x128xbf16>
    %cst_25 = arith.constant dense<0.000000e+00> : vector<64x128xf32>
    %28 = tpu.matmul %27, %0, %cst_25 {dimension_numbers = #tpu.dot_dimension_numbers<[1], [0], [0], [1], [0, 0, 1, 1], [], []>} : vector<64x128xbf16>, vector<128x128xbf16>, vector<64x128xf32> -> vector<64x128xf32>
    %29 = arith.truncf %28 : vector<64x128xf32> to vector<64x128xbf16>
    %c3_26 = arith.constant 3 : index
    %c0_27 = arith.constant 0 : index
    %c0_28 = arith.constant 0 : index
    %30 = vector.load %arg2[%c3_26, %c0_27, %c0_28] : memref<4x128x256xbf16, #tpu.memory_space<vmem>>, vector<1x128x256xbf16>
    %31 = vector.shape_cast %30 : vector<1x128x256xbf16> to vector<128x256xbf16>
    %cst_29 = arith.constant dense<0.000000e+00> : vector<64x256xf32>
    %32 = tpu.matmul %29, %31, %cst_29 {dimension_numbers = #tpu.dot_dimension_numbers<[1], [0], [0], [1], [0, 0, 1, 1], [], []>} : vector<64x128xbf16>, vector<128x256xbf16>, vector<64x256xf32> -> vector<64x256xf32>
    %33 = arith.addf %25, %32 : vector<64x256xf32>
    %c0_30 = arith.constant 0 : index
    %c0_31 = arith.constant 0 : index
    %34 = vector.load %arg3[%c0_30, %c0_31] : memref<1x256xf32, #tpu.memory_space<vmem>>, vector<1x256xf32>
    %35 = vector.broadcast %34 : vector<1x256xf32> to vector<64x256xf32>
    %36 = arith.addf %33, %35 : vector<64x256xf32>
    %cst_32 = arith.constant 0.000000e+00 : f32
    %37 = vector.broadcast %cst_32 : f32 to vector<64x256xf32>
    %38 = arith.cmpf oge, %36, %37 : vector<64x256xf32>
    %cst_33 = arith.constant 2.000000e-01 : f32
    %39 = vector.broadcast %cst_33 : f32 to vector<64x256xf32>
    %40 = arith.mulf %39, %36 : vector<64x256xf32>
    %41 = arith.select %38, %36, %40 : vector<64x256xi1>, vector<64x256xf32>
    %42 = arith.truncf %41 : vector<64x256xf32> to vector<64x256xbf16>
    %cst_34 = arith.constant 0.000000e+00 : f32
    %43 = vector.broadcast %cst_34 : f32 to vector<32x256xf32>
    %c0_35 = arith.constant 0 : index
    %c0_36 = arith.constant 0 : index
    %c0_37 = arith.constant 0 : index
    %44 = vector.load %arg4[%c0_35, %c0_36, %c0_37] : memref<4x32x64xbf16, #tpu.memory_space<vmem>>, vector<1x32x64xbf16>
    %45 = vector.shape_cast %44 : vector<1x32x64xbf16> to vector<32x64xbf16>
    %cst_38 = arith.constant dense<0.000000e+00> : vector<32x256xf32>
    %46 = tpu.matmul %45, %42, %cst_38 {dimension_numbers = #tpu.dot_dimension_numbers<[1], [0], [0], [1], [0, 0, 1, 1], [], []>} : vector<32x64xbf16>, vector<64x256xbf16>, vector<32x256xf32> -> vector<32x256xf32>
    %47 = arith.truncf %46 : vector<32x256xf32> to vector<32x256xbf16>
    %c0_39 = arith.constant 0 : index
    %c0_40 = arith.constant 0 : index
    %c0_41 = arith.constant 0 : index
    %48 = vector.load %arg5[%c0_39, %c0_40, %c0_41] : memref<4x256x256xbf16, #tpu.memory_space<vmem>>, vector<1x256x256xbf16>
    %49 = vector.shape_cast %48 : vector<1x256x256xbf16> to vector<256x256xbf16>
    %cst_42 = arith.constant dense<0.000000e+00> : vector<32x256xf32>
    %50 = tpu.matmul %47, %49, %cst_42 {dimension_numbers = #tpu.dot_dimension_numbers<[1], [0], [0], [1], [0, 0, 1, 1], [], []>} : vector<32x256xbf16>, vector<256x256xbf16>, vector<32x256xf32> -> vector<32x256xf32>
    %51 = arith.addf %43, %50 : vector<32x256xf32>
    %c1_43 = arith.constant 1 : index
    %c0_44 = arith.constant 0 : index
    %c0_45 = arith.constant 0 : index
    %52 = vector.load %arg4[%c1_43, %c0_44, %c0_45] : memref<4x32x64xbf16, #tpu.memory_space<vmem>>, vector<1x32x64xbf16>
    %53 = vector.shape_cast %52 : vector<1x32x64xbf16> to vector<32x64xbf16>
    %cst_46 = arith.constant dense<0.000000e+00> : vector<32x256xf32>
    %54 = tpu.matmul %53, %42, %cst_46 {dimension_numbers = #tpu.dot_dimension_numbers<[1], [0], [0], [1], [0, 0, 1, 1], [], []>} : vector<32x64xbf16>, vector<64x256xbf16>, vector<32x256xf32> -> vector<32x256xf32>
    %55 = arith.truncf %54 : vector<32x256xf32> to vector<32x256xbf16>
    %c1_47 = arith.constant 1 : index
    %c0_48 = arith.constant 0 : index
    %c0_49 = arith.constant 0 : index
    %56 = vector.load %arg5[%c1_47, %c0_48, %c0_49] : memref<4x256x256xbf16, #tpu.memory_space<vmem>>, vector<1x256x256xbf16>
    %57 = vector.shape_cast %56 : vector<1x256x256xbf16> to vector<256x256xbf16>
    %cst_50 = arith.constant dense<0.000000e+00> : vector<32x256xf32>
    %58 = tpu.matmul %55, %57, %cst_50 {dimension_numbers = #tpu.dot_dimension_numbers<[1], [0], [0], [1], [0, 0, 1, 1], [], []>} : vector<32x256xbf16>, vector<256x256xbf16>, vector<32x256xf32> -> vector<32x256xf32>
    %59 = arith.addf %51, %58 : vector<32x256xf32>
    %c2_51 = arith.constant 2 : index
    %c0_52 = arith.constant 0 : index
    %c0_53 = arith.constant 0 : index
    %60 = vector.load %arg4[%c2_51, %c0_52, %c0_53] : memref<4x32x64xbf16, #tpu.memory_space<vmem>>, vector<1x32x64xbf16>
    %61 = vector.shape_cast %60 : vector<1x32x64xbf16> to vector<32x64xbf16>
    %cst_54 = arith.constant dense<0.000000e+00> : vector<32x256xf32>
    %62 = tpu.matmul %61, %42, %cst_54 {dimension_numbers = #tpu.dot_dimension_numbers<[1], [0], [0], [1], [0, 0, 1, 1], [], []>} : vector<32x64xbf16>, vector<64x256xbf16>, vector<32x256xf32> -> vector<32x256xf32>
    %63 = arith.truncf %62 : vector<32x256xf32> to vector<32x256xbf16>
    %c2_55 = arith.constant 2 : index
    %c0_56 = arith.constant 0 : index
    %c0_57 = arith.constant 0 : index
    %64 = vector.load %arg5[%c2_55, %c0_56, %c0_57] : memref<4x256x256xbf16, #tpu.memory_space<vmem>>, vector<1x256x256xbf16>
    %65 = vector.shape_cast %64 : vector<1x256x256xbf16> to vector<256x256xbf16>
    %cst_58 = arith.constant dense<0.000000e+00> : vector<32x256xf32>
    %66 = tpu.matmul %63, %65, %cst_58 {dimension_numbers = #tpu.dot_dimension_numbers<[1], [0], [0], [1], [0, 0, 1, 1], [], []>} : vector<32x256xbf16>, vector<256x256xbf16>, vector<32x256xf32> -> vector<32x256xf32>
    %67 = arith.addf %59, %66 : vector<32x256xf32>
    %c3_59 = arith.constant 3 : index
    %c0_60 = arith.constant 0 : index
    %c0_61 = arith.constant 0 : index
    %68 = vector.load %arg4[%c3_59, %c0_60, %c0_61] : memref<4x32x64xbf16, #tpu.memory_space<vmem>>, vector<1x32x64xbf16>
    %69 = vector.shape_cast %68 : vector<1x32x64xbf16> to vector<32x64xbf16>
    %cst_62 = arith.constant dense<0.000000e+00> : vector<32x256xf32>
    %70 = tpu.matmul %69, %42, %cst_62 {dimension_numbers = #tpu.dot_dimension_numbers<[1], [0], [0], [1], [0, 0, 1, 1], [], []>} : vector<32x64xbf16>, vector<64x256xbf16>, vector<32x256xf32> -> vector<32x256xf32>
    %71 = arith.truncf %70 : vector<32x256xf32> to vector<32x256xbf16>
    %c3_63 = arith.constant 3 : index
    %c0_64 = arith.constant 0 : index
    %c0_65 = arith.constant 0 : index
    %72 = vector.load %arg5[%c3_63, %c0_64, %c0_65] : memref<4x256x256xbf16, #tpu.memory_space<vmem>>, vector<1x256x256xbf16>
    %73 = vector.shape_cast %72 : vector<1x256x256xbf16> to vector<256x256xbf16>
    %cst_66 = arith.constant dense<0.000000e+00> : vector<32x256xf32>
    %74 = tpu.matmul %71, %73, %cst_66 {dimension_numbers = #tpu.dot_dimension_numbers<[1], [0], [0], [1], [0, 0, 1, 1], [], []>} : vector<32x256xbf16>, vector<256x256xbf16>, vector<32x256xf32> -> vector<32x256xf32>
    %75 = arith.addf %67, %74 : vector<32x256xf32>
    %cst_67 = arith.constant dense<0.000000e+00> : vector<256xf32>
    %76 = vector.multi_reduction <add>, %75, %cst_67 [0] : vector<32x256xf32> to vector<256xf32>
    %77 = vector.shape_cast %76 : vector<256xf32> to vector<1x256xf32>
    %78 = arith.mulf %75, %75 : vector<32x256xf32>
    %cst_68 = arith.constant dense<0.000000e+00> : vector<256xf32>
    %79 = vector.multi_reduction <add>, %78, %cst_68 [0] : vector<32x256xf32> to vector<256xf32>
    %80 = vector.shape_cast %79 : vector<256xf32> to vector<1x256xf32>
    %c0_69 = arith.constant 0 : index
    %c0_70 = arith.constant 0 : index
    %81 = vector.load %arg8[%c0_69, %c0_70] : memref<256x16xf32, #tpu.memory_space<vmem>>, vector<256x16xf32>
    %cst_71 = arith.constant dense<0.000000e+00> : vector<1x16xf32>
    %82 = tpu.matmul %77, %81, %cst_71 {dimension_numbers = #tpu.dot_dimension_numbers<[1], [0], [0], [1], [0, 0, 1, 1], [], []>} : vector<1x256xf32>, vector<256x16xf32>, vector<1x16xf32> -> vector<1x16xf32>
    %c0_72 = arith.constant 0 : index
    %c0_73 = arith.constant 0 : index
    %83 = vector.load %arg8[%c0_72, %c0_73] : memref<256x16xf32, #tpu.memory_space<vmem>>, vector<256x16xf32>
    %cst_74 = arith.constant dense<0.000000e+00> : vector<1x16xf32>
    %84 = tpu.matmul %80, %83, %cst_74 {dimension_numbers = #tpu.dot_dimension_numbers<[1], [0], [0], [1], [0, 0, 1, 1], [], []>} : vector<1x256xf32>, vector<256x16xf32>, vector<1x16xf32> -> vector<1x16xf32>
    %cst_75 = arith.constant 0.001953125 : f32
    %85 = vector.broadcast %cst_75 : f32 to vector<1x16xf32>
    %86 = arith.mulf %82, %85 : vector<1x16xf32>
    %cst_76 = arith.constant 0.001953125 : f32
    %87 = vector.broadcast %cst_76 : f32 to vector<1x16xf32>
    %88 = arith.mulf %84, %87 : vector<1x16xf32>
    %89 = arith.mulf %86, %86 : vector<1x16xf32>
    %90 = arith.subf %88, %89 : vector<1x16xf32>
    %cst_77 = arith.constant 9.99999974E-6 : f32
    %91 = vector.broadcast %cst_77 : f32 to vector<1x16xf32>
    %92 = arith.addf %90, %91 : vector<1x16xf32>
    %93 = math.rsqrt %92 : vector<1x16xf32>
    %c0_78 = arith.constant 0 : index
    %c0_79 = arith.constant 0 : index
    %94 = vector.load %arg6[%c0_78, %c0_79] : memref<1x16xf32, #tpu.memory_space<vmem>>, vector<1x16xf32>
    %95 = arith.mulf %94, %93 : vector<1x16xf32>
    %c0_80 = arith.constant 0 : index
    %c0_81 = arith.constant 0 : index
    %96 = vector.load %arg7[%c0_80, %c0_81] : memref<1x16xf32, #tpu.memory_space<vmem>>, vector<1x16xf32>
    %97 = arith.mulf %86, %95 : vector<1x16xf32>
    %98 = arith.subf %96, %97 : vector<1x16xf32>
    %c0_82 = arith.constant 0 : index
    %c0_83 = arith.constant 0 : index
    %99 = vector.load %arg9[%c0_82, %c0_83] : memref<16x256xf32, #tpu.memory_space<vmem>>, vector<16x256xf32>
    %cst_84 = arith.constant dense<0.000000e+00> : vector<1x256xf32>
    %100 = tpu.matmul %95, %99, %cst_84 {dimension_numbers = #tpu.dot_dimension_numbers<[1], [0], [0], [1], [0, 0, 1, 1], [], []>} : vector<1x16xf32>, vector<16x256xf32>, vector<1x256xf32> -> vector<1x256xf32>
    %c0_85 = arith.constant 0 : index
    %c0_86 = arith.constant 0 : index
    %101 = vector.load %arg9[%c0_85, %c0_86] : memref<16x256xf32, #tpu.memory_space<vmem>>, vector<16x256xf32>
    %cst_87 = arith.constant dense<0.000000e+00> : vector<1x256xf32>
    %102 = tpu.matmul %98, %101, %cst_87 {dimension_numbers = #tpu.dot_dimension_numbers<[1], [0], [0], [1], [0, 0, 1, 1], [], []>} : vector<1x16xf32>, vector<16x256xf32>, vector<1x256xf32> -> vector<1x256xf32>
    %103 = vector.broadcast %100 : vector<1x256xf32> to vector<32x256xf32>
    %104 = arith.mulf %75, %103 : vector<32x256xf32>
    %105 = vector.broadcast %102 : vector<1x256xf32> to vector<32x256xf32>
    %106 = arith.addf %104, %105 : vector<32x256xf32>
    %cst_88 = arith.constant 0.000000e+00 : f32
    %107 = vector.broadcast %cst_88 : f32 to vector<32x256xf32>
    %108 = arith.cmpf oge, %106, %107 : vector<32x256xf32>
    %cst_89 = arith.constant 2.000000e-01 : f32
    %109 = vector.broadcast %cst_89 : f32 to vector<32x256xf32>
    %110 = arith.mulf %109, %106 : vector<32x256xf32>
    %111 = arith.select %108, %106, %110 : vector<32x256xi1>, vector<32x256xf32>
    %112 = arith.truncf %111 : vector<32x256xf32> to vector<32x256xbf16>
    %cst_90 = arith.constant 0.000000e+00 : f32
    %113 = vector.broadcast %cst_90 : f32 to vector<16x256xf32>
    %c0_91 = arith.constant 0 : index
    %c0_92 = arith.constant 0 : index
    %c0_93 = arith.constant 0 : index
    %114 = vector.load %arg10[%c0_91, %c0_92, %c0_93] : memref<4x16x32xbf16, #tpu.memory_space<vmem>>, vector<1x16x32xbf16>
    %115 = vector.shape_cast %114 : vector<1x16x32xbf16> to vector<16x32xbf16>
    %cst_94 = arith.constant dense<0.000000e+00> : vector<16x256xf32>
    %116 = tpu.matmul %115, %112, %cst_94 {dimension_numbers = #tpu.dot_dimension_numbers<[1], [0], [0], [1], [0, 0, 1, 1], [], []>} : vector<16x32xbf16>, vector<32x256xbf16>, vector<16x256xf32> -> vector<16x256xf32>
    %117 = arith.truncf %116 : vector<16x256xf32> to vector<16x256xbf16>
    %c0_95 = arith.constant 0 : index
    %c0_96 = arith.constant 0 : index
    %c0_97 = arith.constant 0 : index
    %118 = vector.load %arg11[%c0_95, %c0_96, %c0_97] : memref<4x256x256xbf16, #tpu.memory_space<vmem>>, vector<1x256x256xbf16>
    %119 = vector.shape_cast %118 : vector<1x256x256xbf16> to vector<256x256xbf16>
    %cst_98 = arith.constant dense<0.000000e+00> : vector<16x256xf32>
    %120 = tpu.matmul %117, %119, %cst_98 {dimension_numbers = #tpu.dot_dimension_numbers<[1], [0], [0], [1], [0, 0, 1, 1], [], []>} : vector<16x256xbf16>, vector<256x256xbf16>, vector<16x256xf32> -> vector<16x256xf32>
    %121 = arith.addf %113, %120 : vector<16x256xf32>
    %c1_99 = arith.constant 1 : index
    %c0_100 = arith.constant 0 : index
    %c0_101 = arith.constant 0 : index
    %122 = vector.load %arg10[%c1_99, %c0_100, %c0_101] : memref<4x16x32xbf16, #tpu.memory_space<vmem>>, vector<1x16x32xbf16>
    %123 = vector.shape_cast %122 : vector<1x16x32xbf16> to vector<16x32xbf16>
    %cst_102 = arith.constant dense<0.000000e+00> : vector<16x256xf32>
    %124 = tpu.matmul %123, %112, %cst_102 {dimension_numbers = #tpu.dot_dimension_numbers<[1], [0], [0], [1], [0, 0, 1, 1], [], []>} : vector<16x32xbf16>, vector<32x256xbf16>, vector<16x256xf32> -> vector<16x256xf32>
    %125 = arith.truncf %124 : vector<16x256xf32> to vector<16x256xbf16>
    %c1_103 = arith.constant 1 : index
    %c0_104 = arith.constant 0 : index
    %c0_105 = arith.constant 0 : index
    %126 = vector.load %arg11[%c1_103, %c0_104, %c0_105] : memref<4x256x256xbf16, #tpu.memory_space<vmem>>, vector<1x256x256xbf16>
    %127 = vector.shape_cast %126 : vector<1x256x256xbf16> to vector<256x256xbf16>
    %cst_106 = arith.constant dense<0.000000e+00> : vector<16x256xf32>
    %128 = tpu.matmul %125, %127, %cst_106 {dimension_numbers = #tpu.dot_dimension_numbers<[1], [0], [0], [1], [0, 0, 1, 1], [], []>} : vector<16x256xbf16>, vector<256x256xbf16>, vector<16x256xf32> -> vector<16x256xf32>
    %129 = arith.addf %121, %128 : vector<16x256xf32>
    %c2_107 = arith.constant 2 : index
    %c0_108 = arith.constant 0 : index
    %c0_109 = arith.constant 0 : index
    %130 = vector.load %arg10[%c2_107, %c0_108, %c0_109] : memref<4x16x32xbf16, #tpu.memory_space<vmem>>, vector<1x16x32xbf16>
    %131 = vector.shape_cast %130 : vector<1x16x32xbf16> to vector<16x32xbf16>
    %cst_110 = arith.constant dense<0.000000e+00> : vector<16x256xf32>
    %132 = tpu.matmul %131, %112, %cst_110 {dimension_numbers = #tpu.dot_dimension_numbers<[1], [0], [0], [1], [0, 0, 1, 1], [], []>} : vector<16x32xbf16>, vector<32x256xbf16>, vector<16x256xf32> -> vector<16x256xf32>
    %133 = arith.truncf %132 : vector<16x256xf32> to vector<16x256xbf16>
    %c2_111 = arith.constant 2 : index
    %c0_112 = arith.constant 0 : index
    %c0_113 = arith.constant 0 : index
    %134 = vector.load %arg11[%c2_111, %c0_112, %c0_113] : memref<4x256x256xbf16, #tpu.memory_space<vmem>>, vector<1x256x256xbf16>
    %135 = vector.shape_cast %134 : vector<1x256x256xbf16> to vector<256x256xbf16>
    %cst_114 = arith.constant dense<0.000000e+00> : vector<16x256xf32>
    %136 = tpu.matmul %133, %135, %cst_114 {dimension_numbers = #tpu.dot_dimension_numbers<[1], [0], [0], [1], [0, 0, 1, 1], [], []>} : vector<16x256xbf16>, vector<256x256xbf16>, vector<16x256xf32> -> vector<16x256xf32>
    %137 = arith.addf %129, %136 : vector<16x256xf32>
    %c3_115 = arith.constant 3 : index
    %c0_116 = arith.constant 0 : index
    %c0_117 = arith.constant 0 : index
    %138 = vector.load %arg10[%c3_115, %c0_116, %c0_117] : memref<4x16x32xbf16, #tpu.memory_space<vmem>>, vector<1x16x32xbf16>
    %139 = vector.shape_cast %138 : vector<1x16x32xbf16> to vector<16x32xbf16>
    %cst_118 = arith.constant dense<0.000000e+00> : vector<16x256xf32>
    %140 = tpu.matmul %139, %112, %cst_118 {dimension_numbers = #tpu.dot_dimension_numbers<[1], [0], [0], [1], [0, 0, 1, 1], [], []>} : vector<16x32xbf16>, vector<32x256xbf16>, vector<16x256xf32> -> vector<16x256xf32>
    %141 = arith.truncf %140 : vector<16x256xf32> to vector<16x256xbf16>
    %c3_119 = arith.constant 3 : index
    %c0_120 = arith.constant 0 : index
    %c0_121 = arith.constant 0 : index
    %142 = vector.load %arg11[%c3_119, %c0_120, %c0_121] : memref<4x256x256xbf16, #tpu.memory_space<vmem>>, vector<1x256x256xbf16>
    %143 = vector.shape_cast %142 : vector<1x256x256xbf16> to vector<256x256xbf16>
    %cst_122 = arith.constant dense<0.000000e+00> : vector<16x256xf32>
    %144 = tpu.matmul %141, %143, %cst_122 {dimension_numbers = #tpu.dot_dimension_numbers<[1], [0], [0], [1], [0, 0, 1, 1], [], []>} : vector<16x256xbf16>, vector<256x256xbf16>, vector<16x256xf32> -> vector<16x256xf32>
    %145 = arith.addf %137, %144 : vector<16x256xf32>
    %cst_123 = arith.constant dense<0.000000e+00> : vector<256xf32>
    %146 = vector.multi_reduction <add>, %145, %cst_123 [0] : vector<16x256xf32> to vector<256xf32>
    %147 = vector.shape_cast %146 : vector<256xf32> to vector<1x256xf32>
    %148 = arith.mulf %145, %145 : vector<16x256xf32>
    %cst_124 = arith.constant dense<0.000000e+00> : vector<256xf32>
    %149 = vector.multi_reduction <add>, %148, %cst_124 [0] : vector<16x256xf32> to vector<256xf32>
    %150 = vector.shape_cast %149 : vector<256xf32> to vector<1x256xf32>
    %c0_125 = arith.constant 0 : index
    %c0_126 = arith.constant 0 : index
    %151 = vector.load %arg14[%c0_125, %c0_126] : memref<256x32xf32, #tpu.memory_space<vmem>>, vector<256x32xf32>
    %cst_127 = arith.constant dense<0.000000e+00> : vector<1x32xf32>
    %152 = tpu.matmul %147, %151, %cst_127 {dimension_numbers = #tpu.dot_dimension_numbers<[1], [0], [0], [1], [0, 0, 1, 1], [], []>} : vector<1x256xf32>, vector<256x32xf32>, vector<1x32xf32> -> vector<1x32xf32>
    %c0_128 = arith.constant 0 : index
    %c0_129 = arith.constant 0 : index
    %153 = vector.load %arg14[%c0_128, %c0_129] : memref<256x32xf32, #tpu.memory_space<vmem>>, vector<256x32xf32>
    %cst_130 = arith.constant dense<0.000000e+00> : vector<1x32xf32>
    %154 = tpu.matmul %150, %153, %cst_130 {dimension_numbers = #tpu.dot_dimension_numbers<[1], [0], [0], [1], [0, 0, 1, 1], [], []>} : vector<1x256xf32>, vector<256x32xf32>, vector<1x32xf32> -> vector<1x32xf32>
    %cst_131 = arith.constant 7.812500e-03 : f32
    %155 = vector.broadcast %cst_131 : f32 to vector<1x32xf32>
    %156 = arith.mulf %152, %155 : vector<1x32xf32>
    %cst_132 = arith.constant 7.812500e-03 : f32
    %157 = vector.broadcast %cst_132 : f32 to vector<1x32xf32>
    %158 = arith.mulf %154, %157 : vector<1x32xf32>
    %159 = arith.mulf %156, %156 : vector<1x32xf32>
    %160 = arith.subf %158, %159 : vector<1x32xf32>
    %cst_133 = arith.constant 9.99999974E-6 : f32
    %161 = vector.broadcast %cst_133 : f32 to vector<1x32xf32>
    %162 = arith.addf %160, %161 : vector<1x32xf32>
    %163 = math.rsqrt %162 : vector<1x32xf32>
    %c0_134 = arith.constant 0 : index
    %c0_135 = arith.constant 0 : index
    %164 = vector.load %arg12[%c0_134, %c0_135] : memref<1x32xf32, #tpu.memory_space<vmem>>, vector<1x32xf32>
    %165 = arith.mulf %164, %163 : vector<1x32xf32>
    %c0_136 = arith.constant 0 : index
    %c0_137 = arith.constant 0 : index
    %166 = vector.load %arg13[%c0_136, %c0_137] : memref<1x32xf32, #tpu.memory_space<vmem>>, vector<1x32xf32>
    %167 = arith.mulf %156, %165 : vector<1x32xf32>
    %168 = arith.subf %166, %167 : vector<1x32xf32>
    %c0_138 = arith.constant 0 : index
    %c0_139 = arith.constant 0 : index
    %169 = vector.load %arg15[%c0_138, %c0_139] : memref<32x256xf32, #tpu.memory_space<vmem>>, vector<32x256xf32>
    %cst_140 = arith.constant dense<0.000000e+00> : vector<1x256xf32>
    %170 = tpu.matmul %165, %169, %cst_140 {dimension_numbers = #tpu.dot_dimension_numbers<[1], [0], [0], [1], [0, 0, 1, 1], [], []>} : vector<1x32xf32>, vector<32x256xf32>, vector<1x256xf32> -> vector<1x256xf32>
    %c0_141 = arith.constant 0 : index
    %c0_142 = arith.constant 0 : index
    %171 = vector.load %arg15[%c0_141, %c0_142] : memref<32x256xf32, #tpu.memory_space<vmem>>, vector<32x256xf32>
    %cst_143 = arith.constant dense<0.000000e+00> : vector<1x256xf32>
    %172 = tpu.matmul %168, %171, %cst_143 {dimension_numbers = #tpu.dot_dimension_numbers<[1], [0], [0], [1], [0, 0, 1, 1], [], []>} : vector<1x32xf32>, vector<32x256xf32>, vector<1x256xf32> -> vector<1x256xf32>
    %173 = vector.broadcast %170 : vector<1x256xf32> to vector<16x256xf32>
    %174 = arith.mulf %145, %173 : vector<16x256xf32>
    %175 = vector.broadcast %172 : vector<1x256xf32> to vector<16x256xf32>
    %176 = arith.addf %174, %175 : vector<16x256xf32>
    %cst_144 = arith.constant 0.000000e+00 : f32
    %177 = vector.broadcast %cst_144 : f32 to vector<16x256xf32>
    %178 = arith.cmpf oge, %176, %177 : vector<16x256xf32>
    %cst_145 = arith.constant 2.000000e-01 : f32
    %179 = vector.broadcast %cst_145 : f32 to vector<16x256xf32>
    %180 = arith.mulf %179, %176 : vector<16x256xf32>
    %181 = arith.select %178, %176, %180 : vector<16x256xi1>, vector<16x256xf32>
    %182 = arith.truncf %181 : vector<16x256xf32> to vector<16x256xbf16>
    %cst_146 = arith.constant 0.000000e+00 : f32
    %183 = vector.broadcast %cst_146 : f32 to vector<8x256xf32>
    %c0_147 = arith.constant 0 : index
    %c0_148 = arith.constant 0 : index
    %c0_149 = arith.constant 0 : index
    %184 = vector.load %arg16[%c0_147, %c0_148, %c0_149] : memref<4x8x16xbf16, #tpu.memory_space<vmem>>, vector<1x8x16xbf16>
    %185 = vector.shape_cast %184 : vector<1x8x16xbf16> to vector<8x16xbf16>
    %cst_150 = arith.constant dense<0.000000e+00> : vector<8x256xf32>
    %186 = tpu.matmul %185, %182, %cst_150 {dimension_numbers = #tpu.dot_dimension_numbers<[1], [0], [0], [1], [0, 0, 1, 1], [], []>} : vector<8x16xbf16>, vector<16x256xbf16>, vector<8x256xf32> -> vector<8x256xf32>
    %187 = arith.truncf %186 : vector<8x256xf32> to vector<8x256xbf16>
    %c0_151 = arith.constant 0 : index
    %c0_152 = arith.constant 0 : index
    %c0_153 = arith.constant 0 : index
    %188 = vector.load %arg17[%c0_151, %c0_152, %c0_153] : memref<4x256x256xbf16, #tpu.memory_space<vmem>>, vector<1x256x256xbf16>
    %189 = vector.shape_cast %188 : vector<1x256x256xbf16> to vector<256x256xbf16>
    %cst_154 = arith.constant dense<0.000000e+00> : vector<8x256xf32>
    %190 = tpu.matmul %187, %189, %cst_154 {dimension_numbers = #tpu.dot_dimension_numbers<[1], [0], [0], [1], [0, 0, 1, 1], [], []>} : vector<8x256xbf16>, vector<256x256xbf16>, vector<8x256xf32> -> vector<8x256xf32>
    %191 = arith.addf %183, %190 : vector<8x256xf32>
    %c1_155 = arith.constant 1 : index
    %c0_156 = arith.constant 0 : index
    %c0_157 = arith.constant 0 : index
    %192 = vector.load %arg16[%c1_155, %c0_156, %c0_157] : memref<4x8x16xbf16, #tpu.memory_space<vmem>>, vector<1x8x16xbf16>
    %193 = vector.shape_cast %192 : vector<1x8x16xbf16> to vector<8x16xbf16>
    %cst_158 = arith.constant dense<0.000000e+00> : vector<8x256xf32>
    %194 = tpu.matmul %193, %182, %cst_158 {dimension_numbers = #tpu.dot_dimension_numbers<[1], [0], [0], [1], [0, 0, 1, 1], [], []>} : vector<8x16xbf16>, vector<16x256xbf16>, vector<8x256xf32> -> vector<8x256xf32>
    %195 = arith.truncf %194 : vector<8x256xf32> to vector<8x256xbf16>
    %c1_159 = arith.constant 1 : index
    %c0_160 = arith.constant 0 : index
    %c0_161 = arith.constant 0 : index
    %196 = vector.load %arg17[%c1_159, %c0_160, %c0_161] : memref<4x256x256xbf16, #tpu.memory_space<vmem>>, vector<1x256x256xbf16>
    %197 = vector.shape_cast %196 : vector<1x256x256xbf16> to vector<256x256xbf16>
    %cst_162 = arith.constant dense<0.000000e+00> : vector<8x256xf32>
    %198 = tpu.matmul %195, %197, %cst_162 {dimension_numbers = #tpu.dot_dimension_numbers<[1], [0], [0], [1], [0, 0, 1, 1], [], []>} : vector<8x256xbf16>, vector<256x256xbf16>, vector<8x256xf32> -> vector<8x256xf32>
    %199 = arith.addf %191, %198 : vector<8x256xf32>
    %c2_163 = arith.constant 2 : index
    %c0_164 = arith.constant 0 : index
    %c0_165 = arith.constant 0 : index
    %200 = vector.load %arg16[%c2_163, %c0_164, %c0_165] : memref<4x8x16xbf16, #tpu.memory_space<vmem>>, vector<1x8x16xbf16>
    %201 = vector.shape_cast %200 : vector<1x8x16xbf16> to vector<8x16xbf16>
    %cst_166 = arith.constant dense<0.000000e+00> : vector<8x256xf32>
    %202 = tpu.matmul %201, %182, %cst_166 {dimension_numbers = #tpu.dot_dimension_numbers<[1], [0], [0], [1], [0, 0, 1, 1], [], []>} : vector<8x16xbf16>, vector<16x256xbf16>, vector<8x256xf32> -> vector<8x256xf32>
    %203 = arith.truncf %202 : vector<8x256xf32> to vector<8x256xbf16>
    %c2_167 = arith.constant 2 : index
    %c0_168 = arith.constant 0 : index
    %c0_169 = arith.constant 0 : index
    %204 = vector.load %arg17[%c2_167, %c0_168, %c0_169] : memref<4x256x256xbf16, #tpu.memory_space<vmem>>, vector<1x256x256xbf16>
    %205 = vector.shape_cast %204 : vector<1x256x256xbf16> to vector<256x256xbf16>
    %cst_170 = arith.constant dense<0.000000e+00> : vector<8x256xf32>
    %206 = tpu.matmul %203, %205, %cst_170 {dimension_numbers = #tpu.dot_dimension_numbers<[1], [0], [0], [1], [0, 0, 1, 1], [], []>} : vector<8x256xbf16>, vector<256x256xbf16>, vector<8x256xf32> -> vector<8x256xf32>
    %207 = arith.addf %199, %206 : vector<8x256xf32>
    %c3_171 = arith.constant 3 : index
    %c0_172 = arith.constant 0 : index
    %c0_173 = arith.constant 0 : index
    %208 = vector.load %arg16[%c3_171, %c0_172, %c0_173] : memref<4x8x16xbf16, #tpu.memory_space<vmem>>, vector<1x8x16xbf16>
    %209 = vector.shape_cast %208 : vector<1x8x16xbf16> to vector<8x16xbf16>
    %cst_174 = arith.constant dense<0.000000e+00> : vector<8x256xf32>
    %210 = tpu.matmul %209, %182, %cst_174 {dimension_numbers = #tpu.dot_dimension_numbers<[1], [0], [0], [1], [0, 0, 1, 1], [], []>} : vector<8x16xbf16>, vector<16x256xbf16>, vector<8x256xf32> -> vector<8x256xf32>
    %211 = arith.truncf %210 : vector<8x256xf32> to vector<8x256xbf16>
    %c3_175 = arith.constant 3 : index
    %c0_176 = arith.constant 0 : index
    %c0_177 = arith.constant 0 : index
    %212 = vector.load %arg17[%c3_175, %c0_176, %c0_177] : memref<4x256x256xbf16, #tpu.memory_space<vmem>>, vector<1x256x256xbf16>
    %213 = vector.shape_cast %212 : vector<1x256x256xbf16> to vector<256x256xbf16>
    %cst_178 = arith.constant dense<0.000000e+00> : vector<8x256xf32>
    %214 = tpu.matmul %211, %213, %cst_178 {dimension_numbers = #tpu.dot_dimension_numbers<[1], [0], [0], [1], [0, 0, 1, 1], [], []>} : vector<8x256xbf16>, vector<256x256xbf16>, vector<8x256xf32> -> vector<8x256xf32>
    %215 = arith.addf %207, %214 : vector<8x256xf32>
    %cst_179 = arith.constant dense<0.000000e+00> : vector<256xf32>
    %216 = vector.multi_reduction <add>, %215, %cst_179 [0] : vector<8x256xf32> to vector<256xf32>
    %217 = vector.shape_cast %216 : vector<256xf32> to vector<1x256xf32>
    %218 = arith.mulf %215, %215 : vector<8x256xf32>
    %cst_180 = arith.constant dense<0.000000e+00> : vector<256xf32>
    %219 = vector.multi_reduction <add>, %218, %cst_180 [0] : vector<8x256xf32> to vector<256xf32>
    %220 = vector.shape_cast %219 : vector<256xf32> to vector<1x256xf32>
    %c0_181 = arith.constant 0 : index
    %c0_182 = arith.constant 0 : index
    %221 = vector.load %arg20[%c0_181, %c0_182] : memref<256x64xf32, #tpu.memory_space<vmem>>, vector<256x64xf32>
    %cst_183 = arith.constant dense<0.000000e+00> : vector<1x64xf32>
    %222 = tpu.matmul %217, %221, %cst_183 {dimension_numbers = #tpu.dot_dimension_numbers<[1], [0], [0], [1], [0, 0, 1, 1], [], []>} : vector<1x256xf32>, vector<256x64xf32>, vector<1x64xf32> -> vector<1x64xf32>
    %c0_184 = arith.constant 0 : index
    %c0_185 = arith.constant 0 : index
    %223 = vector.load %arg20[%c0_184, %c0_185] : memref<256x64xf32, #tpu.memory_space<vmem>>, vector<256x64xf32>
    %cst_186 = arith.constant dense<0.000000e+00> : vector<1x64xf32>
    %224 = tpu.matmul %220, %223, %cst_186 {dimension_numbers = #tpu.dot_dimension_numbers<[1], [0], [0], [1], [0, 0, 1, 1], [], []>} : vector<1x256xf32>, vector<256x64xf32>, vector<1x64xf32> -> vector<1x64xf32>
    %cst_187 = arith.constant 3.125000e-02 : f32
    %225 = vector.broadcast %cst_187 : f32 to vector<1x64xf32>
    %226 = arith.mulf %222, %225 : vector<1x64xf32>
    %cst_188 = arith.constant 3.125000e-02 : f32
    %227 = vector.broadcast %cst_188 : f32 to vector<1x64xf32>
    %228 = arith.mulf %224, %227 : vector<1x64xf32>
    %229 = arith.mulf %226, %226 : vector<1x64xf32>
    %230 = arith.subf %228, %229 : vector<1x64xf32>
    %cst_189 = arith.constant 9.99999974E-6 : f32
    %231 = vector.broadcast %cst_189 : f32 to vector<1x64xf32>
    %232 = arith.addf %230, %231 : vector<1x64xf32>
    %233 = math.rsqrt %232 : vector<1x64xf32>
    %c0_190 = arith.constant 0 : index
    %c0_191 = arith.constant 0 : index
    %234 = vector.load %arg18[%c0_190, %c0_191] : memref<1x64xf32, #tpu.memory_space<vmem>>, vector<1x64xf32>
    %235 = arith.mulf %234, %233 : vector<1x64xf32>
    %c0_192 = arith.constant 0 : index
    %c0_193 = arith.constant 0 : index
    %236 = vector.load %arg19[%c0_192, %c0_193] : memref<1x64xf32, #tpu.memory_space<vmem>>, vector<1x64xf32>
    %237 = arith.mulf %226, %235 : vector<1x64xf32>
    %238 = arith.subf %236, %237 : vector<1x64xf32>
    %c0_194 = arith.constant 0 : index
    %c0_195 = arith.constant 0 : index
    %239 = vector.load %arg21[%c0_194, %c0_195] : memref<64x256xf32, #tpu.memory_space<vmem>>, vector<64x256xf32>
    %cst_196 = arith.constant dense<0.000000e+00> : vector<1x256xf32>
    %240 = tpu.matmul %235, %239, %cst_196 {dimension_numbers = #tpu.dot_dimension_numbers<[1], [0], [0], [1], [0, 0, 1, 1], [], []>} : vector<1x64xf32>, vector<64x256xf32>, vector<1x256xf32> -> vector<1x256xf32>
    %c0_197 = arith.constant 0 : index
    %c0_198 = arith.constant 0 : index
    %241 = vector.load %arg21[%c0_197, %c0_198] : memref<64x256xf32, #tpu.memory_space<vmem>>, vector<64x256xf32>
    %cst_199 = arith.constant dense<0.000000e+00> : vector<1x256xf32>
    %242 = tpu.matmul %238, %241, %cst_199 {dimension_numbers = #tpu.dot_dimension_numbers<[1], [0], [0], [1], [0, 0, 1, 1], [], []>} : vector<1x64xf32>, vector<64x256xf32>, vector<1x256xf32> -> vector<1x256xf32>
    %243 = vector.broadcast %240 : vector<1x256xf32> to vector<8x256xf32>
    %244 = arith.mulf %215, %243 : vector<8x256xf32>
    %245 = vector.broadcast %242 : vector<1x256xf32> to vector<8x256xf32>
    %246 = arith.addf %244, %245 : vector<8x256xf32>
    %cst_200 = arith.constant 0.000000e+00 : f32
    %247 = vector.broadcast %cst_200 : f32 to vector<8x256xf32>
    %248 = arith.cmpf oge, %246, %247 : vector<8x256xf32>
    %cst_201 = arith.constant 2.000000e-01 : f32
    %249 = vector.broadcast %cst_201 : f32 to vector<8x256xf32>
    %250 = arith.mulf %249, %246 : vector<8x256xf32>
    %251 = arith.select %248, %246, %250 : vector<8x256xi1>, vector<8x256xf32>
    %252 = arith.truncf %251 : vector<8x256xf32> to vector<8x256xbf16>
    %cst_202 = arith.constant 0.000000e+00 : f32
    %253 = vector.broadcast %cst_202 : f32 to vector<2x1xf32>
    %c0_203 = arith.constant 0 : index
    %c0_204 = arith.constant 0 : index
    %c0_205 = arith.constant 0 : index
    %254 = vector.load %arg22[%c0_203, %c0_204, %c0_205] : memref<4x2x8xbf16, #tpu.memory_space<vmem>>, vector<1x2x8xbf16>
    %255 = vector.shape_cast %254 : vector<1x2x8xbf16> to vector<2x8xbf16>
    %cst_206 = arith.constant dense<0.000000e+00> : vector<2x256xf32>
    %256 = tpu.matmul %255, %252, %cst_206 {dimension_numbers = #tpu.dot_dimension_numbers<[1], [0], [0], [1], [0, 0, 1, 1], [], []>} : vector<2x8xbf16>, vector<8x256xbf16>, vector<2x256xf32> -> vector<2x256xf32>
    %257 = arith.truncf %256 : vector<2x256xf32> to vector<2x256xbf16>
    %c0_207 = arith.constant 0 : index
    %c0_208 = arith.constant 0 : index
    %c0_209 = arith.constant 0 : index
    %258 = vector.load %arg23[%c0_207, %c0_208, %c0_209] : memref<4x256x1xbf16, #tpu.memory_space<vmem>>, vector<1x256x1xbf16>
    %259 = vector.shape_cast %258 : vector<1x256x1xbf16> to vector<256x1xbf16>
    %cst_210 = arith.constant dense<0.000000e+00> : vector<2x1xf32>
    %260 = tpu.matmul %257, %259, %cst_210 {dimension_numbers = #tpu.dot_dimension_numbers<[1], [0], [0], [1], [0, 0, 1, 1], [], []>} : vector<2x256xbf16>, vector<256x1xbf16>, vector<2x1xf32> -> vector<2x1xf32>
    %261 = arith.addf %253, %260 : vector<2x1xf32>
    %c1_211 = arith.constant 1 : index
    %c0_212 = arith.constant 0 : index
    %c0_213 = arith.constant 0 : index
    %262 = vector.load %arg22[%c1_211, %c0_212, %c0_213] : memref<4x2x8xbf16, #tpu.memory_space<vmem>>, vector<1x2x8xbf16>
    %263 = vector.shape_cast %262 : vector<1x2x8xbf16> to vector<2x8xbf16>
    %cst_214 = arith.constant dense<0.000000e+00> : vector<2x256xf32>
    %264 = tpu.matmul %263, %252, %cst_214 {dimension_numbers = #tpu.dot_dimension_numbers<[1], [0], [0], [1], [0, 0, 1, 1], [], []>} : vector<2x8xbf16>, vector<8x256xbf16>, vector<2x256xf32> -> vector<2x256xf32>
    %265 = arith.truncf %264 : vector<2x256xf32> to vector<2x256xbf16>
    %c1_215 = arith.constant 1 : index
    %c0_216 = arith.constant 0 : index
    %c0_217 = arith.constant 0 : index
    %266 = vector.load %arg23[%c1_215, %c0_216, %c0_217] : memref<4x256x1xbf16, #tpu.memory_space<vmem>>, vector<1x256x1xbf16>
    %267 = vector.shape_cast %266 : vector<1x256x1xbf16> to vector<256x1xbf16>
    %cst_218 = arith.constant dense<0.000000e+00> : vector<2x1xf32>
    %268 = tpu.matmul %265, %267, %cst_218 {dimension_numbers = #tpu.dot_dimension_numbers<[1], [0], [0], [1], [0, 0, 1, 1], [], []>} : vector<2x256xbf16>, vector<256x1xbf16>, vector<2x1xf32> -> vector<2x1xf32>
    %269 = arith.addf %261, %268 : vector<2x1xf32>
    %c2_219 = arith.constant 2 : index
    %c0_220 = arith.constant 0 : index
    %c0_221 = arith.constant 0 : index
    %270 = vector.load %arg22[%c2_219, %c0_220, %c0_221] : memref<4x2x8xbf16, #tpu.memory_space<vmem>>, vector<1x2x8xbf16>
    %271 = vector.shape_cast %270 : vector<1x2x8xbf16> to vector<2x8xbf16>
    %cst_222 = arith.constant dense<0.000000e+00> : vector<2x256xf32>
    %272 = tpu.matmul %271, %252, %cst_222 {dimension_numbers = #tpu.dot_dimension_numbers<[1], [0], [0], [1], [0, 0, 1, 1], [], []>} : vector<2x8xbf16>, vector<8x256xbf16>, vector<2x256xf32> -> vector<2x256xf32>
    %273 = arith.truncf %272 : vector<2x256xf32> to vector<2x256xbf16>
    %c2_223 = arith.constant 2 : index
    %c0_224 = arith.constant 0 : index
    %c0_225 = arith.constant 0 : index
    %274 = vector.load %arg23[%c2_223, %c0_224, %c0_225] : memref<4x256x1xbf16, #tpu.memory_space<vmem>>, vector<1x256x1xbf16>
    %275 = vector.shape_cast %274 : vector<1x256x1xbf16> to vector<256x1xbf16>
    %cst_226 = arith.constant dense<0.000000e+00> : vector<2x1xf32>
    %276 = tpu.matmul %273, %275, %cst_226 {dimension_numbers = #tpu.dot_dimension_numbers<[1], [0], [0], [1], [0, 0, 1, 1], [], []>} : vector<2x256xbf16>, vector<256x1xbf16>, vector<2x1xf32> -> vector<2x1xf32>
    %277 = arith.addf %269, %276 : vector<2x1xf32>
    %c3_227 = arith.constant 3 : index
    %c0_228 = arith.constant 0 : index
    %c0_229 = arith.constant 0 : index
    %278 = vector.load %arg22[%c3_227, %c0_228, %c0_229] : memref<4x2x8xbf16, #tpu.memory_space<vmem>>, vector<1x2x8xbf16>
    %279 = vector.shape_cast %278 : vector<1x2x8xbf16> to vector<2x8xbf16>
    %cst_230 = arith.constant dense<0.000000e+00> : vector<2x256xf32>
    %280 = tpu.matmul %279, %252, %cst_230 {dimension_numbers = #tpu.dot_dimension_numbers<[1], [0], [0], [1], [0, 0, 1, 1], [], []>} : vector<2x8xbf16>, vector<8x256xbf16>, vector<2x256xf32> -> vector<2x256xf32>
    %281 = arith.truncf %280 : vector<2x256xf32> to vector<2x256xbf16>
    %c3_231 = arith.constant 3 : index
    %c0_232 = arith.constant 0 : index
    %c0_233 = arith.constant 0 : index
    %282 = vector.load %arg23[%c3_231, %c0_232, %c0_233] : memref<4x256x1xbf16, #tpu.memory_space<vmem>>, vector<1x256x1xbf16>
    %283 = vector.shape_cast %282 : vector<1x256x1xbf16> to vector<256x1xbf16>
    %cst_234 = arith.constant dense<0.000000e+00> : vector<2x1xf32>
    %284 = tpu.matmul %281, %283, %cst_234 {dimension_numbers = #tpu.dot_dimension_numbers<[1], [0], [0], [1], [0, 0, 1, 1], [], []>} : vector<2x256xbf16>, vector<256x1xbf16>, vector<2x1xf32> -> vector<2x1xf32>
    %285 = arith.addf %277, %284 : vector<2x1xf32>
    %c0_235 = arith.constant 0 : index
    %c0_236 = arith.constant 0 : index
    %286 = vector.load %arg24[%c0_235, %c0_236] : memref<1x1xf32, #tpu.memory_space<vmem>>, vector<1x1xf32>
    %287 = vector.broadcast %286 : vector<1x1xf32> to vector<2x1xf32>
    %288 = arith.addf %285, %287 : vector<2x1xf32>
    %289 = arith.negf %288 : vector<2x1xf32>
    %290 = math.exp %289 : vector<2x1xf32>
    %cst_237 = arith.constant 1.000000e+00 : f32
    %291 = vector.broadcast %cst_237 : f32 to vector<2x1xf32>
    %292 = arith.addf %291, %290 : vector<2x1xf32>
    %293 = arith.divf %291, %292 : vector<2x1xf32>
    %c0_238 = arith.constant 0 : index
    %c0_239 = arith.constant 0 : index
    %294 = vector.load %arg25[%c0_238, %c0_239] : memref<2x1xf32, #tpu.memory_space<vmem>>, vector<2x1xf32>
    tpu.vector_store %arg25[%c0_238, %c0_239], %293 {strides = array<i32>} : memref<2x1xf32, #tpu.memory_space<vmem>>, vector<2x1xf32>,
    return
  }
}

</mosaic_0001>

<llo_original>
// kernel: tile.39
$region0: #{tile.39}
  %s0 = inlined_call_operand.vmem [shape: f32[4,64,64], index: 0, kind: input, shape index: {}]
  %s1 = inlined_call_operand.vmem [shape: f32[256,64], index: 1, kind: output, shape index: {}]
  $region1: #{tile.39} parent=0
    #allocation0 [shape = 'u8[262144]{0}', space=vmem, size = 0x40000, scoped, tag = 'scoped mem for input reshape']
    %s3 = sshll.u32 1, 4
    %s4 = ssub.s32 %s3, 1
    %s5 = smul.addr 4, 63
    %s6 = scalar_lea.vmem %s0, %s5
    %v7 = vld [vmem:[%s6] sm:%s4]
    %s8 = scalar_lea.vmem [#allocation0], 504
    %9 = vst [vmem:[%s8] sm:%s4] %v7
    %s10 = smul.addr 4, 62
    %s11 = scalar_lea.vmem %s0, %s10
    %v12 = vld [vmem:[%s11] sm:%s4]
    %s13 = scalar_lea.vmem [#allocation0], 496
    %14 = vst [vmem:[%s13] sm:%s4] %v12
    %s15 = smul.addr 4, 61
    %s16 = scalar_lea.vmem %s0, %s15
    %v17 = vld [vmem:[%s16] sm:%s4]
    %s18 = scalar_lea.vmem [#allocation0], 488
    %19 = vst [vmem:[%s18] sm:%s4] %v17
    %s20 = smul.addr 4, 60
    %s21 = scalar_lea.vmem %s0, %s20
    %v22 = vld [vmem:[%s21] sm:%s4]
    %s23 = scalar_lea.vmem [#allocation0], 480
    %24 = vst [vmem:[%s23] sm:%s4] %v22
    %s25 = smul.addr 4, 59
    %s26 = scalar_lea.vmem %s0, %s25
    %v27 = vld [vmem:[%s26] sm:%s4]
    %s28 = scalar_lea.vmem [#allocation0], 472
    %29 = vst [vmem:[%s28] sm:%s4] %v27
    %s30 = smul.addr 4, 58
    %s31 = scalar_lea.vmem %s0, %s30
    %v32 = vld [vmem:[%s31] sm:%s4]
    %s33 = scalar_lea.vmem [#allocation0], 464
    %34 = vst [vmem:[%s33] sm:%s4] %v32
    %s35 = smul.addr 4, 57
    %s36 = scalar_lea.vmem %s0, %s35
    %v37 = vld [vmem:[%s36] sm:%s4]
    %s38 = scalar_lea.vmem [#allocation0], 456
    %39 = vst [vmem:[%s38] sm:%s4] %v37
    %s40 = smul.addr 4, 56
    %s41 = scalar_lea.vmem %s0, %s40
    %v42 = vld [vmem:[%s41] sm:%s4]
    %s43 = scalar_lea.vmem [#allocation0], 448
    %44 = vst [vmem:[%s43] sm:%s4] %v42
    %s45 = smul.addr 4, 55
    %s46 = scalar_lea.vmem %s0, %s45
    %v47 = vld [vmem:[%s46] sm:%s4]
    %s48 = scalar_lea.vmem [#allocation0], 440
    %49 = vst [vmem:[%s48] sm:%s4] %v47
    %s50 = smul.addr 4, 54
    %s51 = scalar_lea.vmem %s0, %s50
    %v52 = vld [vmem:[%s51] sm:%s4]
    %s53 = scalar_lea.vmem [#allocation0], 432
    %54 = vst [vmem:[%s53] sm:%s4] %v52
    %s55 = smul.addr 4, 53
    %s56 = scalar_lea.vmem %s0, %s55
    %v57 = vld [vmem:[%s56] sm:%s4]
    %s58 = scalar_lea.vmem [#allocation0], 424
    %59 = vst [vmem:[%s58] sm:%s4] %v57
    %s60 = smul.addr 4, 52
    %s61 = scalar_lea.vmem %s0, %s60
    %v62 = vld [vmem:[%s61] sm:%s4]
    %s63 = scalar_lea.vmem [#allocation0], 416
    %64 = vst [vmem:[%s63] sm:%s4] %v62
    %s65 = smul.addr 4, 51
    %s66 = scalar_lea.vmem %s0, %s65
    %v67 = vld [vmem:[%s66] sm:%s4]
    %s68 = scalar_lea.vmem [#allocation0], 408
    %69 = vst [vmem:[%s68] sm:%s4] %v67
    %s70 = smul.addr 4, 50
    %s71 = scalar_lea.vmem %s0, %s70
    %v72 = vld [vmem:[%s71] sm:%s4]
    %s73 = scalar_lea.vmem [#allocation0], 400
    %74 = vst [vmem:[%s73] sm:%s4] %v72
    %s75 = smul.addr 4, 49
    %s76 = scalar_lea.vmem %s0, %s75
    %v77 = vld [vmem:[%s76] sm:%s4]
    %s78 = scalar_lea.vmem [#allocation0], 392
    %79 = vst [vmem:[%s78] sm:%s4] %v77
    %s80 = smul.addr 4, 48
    %s81 = scalar_lea.vmem %s0, %s80
    %v82 = vld [vmem:[%s81] sm:%s4]
    %s83 = scalar_lea.vmem [#allocation0], 384
    %84 = vst [vmem:[%s83] sm:%s4] %v82
    %s85 = smul.addr 4, 47
    %s86 = scalar_lea.vmem %s0, %s85
    %v87 = vld [vmem:[%s86] sm:%s4]
    %s88 = scalar_lea.vmem [#allocation0], 376
    %89 = vst [vmem:[%s88] sm:%s4] %v87
    %s90 = smul.addr 4, 46
    %s91 = scalar_lea.vmem %s0, %s90
    %v92 = vld [vmem:[%s91] sm:%s4]
    %s93 = scalar_lea.vmem [#allocation0], 368
    %94 = vst [vmem:[%s93] sm:%s4] %v92
    %s95 = smul.addr 4, 45
    %s96 = scalar_lea.vmem %s0, %s95
    %v97 = vld [vmem:[%s96] sm:%s4]
    %s98 = scalar_lea.vmem [#allocation0], 360
    %99 = vst [vmem:[%s98] sm:%s4] %v97
    %s100 = smul.addr 4, 44
    %s101 = scalar_lea.vmem %s0, %s100
    %v102 = vld [vmem:[%s101] sm:%s4]
    %s103 = scalar_lea.vmem [#allocation0], 352
    %104 = vst [vmem:[%s103] sm:%s4] %v102
    %s105 = smul.addr 4, 43
    %s106 = scalar_lea.vmem %s0, %s105
    %v107 = vld [vmem:[%s106] sm:%s4]
    %s108 = scalar_lea.vmem [#allocation0], 344
    %109 = vst [vmem:[%s108] sm:%s4] %v107
    %s110 = smul.addr 4, 42
    %s111 = scalar_lea.vmem %s0, %s110
    %v112 = vld [vmem:[%s111] sm:%s4]
    %s113 = scalar_lea.vmem [#allocation0], 336
    %114 = vst [vmem:[%s113] sm:%s4] %v112
    %s115 = smul.addr 4, 41
    %s116 = scalar_lea.vmem %s0, %s115
    %v117 = vld [vmem:[%s116] sm:%s4]
    %s118 = scalar_lea.vmem [#allocation0], 328
    %119 = vst [vmem:[%s118] sm:%s4] %v117
    %s120 = smul.addr 4, 40
    %s121 = scalar_lea.vmem %s0, %s120
    %v122 = vld [vmem:[%s121] sm:%s4]
    %s123 = scalar_lea.vmem [#allocation0], 320
    %124 = vst [vmem:[%s123] sm:%s4] %v122
    %s125 = smul.addr 4, 39
    %s126 = scalar_lea.vmem %s0, %s125
    %v127 = vld [vmem:[%s126] sm:%s4]
    %s128 = scalar_lea.vmem [#allocation0], 312
    %129 = vst [vmem:[%s128] sm:%s4] %v127
    %s130 = smul.addr 4, 38
    %s131 = scalar_lea.vmem %s0, %s130
    %v132 = vld [vmem:[%s131] sm:%s4]
    %s133 = scalar_lea.vmem [#allocation0], 304
    %134 = vst [vmem:[%s133] sm:%s4] %v132
    %s135 = smul.addr 4, 37
    %s136 = scalar_lea.vmem %s0, %s135
    %v137 = vld [vmem:[%s136] sm:%s4]
    %s138 = scalar_lea.vmem [#allocation0], 296
    %139 = vst [vmem:[%s138] sm:%s4] %v137
    %s140 = smul.addr 4, 36
    %s141 = scalar_lea.vmem %s0, %s140
    %v142 = vld [vmem:[%s141] sm:%s4]
    %s143 = scalar_lea.vmem [#allocation0], 288
    %144 = vst [vmem:[%s143] sm:%s4] %v142
    %s145 = smul.addr 4, 35
    %s146 = scalar_lea.vmem %s0, %s145
    %v147 = vld [vmem:[%s146] sm:%s4]
    %s148 = scalar_lea.vmem [#allocation0], 280
    %149 = vst [vmem:[%s148] sm:%s4] %v147
    %s150 = smul.addr 4, 34
    %s151 = scalar_lea.vmem %s0, %s150
    %v152 = vld [vmem:[%s151] sm:%s4]
    %s153 = scalar_lea.vmem [#allocation0], 272
    %154 = vst [vmem:[%s153] sm:%s4] %v152
    %s155 = smul.addr 4, 33
    %s156 = scalar_lea.vmem %s0, %s155
    %v157 = vld [vmem:[%s156] sm:%s4]
    %s158 = scalar_lea.vmem [#allocation0], 264
    %159 = vst [vmem:[%s158] sm:%s4] %v157
    %s160 = smul.addr 4, 32
    %s161 = scalar_lea.vmem %s0, %s160
    %v162 = vld [vmem:[%s161] sm:%s4]
    %s163 = scalar_lea.vmem [#allocation0], 256
    %164 = vst [vmem:[%s163] sm:%s4] %v162
    %s165 = smul.addr 4, 31
    %s166 = scalar_lea.vmem %s0, %s165
    %v167 = vld [vmem:[%s166] sm:%s4]
    %s168 = scalar_lea.vmem [#allocation0], 248
    %169 = vst [vmem:[%s168] sm:%s4] %v167
    %s170 = smul.addr 4, 30
    %s171 = scalar_lea.vmem %s0, %s170
    %v172 = vld [vmem:[%s171] sm:%s4]
    %s173 = scalar_lea.vmem [#allocation0], 240
    %174 = vst [vmem:[%s173] sm:%s4] %v172
    %s175 = smul.addr 4, 29
    %s176 = scalar_lea.vmem %s0, %s175
    %v177 = vld [vmem:[%s176] sm:%s4]
    %s178 = scalar_lea.vmem [#allocation0], 232
    %179 = vst [vmem:[%s178] sm:%s4] %v177
    %s180 = smul.addr 4, 28
    %s181 = scalar_lea.vmem %s0, %s180
    %v182 = vld [vmem:[%s181] sm:%s4]
    %s183 = scalar_lea.vmem [#allocation0], 224
    %184 = vst [vmem:[%s183] sm:%s4] %v182
    %s185 = smul.addr 4, 27
    %s186 = scalar_lea.vmem %s0, %s185
    %v187 = vld [vmem:[%s186] sm:%s4]
    %s188 = scalar_lea.vmem [#allocation0], 216
    %189 = vst [vmem:[%s188] sm:%s4] %v187
    %s190 = smul.addr 4, 26
    %s191 = scalar_lea.vmem %s0, %s190
    %v192 = vld [vmem:[%s191] sm:%s4]
    %s193 = scalar_lea.vmem [#allocation0], 208
    %194 = vst [vmem:[%s193] sm:%s4] %v192
    %s195 = smul.addr 4, 25
    %s196 = scalar_lea.vmem %s0, %s195
    %v197 = vld [vmem:[%s196] sm:%s4]
    %s198 = scalar_lea.vmem [#allocation0], 200
    %199 = vst [vmem:[%s198] sm:%s4] %v197
    %s200 = smul.addr 4, 24
    %s201 = scalar_lea.vmem %s0, %s200
    %v202 = vld [vmem:[%s201] sm:%s4]
    %s203 = scalar_lea.vmem [#allocation0], 192
    %204 = vst [vmem:[%s203] sm:%s4] %v202
    %s205 = smul.addr 4, 23
    %s206 = scalar_lea.vmem %s0, %s205
    %v207 = vld [vmem:[%s206] sm:%s4]
    %s208 = scalar_lea.vmem [#allocation0], 184
    %209 = vst [vmem:[%s208] sm:%s4] %v207
    %s210 = smul.addr 4, 22
    %s211 = scalar_lea.vmem %s0, %s210
    %v212 = vld [vmem:[%s211] sm:%s4]
    %s213 = scalar_lea.vmem [#allocation0], 176
    %214 = vst [vmem:[%s213] sm:%s4] %v212
    %s215 = smul.addr 4, 21
    %s216 = scalar_lea.vmem %s0, %s215
    %v217 = vld [vmem:[%s216] sm:%s4]
    %s218 = scalar_lea.vmem [#allocation0], 168
    %219 = vst [vmem:[%s218] sm:%s4] %v217
    %s220 = smul.addr 4, 20
    %s221 = scalar_lea.vmem %s0, %s220
    %v222 = vld [vmem:[%s221] sm:%s4]
    %s223 = scalar_lea.vmem [#allocation0], 160
    %224 = vst [vmem:[%s223] sm:%s4] %v222
    %s225 = smul.addr 4, 19
    %s226 = scalar_lea.vmem %s0, %s225
    %v227 = vld [vmem:[%s226] sm:%s4]
    %s228 = scalar_lea.vmem [#allocation0], 152
    %229 = vst [vmem:[%s228] sm:%s4] %v227
    %s230 = smul.addr 4, 18
    %s231 = scalar_lea.vmem %s0, %s230
    %v232 = vld [vmem:[%s231] sm:%s4]
    %s233 = scalar_lea.vmem [#allocation0], 144
    %234 = vst [vmem:[%s233] sm:%s4] %v232
    %s235 = smul.addr 4, 17
    %s236 = scalar_lea.vmem %s0, %s235
    %v237 = vld [vmem:[%s236] sm:%s4]
    %s238 = scalar_lea.vmem [#allocation0], 136
    %239 = vst [vmem:[%s238] sm:%s4] %v237
    %s240 = smul.addr 4, 16
    %s241 = scalar_lea.vmem %s0, %s240
    %v242 = vld [vmem:[%s241] sm:%s4]
    %s243 = scalar_lea.vmem [#allocation0], 128
    %244 = vst [vmem:[%s243] sm:%s4] %v242
    %s245 = smul.addr 4, 15
    %s246 = scalar_lea.vmem %s0, %s245
    %v247 = vld [vmem:[%s246] sm:%s4]
    %s248 = scalar_lea.vmem [#allocation0], 120
    %249 = vst [vmem:[%s248] sm:%s4] %v247
    %s250 = smul.addr 4, 14
    %s251 = scalar_lea.vmem %s0, %s250
    %v252 = vld [vmem:[%s251] sm:%s4]
    %s253 = scalar_lea.vmem [#allocation0], 112
    %254 = vst [vmem:[%s253] sm:%s4] %v252
    %s255 = smul.addr 4, 13
    %s256 = scalar_lea.vmem %s0, %s255
    %v257 = vld [vmem:[%s256] sm:%s4]
    %s258 = scalar_lea.vmem [#allocation0], 104
    %259 = vst [vmem:[%s258] sm:%s4] %v257
    %s260 = smul.addr 4, 12
    %s261 = scalar_lea.vmem %s0, %s260
    %v262 = vld [vmem:[%s261] sm:%s4]
    %s263 = scalar_lea.vmem [#allocation0], 96
    %264 = vst [vmem:[%s263] sm:%s4] %v262
    %s265 = smul.addr 4, 11
    %s266 = scalar_lea.vmem %s0, %s265
    %v267 = vld [vmem:[%s266] sm:%s4]
    %s268 = scalar_lea.vmem [#allocation0], 88
    %269 = vst [vmem:[%s268] sm:%s4] %v267
    %s270 = smul.addr 4, 10
    %s271 = scalar_lea.vmem %s0, %s270
    %v272 = vld [vmem:[%s271] sm:%s4]
    %s273 = scalar_lea.vmem [#allocation0], 80
    %274 = vst [vmem:[%s273] sm:%s4] %v272
    %s275 = smul.addr 4, 9
    %s276 = scalar_lea.vmem %s0, %s275
    %v277 = vld [vmem:[%s276] sm:%s4]
    %s278 = scalar_lea.vmem [#allocation0], 72
    %279 = vst [vmem:[%s278] sm:%s4] %v277
    %s280 = smul.addr 4, 8
    %s281 = scalar_lea.vmem %s0, %s280
    %v282 = vld [vmem:[%s281] sm:%s4]
    %s283 = scalar_lea.vmem [#allocation0], 64
    %284 = vst [vmem:[%s283] sm:%s4] %v282
    %s285 = smul.addr 4, 7
    %s286 = scalar_lea.vmem %s0, %s285
    %v287 = vld [vmem:[%s286] sm:%s4]
    %s288 = scalar_lea.vmem [#allocation0], 56
    %289 = vst [vmem:[%s288] sm:%s4] %v287
    %s290 = smul.addr 4, 6
    %s291 = scalar_lea.vmem %s0, %s290
    %v292 = vld [vmem:[%s291] sm:%s4]
    %s293 = scalar_lea.vmem [#allocation0], 48
    %294 = vst [vmem:[%s293] sm:%s4] %v292
    %s295 = smul.addr 4, 5
    %s296 = scalar_lea.vmem %s0, %s295
    %v297 = vld [vmem:[%s296] sm:%s4]
    %s298 = scalar_lea.vmem [#allocation0], 40
    %299 = vst [vmem:[%s298] sm:%s4] %v297
    %s300 = smul.addr 4, 4
    %s301 = scalar_lea.vmem %s0, %s300
    %v302 = vld [vmem:[%s301] sm:%s4]
    %s303 = scalar_lea.vmem [#allocation0], 32
    %304 = vst [vmem:[%s303] sm:%s4] %v302
    %s305 = smul.addr 4, 3
    %s306 = scalar_lea.vmem %s0, %s305
    %v307 = vld [vmem:[%s306] sm:%s4]
    %s308 = scalar_lea.vmem [#allocation0], 24
    %309 = vst [vmem:[%s308] sm:%s4] %v307
    %s310 = smul.addr 4, 2
    %s311 = scalar_lea.vmem %s0, %s310
    %v312 = vld [vmem:[%s311] sm:%s4]
    %s313 = scalar_lea.vmem [#allocation0], 16
    %314 = vst [vmem:[%s313] sm:%s4] %v312
    %s315 = scalar_lea.vmem %s0, 4
    %v316 = vld [vmem:[%s315] sm:%s4]
    %s317 = scalar_lea.vmem [#allocation0], 8
    %318 = vst [vmem:[%s317] sm:%s4] %v316
    %v319 = vld [vmem:[%s0] sm:%s4]
    %320 = vst [vmem:[#allocation0] sm:%s4] %v319
    %s321 = smov 3
    %v322 = vld [vmem:[#allocation0] ss:$2 sm:%s321]
    %vm323 = vcmask 523264
    %324 = vst.msk [vmem:[%s1] ss:$8 sm:$0x3] %vm323, %v322
    %s325 = scalar_lea.vmem [#allocation0], 8
    %s326 = smov 3
    %v327 = vld [vmem:[%s325] ss:$2 sm:%s326]
    %vm328 = vcmask 523264
    %s329 = scalar_lea.vmem %s1, 1
    %330 = vst.msk [vmem:[%s329] ss:$8 sm:$0x3] %vm328, %v327
    %s331 = scalar_lea.vmem [#allocation0], 16
    %s332 = smov 3
    %v333 = vld [vmem:[%s331] ss:$2 sm:%s332]
    %vm334 = vcmask 523264
    %s335 = scalar_lea.vmem %s1, 2
    %336 = vst.msk [vmem:[%s335] ss:$8 sm:$0x3] %vm334, %v333
    %s337 = scalar_lea.vmem [#allocation0], 24
    %s338 = smov 3
    %v339 = vld [vmem:[%s337] ss:$2 sm:%s338]
    %vm340 = vcmask 523264
    %s341 = scalar_lea.vmem %s1, 3
    %342 = vst.msk [vmem:[%s341] ss:$8 sm:$0x3] %vm340, %v339
    %s343 = scalar_lea.vmem [#allocation0], 32
    %s344 = smov 3
    %v345 = vld [vmem:[%s343] ss:$2 sm:%s344]
    %vm346 = vcmask 523264
    %s347 = scalar_lea.vmem %s1, 4
    %348 = vst.msk [vmem:[%s347] ss:$8 sm:$0x3] %vm346, %v345
    %s349 = scalar_lea.vmem [#allocation0], 40
    %s350 = smov 3
    %v351 = vld [vmem:[%s349] ss:$2 sm:%s350]
    %vm352 = vcmask 523264
    %s353 = scalar_lea.vmem %s1, 5
    %354 = vst.msk [vmem:[%s353] ss:$8 sm:$0x3] %vm352, %v351
    %s355 = scalar_lea.vmem [#allocation0], 48
    %s356 = smov 3
    %v357 = vld [vmem:[%s355] ss:$2 sm:%s356]
    %vm358 = vcmask 523264
    %s359 = scalar_lea.vmem %s1, 6
    %360 = vst.msk [vmem:[%s359] ss:$8 sm:$0x3] %vm358, %v357
    %s361 = scalar_lea.vmem [#allocation0], 56
    %s362 = smov 3
    %v363 = vld [vmem:[%s361] ss:$2 sm:%s362]
    %vm364 = vcmask 523264
    %s365 = scalar_lea.vmem %s1, 7
    %366 = vst.msk [vmem:[%s365] ss:$8 sm:$0x3] %vm364, %v363
    %s367 = scalar_lea.vmem [#allocation0], 64
    %s368 = smov 3
    %v369 = vld [vmem:[%s367] ss:$2 sm:%s368]
    %vm370 = vcmask 523264
    %s371 = scalar_lea.vmem %s1, 16
    %372 = vst.msk [vmem:[%s371] ss:$8 sm:$0x3] %vm370, %v369
    %s373 = scalar_lea.vmem [#allocation0], 72
    %s374 = smov 3
    %v375 = vld [vmem:[%s373] ss:$2 sm:%s374]
    %vm376 = vcmask 523264
    %s377 = scalar_lea.vmem %s1, 17
    %378 = vst.msk [vmem:[%s377] ss:$8 sm:$0x3] %vm376, %v375
    %s379 = scalar_lea.vmem [#allocation0], 80
    %s380 = smov 3
    %v381 = vld [vmem:[%s379] ss:$2 sm:%s380]
    %vm382 = vcmask 523264
    %s383 = scalar_lea.vmem %s1, 18
    %384 = vst.msk [vmem:[%s383] ss:$8 sm:$0x3] %vm382, %v381
    %s385 = scalar_lea.vmem [#allocation0], 88
    %s386 = smov 3
    %v387 = vld [vmem:[%s385] ss:$2 sm:%s386]
    %vm388 = vcmask 523264
    %s389 = scalar_lea.vmem %s1, 19
    %390 = vst.msk [vmem:[%s389] ss:$8 sm:$0x3] %vm388, %v387
    %s391 = scalar_lea.vmem [#allocation0], 96
    %s392 = smov 3
    %v393 = vld [vmem:[%s391] ss:$2 sm:%s392]
    %vm394 = vcmask 523264
    %s395 = scalar_lea.vmem %s1, 20
    %396 = vst.msk [vmem:[%s395] ss:$8 sm:$0x3] %vm394, %v393
    %s397 = scalar_lea.vmem [#allocation0], 104
    %s398 = smov 3
    %v399 = vld [vmem:[%s397] ss:$2 sm:%s398]
    %vm400 = vcmask 523264
    %s401 = scalar_lea.vmem %s1, 21
    %402 = vst.msk [vmem:[%s401] ss:$8 sm:$0x3] %vm400, %v399
    %s403 = scalar_lea.vmem [#allocation0], 112
    %s404 = smov 3
    %v405 = vld [vmem:[%s403] ss:$2 sm:%s404]
    %vm406 = vcmask 523264
    %s407 = scalar_lea.vmem %s1, 22
    %408 = vst.msk [vmem:[%s407] ss:$8 sm:$0x3] %vm406, %v405
    %s409 = scalar_lea.vmem [#allocation0], 120
    %s410 = smov 3
    %v411 = vld [vmem:[%s409] ss:$2 sm:%s410]
    %vm412 = vcmask 523264
    %s413 = scalar_lea.vmem %s1, 23
    %414 = vst.msk [vmem:[%s413] ss:$8 sm:$0x3] %vm412, %v411
    %s415 = scalar_lea.vmem [#allocation0], 128
    %s416 = smov 3
    %v417 = vld [vmem:[%s415] ss:$2 sm:%s416]
    %vm418 = vcmask 523264
    %s419 = scalar_lea.vmem %s1, 32
    %420 = vst.msk [vmem:[%s419] ss:$8 sm:$0x3] %vm418, %v417
    %s421 = scalar_lea.vmem [#allocation0], 136
    %s422 = smov 3
    %v423 = vld [vmem:[%s421] ss:$2 sm:%s422]
    %vm424 = vcmask 523264
    %s425 = scalar_lea.vmem %s1, 33
    %426 = vst.msk [vmem:[%s425] ss:$8 sm:$0x3] %vm424, %v423
    %s427 = scalar_lea.vmem [#allocation0], 144
    %s428 = smov 3
    %v429 = vld [vmem:[%s427] ss:$2 sm:%s428]
    %vm430 = vcmask 523264
    %s431 = scalar_lea.vmem %s1, 34
    %432 = vst.msk [vmem:[%s431] ss:$8 sm:$0x3] %vm430, %v429
    %s433 = scalar_lea.vmem [#allocation0], 152
    %s434 = smov 3
    %v435 = vld [vmem:[%s433] ss:$2 sm:%s434]
    %vm436 = vcmask 523264
    %s437 = scalar_lea.vmem %s1, 35
    %438 = vst.msk [vmem:[%s437] ss:$8 sm:$0x3] %vm436, %v435
    %s439 = scalar_lea.vmem [#allocation0], 160
    %s440 = smov 3
    %v441 = vld [vmem:[%s439] ss:$2 sm:%s440]
    %vm442 = vcmask 523264
    %s443 = scalar_lea.vmem %s1, 36
    %444 = vst.msk [vmem:[%s443] ss:$8 sm:$0x3] %vm442, %v441
    %s445 = scalar_lea.vmem [#allocation0], 168
    %s446 = smov 3
    %v447 = vld [vmem:[%s445] ss:$2 sm:%s446]
    %vm448 = vcmask 523264
    %s449 = scalar_lea.vmem %s1, 37
    %450 = vst.msk [vmem:[%s449] ss:$8 sm:$0x3] %vm448, %v447
    %s451 = scalar_lea.vmem [#allocation0], 176
    %s452 = smov 3
    %v453 = vld [vmem:[%s451] ss:$2 sm:%s452]
    %vm454 = vcmask 523264
    %s455 = scalar_lea.vmem %s1, 38
    %456 = vst.msk [vmem:[%s455] ss:$8 sm:$0x3] %vm454, %v453
    %s457 = scalar_lea.vmem [#allocation0], 184
    %s458 = smov 3
    %v459 = vld [vmem:[%s457] ss:$2 sm:%s458]
    %vm460 = vcmask 523264
    %s461 = scalar_lea.vmem %s1, 39
    %462 = vst.msk [vmem:[%s461] ss:$8 sm:$0x3] %vm460, %v459
    %s463 = scalar_lea.vmem [#allocation0], 192
    %s464 = smov 3
    %v465 = vld [vmem:[%s463] ss:$2 sm:%s464]
    %vm466 = vcmask 523264
    %s467 = scalar_lea.vmem %s1, 48
    %468 = vst.msk [vmem:[%s467] ss:$8 sm:$0x3] %vm466, %v465
    %s469 = scalar_lea.vmem [#allocation0], 200
    %s470 = smov 3
    %v471 = vld [vmem:[%s469] ss:$2 sm:%s470]
    %vm472 = vcmask 523264
    %s473 = scalar_lea.vmem %s1, 49
    %474 = vst.msk [vmem:[%s473] ss:$8 sm:$0x3] %vm472, %v471
    %s475 = scalar_lea.vmem [#allocation0], 208
    %s476 = smov 3
    %v477 = vld [vmem:[%s475] ss:$2 sm:%s476]
    %vm478 = vcmask 523264
    %s479 = scalar_lea.vmem %s1, 50
    %480 = vst.msk [vmem:[%s479] ss:$8 sm:$0x3] %vm478, %v477
    %s481 = scalar_lea.vmem [#allocation0], 216
    %s482 = smov 3
    %v483 = vld [vmem:[%s481] ss:$2 sm:%s482]
    %vm484 = vcmask 523264
    %s485 = scalar_lea.vmem %s1, 51
    %486 = vst.msk [vmem:[%s485] ss:$8 sm:$0x3] %vm484, %v483
    %s487 = scalar_lea.vmem [#allocation0], 224
    %s488 = smov 3
    %v489 = vld [vmem:[%s487] ss:$2 sm:%s488]
    %vm490 = vcmask 523264
    %s491 = scalar_lea.vmem %s1, 52
    %492 = vst.msk [vmem:[%s491] ss:$8 sm:$0x3] %vm490, %v489
    %s493 = scalar_lea.vmem [#allocation0], 232
    %s494 = smov 3
    %v495 = vld [vmem:[%s493] ss:$2 sm:%s494]
    %vm496 = vcmask 523264
    %s497 = scalar_lea.vmem %s1, 53
    %498 = vst.msk [vmem:[%s497] ss:$8 sm:$0x3] %vm496, %v495
    %s499 = scalar_lea.vmem [#allocation0], 240
    %s500 = smov 3
    %v501 = vld [vmem:[%s499] ss:$2 sm:%s500]
    %vm502 = vcmask 523264
    %s503 = scalar_lea.vmem %s1, 54
    %504 = vst.msk [vmem:[%s503] ss:$8 sm:$0x3] %vm502, %v501
    %s505 = scalar_lea.vmem [#allocation0], 248
    %s506 = smov 3
    %v507 = vld [vmem:[%s505] ss:$2 sm:%s506]
    %vm508 = vcmask 523264
    %s509 = scalar_lea.vmem %s1, 55
    %510 = vst.msk [vmem:[%s509] ss:$8 sm:$0x3] %vm508, %v507
    %s511 = scalar_lea.vmem [#allocation0], 256
    %s512 = smov 3
    %v513 = vld [vmem:[%s511] ss:$2 sm:%s512]
    %vm514 = vcmask 523264
    %s515 = scalar_lea.vmem %s1, 64
    %516 = vst.msk [vmem:[%s515] ss:$8 sm:$0x3] %vm514, %v513
    %s517 = scalar_lea.vmem [#allocation0], 264
    %s518 = smov 3
    %v519 = vld [vmem:[%s517] ss:$2 sm:%s518]
    %vm520 = vcmask 523264
    %s521 = scalar_lea.vmem %s1, 65
    %522 = vst.msk [vmem:[%s521] ss:$8 sm:$0x3] %vm520, %v519
    %s523 = scalar_lea.vmem [#allocation0], 272
    %s524 = smov 3
    %v525 = vld [vmem:[%s523] ss:$2 sm:%s524]
    %vm526 = vcmask 523264
    %s527 = scalar_lea.vmem %s1, 66
    %528 = vst.msk [vmem:[%s527] ss:$8 sm:$0x3] %vm526, %v525
    %s529 = scalar_lea.vmem [#allocation0], 280
    %s530 = smov 3
    %v531 = vld [vmem:[%s529] ss:$2 sm:%s530]
    %vm532 = vcmask 523264
    %s533 = scalar_lea.vmem %s1, 67
    %534 = vst.msk [vmem:[%s533] ss:$8 sm:$0x3] %vm532, %v531
    %s535 = scalar_lea.vmem [#allocation0], 288
    %s536 = smov 3
    %v537 = vld [vmem:[%s535] ss:$2 sm:%s536]
    %vm538 = vcmask 523264
    %s539 = scalar_lea.vmem %s1, 68
    %540 = vst.msk [vmem:[%s539] ss:$8 sm:$0x3] %vm538, %v537
    %s541 = scalar_lea.vmem [#allocation0], 296
    %s542 = smov 3
    %v543 = vld [vmem:[%s541] ss:$2 sm:%s542]
    %vm544 = vcmask 523264
    %s545 = scalar_lea.vmem %s1, 69
    %546 = vst.msk [vmem:[%s545] ss:$8 sm:$0x3] %vm544, %v543
    %s547 = scalar_lea.vmem [#allocation0], 304
    %s548 = smov 3
    %v549 = vld [vmem:[%s547] ss:$2 sm:%s548]
    %vm550 = vcmask 523264
    %s551 = scalar_lea.vmem %s1, 70
    %552 = vst.msk [vmem:[%s551] ss:$8 sm:$0x3] %vm550, %v549
    %s553 = scalar_lea.vmem [#allocation0], 312
    %s554 = smov 3
    %v555 = vld [vmem:[%s553] ss:$2 sm:%s554]
    %vm556 = vcmask 523264
    %s557 = scalar_lea.vmem %s1, 71
    %558 = vst.msk [vmem:[%s557] ss:$8 sm:$0x3] %vm556, %v555
    %s559 = scalar_lea.vmem [#allocation0], 320
    %s560 = smov 3
    %v561 = vld [vmem:[%s559] ss:$2 sm:%s560]
    %vm562 = vcmask 523264
    %s563 = scalar_lea.vmem %s1, 80
    %564 = vst.msk [vmem:[%s563] ss:$8 sm:$0x3] %vm562, %v561
    %s565 = scalar_lea.vmem [#allocation0], 328
    %s566 = smov 3
    %v567 = vld [vmem:[%s565] ss:$2 sm:%s566]
    %vm568 = vcmask 523264
    %s569 = scalar_lea.vmem %s1, 81
    %570 = vst.msk [vmem:[%s569] ss:$8 sm:$0x3] %vm568, %v567
    %s571 = scalar_lea.vmem [#allocation0], 336
    %s572 = smov 3
    %v573 = vld [vmem:[%s571] ss:$2 sm:%s572]
    %vm574 = vcmask 523264
    %s575 = scalar_lea.vmem %s1, 82
    %576 = vst.msk [vmem:[%s575] ss:$8 sm:$0x3] %vm574, %v573
    %s577 = scalar_lea.vmem [#allocation0], 344
    %s578 = smov 3
    %v579 = vld [vmem:[%s577] ss:$2 sm:%s578]
    %vm580 = vcmask 523264
    %s581 = scalar_lea.vmem %s1, 83
    %582 = vst.msk [vmem:[%s581] ss:$8 sm:$0x3] %vm580, %v579
    %s583 = scalar_lea.vmem [#allocation0], 352
    %s584 = smov 3
    %v585 = vld [vmem:[%s583] ss:$2 sm:%s584]
    %vm586 = vcmask 523264
    %s587 = scalar_lea.vmem %s1, 84
    %588 = vst.msk [vmem:[%s587] ss:$8 sm:$0x3] %vm586, %v585
    %s589 = scalar_lea.vmem [#allocation0], 360
    %s590 = smov 3
    %v591 = vld [vmem:[%s589] ss:$2 sm:%s590]
    %vm592 = vcmask 523264
    %s593 = scalar_lea.vmem %s1, 85
    %594 = vst.msk [vmem:[%s593] ss:$8 sm:$0x3] %vm592, %v591
    %s595 = scalar_lea.vmem [#allocation0], 368
    %s596 = smov 3
    %v597 = vld [vmem:[%s595] ss:$2 sm:%s596]
    %vm598 = vcmask 523264
    %s599 = scalar_lea.vmem %s1, 86
    %600 = vst.msk [vmem:[%s599] ss:$8 sm:$0x3] %vm598, %v597
    %s601 = scalar_lea.vmem [#allocation0], 376
    %s602 = smov 3
    %v603 = vld [vmem:[%s601] ss:$2 sm:%s602]
    %vm604 = vcmask 523264
    %s605 = scalar_lea.vmem %s1, 87
    %606 = vst.msk [vmem:[%s605] ss:$8 sm:$0x3] %vm604, %v603
    %s607 = scalar_lea.vmem [#allocation0], 384
    %s608 = smov 3
    %v609 = vld [vmem:[%s607] ss:$2 sm:%s608]
    %vm610 = vcmask 523264
    %s611 = scalar_lea.vmem %s1, 96
    %612 = vst.msk [vmem:[%s611] ss:$8 sm:$0x3] %vm610, %v609
    %s613 = scalar_lea.vmem [#allocation0], 392
    %s614 = smov 3
    %v615 = vld [vmem:[%s613] ss:$2 sm:%s614]
    %vm616 = vcmask 523264
    %s617 = scalar_lea.vmem %s1, 97
    %618 = vst.msk [vmem:[%s617] ss:$8 sm:$0x3] %vm616, %v615
    %s619 = scalar_lea.vmem [#allocation0], 400
    %s620 = smov 3
    %v621 = vld [vmem:[%s619] ss:$2 sm:%s620]
    %vm622 = vcmask 523264
    %s623 = scalar_lea.vmem %s1, 98
    %624 = vst.msk [vmem:[%s623] ss:$8 sm:$0x3] %vm622, %v621
    %s625 = scalar_lea.vmem [#allocation0], 408
    %s626 = smov 3
    %v627 = vld [vmem:[%s625] ss:$2 sm:%s626]
    %vm628 = vcmask 523264
    %s629 = scalar_lea.vmem %s1, 99
    %630 = vst.msk [vmem:[%s629] ss:$8 sm:$0x3] %vm628, %v627
    %s631 = scalar_lea.vmem [#allocation0], 416
    %s632 = smov 3
    %v633 = vld [vmem:[%s631] ss:$2 sm:%s632]
    %vm634 = vcmask 523264
    %s635 = scalar_lea.vmem %s1, 100
    %636 = vst.msk [vmem:[%s635] ss:$8 sm:$0x3] %vm634, %v633
    %s637 = scalar_lea.vmem [#allocation0], 424
    %s638 = smov 3
    %v639 = vld [vmem:[%s637] ss:$2 sm:%s638]
    %vm640 = vcmask 523264
    %s641 = scalar_lea.vmem %s1, 101
    %642 = vst.msk [vmem:[%s641] ss:$8 sm:$0x3] %vm640, %v639
    %s643 = scalar_lea.vmem [#allocation0], 432
    %s644 = smov 3
    %v645 = vld [vmem:[%s643] ss:$2 sm:%s644]
    %vm646 = vcmask 523264
    %s647 = scalar_lea.vmem %s1, 102
    %648 = vst.msk [vmem:[%s647] ss:$8 sm:$0x3] %vm646, %v645
    %s649 = scalar_lea.vmem [#allocation0], 440
    %s650 = smov 3
    %v651 = vld [vmem:[%s649] ss:$2 sm:%s650]
    %vm652 = vcmask 523264
    %s653 = scalar_lea.vmem %s1, 103
    %654 = vst.msk [vmem:[%s653] ss:$8 sm:$0x3] %vm652, %v651
    %s655 = scalar_lea.vmem [#allocation0], 448
    %s656 = smov 3
    %v657 = vld [vmem:[%s655] ss:$2 sm:%s656]
    %vm658 = vcmask 523264
    %s659 = scalar_lea.vmem %s1, 112
    %660 = vst.msk [vmem:[%s659] ss:$8 sm:$0x3] %vm658, %v657
    %s661 = scalar_lea.vmem [#allocation0], 456
    %s662 = smov 3
    %v663 = vld [vmem:[%s661] ss:$2 sm:%s662]
    %vm664 = vcmask 523264
    %s665 = scalar_lea.vmem %s1, 113
    %666 = vst.msk [vmem:[%s665] ss:$8 sm:$0x3] %vm664, %v663
    %s667 = scalar_lea.vmem [#allocation0], 464
    %s668 = smov 3
    %v669 = vld [vmem:[%s667] ss:$2 sm:%s668]
    %vm670 = vcmask 523264
    %s671 = scalar_lea.vmem %s1, 114
    %672 = vst.msk [vmem:[%s671] ss:$8 sm:$0x3] %vm670, %v669
    %s673 = scalar_lea.vmem [#allocation0], 472
    %s674 = smov 3
    %v675 = vld [vmem:[%s673] ss:$2 sm:%s674]
    %vm676 = vcmask 523264
    %s677 = scalar_lea.vmem %s1, 115
    %678 = vst.msk [vmem:[%s677] ss:$8 sm:$0x3] %vm676, %v675
    %s679 = scalar_lea.vmem [#allocation0], 480
    %s680 = smov 3
    %v681 = vld [vmem:[%s679] ss:$2 sm:%s680]
    %vm682 = vcmask 523264
    %s683 = scalar_lea.vmem %s1, 116
    %684 = vst.msk [vmem:[%s683] ss:$8 sm:$0x3] %vm682, %v681
    %s685 = scalar_lea.vmem [#allocation0], 488
    %s686 = smov 3
    %v687 = vld [vmem:[%s685] ss:$2 sm:%s686]
    %vm688 = vcmask 523264
    %s689 = scalar_lea.vmem %s1, 117
    %690 = vst.msk [vmem:[%s689] ss:$8 sm:$0x3] %vm688, %v687
    %s691 = scalar_lea.vmem [#allocation0], 496
    %s692 = smov 3
    %v693 = vld [vmem:[%s691] ss:$2 sm:%s692]
    %vm694 = vcmask 523264
    %s695 = scalar_lea.vmem %s1, 118
    %696 = vst.msk [vmem:[%s695] ss:$8 sm:$0x3] %vm694, %v693
    %s697 = scalar_lea.vmem [#allocation0], 504
    %s698 = smov 3
    %v699 = vld [vmem:[%s697] ss:$2 sm:%s698]
    %vm700 = vcmask 523264
    %s701 = scalar_lea.vmem %s1, 119
    %702 = vst.msk [vmem:[%s701] ss:$8 sm:$0x3] %vm700, %v699
    %s703 = scalar_lea.vmem [#allocation0], 1
    %v704 = vld [vmem:[%s703] ss:$8 sm:$0xf]
    %s705 = scalar_lea.vmem [#allocation0], 1
    %v706 = vld [vmem:[%s705] ss:$8 sm:$0xf0]
    %vm707 = vcmask 1047556
    %v708 = vsel %vm707, %v706, %v704
    %709 = vrot.lane.b32.xlu0 %v708, 64
    %v710 = vpop.permute.xlu0 %709
    %vm711 = vcmask 1048064
    %712 = vst.msk [vmem:[%s1] sm:$0xff] %vm711, %v710
    %s713 = scalar_lea.vmem [#allocation0], 129
    %v714 = vld [vmem:[%s713] ss:$8 sm:$0xf]
    %s715 = scalar_lea.vmem [#allocation0], 129
    %v716 = vld [vmem:[%s715] ss:$8 sm:$0xf0]
    %vm717 = vcmask 1047556
    %v718 = vsel %vm717, %v716, %v714
    %719 = vrot.lane.b32.xlu0 %v718, 64
    %v720 = vpop.permute.xlu0 %719
    %vm721 = vcmask 1048064
    %s722 = scalar_lea.vmem %s1, 32
    %723 = vst.msk [vmem:[%s722] sm:$0xff] %vm721, %v720
    %s724 = scalar_lea.vmem [#allocation0], 257
    %v725 = vld [vmem:[%s724] ss:$8 sm:$0xf]
    %s726 = scalar_lea.vmem [#allocation0], 257
    %v727 = vld [vmem:[%s726] ss:$8 sm:$0xf0]
    %vm728 = vcmask 1047556
    %v729 = vsel %vm728, %v727, %v725
    %730 = vrot.lane.b32.xlu0 %v729, 64
    %v731 = vpop.permute.xlu0 %730
    %vm732 = vcmask 1048064
    %s733 = scalar_lea.vmem %s1, 64
    %734 = vst.msk [vmem:[%s733] sm:$0xff] %vm732, %v731
    %s735 = scalar_lea.vmem [#allocation0], 385
    %v736 = vld [vmem:[%s735] ss:$8 sm:$0xf]
    %s737 = scalar_lea.vmem [#allocation0], 385
    %v738 = vld [vmem:[%s737] ss:$8 sm:$0xf0]
    %vm739 = vcmask 1047556
    %v740 = vsel %vm739, %v738, %v736
    %741 = vrot.lane.b32.xlu0 %v740, 64
    %v742 = vpop.permute.xlu0 %741
    %vm743 = vcmask 1048064
    %s744 = scalar_lea.vmem %s1, 96
    %745 = vst.msk [vmem:[%s744] sm:$0xff] %vm743, %v742
    %s746 = scalar_lea.vmem [#allocation0], 3
    %v747 = vld [vmem:[%s746] ss:$8 sm:$0xf]
    %s748 = scalar_lea.vmem [#allocation0], 3
    %v749 = vld [vmem:[%s748] ss:$8 sm:$0xf0]
    %vm750 = vcmask 1047556
    %v751 = vsel %vm750, %v749, %v747
    %752 = vrot.lane.b32.xlu0 %v751, 64
    %v753 = vpop.permute.xlu0 %752
    %vm754 = vcmask 1048064
    %s755 = scalar_lea.vmem %s1, 8
    %756 = vst.msk [vmem:[%s755] sm:$0xff] %vm754, %v753
    %s757 = scalar_lea.vmem [#allocation0], 131
    %v758 = vld [vmem:[%s757] ss:$8 sm:$0xf]
    %s759 = scalar_lea.vmem [#allocation0], 131
    %v760 = vld [vmem:[%s759] ss:$8 sm:$0xf0]
    %vm761 = vcmask 1047556
    %v762 = vsel %vm761, %v760, %v758
    %763 = vrot.lane.b32.xlu0 %v762, 64
    %v764 = vpop.permute.xlu0 %763
    %vm765 = vcmask 1048064
    %s766 = scalar_lea.vmem %s1, 40
    %767 = vst.msk [vmem:[%s766] sm:$0xff] %vm765, %v764
    %s768 = scalar_lea.vmem [#allocation0], 259
    %v769 = vld [vmem:[%s768] ss:$8 sm:$0xf]
    %s770 = scalar_lea.vmem [#allocation0], 259
    %v771 = vld [vmem:[%s770] ss:$8 sm:$0xf0]
    %vm772 = vcmask 1047556
    %v773 = vsel %vm772, %v771, %v769
    %774 = vrot.lane.b32.xlu0 %v773, 64
    %v775 = vpop.permute.xlu0 %774
    %vm776 = vcmask 1048064
    %s777 = scalar_lea.vmem %s1, 72
    %778 = vst.msk [vmem:[%s777] sm:$0xff] %vm776, %v775
    %s779 = scalar_lea.vmem [#allocation0], 387
    %v780 = vld [vmem:[%s779] ss:$8 sm:$0xf]
    %s781 = scalar_lea.vmem [#allocation0], 387
    %v782 = vld [vmem:[%s781] ss:$8 sm:$0xf0]
    %vm783 = vcmask 1047556
    %v784 = vsel %vm783, %v782, %v780
    %785 = vrot.lane.b32.xlu0 %v784, 64
    %v786 = vpop.permute.xlu0 %785
    %vm787 = vcmask 1048064
    %s788 = scalar_lea.vmem %s1, 104
    %789 = vst.msk [vmem:[%s788] sm:$0xff] %vm787, %v786
    %s790 = scalar_lea.vmem [#allocation0], 65
    %v791 = vld [vmem:[%s790] ss:$8 sm:$0xf]
    %s792 = scalar_lea.vmem [#allocation0], 65
    %v793 = vld [vmem:[%s792] ss:$8 sm:$0xf0]
    %vm794 = vcmask 1047556
    %v795 = vsel %vm794, %v793, %v791
    %796 = vrot.lane.b32.xlu0 %v795, 64
    %v797 = vpop.permute.xlu0 %796
    %vm798 = vcmask 1048064
    %s799 = scalar_lea.vmem %s1, 16
    %800 = vst.msk [vmem:[%s799] sm:$0xff] %vm798, %v797
    %s801 = scalar_lea.vmem [#allocation0], 193
    %v802 = vld [vmem:[%s801] ss:$8 sm:$0xf]
    %s803 = scalar_lea.vmem [#allocation0], 193
    %v804 = vld [vmem:[%s803] ss:$8 sm:$0xf0]
    %vm805 = vcmask 1047556
    %v806 = vsel %vm805, %v804, %v802
    %807 = vrot.lane.b32.xlu0 %v806, 64
    %v808 = vpop.permute.xlu0 %807
    %vm809 = vcmask 1048064
    %s810 = scalar_lea.vmem %s1, 48
    %811 = vst.msk [vmem:[%s810] sm:$0xff] %vm809, %v808
    %s812 = scalar_lea.vmem [#allocation0], 321
    %v813 = vld [vmem:[%s812] ss:$8 sm:$0xf]
    %s814 = scalar_lea.vmem [#allocation0], 321
    %v815 = vld [vmem:[%s814] ss:$8 sm:$0xf0]
    %vm816 = vcmask 1047556
    %v817 = vsel %vm816, %v815, %v813
    %818 = vrot.lane.b32.xlu0 %v817, 64
    %v819 = vpop.permute.xlu0 %818
    %vm820 = vcmask 1048064
    %s821 = scalar_lea.vmem %s1, 80
    %822 = vst.msk [vmem:[%s821] sm:$0xff] %vm820, %v819
    %s823 = scalar_lea.vmem [#allocation0], 449
    %v824 = vld [vmem:[%s823] ss:$8 sm:$0xf]
    %s825 = scalar_lea.vmem [#allocation0], 449
    %v826 = vld [vmem:[%s825] ss:$8 sm:$0xf0]
    %vm827 = vcmask 1047556
    %v828 = vsel %vm827, %v826, %v824
    %829 = vrot.lane.b32.xlu0 %v828, 64
    %v830 = vpop.permute.xlu0 %829
    %vm831 = vcmask 1048064
    %s832 = scalar_lea.vmem %s1, 112
    %833 = vst.msk [vmem:[%s832] sm:$0xff] %vm831, %v830
    %s834 = scalar_lea.vmem [#allocation0], 67
    %v835 = vld [vmem:[%s834] ss:$8 sm:$0xf]
    %s836 = scalar_lea.vmem [#allocation0], 67
    %v837 = vld [vmem:[%s836] ss:$8 sm:$0xf0]
    %vm838 = vcmask 1047556
    %v839 = vsel %vm838, %v837, %v835
    %840 = vrot.lane.b32.xlu0 %v839, 64
    %v841 = vpop.permute.xlu0 %840
    %vm842 = vcmask 1048064
    %s843 = scalar_lea.vmem %s1, 24
    %844 = vst.msk [vmem:[%s843] sm:$0xff] %vm842, %v841
    %s845 = scalar_lea.vmem [#allocation0], 195
    %v846 = vld [vmem:[%s845] ss:$8 sm:$0xf]
    %s847 = scalar_lea.vmem [#allocation0], 195
    %v848 = vld [vmem:[%s847] ss:$8 sm:$0xf0]
    %vm849 = vcmask 1047556
    %v850 = vsel %vm849, %v848, %v846
    %851 = vrot.lane.b32.xlu0 %v850, 64
    %v852 = vpop.permute.xlu0 %851
    %vm853 = vcmask 1048064
    %s854 = scalar_lea.vmem %s1, 56
    %855 = vst.msk [vmem:[%s854] sm:$0xff] %vm853, %v852
    %s856 = scalar_lea.vmem [#allocation0], 323
    %v857 = vld [vmem:[%s856] ss:$8 sm:$0xf]
    %s858 = scalar_lea.vmem [#allocation0], 323
    %v859 = vld [vmem:[%s858] ss:$8 sm:$0xf0]
    %vm860 = vcmask 1047556
    %v861 = vsel %vm860, %v859, %v857
    %862 = vrot.lane.b32.xlu0 %v861, 64
    %v863 = vpop.permute.xlu0 %862
    %vm864 = vcmask 1048064
    %s865 = scalar_lea.vmem %s1, 88
    %866 = vst.msk [vmem:[%s865] sm:$0xff] %vm864, %v863
    %s867 = scalar_lea.vmem [#allocation0], 451
    %v868 = vld [vmem:[%s867] ss:$8 sm:$0xf]
    %s869 = scalar_lea.vmem [#allocation0], 451
    %v870 = vld [vmem:[%s869] ss:$8 sm:$0xf0]
    %vm871 = vcmask 1047556
    %v872 = vsel %vm871, %v870, %v868
    %873 = vrot.lane.b32.xlu0 %v872, 64
    %v874 = vpop.permute.xlu0 %873
    %vm875 = vcmask 1048064
    %s876 = scalar_lea.vmem %s1, 120
    %877 = vst.msk [vmem:[%s876] sm:$0xff] %vm875, %v874

// kernel: tile.34
$region0: #{tile.34}
  %s0 = inlined_call_operand.vmem [shape: f32[8,32,32], index: 0, kind: input, shape index: {}]
  %s1 = inlined_call_operand.vmem [shape: f32[256,32], index: 1, kind: output, shape index: {}]
  %v2 = vld [vmem:[%s0] ss:$4 sm:$0xff]
  %vm3 = vcmask 261120
  %4 = vst.msk [vmem:[%s1] ss:$8 sm:$0x3] %vm3, %v2
  %s5 = scalar_lea.vmem %s1, 4294967281
  %6 = vst.msk [vmem:[%s5] ss:$8 sm:$0xc] %vm3, %v2
  %s7 = scalar_lea.vmem %s1, 4294967266
  %8 = vst.msk [vmem:[%s7] ss:$8 sm:$0x30] %vm3, %v2
  %s9 = scalar_lea.vmem %s1, 4294967251
  %10 = vst.msk [vmem:[%s9] ss:$8 sm:$0xc0] %vm3, %v2
  %s11 = scalar_lea.vmem %s0, 32
  %v12 = vld [vmem:[%s11] ss:$4 sm:$0xff]
  %vm13 = vcmask 261120
  %s14 = scalar_lea.vmem %s1, 4
  %15 = vst.msk [vmem:[%s14] ss:$8 sm:$0x3] %vm13, %v12
  %s16 = scalar_lea.vmem %s1, 4294967285
  %17 = vst.msk [vmem:[%s16] ss:$8 sm:$0xc] %vm13, %v12
  %s18 = scalar_lea.vmem %s1, 4294967270
  %19 = vst.msk [vmem:[%s18] ss:$8 sm:$0x30] %vm13, %v12
  %s20 = scalar_lea.vmem %s1, 4294967255
  %21 = vst.msk [vmem:[%s20] ss:$8 sm:$0xc0] %vm13, %v12
  %s22 = scalar_lea.vmem %s0, 64
  %v23 = vld [vmem:[%s22] ss:$4 sm:$0xff]
  %vm24 = vcmask 261120
  %s25 = scalar_lea.vmem %s1, 16
  %26 = vst.msk [vmem:[%s25] ss:$8 sm:$0x3] %vm24, %v23
  %s27 = scalar_lea.vmem %s1, 1
  %28 = vst.msk [vmem:[%s27] ss:$8 sm:$0xc] %vm24, %v23
  %s29 = scalar_lea.vmem %s1, 4294967282
  %30 = vst.msk [vmem:[%s29] ss:$8 sm:$0x30] %vm24, %v23
  %s31 = scalar_lea.vmem %s1, 4294967267
  %32 = vst.msk [vmem:[%s31] ss:$8 sm:$0xc0] %vm24, %v23
  %s33 = scalar_lea.vmem %s0, 96
  %v34 = vld [vmem:[%s33] ss:$4 sm:$0xff]
  %vm35 = vcmask 261120
  %s36 = scalar_lea.vmem %s1, 20
  %37 = vst.msk [vmem:[%s36] ss:$8 sm:$0x3] %vm35, %v34
  %s38 = scalar_lea.vmem %s1, 5
  %39 = vst.msk [vmem:[%s38] ss:$8 sm:$0xc] %vm35, %v34
  %s40 = scalar_lea.vmem %s1, 4294967286
  %41 = vst.msk [vmem:[%s40] ss:$8 sm:$0x30] %vm35, %v34
  %s42 = scalar_lea.vmem %s1, 4294967271
  %43 = vst.msk [vmem:[%s42] ss:$8 sm:$0xc0] %vm35, %v34
  %s44 = scalar_lea.vmem %s0, 128
  %v45 = vld [vmem:[%s44] ss:$4 sm:$0xff]
  %vm46 = vcmask 261120
  %s47 = scalar_lea.vmem %s1, 32
  %48 = vst.msk [vmem:[%s47] ss:$8 sm:$0x3] %vm46, %v45
  %s49 = scalar_lea.vmem %s1, 17
  %50 = vst.msk [vmem:[%s49] ss:$8 sm:$0xc] %vm46, %v45
  %s51 = scalar_lea.vmem %s1, 2
  %52 = vst.msk [vmem:[%s51] ss:$8 sm:$0x30] %vm46, %v45
  %s53 = scalar_lea.vmem %s1, 4294967283
  %54 = vst.msk [vmem:[%s53] ss:$8 sm:$0xc0] %vm46, %v45
  %s55 = scalar_lea.vmem %s0, 160
  %v56 = vld [vmem:[%s55] ss:$4 sm:$0xff]
  %vm57 = vcmask 261120
  %s58 = scalar_lea.vmem %s1, 36
  %59 = vst.msk [vmem:[%s58] ss:$8 sm:$0x3] %vm57, %v56
  %s60 = scalar_lea.vmem %s1, 21
  %61 = vst.msk [vmem:[%s60] ss:$8 sm:$0xc] %vm57, %v56
  %s62 = scalar_lea.vmem %s1, 6
  %63 = vst.msk [vmem:[%s62] ss:$8 sm:$0x30] %vm57, %v56
  %s64 = scalar_lea.vmem %s1, 4294967287
  %65 = vst.msk [vmem:[%s64] ss:$8 sm:$0xc0] %vm57, %v56
  %s66 = scalar_lea.vmem %s0, 192
  %v67 = vld [vmem:[%s66] ss:$4 sm:$0xff]
  %vm68 = vcmask 261120
  %s69 = scalar_lea.vmem %s1, 48
  %70 = vst.msk [vmem:[%s69] ss:$8 sm:$0x3] %vm68, %v67
  %s71 = scalar_lea.vmem %s1, 33
  %72 = vst.msk [vmem:[%s71] ss:$8 sm:$0xc] %vm68, %v67
  %s73 = scalar_lea.vmem %s1, 18
  %74 = vst.msk [vmem:[%s73] ss:$8 sm:$0x30] %vm68, %v67
  %s75 = scalar_lea.vmem %s1, 3
  %76 = vst.msk [vmem:[%s75] ss:$8 sm:$0xc0] %vm68, %v67
  %s77 = scalar_lea.vmem %s0, 224
  %v78 = vld [vmem:[%s77] ss:$4 sm:$0xff]
  %vm79 = vcmask 261120
  %s80 = scalar_lea.vmem %s1, 52
  %81 = vst.msk [vmem:[%s80] ss:$8 sm:$0x3] %vm79, %v78
  %s82 = scalar_lea.vmem %s1, 37
  %83 = vst.msk [vmem:[%s82] ss:$8 sm:$0xc] %vm79, %v78
  %s84 = scalar_lea.vmem %s1, 22
  %85 = vst.msk [vmem:[%s84] ss:$8 sm:$0x30] %vm79, %v78
  %s86 = scalar_lea.vmem %s1, 7
  %87 = vst.msk [vmem:[%s86] ss:$8 sm:$0xc0] %vm79, %v78
  %s88 = scalar_lea.vmem %s0, 3
  %v89 = vld [vmem:[%s88] ss:$8 sm:$0xf]
  %s90 = scalar_lea.vmem %s0, 3
  %v91 = vld [vmem:[%s90] ss:$8 sm:$0xf0]
  %vm92 = vcmask 1047556
  %v93 = vsel %vm92, %v91, %v89
  %94 = vrot.lane.b32.xlu0 %v93, 96
  %v95 = vpop.permute.xlu0 %94
  %vm96 = vcmask 1048320
  %97 = vst.msk [vmem:[%s1] sm:$0xff] %vm96, %v95
  %s98 = scalar_lea.vmem %s0, 131
  %v99 = vld [vmem:[%s98] ss:$8 sm:$0xf]
  %s100 = scalar_lea.vmem %s0, 131
  %v101 = vld [vmem:[%s100] ss:$8 sm:$0xf0]
  %vm102 = vcmask 1047556
  %v103 = vsel %vm102, %v101, %v99
  %104 = vrot.lane.b32.xlu0 %v103, 96
  %v105 = vpop.permute.xlu0 %104
  %vm106 = vcmask 1048320
  %s107 = scalar_lea.vmem %s1, 32
  %108 = vst.msk [vmem:[%s107] sm:$0xff] %vm106, %v105
  %s109 = scalar_lea.vmem %s0, 7
  %v110 = vld [vmem:[%s109] ss:$8 sm:$0xf]
  %s111 = scalar_lea.vmem %s0, 7
  %v112 = vld [vmem:[%s111] ss:$8 sm:$0xf0]
  %vm113 = vcmask 1047556
  %v114 = vsel %vm113, %v112, %v110
  %115 = vrot.lane.b32.xlu0 %v114, 96
  %v116 = vpop.permute.xlu0 %115
  %vm117 = vcmask 1048320
  %s118 = scalar_lea.vmem %s1, 8
  %119 = vst.msk [vmem:[%s118] sm:$0xff] %vm117, %v116
  %s120 = scalar_lea.vmem %s0, 135
  %v121 = vld [vmem:[%s120] ss:$8 sm:$0xf]
  %s122 = scalar_lea.vmem %s0, 135
  %v123 = vld [vmem:[%s122] ss:$8 sm:$0xf0]
  %vm124 = vcmask 1047556
  %v125 = vsel %vm124, %v123, %v121
  %126 = vrot.lane.b32.xlu0 %v125, 96
  %v127 = vpop.permute.xlu0 %126
  %vm128 = vcmask 1048320
  %s129 = scalar_lea.vmem %s1, 40
  %130 = vst.msk [vmem:[%s129] sm:$0xff] %vm128, %v127
  %s131 = scalar_lea.vmem %s0, 67
  %v132 = vld [vmem:[%s131] ss:$8 sm:$0xf]
  %s133 = scalar_lea.vmem %s0, 67
  %v134 = vld [vmem:[%s133] ss:$8 sm:$0xf0]
  %vm135 = vcmask 1047556
  %v136 = vsel %vm135, %v134, %v132
  %137 = vrot.lane.b32.xlu0 %v136, 96
  %v138 = vpop.permute.xlu0 %137
  %vm139 = vcmask 1048320
  %s140 = scalar_lea.vmem %s1, 16
  %141 = vst.msk [vmem:[%s140] sm:$0xff] %vm139, %v138
  %s142 = scalar_lea.vmem %s0, 195
  %v143 = vld [vmem:[%s142] ss:$8 sm:$0xf]
  %s144 = scalar_lea.vmem %s0, 195
  %v145 = vld [vmem:[%s144] ss:$8 sm:$0xf0]
  %vm146 = vcmask 1047556
  %v147 = vsel %vm146, %v145, %v143
  %148 = vrot.lane.b32.xlu0 %v147, 96
  %v149 = vpop.permute.xlu0 %148
  %vm150 = vcmask 1048320
  %s151 = scalar_lea.vmem %s1, 48
  %152 = vst.msk [vmem:[%s151] sm:$0xff] %vm150, %v149
  %s153 = scalar_lea.vmem %s0, 71
  %v154 = vld [vmem:[%s153] ss:$8 sm:$0xf]
  %s155 = scalar_lea.vmem %s0, 71
  %v156 = vld [vmem:[%s155] ss:$8 sm:$0xf0]
  %vm157 = vcmask 1047556
  %v158 = vsel %vm157, %v156, %v154
  %159 = vrot.lane.b32.xlu0 %v158, 96
  %v160 = vpop.permute.xlu0 %159
  %vm161 = vcmask 1048320
  %s162 = scalar_lea.vmem %s1, 24
  %163 = vst.msk [vmem:[%s162] sm:$0xff] %vm161, %v160
  %s164 = scalar_lea.vmem %s0, 199
  %v165 = vld [vmem:[%s164] ss:$8 sm:$0xf]
  %s166 = scalar_lea.vmem %s0, 199
  %v167 = vld [vmem:[%s166] ss:$8 sm:$0xf0]
  %vm168 = vcmask 1047556
  %v169 = vsel %vm168, %v167, %v165
  %170 = vrot.lane.b32.xlu0 %v169, 96
  %v171 = vpop.permute.xlu0 %170
  %vm172 = vcmask 1048320
  %s173 = scalar_lea.vmem %s1, 56
  %174 = vst.msk [vmem:[%s173] sm:$0xff] %vm172, %v171
  %s175 = scalar_lea.vmem %s0, 2
  %v176 = vld [vmem:[%s175] ss:$8 sm:$0xf]
  %s177 = scalar_lea.vmem %s0, 2
  %v178 = vld [vmem:[%s177] ss:$8 sm:$0xf0]
  %vm179 = vcmask 1047556
  %v180 = vsel %vm179, %v178, %v176
  %181 = vrot.lane.b32.xlu0 %v180, 64
  %v182 = vpop.permute.xlu0 %181
  %vm183 = vcmask 785920
  %184 = vst.msk [vmem:[%s1] sm:$0xff] %vm183, %v182
  %s185 = scalar_lea.vmem %s0, 130
  %v186 = vld [vmem:[%s185] ss:$8 sm:$0xf]
  %s187 = scalar_lea.vmem %s0, 130
  %v188 = vld [vmem:[%s187] ss:$8 sm:$0xf0]
  %vm189 = vcmask 1047556
  %v190 = vsel %vm189, %v188, %v186
  %191 = vrot.lane.b32.xlu0 %v190, 64
  %v192 = vpop.permute.xlu0 %191
  %vm193 = vcmask 785920
  %s194 = scalar_lea.vmem %s1, 32
  %195 = vst.msk [vmem:[%s194] sm:$0xff] %vm193, %v192
  %s196 = scalar_lea.vmem %s0, 6
  %v197 = vld [vmem:[%s196] ss:$8 sm:$0xf]
  %s198 = scalar_lea.vmem %s0, 6
  %v199 = vld [vmem:[%s198] ss:$8 sm:$0xf0]
  %vm200 = vcmask 1047556
  %v201 = vsel %vm200, %v199, %v197
  %202 = vrot.lane.b32.xlu0 %v201, 64
  %v203 = vpop.permute.xlu0 %202
  %vm204 = vcmask 785920
  %s205 = scalar_lea.vmem %s1, 8
  %206 = vst.msk [vmem:[%s205] sm:$0xff] %vm204, %v203
  %s207 = scalar_lea.vmem %s0, 134
  %v208 = vld [vmem:[%s207] ss:$8 sm:$0xf]
  %s209 = scalar_lea.vmem %s0, 134
  %v210 = vld [vmem:[%s209] ss:$8 sm:$0xf0]
  %vm211 = vcmask 1047556
  %v212 = vsel %vm211, %v210, %v208
  %213 = vrot.lane.b32.xlu0 %v212, 64
  %v214 = vpop.permute.xlu0 %213
  %vm215 = vcmask 785920
  %s216 = scalar_lea.vmem %s1, 40
  %217 = vst.msk [vmem:[%s216] sm:$0xff] %vm215, %v214
  %s218 = scalar_lea.vmem %s0, 66
  %v219 = vld [vmem:[%s218] ss:$8 sm:$0xf]
  %s220 = scalar_lea.vmem %s0, 66
  %v221 = vld [vmem:[%s220] ss:$8 sm:$0xf0]
  %vm222 = vcmask 1047556
  %v223 = vsel %vm222, %v221, %v219
  %224 = vrot.lane.b32.xlu0 %v223, 64
  %v225 = vpop.permute.xlu0 %224
  %vm226 = vcmask 785920
  %s227 = scalar_lea.vmem %s1, 16
  %228 = vst.msk [vmem:[%s227] sm:$0xff] %vm226, %v225
  %s229 = scalar_lea.vmem %s0, 194
  %v230 = vld [vmem:[%s229] ss:$8 sm:$0xf]
  %s231 = scalar_lea.vmem %s0, 194
  %v232 = vld [vmem:[%s231] ss:$8 sm:$0xf0]
  %vm233 = vcmask 1047556
  %v234 = vsel %vm233, %v232, %v230
  %235 = vrot.lane.b32.xlu0 %v234, 64
  %v236 = vpop.permute.xlu0 %235
  %vm237 = vcmask 785920
  %s238 = scalar_lea.vmem %s1, 48
  %239 = vst.msk [vmem:[%s238] sm:$0xff] %vm237, %v236
  %s240 = scalar_lea.vmem %s0, 70
  %v241 = vld [vmem:[%s240] ss:$8 sm:$0xf]
  %s242 = scalar_lea.vmem %s0, 70
  %v243 = vld [vmem:[%s242] ss:$8 sm:$0xf0]
  %vm244 = vcmask 1047556
  %v245 = vsel %vm244, %v243, %v241
  %246 = vrot.lane.b32.xlu0 %v245, 64
  %v247 = vpop.permute.xlu0 %246
  %vm248 = vcmask 785920
  %s249 = scalar_lea.vmem %s1, 24
  %250 = vst.msk [vmem:[%s249] sm:$0xff] %vm248, %v247
  %s251 = scalar_lea.vmem %s0, 198
  %v252 = vld [vmem:[%s251] ss:$8 sm:$0xf]
  %s253 = scalar_lea.vmem %s0, 198
  %v254 = vld [vmem:[%s253] ss:$8 sm:$0xf0]
  %vm255 = vcmask 1047556
  %v256 = vsel %vm255, %v254, %v252
  %257 = vrot.lane.b32.xlu0 %v256, 64
  %v258 = vpop.permute.xlu0 %257
  %vm259 = vcmask 785920
  %s260 = scalar_lea.vmem %s1, 56
  %261 = vst.msk [vmem:[%s260] sm:$0xff] %vm259, %v258
  %s262 = scalar_lea.vmem %s0, 1
  %v263 = vld [vmem:[%s262] ss:$8 sm:$0xf]
  %s264 = scalar_lea.vmem %s0, 1
  %v265 = vld [vmem:[%s264] ss:$8 sm:$0xf0]
  %vm266 = vcmask 1047556
  %v267 = vsel %vm266, %v265, %v263
  %268 = vrot.lane.b32.xlu0 %v267, 32
  %v269 = vpop.permute.xlu0 %268
  %vm270 = vcmask 523520
  %271 = vst.msk [vmem:[%s1] sm:$0xff] %vm270, %v269
  %s272 = scalar_lea.vmem %s0, 129
  %v273 = vld [vmem:[%s272] ss:$8 sm:$0xf]
  %s274 = scalar_lea.vmem %s0, 129
  %v275 = vld [vmem:[%s274] ss:$8 sm:$0xf0]
  %vm276 = vcmask 1047556
  %v277 = vsel %vm276, %v275, %v273
  %278 = vrot.lane.b32.xlu0 %v277, 32
  %v279 = vpop.permute.xlu0 %278
  %vm280 = vcmask 523520
  %s281 = scalar_lea.vmem %s1, 32
  %282 = vst.msk [vmem:[%s281] sm:$0xff] %vm280, %v279
  %s283 = scalar_lea.vmem %s0, 5
  %v284 = vld [vmem:[%s283] ss:$8 sm:$0xf]
  %s285 = scalar_lea.vmem %s0, 5
  %v286 = vld [vmem:[%s285] ss:$8 sm:$0xf0]
  %vm287 = vcmask 1047556
  %v288 = vsel %vm287, %v286, %v284
  %289 = vrot.lane.b32.xlu0 %v288, 32
  %v290 = vpop.permute.xlu0 %289
  %vm291 = vcmask 523520
  %s292 = scalar_lea.vmem %s1, 8
  %293 = vst.msk [vmem:[%s292] sm:$0xff] %vm291, %v290
  %s294 = scalar_lea.vmem %s0, 133
  %v295 = vld [vmem:[%s294] ss:$8 sm:$0xf]
  %s296 = scalar_lea.vmem %s0, 133
  %v297 = vld [vmem:[%s296] ss:$8 sm:$0xf0]
  %vm298 = vcmask 1047556
  %v299 = vsel %vm298, %v297, %v295
  %300 = vrot.lane.b32.xlu0 %v299, 32
  %v301 = vpop.permute.xlu0 %300
  %vm302 = vcmask 523520
  %s303 = scalar_lea.vmem %s1, 40
  %304 = vst.msk [vmem:[%s303] sm:$0xff] %vm302, %v301
  %s305 = scalar_lea.vmem %s0, 65
  %v306 = vld [vmem:[%s305] ss:$8 sm:$0xf]
  %s307 = scalar_lea.vmem %s0, 65
  %v308 = vld [vmem:[%s307] ss:$8 sm:$0xf0]
  %vm309 = vcmask 1047556
  %v310 = vsel %vm309, %v308, %v306
  %311 = vrot.lane.b32.xlu0 %v310, 32
  %v312 = vpop.permute.xlu0 %311
  %vm313 = vcmask 523520
  %s314 = scalar_lea.vmem %s1, 16
  %315 = vst.msk [vmem:[%s314] sm:$0xff] %vm313, %v312
  %s316 = scalar_lea.vmem %s0, 193
  %v317 = vld [vmem:[%s316] ss:$8 sm:$0xf]
  %s318 = scalar_lea.vmem %s0, 193
  %v319 = vld [vmem:[%s318] ss:$8 sm:$0xf0]
  %vm320 = vcmask 1047556
  %v321 = vsel %vm320, %v319, %v317
  %322 = vrot.lane.b32.xlu0 %v321, 32
  %v323 = vpop.permute.xlu0 %322
  %vm324 = vcmask 523520
  %s325 = scalar_lea.vmem %s1, 48
  %326 = vst.msk [vmem:[%s325] sm:$0xff] %vm324, %v323
  %s327 = scalar_lea.vmem %s0, 69
  %v328 = vld [vmem:[%s327] ss:$8 sm:$0xf]
  %s329 = scalar_lea.vmem %s0, 69
  %v330 = vld [vmem:[%s329] ss:$8 sm:$0xf0]
  %vm331 = vcmask 1047556
  %v332 = vsel %vm331, %v330, %v328
  %333 = vrot.lane.b32.xlu0 %v332, 32
  %v334 = vpop.permute.xlu0 %333
  %vm335 = vcmask 523520
  %s336 = scalar_lea.vmem %s1, 24
  %337 = vst.msk [vmem:[%s336] sm:$0xff] %vm335, %v334
  %s338 = scalar_lea.vmem %s0, 197
  %v339 = vld [vmem:[%s338] ss:$8 sm:$0xf]
  %s340 = scalar_lea.vmem %s0, 197
  %v341 = vld [vmem:[%s340] ss:$8 sm:$0xf0]
  %vm342 = vcmask 1047556
  %v343 = vsel %vm342, %v341, %v339
  %344 = vrot.lane.b32.xlu0 %v343, 32
  %v345 = vpop.permute.xlu0 %344
  %vm346 = vcmask 523520
  %s347 = scalar_lea.vmem %s1, 56
  %348 = vst.msk [vmem:[%s347] sm:$0xff] %vm346, %v345

// kernel: tile.29
$region0: #{tile.29}
  %s0 = inlined_call_operand.vmem [shape: f32[16,16,16], index: 0, kind: input, shape index: {}]
  %s1 = inlined_call_operand.vmem [shape: f32[256,16], index: 1, kind: output, shape index: {}]
  %v2 = vld [vmem:[%s0] ss:$8 sm:$0xf]
  %v3 = vld [vmem:[%s0] ss:$8 sm:$0xf0]
  %vm4 = vcmask 1047556
  %v5 = vsel %vm4, %v3, %v2
  %vm6 = vcmask 130048
  %7 = vst.msk [vmem:[%s1] ss:$8 sm:$0x3] %vm6, %v5
  %s8 = scalar_lea.vmem %s1, 4294967281
  %9 = vst.msk [vmem:[%s8] ss:$8 sm:$0xc] %vm6, %v5
  %s10 = scalar_lea.vmem %s1, 4294967266
  %11 = vst.msk [vmem:[%s10] ss:$8 sm:$0x30] %vm6, %v5
  %s12 = scalar_lea.vmem %s1, 4294967251
  %13 = vst.msk [vmem:[%s12] ss:$8 sm:$0xc0] %vm6, %v5
  %s14 = scalar_lea.vmem %s0, 64
  %v15 = vld [vmem:[%s14] ss:$8 sm:$0xf]
  %s16 = scalar_lea.vmem %s0, 64
  %v17 = vld [vmem:[%s16] ss:$8 sm:$0xf0]
  %vm18 = vcmask 1047556
  %v19 = vsel %vm18, %v17, %v15
  %vm20 = vcmask 130048
  %s21 = scalar_lea.vmem %s1, 4
  %22 = vst.msk [vmem:[%s21] ss:$8 sm:$0x3] %vm20, %v19
  %s23 = scalar_lea.vmem %s1, 4294967285
  %24 = vst.msk [vmem:[%s23] ss:$8 sm:$0xc] %vm20, %v19
  %s25 = scalar_lea.vmem %s1, 4294967270
  %26 = vst.msk [vmem:[%s25] ss:$8 sm:$0x30] %vm20, %v19
  %s27 = scalar_lea.vmem %s1, 4294967255
  %28 = vst.msk [vmem:[%s27] ss:$8 sm:$0xc0] %vm20, %v19
  %s29 = scalar_lea.vmem %s0, 128
  %v30 = vld [vmem:[%s29] ss:$8 sm:$0xf]
  %s31 = scalar_lea.vmem %s0, 128
  %v32 = vld [vmem:[%s31] ss:$8 sm:$0xf0]
  %vm33 = vcmask 1047556
  %v34 = vsel %vm33, %v32, %v30
  %vm35 = vcmask 130048
  %s36 = scalar_lea.vmem %s1, 16
  %37 = vst.msk [vmem:[%s36] ss:$8 sm:$0x3] %vm35, %v34
  %s38 = scalar_lea.vmem %s1, 1
  %39 = vst.msk [vmem:[%s38] ss:$8 sm:$0xc] %vm35, %v34
  %s40 = scalar_lea.vmem %s1, 4294967282
  %41 = vst.msk [vmem:[%s40] ss:$8 sm:$0x30] %vm35, %v34
  %s42 = scalar_lea.vmem %s1, 4294967267
  %43 = vst.msk [vmem:[%s42] ss:$8 sm:$0xc0] %vm35, %v34
  %s44 = scalar_lea.vmem %s0, 192
  %v45 = vld [vmem:[%s44] ss:$8 sm:$0xf]
  %s46 = scalar_lea.vmem %s0, 192
  %v47 = vld [vmem:[%s46] ss:$8 sm:$0xf0]
  %vm48 = vcmask 1047556
  %v49 = vsel %vm48, %v47, %v45
  %vm50 = vcmask 130048
  %s51 = scalar_lea.vmem %s1, 20
  %52 = vst.msk [vmem:[%s51] ss:$8 sm:$0x3] %vm50, %v49
  %s53 = scalar_lea.vmem %s1, 5
  %54 = vst.msk [vmem:[%s53] ss:$8 sm:$0xc] %vm50, %v49
  %s55 = scalar_lea.vmem %s1, 4294967286
  %56 = vst.msk [vmem:[%s55] ss:$8 sm:$0x30] %vm50, %v49
  %s57 = scalar_lea.vmem %s1, 4294967271
  %58 = vst.msk [vmem:[%s57] ss:$8 sm:$0xc0] %vm50, %v49
  %s59 = scalar_lea.vmem %s0, 7
  %s60 = smov 3
  %v61 = vld [vmem:[%s59] ss:$16 sm:%s60]
  %s62 = scalar_lea.vmem %s0, 7
  %s63 = smov 12
  %v64 = vld [vmem:[%s62] ss:$16 sm:%s63]
  %vm65 = vcmask 1043458
  %v66 = vsel %vm65, %v64, %v61
  %s67 = scalar_lea.vmem %s0, 7
  %s68 = smov 48
  %v69 = vld [vmem:[%s67] ss:$16 sm:%s68]
  %vm70 = vcmask 1045508
  %v71 = vsel %vm70, %v69, %v66
  %s72 = scalar_lea.vmem %s0, 7
  %s73 = smov 192
  %v74 = vld [vmem:[%s72] ss:$16 sm:%s73]
  %vm75 = vcmask 1047558
  %v76 = vsel %vm75, %v74, %v71
  %77 = vrot.lane.b32.xlu0 %v76, 112
  %v78 = vpop.permute.xlu0 %77
  %vm79 = vcmask 1048448
  %80 = vst.msk [vmem:[%s1] sm:$0xff] %vm79, %v78
  %s81 = scalar_lea.vmem %s0, 15
  %s82 = smov 3
  %v83 = vld [vmem:[%s81] ss:$16 sm:%s82]
  %s84 = scalar_lea.vmem %s0, 15
  %s85 = smov 12
  %v86 = vld [vmem:[%s84] ss:$16 sm:%s85]
  %vm87 = vcmask 1043458
  %v88 = vsel %vm87, %v86, %v83
  %s89 = scalar_lea.vmem %s0, 15
  %s90 = smov 48
  %v91 = vld [vmem:[%s89] ss:$16 sm:%s90]
  %vm92 = vcmask 1045508
  %v93 = vsel %vm92, %v91, %v88
  %s94 = scalar_lea.vmem %s0, 15
  %s95 = smov 192
  %v96 = vld [vmem:[%s94] ss:$16 sm:%s95]
  %vm97 = vcmask 1047558
  %v98 = vsel %vm97, %v96, %v93
  %99 = vrot.lane.b32.xlu0 %v98, 112
  %v100 = vpop.permute.xlu0 %99
  %vm101 = vcmask 1048448
  %s102 = scalar_lea.vmem %s1, 8
  %103 = vst.msk [vmem:[%s102] sm:$0xff] %vm101, %v100
  %s104 = scalar_lea.vmem %s0, 135
  %s105 = smov 3
  %v106 = vld [vmem:[%s104] ss:$16 sm:%s105]
  %s107 = scalar_lea.vmem %s0, 135
  %s108 = smov 12
  %v109 = vld [vmem:[%s107] ss:$16 sm:%s108]
  %vm110 = vcmask 1043458
  %v111 = vsel %vm110, %v109, %v106
  %s112 = scalar_lea.vmem %s0, 135
  %s113 = smov 48
  %v114 = vld [vmem:[%s112] ss:$16 sm:%s113]
  %vm115 = vcmask 1045508
  %v116 = vsel %vm115, %v114, %v111
  %s117 = scalar_lea.vmem %s0, 135
  %s118 = smov 192
  %v119 = vld [vmem:[%s117] ss:$16 sm:%s118]
  %vm120 = vcmask 1047558
  %v121 = vsel %vm120, %v119, %v116
  %122 = vrot.lane.b32.xlu0 %v121, 112
  %v123 = vpop.permute.xlu0 %122
  %vm124 = vcmask 1048448
  %s125 = scalar_lea.vmem %s1, 16
  %126 = vst.msk [vmem:[%s125] sm:$0xff] %vm124, %v123
  %s127 = scalar_lea.vmem %s0, 143
  %s128 = smov 3
  %v129 = vld [vmem:[%s127] ss:$16 sm:%s128]
  %s130 = scalar_lea.vmem %s0, 143
  %s131 = smov 12
  %v132 = vld [vmem:[%s130] ss:$16 sm:%s131]
  %vm133 = vcmask 1043458
  %v134 = vsel %vm133, %v132, %v129
  %s135 = scalar_lea.vmem %s0, 143
  %s136 = smov 48
  %v137 = vld [vmem:[%s135] ss:$16 sm:%s136]
  %vm138 = vcmask 1045508
  %v139 = vsel %vm138, %v137, %v134
  %s140 = scalar_lea.vmem %s0, 143
  %s141 = smov 192
  %v142 = vld [vmem:[%s140] ss:$16 sm:%s141]
  %vm143 = vcmask 1047558
  %v144 = vsel %vm143, %v142, %v139
  %145 = vrot.lane.b32.xlu0 %v144, 112
  %v146 = vpop.permute.xlu0 %145
  %vm147 = vcmask 1048448
  %s148 = scalar_lea.vmem %s1, 24
  %149 = vst.msk [vmem:[%s148] sm:$0xff] %vm147, %v146
  %s150 = scalar_lea.vmem %s0, 6
  %s151 = smov 3
  %v152 = vld [vmem:[%s150] ss:$16 sm:%s151]
  %s153 = scalar_lea.vmem %s0, 6
  %s154 = smov 12
  %v155 = vld [vmem:[%s153] ss:$16 sm:%s154]
  %vm156 = vcmask 1043458
  %v157 = vsel %vm156, %v155, %v152
  %s158 = scalar_lea.vmem %s0, 6
  %s159 = smov 48
  %v160 = vld [vmem:[%s158] ss:$16 sm:%s159]
  %vm161 = vcmask 1045508
  %v162 = vsel %vm161, %v160, %v157
  %s163 = scalar_lea.vmem %s0, 6
  %s164 = smov 192
  %v165 = vld [vmem:[%s163] ss:$16 sm:%s164]
  %vm166 = vcmask 1047558
  %v167 = vsel %vm166, %v165, %v162
  %168 = vrot.lane.b32.xlu0 %v167, 96
  %v169 = vpop.permute.xlu0 %168
  %vm170 = vcmask 917248
  %171 = vst.msk [vmem:[%s1] sm:$0xff] %vm170, %v169
  %s172 = scalar_lea.vmem %s0, 14
  %s173 = smov 3
  %v174 = vld [vmem:[%s172] ss:$16 sm:%s173]
  %s175 = scalar_lea.vmem %s0, 14
  %s176 = smov 12
  %v177 = vld [vmem:[%s175] ss:$16 sm:%s176]
  %vm178 = vcmask 1043458
  %v179 = vsel %vm178, %v177, %v174
  %s180 = scalar_lea.vmem %s0, 14
  %s181 = smov 48
  %v182 = vld [vmem:[%s180] ss:$16 sm:%s181]
  %vm183 = vcmask 1045508
  %v184 = vsel %vm183, %v182, %v179
  %s185 = scalar_lea.vmem %s0, 14
  %s186 = smov 192
  %v187 = vld [vmem:[%s185] ss:$16 sm:%s186]
  %vm188 = vcmask 1047558
  %v189 = vsel %vm188, %v187, %v184
  %190 = vrot.lane.b32.xlu0 %v189, 96
  %v191 = vpop.permute.xlu0 %190
  %vm192 = vcmask 917248
  %s193 = scalar_lea.vmem %s1, 8
  %194 = vst.msk [vmem:[%s193] sm:$0xff] %vm192, %v191
  %s195 = scalar_lea.vmem %s0, 134
  %s196 = smov 3
  %v197 = vld [vmem:[%s195] ss:$16 sm:%s196]
  %s198 = scalar_lea.vmem %s0, 134
  %s199 = smov 12
  %v200 = vld [vmem:[%s198] ss:$16 sm:%s199]
  %vm201 = vcmask 1043458
  %v202 = vsel %vm201, %v200, %v197
  %s203 = scalar_lea.vmem %s0, 134
  %s204 = smov 48
  %v205 = vld [vmem:[%s203] ss:$16 sm:%s204]
  %vm206 = vcmask 1045508
  %v207 = vsel %vm206, %v205, %v202
  %s208 = scalar_lea.vmem %s0, 134
  %s209 = smov 192
  %v210 = vld [vmem:[%s208] ss:$16 sm:%s209]
  %vm211 = vcmask 1047558
  %v212 = vsel %vm211, %v210, %v207
  %213 = vrot.lane.b32.xlu0 %v212, 96
  %v214 = vpop.permute.xlu0 %213
  %vm215 = vcmask 917248
  %s216 = scalar_lea.vmem %s1, 16
  %217 = vst.msk [vmem:[%s216] sm:$0xff] %vm215, %v214
  %s218 = scalar_lea.vmem %s0, 142
  %s219 = smov 3
  %v220 = vld [vmem:[%s218] ss:$16 sm:%s219]
  %s221 = scalar_lea.vmem %s0, 142
  %s222 = smov 12
  %v223 = vld [vmem:[%s221] ss:$16 sm:%s222]
  %vm224 = vcmask 1043458
  %v225 = vsel %vm224, %v223, %v220
  %s226 = scalar_lea.vmem %s0, 142
  %s227 = smov 48
  %v228 = vld [vmem:[%s226] ss:$16 sm:%s227]
  %vm229 = vcmask 1045508
  %v230 = vsel %vm229, %v228, %v225
  %s231 = scalar_lea.vmem %s0, 142
  %s232 = smov 192
  %v233 = vld [vmem:[%s231] ss:$16 sm:%s232]
  %vm234 = vcmask 1047558
  %v235 = vsel %vm234, %v233, %v230
  %236 = vrot.lane.b32.xlu0 %v235, 96
  %v237 = vpop.permute.xlu0 %236
  %vm238 = vcmask 917248
  %s239 = scalar_lea.vmem %s1, 24
  %240 = vst.msk [vmem:[%s239] sm:$0xff] %vm238, %v237
  %s241 = scalar_lea.vmem %s0, 5
  %s242 = smov 3
  %v243 = vld [vmem:[%s241] ss:$16 sm:%s242]
  %s244 = scalar_lea.vmem %s0, 5
  %s245 = smov 12
  %v246 = vld [vmem:[%s244] ss:$16 sm:%s245]
  %vm247 = vcmask 1043458
  %v248 = vsel %vm247, %v246, %v243
  %s249 = scalar_lea.vmem %s0, 5
  %s250 = smov 48
  %v251 = vld [vmem:[%s249] ss:$16 sm:%s250]
  %vm252 = vcmask 1045508
  %v253 = vsel %vm252, %v251, %v248
  %s254 = scalar_lea.vmem %s0, 5
  %s255 = smov 192
  %v256 = vld [vmem:[%s254] ss:$16 sm:%s255]
  %vm257 = vcmask 1047558
  %v258 = vsel %vm257, %v256, %v253
  %259 = vrot.lane.b32.xlu0 %v258, 80
  %v260 = vpop.permute.xlu0 %259
  %vm261 = vcmask 786048
  %262 = vst.msk [vmem:[%s1] sm:$0xff] %vm261, %v260
  %s263 = scalar_lea.vmem %s0, 13
  %s264 = smov 3
  %v265 = vld [vmem:[%s263] ss:$16 sm:%s264]
  %s266 = scalar_lea.vmem %s0, 13
  %s267 = smov 12
  %v268 = vld [vmem:[%s266] ss:$16 sm:%s267]
  %vm269 = vcmask 1043458
  %v270 = vsel %vm269, %v268, %v265
  %s271 = scalar_lea.vmem %s0, 13
  %s272 = smov 48
  %v273 = vld [vmem:[%s271] ss:$16 sm:%s272]
  %vm274 = vcmask 1045508
  %v275 = vsel %vm274, %v273, %v270
  %s276 = scalar_lea.vmem %s0, 13
  %s277 = smov 192
  %v278 = vld [vmem:[%s276] ss:$16 sm:%s277]
  %vm279 = vcmask 1047558
  %v280 = vsel %vm279, %v278, %v275
  %281 = vrot.lane.b32.xlu0 %v280, 80
  %v282 = vpop.permute.xlu0 %281
  %vm283 = vcmask 786048
  %s284 = scalar_lea.vmem %s1, 8
  %285 = vst.msk [vmem:[%s284] sm:$0xff] %vm283, %v282
  %s286 = scalar_lea.vmem %s0, 133
  %s287 = smov 3
  %v288 = vld [vmem:[%s286] ss:$16 sm:%s287]
  %s289 = scalar_lea.vmem %s0, 133
  %s290 = smov 12
  %v291 = vld [vmem:[%s289] ss:$16 sm:%s290]
  %vm292 = vcmask 1043458
  %v293 = vsel %vm292, %v291, %v288
  %s294 = scalar_lea.vmem %s0, 133
  %s295 = smov 48
  %v296 = vld [vmem:[%s294] ss:$16 sm:%s295]
  %vm297 = vcmask 1045508
  %v298 = vsel %vm297, %v296, %v293
  %s299 = scalar_lea.vmem %s0, 133
  %s300 = smov 192
  %v301 = vld [vmem:[%s299] ss:$16 sm:%s300]
  %vm302 = vcmask 1047558
  %v303 = vsel %vm302, %v301, %v298
  %304 = vrot.lane.b32.xlu0 %v303, 80
  %v305 = vpop.permute.xlu0 %304
  %vm306 = vcmask 786048
  %s307 = scalar_lea.vmem %s1, 16
  %308 = vst.msk [vmem:[%s307] sm:$0xff] %vm306, %v305
  %s309 = scalar_lea.vmem %s0, 141
  %s310 = smov 3
  %v311 = vld [vmem:[%s309] ss:$16 sm:%s310]
  %s312 = scalar_lea.vmem %s0, 141
  %s313 = smov 12
  %v314 = vld [vmem:[%s312] ss:$16 sm:%s313]
  %vm315 = vcmask 1043458
  %v316 = vsel %vm315, %v314, %v311
  %s317 = scalar_lea.vmem %s0, 141
  %s318 = smov 48
  %v319 = vld [vmem:[%s317] ss:$16 sm:%s318]
  %vm320 = vcmask 1045508
  %v321 = vsel %vm320, %v319, %v316
  %s322 = scalar_lea.vmem %s0, 141
  %s323 = smov 192
  %v324 = vld [vmem:[%s322] ss:$16 sm:%s323]
  %vm325 = vcmask 1047558
  %v326 = vsel %vm325, %v324, %v321
  %327 = vrot.lane.b32.xlu0 %v326, 80
  %v328 = vpop.permute.xlu0 %327
  %vm329 = vcmask 786048
  %s330 = scalar_lea.vmem %s1, 24
  %331 = vst.msk [vmem:[%s330] sm:$0xff] %vm329, %v328
  %s332 = scalar_lea.vmem %s0, 4
  %s333 = smov 3
  %v334 = vld [vmem:[%s332] ss:$16 sm:%s333]
  %s335 = scalar_lea.vmem %s0, 4
  %s336 = smov 12
  %v337 = vld [vmem:[%s335] ss:$16 sm:%s336]
  %vm338 = vcmask 1043458
  %v339 = vsel %vm338, %v337, %v334
  %s340 = scalar_lea.vmem %s0, 4
  %s341 = smov 48
  %v342 = vld [vmem:[%s340] ss:$16 sm:%s341]
  %vm343 = vcmask 1045508
  %v344 = vsel %vm343, %v342, %v339
  %s345 = scalar_lea.vmem %s0, 4
  %s346 = smov 192
  %v347 = vld [vmem:[%s345] ss:$16 sm:%s346]
  %vm348 = vcmask 1047558
  %v349 = vsel %vm348, %v347, %v344
  %350 = vrot.lane.b32.xlu0 %v349, 64
  %v351 = vpop.permute.xlu0 %350
  %vm352 = vcmask 654848
  %353 = vst.msk [vmem:[%s1] sm:$0xff] %vm352, %v351
  %s354 = scalar_lea.vmem %s0, 12
  %s355 = smov 3
  %v356 = vld [vmem:[%s354] ss:$16 sm:%s355]
  %s357 = scalar_lea.vmem %s0, 12
  %s358 = smov 12
  %v359 = vld [vmem:[%s357] ss:$16 sm:%s358]
  %vm360 = vcmask 1043458
  %v361 = vsel %vm360, %v359, %v356
  %s362 = scalar_lea.vmem %s0, 12
  %s363 = smov 48
  %v364 = vld [vmem:[%s362] ss:$16 sm:%s363]
  %vm365 = vcmask 1045508
  %v366 = vsel %vm365, %v364, %v361
  %s367 = scalar_lea.vmem %s0, 12
  %s368 = smov 192
  %v369 = vld [vmem:[%s367] ss:$16 sm:%s368]
  %vm370 = vcmask 1047558
  %v371 = vsel %vm370, %v369, %v366
  %372 = vrot.lane.b32.xlu0 %v371, 64
  %v373 = vpop.permute.xlu0 %372
  %vm374 = vcmask 654848
  %s375 = scalar_lea.vmem %s1, 8
  %376 = vst.msk [vmem:[%s375] sm:$0xff] %vm374, %v373
  %s377 = scalar_lea.vmem %s0, 132
  %s378 = smov 3
  %v379 = vld [vmem:[%s377] ss:$16 sm:%s378]
  %s380 = scalar_lea.vmem %s0, 132
  %s381 = smov 12
  %v382 = vld [vmem:[%s380] ss:$16 sm:%s381]
  %vm383 = vcmask 1043458
  %v384 = vsel %vm383, %v382, %v379
  %s385 = scalar_lea.vmem %s0, 132
  %s386 = smov 48
  %v387 = vld [vmem:[%s385] ss:$16 sm:%s386]
  %vm388 = vcmask 1045508
  %v389 = vsel %vm388, %v387, %v384
  %s390 = scalar_lea.vmem %s0, 132
  %s391 = smov 192
  %v392 = vld [vmem:[%s390] ss:$16 sm:%s391]
  %vm393 = vcmask 1047558
  %v394 = vsel %vm393, %v392, %v389
  %395 = vrot.lane.b32.xlu0 %v394, 64
  %v396 = vpop.permute.xlu0 %395
  %vm397 = vcmask 654848
  %s398 = scalar_lea.vmem %s1, 16
  %399 = vst.msk [vmem:[%s398] sm:$0xff] %vm397, %v396
  %s400 = scalar_lea.vmem %s0, 140
  %s401 = smov 3
  %v402 = vld [vmem:[%s400] ss:$16 sm:%s401]
  %s403 = scalar_lea.vmem %s0, 140
  %s404 = smov 12
  %v405 = vld [vmem:[%s403] ss:$16 sm:%s404]
  %vm406 = vcmask 1043458
  %v407 = vsel %vm406, %v405, %v402
  %s408 = scalar_lea.vmem %s0, 140
  %s409 = smov 48
  %v410 = vld [vmem:[%s408] ss:$16 sm:%s409]
  %vm411 = vcmask 1045508
  %v412 = vsel %vm411, %v410, %v407
  %s413 = scalar_lea.vmem %s0, 140
  %s414 = smov 192
  %v415 = vld [vmem:[%s413] ss:$16 sm:%s414]
  %vm416 = vcmask 1047558
  %v417 = vsel %vm416, %v415, %v412
  %418 = vrot.lane.b32.xlu0 %v417, 64
  %v419 = vpop.permute.xlu0 %418
  %vm420 = vcmask 654848
  %s421 = scalar_lea.vmem %s1, 24
  %422 = vst.msk [vmem:[%s421] sm:$0xff] %vm420, %v419
  %s423 = scalar_lea.vmem %s0, 3
  %s424 = smov 3
  %v425 = vld [vmem:[%s423] ss:$16 sm:%s424]
  %s426 = scalar_lea.vmem %s0, 3
  %s427 = smov 12
  %v428 = vld [vmem:[%s426] ss:$16 sm:%s427]
  %vm429 = vcmask 1043458
  %v430 = vsel %vm429, %v428, %v425
  %s431 = scalar_lea.vmem %s0, 3
  %s432 = smov 48
  %v433 = vld [vmem:[%s431] ss:$16 sm:%s432]
  %vm434 = vcmask 1045508
  %v435 = vsel %vm434, %v433, %v430
  %s436 = scalar_lea.vmem %s0, 3
  %s437 = smov 192
  %v438 = vld [vmem:[%s436] ss:$16 sm:%s437]
  %vm439 = vcmask 1047558
  %v440 = vsel %vm439, %v438, %v435
  %441 = vrot.lane.b32.xlu0 %v440, 48
  %v442 = vpop.permute.xlu0 %441
  %vm443 = vcmask 523648
  %444 = vst.msk [vmem:[%s1] sm:$0xff] %vm443, %v442
  %s445 = scalar_lea.vmem %s0, 11
  %s446 = smov 3
  %v447 = vld [vmem:[%s445] ss:$16 sm:%s446]
  %s448 = scalar_lea.vmem %s0, 11
  %s449 = smov 12
  %v450 = vld [vmem:[%s448] ss:$16 sm:%s449]
  %vm451 = vcmask 1043458
  %v452 = vsel %vm451, %v450, %v447
  %s453 = scalar_lea.vmem %s0, 11
  %s454 = smov 48
  %v455 = vld [vmem:[%s453] ss:$16 sm:%s454]
  %vm456 = vcmask 1045508
  %v457 = vsel %vm456, %v455, %v452
  %s458 = scalar_lea.vmem %s0, 11
  %s459 = smov 192
  %v460 = vld [vmem:[%s458] ss:$16 sm:%s459]
  %vm461 = vcmask 1047558
  %v462 = vsel %vm461, %v460, %v457
  %463 = vrot.lane.b32.xlu0 %v462, 48
  %v464 = vpop.permute.xlu0 %463
  %vm465 = vcmask 523648
  %s466 = scalar_lea.vmem %s1, 8
  %467 = vst.msk [vmem:[%s466] sm:$0xff] %vm465, %v464
  %s468 = scalar_lea.vmem %s0, 131
  %s469 = smov 3
  %v470 = vld [vmem:[%s468] ss:$16 sm:%s469]
  %s471 = scalar_lea.vmem %s0, 131
  %s472 = smov 12
  %v473 = vld [vmem:[%s471] ss:$16 sm:%s472]
  %vm474 = vcmask 1043458
  %v475 = vsel %vm474, %v473, %v470
  %s476 = scalar_lea.vmem %s0, 131
  %s477 = smov 48
  %v478 = vld [vmem:[%s476] ss:$16 sm:%s477]
  %vm479 = vcmask 1045508
  %v480 = vsel %vm479, %v478, %v475
  %s481 = scalar_lea.vmem %s0, 131
  %s482 = smov 192
  %v483 = vld [vmem:[%s481] ss:$16 sm:%s482]
  %vm484 = vcmask 1047558
  %v485 = vsel %vm484, %v483, %v480
  %486 = vrot.lane.b32.xlu0 %v485, 48
  %v487 = vpop.permute.xlu0 %486
  %vm488 = vcmask 523648
  %s489 = scalar_lea.vmem %s1, 16
  %490 = vst.msk [vmem:[%s489] sm:$0xff] %vm488, %v487
  %s491 = scalar_lea.vmem %s0, 139
  %s492 = smov 3
  %v493 = vld [vmem:[%s491] ss:$16 sm:%s492]
  %s494 = scalar_lea.vmem %s0, 139
  %s495 = smov 12
  %v496 = vld [vmem:[%s494] ss:$16 sm:%s495]
  %vm497 = vcmask 1043458
  %v498 = vsel %vm497, %v496, %v493
  %s499 = scalar_lea.vmem %s0, 139
  %s500 = smov 48
  %v501 = vld [vmem:[%s499] ss:$16 sm:%s500]
  %vm502 = vcmask 1045508
  %v503 = vsel %vm502, %v501, %v498
  %s504 = scalar_lea.vmem %s0, 139
  %s505 = smov 192
  %v506 = vld [vmem:[%s504] ss:$16 sm:%s505]
  %vm507 = vcmask 1047558
  %v508 = vsel %vm507, %v506, %v503
  %509 = vrot.lane.b32.xlu0 %v508, 48
  %v510 = vpop.permute.xlu0 %509
  %vm511 = vcmask 523648
  %s512 = scalar_lea.vmem %s1, 24
  %513 = vst.msk [vmem:[%s512] sm:$0xff] %vm511, %v510
  %s514 = scalar_lea.vmem %s0, 2
  %s515 = smov 3
  %v516 = vld [vmem:[%s514] ss:$16 sm:%s515]
  %s517 = scalar_lea.vmem %s0, 2
  %s518 = smov 12
  %v519 = vld [vmem:[%s517] ss:$16 sm:%s518]
  %vm520 = vcmask 1043458
  %v521 = vsel %vm520, %v519, %v516
  %s522 = scalar_lea.vmem %s0, 2
  %s523 = smov 48
  %v524 = vld [vmem:[%s522] ss:$16 sm:%s523]
  %vm525 = vcmask 1045508
  %v526 = vsel %vm525, %v524, %v521
  %s527 = scalar_lea.vmem %s0, 2
  %s528 = smov 192
  %v529 = vld [vmem:[%s527] ss:$16 sm:%s528]
  %vm530 = vcmask 1047558
  %v531 = vsel %vm530, %v529, %v526
  %532 = vrot.lane.b32.xlu0 %v531, 32
  %v533 = vpop.permute.xlu0 %532
  %vm534 = vcmask 392448
  %535 = vst.msk [vmem:[%s1] sm:$0xff] %vm534, %v533
  %s536 = scalar_lea.vmem %s0, 10
  %s537 = smov 3
  %v538 = vld [vmem:[%s536] ss:$16 sm:%s537]
  %s539 = scalar_lea.vmem %s0, 10
  %s540 = smov 12
  %v541 = vld [vmem:[%s539] ss:$16 sm:%s540]
  %vm542 = vcmask 1043458
  %v543 = vsel %vm542, %v541, %v538
  %s544 = scalar_lea.vmem %s0, 10
  %s545 = smov 48
  %v546 = vld [vmem:[%s544] ss:$16 sm:%s545]
  %vm547 = vcmask 1045508
  %v548 = vsel %vm547, %v546, %v543
  %s549 = scalar_lea.vmem %s0, 10
  %s550 = smov 192
  %v551 = vld [vmem:[%s549] ss:$16 sm:%s550]
  %vm552 = vcmask 1047558
  %v553 = vsel %vm552, %v551, %v548
  %554 = vrot.lane.b32.xlu0 %v553, 32
  %v555 = vpop.permute.xlu0 %554
  %vm556 = vcmask 392448
  %s557 = scalar_lea.vmem %s1, 8
  %558 = vst.msk [vmem:[%s557] sm:$0xff] %vm556, %v555
  %s559 = scalar_lea.vmem %s0, 130
  %s560 = smov 3
  %v561 = vld [vmem:[%s559] ss:$16 sm:%s560]
  %s562 = scalar_lea.vmem %s0, 130
  %s563 = smov 12
  %v564 = vld [vmem:[%s562] ss:$16 sm:%s563]
  %vm565 = vcmask 1043458
  %v566 = vsel %vm565, %v564, %v561
  %s567 = scalar_lea.vmem %s0, 130
  %s568 = smov 48
  %v569 = vld [vmem:[%s567] ss:$16 sm:%s568]
  %vm570 = vcmask 1045508
  %v571 = vsel %vm570, %v569, %v566
  %s572 = scalar_lea.vmem %s0, 130
  %s573 = smov 192
  %v574 = vld [vmem:[%s572] ss:$16 sm:%s573]
  %vm575 = vcmask 1047558
  %v576 = vsel %vm575, %v574, %v571
  %577 = vrot.lane.b32.xlu0 %v576, 32
  %v578 = vpop.permute.xlu0 %577
  %vm579 = vcmask 392448
  %s580 = scalar_lea.vmem %s1, 16
  %581 = vst.msk [vmem:[%s580] sm:$0xff] %vm579, %v578
  %s582 = scalar_lea.vmem %s0, 138
  %s583 = smov 3
  %v584 = vld [vmem:[%s582] ss:$16 sm:%s583]
  %s585 = scalar_lea.vmem %s0, 138
  %s586 = smov 12
  %v587 = vld [vmem:[%s585] ss:$16 sm:%s586]
  %vm588 = vcmask 1043458
  %v589 = vsel %vm588, %v587, %v584
  %s590 = scalar_lea.vmem %s0, 138
  %s591 = smov 48
  %v592 = vld [vmem:[%s590] ss:$16 sm:%s591]
  %vm593 = vcmask 1045508
  %v594 = vsel %vm593, %v592, %v589
  %s595 = scalar_lea.vmem %s0, 138
  %s596 = smov 192
  %v597 = vld [vmem:[%s595] ss:$16 sm:%s596]
  %vm598 = vcmask 1047558
  %v599 = vsel %vm598, %v597, %v594
  %600 = vrot.lane.b32.xlu0 %v599, 32
  %v601 = vpop.permute.xlu0 %600
  %vm602 = vcmask 392448
  %s603 = scalar_lea.vmem %s1, 24
  %604 = vst.msk [vmem:[%s603] sm:$0xff] %vm602, %v601
  %s605 = scalar_lea.vmem %s0, 1
  %s606 = smov 3
  %v607 = vld [vmem:[%s605] ss:$16 sm:%s606]
  %s608 = scalar_lea.vmem %s0, 1
  %s609 = smov 12
  %v610 = vld [vmem:[%s608] ss:$16 sm:%s609]
  %vm611 = vcmask 1043458
  %v612 = vsel %vm611, %v610, %v607
  %s613 = scalar_lea.vmem %s0, 1
  %s614 = smov 48
  %v615 = vld [vmem:[%s613] ss:$16 sm:%s614]
  %vm616 = vcmask 1045508
  %v617 = vsel %vm616, %v615, %v612
  %s618 = scalar_lea.vmem %s0, 1
  %s619 = smov 192
  %v620 = vld [vmem:[%s618] ss:$16 sm:%s619]
  %vm621 = vcmask 1047558
  %v622 = vsel %vm621, %v620, %v617
  %623 = vrot.lane.b32.xlu0 %v622, 16
  %v624 = vpop.permute.xlu0 %623
  %vm625 = vcmask 261248
  %626 = vst.msk [vmem:[%s1] sm:$0xff] %vm625, %v624
  %s627 = scalar_lea.vmem %s0, 9
  %s628 = smov 3
  %v629 = vld [vmem:[%s627] ss:$16 sm:%s628]
  %s630 = scalar_lea.vmem %s0, 9
  %s631 = smov 12
  %v632 = vld [vmem:[%s630] ss:$16 sm:%s631]
  %vm633 = vcmask 1043458
  %v634 = vsel %vm633, %v632, %v629
  %s635 = scalar_lea.vmem %s0, 9
  %s636 = smov 48
  %v637 = vld [vmem:[%s635] ss:$16 sm:%s636]
  %vm638 = vcmask 1045508
  %v639 = vsel %vm638, %v637, %v634
  %s640 = scalar_lea.vmem %s0, 9
  %s641 = smov 192
  %v642 = vld [vmem:[%s640] ss:$16 sm:%s641]
  %vm643 = vcmask 1047558
  %v644 = vsel %vm643, %v642, %v639
  %645 = vrot.lane.b32.xlu0 %v644, 16
  %v646 = vpop.permute.xlu0 %645
  %vm647 = vcmask 261248
  %s648 = scalar_lea.vmem %s1, 8
  %649 = vst.msk [vmem:[%s648] sm:$0xff] %vm647, %v646
  %s650 = scalar_lea.vmem %s0, 129
  %s651 = smov 3
  %v652 = vld [vmem:[%s650] ss:$16 sm:%s651]
  %s653 = scalar_lea.vmem %s0, 129
  %s654 = smov 12
  %v655 = vld [vmem:[%s653] ss:$16 sm:%s654]
  %vm656 = vcmask 1043458
  %v657 = vsel %vm656, %v655, %v652
  %s658 = scalar_lea.vmem %s0, 129
  %s659 = smov 48
  %v660 = vld [vmem:[%s658] ss:$16 sm:%s659]
  %vm661 = vcmask 1045508
  %v662 = vsel %vm661, %v660, %v657
  %s663 = scalar_lea.vmem %s0, 129
  %s664 = smov 192
  %v665 = vld [vmem:[%s663] ss:$16 sm:%s664]
  %vm666 = vcmask 1047558
  %v667 = vsel %vm666, %v665, %v662
  %668 = vrot.lane.b32.xlu0 %v667, 16
  %v669 = vpop.permute.xlu0 %668
  %vm670 = vcmask 261248
  %s671 = scalar_lea.vmem %s1, 16
  %672 = vst.msk [vmem:[%s671] sm:$0xff] %vm670, %v669
  %s673 = scalar_lea.vmem %s0, 137
  %s674 = smov 3
  %v675 = vld [vmem:[%s673] ss:$16 sm:%s674]
  %s676 = scalar_lea.vmem %s0, 137
  %s677 = smov 12
  %v678 = vld [vmem:[%s676] ss:$16 sm:%s677]
  %vm679 = vcmask 1043458
  %v680 = vsel %vm679, %v678, %v675
  %s681 = scalar_lea.vmem %s0, 137
  %s682 = smov 48
  %v683 = vld [vmem:[%s681] ss:$16 sm:%s682]
  %vm684 = vcmask 1045508
  %v685 = vsel %vm684, %v683, %v680
  %s686 = scalar_lea.vmem %s0, 137
  %s687 = smov 192
  %v688 = vld [vmem:[%s686] ss:$16 sm:%s687]
  %vm689 = vcmask 1047558
  %v690 = vsel %vm689, %v688, %v685
  %691 = vrot.lane.b32.xlu0 %v690, 16
  %v692 = vpop.permute.xlu0 %691
  %vm693 = vcmask 261248
  %s694 = scalar_lea.vmem %s1, 24
  %695 = vst.msk [vmem:[%s694] sm:$0xff] %vm693, %v692

// kernel: tile.23
$region0: #{tile.23}
  #allocation0 [shape = 's32[1]{0}', space=sflag, size = 0x4, scoped, tag = 'scoped memory for tile.23']
  %s0 = inlined_call_operand.vmem [shape: f32[8], index: 0, kind: input, shape index: {}]
  %s1 = inlined_call_operand.vmem [shape: f32[32,8], index: 1, kind: output, shape index: {}]
  // Predicated region
  $region2: #{tile.23} parent=0 // pred_check
    _
  $region3: #{tile.23} parent=0 // pred_check_branch
    %3 = sbr.rel (0) target = $region5
  $region4: #{tile.23} parent=0 // pred_region
    _
  $region5: #{tile.23} parent=0 // pred_fallthru
    _
  %v4 = vld [vmem:[%s0] ss:$0 sm:$0xff]
  %5 = vst [vmem:[%s1] sm:$0xff] %v4
  %s6 = scalar_lea.vmem %s1, 8
  %7 = vst [vmem:[%s6] sm:$0xff] %v4
  %s8 = scalar_lea.vmem %s1, 16
  %9 = vst [vmem:[%s8] sm:$0xff] %v4
  %s10 = scalar_lea.vmem %s1, 24
  %11 = vst [vmem:[%s10] sm:$0xff] %v4

// kernel: tile.24
$region0: #{tile.24}
  %s0 = inlined_call_operand.vmem [shape: f32[32,8], index: 0, kind: input, shape index: {}]
  %s1 = inlined_call_operand.vmem [shape: f32[1,256], index: 1, kind: output, shape index: {}]
  $region1: #{tile.24} parent=0
    #allocation0 [shape = 'u8[8192]{0}', space=vmem, size = 0x2000, scoped, tag = 'scoped mem for output reshape']
    %s2 = smov 3
    %v3 = vld [vmem:[%s0] ss:$16 sm:%s2]
    %vm4 = vcmask 64512
    %5 = vst.msk [vmem:[#allocation0] ss:$8 sm:$0x3] %vm4, %v3
    %s6 = scalar_lea.vmem %s0, 15
    %s7 = smov 3
    %v8 = vld [vmem:[%s6] ss:$16 sm:%s7]
    %9 = vrot.lane.b32.xlu0 %v8, 120
    %v10 = vpop.permute.xlu0 %9
    %vm11 = vcmask 1048512
    %12 = vst.msk [vmem:[#allocation0] ss:$8 sm:$0x3] %vm11, %v10
    %s13 = scalar_lea.vmem %s0, 14
    %s14 = smov 3
    %v15 = vld [vmem:[%s13] ss:$16 sm:%s14]
    %16 = vrot.lane.b32.xlu0 %v15, 112
    %v17 = vpop.permute.xlu0 %16
    %vm18 = vcmask 982912
    %19 = vst.msk [vmem:[#allocation0] ss:$8 sm:$0x3] %vm18, %v17
    %s20 = scalar_lea.vmem %s0, 13
    %s21 = smov 3
    %v22 = vld [vmem:[%s20] ss:$16 sm:%s21]
    %23 = vrot.lane.b32.xlu0 %v22, 104
    %v24 = vpop.permute.xlu0 %23
    %vm25 = vcmask 917312
    %26 = vst.msk [vmem:[#allocation0] ss:$8 sm:$0x3] %vm25, %v24
    %s27 = scalar_lea.vmem %s0, 12
    %s28 = smov 3
    %v29 = vld [vmem:[%s27] ss:$16 sm:%s28]
    %30 = vrot.lane.b32.xlu0 %v29, 96
    %v31 = vpop.permute.xlu0 %30
    %vm32 = vcmask 851712
    %33 = vst.msk [vmem:[#allocation0] ss:$8 sm:$0x3] %vm32, %v31
    %s34 = scalar_lea.vmem %s0, 11
    %s35 = smov 3
    %v36 = vld [vmem:[%s34] ss:$16 sm:%s35]
    %37 = vrot.lane.b32.xlu0 %v36, 88
    %v38 = vpop.permute.xlu0 %37
    %vm39 = vcmask 786112
    %40 = vst.msk [vmem:[#allocation0] ss:$8 sm:$0x3] %vm39, %v38
    %s41 = scalar_lea.vmem %s0, 10
    %s42 = smov 3
    %v43 = vld [vmem:[%s41] ss:$16 sm:%s42]
    %44 = vrot.lane.b32.xlu0 %v43, 80
    %v45 = vpop.permute.xlu0 %44
    %vm46 = vcmask 720512
    %47 = vst.msk [vmem:[#allocation0] ss:$8 sm:$0x3] %vm46, %v45
    %s48 = scalar_lea.vmem %s0, 9
    %s49 = smov 3
    %v50 = vld [vmem:[%s48] ss:$16 sm:%s49]
    %51 = vrot.lane.b32.xlu0 %v50, 72
    %v52 = vpop.permute.xlu0 %51
    %vm53 = vcmask 654912
    %54 = vst.msk [vmem:[#allocation0] ss:$8 sm:$0x3] %vm53, %v52
    %s55 = scalar_lea.vmem %s0, 8
    %s56 = smov 3
    %v57 = vld [vmem:[%s55] ss:$16 sm:%s56]
    %58 = vrot.lane.b32.xlu0 %v57, 64
    %v59 = vpop.permute.xlu0 %58
    %vm60 = vcmask 589312
    %61 = vst.msk [vmem:[#allocation0] ss:$8 sm:$0x3] %vm60, %v59
    %s62 = scalar_lea.vmem %s0, 7
    %s63 = smov 3
    %v64 = vld [vmem:[%s62] ss:$16 sm:%s63]
    %65 = vrot.lane.b32.xlu0 %v64, 56
    %v66 = vpop.permute.xlu0 %65
    %vm67 = vcmask 523712
    %68 = vst.msk [vmem:[#allocation0] ss:$8 sm:$0x3] %vm67, %v66
    %s69 = scalar_lea.vmem %s0, 6
    %s70 = smov 3
    %v71 = vld [vmem:[%s69] ss:$16 sm:%s70]
    %72 = vrot.lane.b32.xlu0 %v71, 48
    %v73 = vpop.permute.xlu0 %72
    %vm74 = vcmask 458112
    %75 = vst.msk [vmem:[#allocation0] ss:$8 sm:$0x3] %vm74, %v73
    %s76 = scalar_lea.vmem %s0, 5
    %s77 = smov 3
    %v78 = vld [vmem:[%s76] ss:$16 sm:%s77]
    %79 = vrot.lane.b32.xlu0 %v78, 40
    %v80 = vpop.permute.xlu0 %79
    %vm81 = vcmask 392512
    %82 = vst.msk [vmem:[#allocation0] ss:$8 sm:$0x3] %vm81, %v80
    %s83 = scalar_lea.vmem %s0, 4
    %s84 = smov 3
    %v85 = vld [vmem:[%s83] ss:$16 sm:%s84]
    %86 = vrot.lane.b32.xlu0 %v85, 32
    %v87 = vpop.permute.xlu0 %86
    %vm88 = vcmask 326912
    %89 = vst.msk [vmem:[#allocation0] ss:$8 sm:$0x3] %vm88, %v87
    %s90 = scalar_lea.vmem %s0, 3
    %s91 = smov 3
    %v92 = vld [vmem:[%s90] ss:$16 sm:%s91]
    %93 = vrot.lane.b32.xlu0 %v92, 24
    %v94 = vpop.permute.xlu0 %93
    %vm95 = vcmask 261312
    %96 = vst.msk [vmem:[#allocation0] ss:$8 sm:$0x3] %vm95, %v94
    %s97 = scalar_lea.vmem %s0, 2
    %s98 = smov 3
    %v99 = vld [vmem:[%s97] ss:$16 sm:%s98]
    %100 = vrot.lane.b32.xlu0 %v99, 16
    %v101 = vpop.permute.xlu0 %100
    %vm102 = vcmask 195712
    %103 = vst.msk [vmem:[#allocation0] ss:$8 sm:$0x3] %vm102, %v101
    %s104 = scalar_lea.vmem %s0, 1
    %s105 = smov 3
    %v106 = vld [vmem:[%s104] ss:$16 sm:%s105]
    %107 = vrot.lane.b32.xlu0 %v106, 8
    %v108 = vpop.permute.xlu0 %107
    %vm109 = vcmask 130112
    %110 = vst.msk [vmem:[#allocation0] ss:$8 sm:$0x3] %vm109, %v108
    %s112 = sshll.u32 1, 1
    %s113 = ssub.s32 %s112, 1
    %v115 = vld [vmem:[#allocation0] sm:%s113]
    %s116 = sshll.u32 1, 1
    %s117 = ssub.s32 %s116, 1
    %118 = vst [vmem:[%s1] sm:%s117] %v115
    %s119 = scalar_lea.vmem [#allocation0], 8
    %v120 = vld [vmem:[%s119] sm:%s113]
    %s121 = sshll.u32 1, 1
    %s122 = ssub.s32 %s121, 1
    %s123 = scalar_lea.vmem %s1, 1
    %124 = vst [vmem:[%s123] sm:%s122] %v120

// kernel: _lambda_.1
$region0: #{_lambda_.1}
  #allocation0 [shape = 'u32[]', space=smem, size = 0x4, offset = 0x4, fixed_abs, tag = 'smem constant byte address 0x4 - core index']
  #allocation1 [shape = 'u32[144,128]{1,0:T(1,128)}', space=vmem, size = 0x12000, scoped, tag = 'internal scratch']
  #allocation2 [shape = 'f32[1,1]{1,0:T(1,128)S(1)}', space=vmem, size = 0x200, scoped, tag = 'scoped memory for _lambda_.1']
  %s0 = inlined_call_operand.vmem [shape: bf16[128,128], index: 0, kind: input, shape index: {}]
  %s1 = inlined_call_operand.vmem [shape: bf16[4,64,128], index: 1, kind: input, shape index: {}]
  %s2 = inlined_call_operand.vmem [shape: bf16[4,128,256], index: 2, kind: input, shape index: {}]
  %s3 = inlined_call_operand.vmem [shape: f32[1,256], index: 3, kind: input, shape index: {}]
  %s4 = inlined_call_operand.vmem [shape: bf16[4,32,64], index: 4, kind: input, shape index: {}]
  %s5 = inlined_call_operand.vmem [shape: bf16[4,256,256], index: 5, kind: input, shape index: {}]
  %s6 = inlined_call_operand.vmem [shape: f32[1,16], index: 6, kind: input, shape index: {}]
  %s7 = inlined_call_operand.vmem [shape: f32[1,16], index: 7, kind: input, shape index: {}]
  %s8 = inlined_call_operand.vmem [shape: f32[256,16], index: 8, kind: input, shape index: {}]
  %s9 = inlined_call_operand.vmem [shape: f32[16,256], index: 9, kind: input, shape index: {}]
  %s10 = inlined_call_operand.vmem [shape: bf16[4,16,32], index: 10, kind: input, shape index: {}]
  %s11 = inlined_call_operand.vmem [shape: bf16[4,256,256], index: 11, kind: input, shape index: {}]
  %s12 = inlined_call_operand.vmem [shape: f32[1,32], index: 12, kind: input, shape index: {}]
  %s13 = inlined_call_operand.vmem [shape: f32[1,32], index: 13, kind: input, shape index: {}]
  %s14 = inlined_call_operand.vmem [shape: f32[256,32], index: 14, kind: input, shape index: {}]
  %s15 = inlined_call_operand.vmem [shape: f32[32,256], index: 15, kind: input, shape index: {}]
  %s16 = inlined_call_operand.vmem [shape: bf16[4,8,16], index: 16, kind: input, shape index: {}]
  %s17 = inlined_call_operand.vmem [shape: bf16[4,256,256], index: 17, kind: input, shape index: {}]
  %s18 = inlined_call_operand.vmem [shape: f32[1,64], index: 18, kind: input, shape index: {}]
  %s19 = inlined_call_operand.vmem [shape: f32[1,64], index: 19, kind: input, shape index: {}]
  %s20 = inlined_call_operand.vmem [shape: f32[256,64], index: 20, kind: input, shape index: {}]
  %s21 = inlined_call_operand.vmem [shape: f32[64,256], index: 21, kind: input, shape index: {}]
  %s22 = inlined_call_operand.vmem [shape: bf16[4,2,8], index: 22, kind: input, shape index: {}]
  %s23 = inlined_call_operand.vmem [shape: bf16[4,256,1], index: 23, kind: input, shape index: {}]
  %s24 = inlined_call_operand.<no memory space> [shape: f32[1,1], index: 24, kind: input, shape index: {}]
  %s25 = inlined_call_operand.vmem [shape: f32[2,1], index: 25, kind: output, shape index: {}]
  %s26 = sld [smem:[#allocation0]]
  $region110: #{_lambda_.1} parent=0
    _
  %s28 = ssub.s32 1, %s26
  %s29 = scalar_select 0, %s28, %s26
  %v30 = vstv %s24
  %31 = vst [vmem:[#allocation2] sm:$0x1] %v30
  // Predicated region
  $region2: #{_lambda_.1} parent=0 // pred_check
    _
  $region3: #{_lambda_.1} parent=0 // pred_check_branch
    %33 = sbr.rel (0) target = $region5
  $region4: #{_lambda_.1} parent=0 // pred_region
    _
  $region5: #{_lambda_.1} parent=0 // pred_fallthru
    _
  // Predicated region
  $region6: #{_lambda_.1} parent=0 // pred_check
    _
  $region7: #{_lambda_.1} parent=0 // pred_check_branch
    %35 = sbr.rel (0) target = $region9
  $region8: #{_lambda_.1} parent=0 // pred_region
    _
  $region9: #{_lambda_.1} parent=0 // pred_fallthru
    _
  // Predicated region
  $region10: #{_lambda_.1} parent=0 // pred_check
    _
  $region11: #{_lambda_.1} parent=0 // pred_check_branch
    %37 = sbr.rel (0) target = $region13
  $region12: #{_lambda_.1} parent=0 // pred_region
    _
  $region13: #{_lambda_.1} parent=0 // pred_fallthru
    _
  // Predicated region
  $region14: #{_lambda_.1} parent=0 // pred_check
    _
  $region15: #{_lambda_.1} parent=0 // pred_check_branch
    %39 = sbr.rel (0) target = $region17
  $region16: #{_lambda_.1} parent=0 // pred_region
    _
  $region17: #{_lambda_.1} parent=0 // pred_fallthru
    _
  // Predicated region
  $region18: #{_lambda_.1} parent=0 // pred_check
    _
  $region19: #{_lambda_.1} parent=0 // pred_check_branch
    %41 = sbr.rel (0) target = $region21
  $region20: #{_lambda_.1} parent=0 // pred_region
    _
  $region21: #{_lambda_.1} parent=0 // pred_fallthru
    _
  // Predicated region
  $region22: #{_lambda_.1} parent=0 // pred_check
    _
  $region23: #{_lambda_.1} parent=0 // pred_check_branch
    %43 = sbr.rel (0) target = $region25
  $region24: #{_lambda_.1} parent=0 // pred_region
    _
  $region25: #{_lambda_.1} parent=0 // pred_fallthru
    _
  // Predicated region
  $region26: #{_lambda_.1} parent=0 // pred_check
    _
  $region27: #{_lambda_.1} parent=0 // pred_check_branch
    %45 = sbr.rel (0) target = $region29
  $region28: #{_lambda_.1} parent=0 // pred_region
    _
  $region29: #{_lambda_.1} parent=0 // pred_fallthru
    _
  // Predicated region
  $region30: #{_lambda_.1} parent=0 // pred_check
    _
  $region31: #{_lambda_.1} parent=0 // pred_check_branch
    %47 = sbr.rel (0) target = $region33
  $region32: #{_lambda_.1} parent=0 // pred_region
    _
  $region33: #{_lambda_.1} parent=0 // pred_fallthru
    _
  // Predicated region
  $region34: #{_lambda_.1} parent=0 // pred_check
    _
  $region35: #{_lambda_.1} parent=0 // pred_check_branch
    %49 = sbr.rel (0) target = $region37
  $region36: #{_lambda_.1} parent=0 // pred_region
    _
  $region37: #{_lambda_.1} parent=0 // pred_fallthru
    _
  // Predicated region
  $region38: #{_lambda_.1} parent=0 // pred_check
    _
  $region39: #{_lambda_.1} parent=0 // pred_check_branch
    %51 = sbr.rel (0) target = $region41
  $region40: #{_lambda_.1} parent=0 // pred_region
    _
  $region41: #{_lambda_.1} parent=0 // pred_fallthru
    _
  // Predicated region
  $region42: #{_lambda_.1} parent=0 // pred_check
    _
  $region43: #{_lambda_.1} parent=0 // pred_check_branch
    %53 = sbr.rel (0) target = $region45
  $region44: #{_lambda_.1} parent=0 // pred_region
    _
  $region45: #{_lambda_.1} parent=0 // pred_fallthru
    _
  // Predicated region
  $region46: #{_lambda_.1} parent=0 // pred_check
    _
  $region47: #{_lambda_.1} parent=0 // pred_check_branch
    %55 = sbr.rel (0) target = $region49
  $region48: #{_lambda_.1} parent=0 // pred_region
    _
  $region49: #{_lambda_.1} parent=0 // pred_fallthru
    _
  // Predicated region
  $region50: #{_lambda_.1} parent=0 // pred_check
    _
  $region51: #{_lambda_.1} parent=0 // pred_check_branch
    %57 = sbr.rel (0) target = $region53
  $region52: #{_lambda_.1} parent=0 // pred_region
    _
  $region53: #{_lambda_.1} parent=0 // pred_fallthru
    _
  // Predicated region
  $region54: #{_lambda_.1} parent=0 // pred_check
    _
  $region55: #{_lambda_.1} parent=0 // pred_check_branch
    %59 = sbr.rel (0) target = $region57
  $region56: #{_lambda_.1} parent=0 // pred_region
    _
  $region57: #{_lambda_.1} parent=0 // pred_fallthru
    _
  // Predicated region
  $region58: #{_lambda_.1} parent=0 // pred_check
    _
  $region59: #{_lambda_.1} parent=0 // pred_check_branch
    %61 = sbr.rel (0) target = $region61
  $region60: #{_lambda_.1} parent=0 // pred_region
    _
  $region61: #{_lambda_.1} parent=0 // pred_fallthru
    _
  // Predicated region
  $region62: #{_lambda_.1} parent=0 // pred_check
    _
  $region63: #{_lambda_.1} parent=0 // pred_check_branch
    %63 = sbr.rel (0) target = $region65
  $region64: #{_lambda_.1} parent=0 // pred_region
    _
  $region65: #{_lambda_.1} parent=0 // pred_fallthru
    _
  // Predicated region
  $region66: #{_lambda_.1} parent=0 // pred_check
    _
  $region67: #{_lambda_.1} parent=0 // pred_check_branch
    %65 = sbr.rel (0) target = $region69
  $region68: #{_lambda_.1} parent=0 // pred_region
    _
  $region69: #{_lambda_.1} parent=0 // pred_fallthru
    _
  // Predicated region
  $region70: #{_lambda_.1} parent=0 // pred_check
    _
  $region71: #{_lambda_.1} parent=0 // pred_check_branch
    %67 = sbr.rel (0) target = $region73
  $region72: #{_lambda_.1} parent=0 // pred_region
    _
  $region73: #{_lambda_.1} parent=0 // pred_fallthru
    _
  // Predicated region
  $region74: #{_lambda_.1} parent=0 // pred_check
    _
  $region75: #{_lambda_.1} parent=0 // pred_check_branch
    %69 = sbr.rel (0) target = $region77
  $region76: #{_lambda_.1} parent=0 // pred_region
    _
  $region77: #{_lambda_.1} parent=0 // pred_fallthru
    _
  // Predicated region
  $region78: #{_lambda_.1} parent=0 // pred_check
    _
  $region79: #{_lambda_.1} parent=0 // pred_check_branch
    %71 = sbr.rel (0) target = $region81
  $region80: #{_lambda_.1} parent=0 // pred_region
    _
  $region81: #{_lambda_.1} parent=0 // pred_fallthru
    _
  // Predicated region
  $region82: #{_lambda_.1} parent=0 // pred_check
    _
  $region83: #{_lambda_.1} parent=0 // pred_check_branch
    %73 = sbr.rel (0) target = $region85
  $region84: #{_lambda_.1} parent=0 // pred_region
    _
  $region85: #{_lambda_.1} parent=0 // pred_fallthru
    _
  // Predicated region
  $region86: #{_lambda_.1} parent=0 // pred_check
    _
  $region87: #{_lambda_.1} parent=0 // pred_check_branch
    %75 = sbr.rel (0) target = $region89
  $region88: #{_lambda_.1} parent=0 // pred_region
    _
  $region89: #{_lambda_.1} parent=0 // pred_fallthru
    _
  // Predicated region
  $region90: #{_lambda_.1} parent=0 // pred_check
    _
  $region91: #{_lambda_.1} parent=0 // pred_check_branch
    %77 = sbr.rel (0) target = $region93
  $region92: #{_lambda_.1} parent=0 // pred_region
    _
  $region93: #{_lambda_.1} parent=0 // pred_fallthru
    _
  // Predicated region
  $region94: #{_lambda_.1} parent=0 // pred_check
    _
  $region95: #{_lambda_.1} parent=0 // pred_check_branch
    %79 = sbr.rel (0) target = $region97
  $region96: #{_lambda_.1} parent=0 // pred_region
    _
  $region97: #{_lambda_.1} parent=0 // pred_fallthru
    _
  // Predicated region
  $region98: #{_lambda_.1} parent=0 // pred_check
    _
  $region99: #{_lambda_.1} parent=0 // pred_check_branch
    %81 = sbr.rel (0) target = $region101
  $region100: #{_lambda_.1} parent=0 // pred_region
    _
  $region101: #{_lambda_.1} parent=0 // pred_fallthru
    _
  %v83 = vld [vmem:[%s0] sm:$0xf]
  %v84 = vld [vmem:[%s0 + $0x4] sm:$0xf]
  %v85 = vld [vmem:[%s0 + $0x8] sm:$0xf]
  %v86 = vld [vmem:[%s0 + $0xc] sm:$0xf]
  %v87 = vld [vmem:[%s0 + $0x10] sm:$0xf]
  %v88 = vld [vmem:[%s0 + $0x14] sm:$0xf]
  %v89 = vld [vmem:[%s0 + $0x18] sm:$0xf]
  %v90 = vld [vmem:[%s0 + $0x1c] sm:$0xf]
  %v91 = vld [vmem:[%s0 + $0x20] sm:$0xf]
  %v92 = vld [vmem:[%s0 + $0x24] sm:$0xf]
  %v93 = vld [vmem:[%s0 + $0x28] sm:$0xf]
  %v94 = vld [vmem:[%s0 + $0x2c] sm:$0xf]
  %v95 = vld [vmem:[%s0 + $0x30] sm:$0xf]
  %v96 = vld [vmem:[%s0 + $0x34] sm:$0xf]
  %v97 = vld [vmem:[%s0 + $0x38] sm:$0xf]
  %v98 = vld [vmem:[%s0 + $0x3c] sm:$0xf]
  %v99 = vld [vmem:[%s1] sm:$0xf]
  %v100 = vld [vmem:[%s1 + $0x4] sm:$0xf]
  %v101 = vld [vmem:[%s1 + $0x8] sm:$0xf]
  %v102 = vld [vmem:[%s1 + $0xc] sm:$0xf]
  %v103 = vld [vmem:[%s1 + $0x10] sm:$0xf]
  %v104 = vld [vmem:[%s1 + $0x14] sm:$0xf]
  %v105 = vld [vmem:[%s1 + $0x18] sm:$0xf]
  %v106 = vld [vmem:[%s1 + $0x1c] sm:$0xf]
  %v115 = vunpack.c.l.b16 %v99
  %v116 = vunpack.c.l.b16 %v100
  %v117 = vunpack.c.l.b16 %v101
  %v118 = vunpack.c.l.b16 %v102
  %v119 = vunpack.c.l.b16 %v103
  %v120 = vunpack.c.l.b16 %v104
  %v121 = vunpack.c.l.b16 %v105
  %v122 = vunpack.c.l.b16 %v106
  %v123 = vpack.c.b16 %v116, %v115
  %v124 = vpack.c.b16 %v118, %v117
  %v125 = vpack.c.b16 %v120, %v119
  %v126 = vpack.c.b16 %v122, %v121
  %v147 = vunpack.c.l.b16 %v83
  %v148 = vunpack.c.l.b16 %v84
  %v149 = vunpack.c.l.b16 %v85
  %v150 = vunpack.c.l.b16 %v86
  %v151 = vunpack.c.l.b16 %v87
  %v152 = vunpack.c.l.b16 %v88
  %v153 = vunpack.c.l.b16 %v89
  %v154 = vunpack.c.l.b16 %v90
  %v155 = vunpack.c.l.b16 %v91
  %v156 = vunpack.c.l.b16 %v92
  %v157 = vunpack.c.l.b16 %v93
  %v158 = vunpack.c.l.b16 %v94
  %v159 = vunpack.c.l.b16 %v95
  %v160 = vunpack.c.l.b16 %v96
  %v161 = vunpack.c.l.b16 %v97
  %v162 = vunpack.c.l.b16 %v98
  %v163 = vpack.c.b16 %v148, %v147
  %v164 = vpack.c.b16 %v150, %v149
  %v165 = vpack.c.b16 %v152, %v151
  %v166 = vpack.c.b16 %v154, %v153
  %v167 = vpack.c.b16 %v156, %v155
  %v168 = vpack.c.b16 %v158, %v157
  %v169 = vpack.c.b16 %v160, %v159
  %v170 = vpack.c.b16 %v162, %v161
  %179 = vmatprep.subr.bf16.mxu0 0
  %180 = vmatpush1.bf16.msra.mxu0 %v170
  %181 = vmatprep.subr.bf16.mxu0 0
  %182 = vmatpush1.bf16.msra.mxu0 %v169
  %183 = vmatprep.subr.bf16.mxu0 0
  %184 = vmatpush1.bf16.msra.mxu0 %v168
  %185 = vmatprep.subr.bf16.mxu0 0
  %186 = vmatpush1.bf16.msra.mxu0 %v167
  %187 = vmatprep.subr.bf16.mxu0 0
  %188 = vmatpush1.bf16.msra.mxu0 %v166
  %189 = vmatprep.subr.bf16.mxu0 0
  %190 = vmatpush1.bf16.msra.mxu0 %v165
  %191 = vmatprep.subr.bf16.mxu0 0
  %192 = vmatpush1.bf16.msra.mxu0 %v164
  %193 = vmatprep.subr.bf16.mxu0 0
  %194 = vmatpush1.bf16.msra.mxu0 %v163
  %195 = vmatprep.subr.bf16.mxu0 0
  %196 = vmatpush2.bf16.msra.mxu0 0
  %197 = vmatprep.subr.bf16.mxu0 0
  %198 = vmatpush2.bf16.msra.mxu0 0
  %199 = vmatprep.subr.bf16.mxu0 0
  %200 = vmatpush2.bf16.msra.mxu0 0
  %201 = vmatprep.subr.bf16.mxu0 0
  %202 = vmatpush2.bf16.msra.mxu0 0
  %203 = vmatprep.subr.bf16.mxu0 0
  %204 = vmatpush2.bf16.msra.mxu0 0
  %205 = vmatprep.subr.bf16.mxu0 0
  %206 = vmatpush2.bf16.msra.mxu0 0
  %207 = vmatprep.subr.bf16.mxu0 0
  %208 = vmatpush2.bf16.msra.mxu0 0
  %209 = vmatprep.subr.bf16.mxu0 0
  %210 = vmatpush2.bf16.msra.mxu0 0
  %211 = vmatprep.mubr.bf16.mxu0 0
  %212 = vmatmul.mubr.bf16.gmra.mxu0 %v123
  %v213 = vpop.f32.mrf.mxu0
  %v214 = vadd.f32 0.0, %v213
  %v215 = vpop.f32.mrf.mxu0
  %v216 = vpop.f32.mrf.mxu0
  %v217 = vadd.f32 0.0, %v216
  %v218 = vpop.f32.mrf.mxu0
  %219 = vmatprep.mubr.bf16.mxu0 0
  %220 = vmatmul.mubr.bf16.gmra.mxu0 %v124
  %v221 = vpop.f32.mrf.mxu0
  %v222 = vadd.f32 0.0, %v221
  %v223 = vpop.f32.mrf.mxu0
  %v224 = vpop.f32.mrf.mxu0
  %v225 = vadd.f32 0.0, %v224
  %v226 = vpop.f32.mrf.mxu0
  %227 = vmatprep.mubr.bf16.mxu0 0
  %228 = vmatmul.mubr.bf16.gmra.mxu0 %v125
  %v229 = vpop.f32.mrf.mxu0
  %v230 = vadd.f32 0.0, %v229
  %v231 = vpop.f32.mrf.mxu0
  %v232 = vpop.f32.mrf.mxu0
  %v233 = vadd.f32 0.0, %v232
  %v234 = vpop.f32.mrf.mxu0
  %235 = vmatprep.mubr.bf16.mxu0 0
  %236 = vmatmul.mubr.bf16.gmra.mxu0 %v126
  %v237 = vpop.f32.mrf.mxu0
  %v238 = vadd.f32 0.0, %v237
  %v239 = vpop.f32.mrf.mxu0
  %v240 = vpop.f32.mrf.mxu0
  %v241 = vadd.f32 0.0, %v240
  %v242 = vpop.f32.mrf.mxu0
  %243 = vdwg.mxu0
  %v244 = vpack.c.bf16 %v217, %v214
  %v245 = vpack.c.bf16 %v225, %v222
  %v246 = vpack.c.bf16 %v233, %v230
  %v247 = vpack.c.bf16 %v241, %v238
  %v248 = vld [vmem:[%s2] sm:$0xff]
  %v249 = vld [vmem:[%s2 + $0x8] sm:$0xff]
  %v250 = vld [vmem:[%s2 + $0x10] sm:$0xff]
  %v251 = vld [vmem:[%s2 + $0x18] sm:$0xff]
  %v252 = vld [vmem:[%s2 + $0x20] sm:$0xff]
  %v253 = vld [vmem:[%s2 + $0x28] sm:$0xff]
  %v254 = vld [vmem:[%s2 + $0x30] sm:$0xff]
  %v255 = vld [vmem:[%s2 + $0x38] sm:$0xff]
  %v256 = vld [vmem:[%s2 + $0x40] sm:$0xff]
  %v257 = vld [vmem:[%s2 + $0x48] sm:$0xff]
  %v258 = vld [vmem:[%s2 + $0x50] sm:$0xff]
  %v259 = vld [vmem:[%s2 + $0x58] sm:$0xff]
  %v260 = vld [vmem:[%s2 + $0x60] sm:$0xff]
  %v261 = vld [vmem:[%s2 + $0x68] sm:$0xff]
  %v262 = vld [vmem:[%s2 + $0x70] sm:$0xff]
  %v263 = vld [vmem:[%s2 + $0x78] sm:$0xff]
  %s264 = scalar_lea.vmem %s1, 32
  %v265 = vld [vmem:[%s264] sm:$0xf]
  %v266 = vld [vmem:[%s264 + $0x4] sm:$0xf]
  %v267 = vld [vmem:[%s264 + $0x8] sm:$0xf]
  %v268 = vld [vmem:[%s264 + $0xc] sm:$0xf]
  %v269 = vld [vmem:[%s264 + $0x10] sm:$0xf]
  %v270 = vld [vmem:[%s264 + $0x14] sm:$0xf]
  %v271 = vld [vmem:[%s264 + $0x18] sm:$0xf]
  %v272 = vld [vmem:[%s264 + $0x1c] sm:$0xf]
  %v281 = vunpack.c.l.b16 %v265
  %v282 = vunpack.c.l.b16 %v266
  %v283 = vunpack.c.l.b16 %v267
  %v284 = vunpack.c.l.b16 %v268
  %v285 = vunpack.c.l.b16 %v269
  %v286 = vunpack.c.l.b16 %v270
  %v287 = vunpack.c.l.b16 %v271
  %v288 = vunpack.c.l.b16 %v272
  %v289 = vpack.c.b16 %v282, %v281
  %v290 = vpack.c.b16 %v284, %v283
  %v291 = vpack.c.b16 %v286, %v285
  %v292 = vpack.c.b16 %v288, %v287
  %297 = vmatprep.subr.bf16.mxu0 0
  %298 = vmatpush1.bf16.msra.mxu0 %v170
  %299 = vmatprep.subr.bf16.mxu0 0
  %300 = vmatpush1.bf16.msra.mxu0 %v169
  %301 = vmatprep.subr.bf16.mxu0 0
  %302 = vmatpush1.bf16.msra.mxu0 %v168
  %303 = vmatprep.subr.bf16.mxu0 0
  %304 = vmatpush1.bf16.msra.mxu0 %v167
  %305 = vmatprep.subr.bf16.mxu0 0
  %306 = vmatpush1.bf16.msra.mxu0 %v166
  %307 = vmatprep.subr.bf16.mxu0 0
  %308 = vmatpush1.bf16.msra.mxu0 %v165
  %309 = vmatprep.subr.bf16.mxu0 0
  %310 = vmatpush1.bf16.msra.mxu0 %v164
  %311 = vmatprep.subr.bf16.mxu0 0
  %312 = vmatpush1.bf16.msra.mxu0 %v163
  %313 = vmatprep.subr.bf16.mxu0 0
  %314 = vmatpush2.bf16.msra.mxu0 0
  %315 = vmatprep.subr.bf16.mxu0 0
  %316 = vmatpush2.bf16.msra.mxu0 0
  %317 = vmatprep.subr.bf16.mxu0 0
  %318 = vmatpush2.bf16.msra.mxu0 0
  %319 = vmatprep.subr.bf16.mxu0 0
  %320 = vmatpush2.bf16.msra.mxu0 0
  %321 = vmatprep.subr.bf16.mxu0 0
  %322 = vmatpush2.bf16.msra.mxu0 0
  %323 = vmatprep.subr.bf16.mxu0 0
  %324 = vmatpush2.bf16.msra.mxu0 0
  %325 = vmatprep.subr.bf16.mxu0 0
  %326 = vmatpush2.bf16.msra.mxu0 0
  %327 = vmatprep.subr.bf16.mxu0 0
  %328 = vmatpush2.bf16.msra.mxu0 0
  %329 = vmatprep.mubr.bf16.mxu0 0
  %330 = vmatmul.mubr.bf16.gmra.mxu0 %v289
  %v331 = vpop.f32.mrf.mxu0
  %v332 = vadd.f32 0.0, %v331
  %v333 = vpop.f32.mrf.mxu0
  %v334 = vpop.f32.mrf.mxu0
  %v335 = vadd.f32 0.0, %v334
  %v336 = vpop.f32.mrf.mxu0
  %337 = vmatprep.mubr.bf16.mxu0 0
  %338 = vmatmul.mubr.bf16.gmra.mxu0 %v290
  %v339 = vpop.f32.mrf.mxu0
  %v340 = vadd.f32 0.0, %v339
  %v341 = vpop.f32.mrf.mxu0
  %v342 = vpop.f32.mrf.mxu0
  %v343 = vadd.f32 0.0, %v342
  %v344 = vpop.f32.mrf.mxu0
  %345 = vmatprep.mubr.bf16.mxu0 0
  %346 = vmatmul.mubr.bf16.gmra.mxu0 %v291
  %v347 = vpop.f32.mrf.mxu0
  %v348 = vadd.f32 0.0, %v347
  %v349 = vpop.f32.mrf.mxu0
  %v350 = vpop.f32.mrf.mxu0
  %v351 = vadd.f32 0.0, %v350
  %v352 = vpop.f32.mrf.mxu0
  %353 = vmatprep.mubr.bf16.mxu0 0
  %354 = vmatmul.mubr.bf16.gmra.mxu0 %v292
  %v355 = vpop.f32.mrf.mxu0
  %v356 = vadd.f32 0.0, %v355
  %v357 = vpop.f32.mrf.mxu0
  %v358 = vpop.f32.mrf.mxu0
  %v359 = vadd.f32 0.0, %v358
  %v360 = vpop.f32.mrf.mxu0
  %361 = vdwg.mxu0
  %v362 = vpack.c.bf16 %v335, %v332
  %v363 = vpack.c.bf16 %v343, %v340
  %v364 = vpack.c.bf16 %v351, %v348
  %v365 = vpack.c.bf16 %v359, %v356
  %s366 = scalar_lea.vmem %s2, 128
  %v367 = vld [vmem:[%s366] sm:$0xff]
  %v368 = vld [vmem:[%s366 + $0x8] sm:$0xff]
  %v369 = vld [vmem:[%s366 + $0x10] sm:$0xff]
  %v370 = vld [vmem:[%s366 + $0x18] sm:$0xff]
  %v371 = vld [vmem:[%s366 + $0x20] sm:$0xff]
  %v372 = vld [vmem:[%s366 + $0x28] sm:$0xff]
  %v373 = vld [vmem:[%s366 + $0x30] sm:$0xff]
  %v374 = vld [vmem:[%s366 + $0x38] sm:$0xff]
  %v375 = vld [vmem:[%s366 + $0x40] sm:$0xff]
  %v376 = vld [vmem:[%s366 + $0x48] sm:$0xff]
  %v377 = vld [vmem:[%s366 + $0x50] sm:$0xff]
  %v378 = vld [vmem:[%s366 + $0x58] sm:$0xff]
  %v379 = vld [vmem:[%s366 + $0x60] sm:$0xff]
  %v380 = vld [vmem:[%s366 + $0x68] sm:$0xff]
  %v381 = vld [vmem:[%s366 + $0x70] sm:$0xff]
  %v382 = vld [vmem:[%s366 + $0x78] sm:$0xff]
  %v399 = vunpack.c.l.b16 %v367
  %v400 = vunpack.c.h.b16 %v367
  %v401 = vunpack.c.l.b16 %v368
  %v402 = vunpack.c.h.b16 %v368
  %v403 = vunpack.c.l.b16 %v369
  %v404 = vunpack.c.h.b16 %v369
  %v405 = vunpack.c.l.b16 %v370
  %v406 = vunpack.c.h.b16 %v370
  %v407 = vunpack.c.l.b16 %v371
  %v408 = vunpack.c.h.b16 %v371
  %v409 = vunpack.c.l.b16 %v372
  %v410 = vunpack.c.h.b16 %v372
  %v411 = vunpack.c.l.b16 %v373
  %v412 = vunpack.c.h.b16 %v373
  %v413 = vunpack.c.l.b16 %v374
  %v414 = vunpack.c.h.b16 %v374
  %v415 = vunpack.c.l.b16 %v375
  %v416 = vunpack.c.h.b16 %v375
  %v417 = vunpack.c.l.b16 %v376
  %v418 = vunpack.c.h.b16 %v376
  %v419 = vunpack.c.l.b16 %v377
  %v420 = vunpack.c.h.b16 %v377
  %v421 = vunpack.c.l.b16 %v378
  %v422 = vunpack.c.h.b16 %v378
  %v423 = vunpack.c.l.b16 %v379
  %v424 = vunpack.c.h.b16 %v379
  %v425 = vunpack.c.l.b16 %v380
  %v426 = vunpack.c.h.b16 %v380
  %v427 = vunpack.c.l.b16 %v381
  %v428 = vunpack.c.h.b16 %v381
  %v429 = vunpack.c.l.b16 %v382
  %v430 = vunpack.c.h.b16 %v382
  %v431 = vpack.c.b16 %v401, %v399
  %v432 = vpack.c.b16 %v402, %v400
  %v433 = vpack.c.b16 %v405, %v403
  %v434 = vpack.c.b16 %v406, %v404
  %v435 = vpack.c.b16 %v409, %v407
  %v436 = vpack.c.b16 %v410, %v408
  %v437 = vpack.c.b16 %v413, %v411
  %v438 = vpack.c.b16 %v414, %v412
  %v439 = vpack.c.b16 %v417, %v415
  %v440 = vpack.c.b16 %v418, %v416
  %v441 = vpack.c.b16 %v421, %v419
  %v442 = vpack.c.b16 %v422, %v420
  %v443 = vpack.c.b16 %v425, %v423
  %v444 = vpack.c.b16 %v426, %v424
  %v445 = vpack.c.b16 %v429, %v427
  %v446 = vpack.c.b16 %v430, %v428
  %463 = vmatprep.subr.bf16.mxu0 %v446
  %464 = vmatpush1.bf16.msra.mxu0 %v445
  %465 = vmatprep.subr.bf16.mxu0 %v444
  %466 = vmatpush1.bf16.msra.mxu0 %v443
  %467 = vmatprep.subr.bf16.mxu0 %v442
  %468 = vmatpush1.bf16.msra.mxu0 %v441
  %469 = vmatprep.subr.bf16.mxu0 %v440
  %470 = vmatpush1.bf16.msra.mxu0 %v439
  %471 = vmatprep.subr.bf16.mxu0 %v438
  %472 = vmatpush1.bf16.msra.mxu0 %v437
  %473 = vmatprep.subr.bf16.mxu0 %v436
  %474 = vmatpush1.bf16.msra.mxu0 %v435
  %475 = vmatprep.subr.bf16.mxu0 %v434
  %476 = vmatpush1.bf16.msra.mxu0 %v433
  %477 = vmatprep.subr.bf16.mxu0 %v432
  %478 = vmatpush1.bf16.msra.mxu0 %v431
  %479 = vmatprep.subr.bf16.mxu0 0
  %480 = vmatpush2.bf16.msra.mxu0 0
  %481 = vmatprep.subr.bf16.mxu0 0
  %482 = vmatpush2.bf16.msra.mxu0 0
  %483 = vmatprep.subr.bf16.mxu0 0
  %484 = vmatpush2.bf16.msra.mxu0 0
  %485 = vmatprep.subr.bf16.mxu0 0
  %486 = vmatpush2.bf16.msra.mxu0 0
  %487 = vmatprep.subr.bf16.mxu0 0
  %488 = vmatpush2.bf16.msra.mxu0 0
  %489 = vmatprep.subr.bf16.mxu0 0
  %490 = vmatpush2.bf16.msra.mxu0 0
  %491 = vmatprep.subr.bf16.mxu0 0
  %492 = vmatpush2.bf16.msra.mxu0 0
  %493 = vmatprep.subr.bf16.mxu0 0
  %494 = vmatpush2.bf16.msra.mxu0 0
  %495 = vmatprep.mubr.bf16.mxu0 0
  %496 = vmatmul.mubr.bf16.gmra.mxu0 %v362
  %v497 = vpop.f32.mrf.mxu0
  %v498 = vadd.f32 0.0, %v497
  %v499 = vpop.f32.mrf.mxu0
  %v500 = vadd.f32 0.0, %v499
  %v501 = vpop.f32.mrf.mxu0
  %v502 = vadd.f32 0.0, %v501
  %v503 = vpop.f32.mrf.mxu0
  %v504 = vadd.f32 0.0, %v503
  %505 = vmatprep.mubr.bf16.mxu0 0
  %506 = vmatmul.mubr.bf16.gmra.mxu0 %v363
  %v507 = vpop.f32.mrf.mxu0
  %v508 = vadd.f32 0.0, %v507
  %v509 = vpop.f32.mrf.mxu0
  %v510 = vadd.f32 0.0, %v509
  %v511 = vpop.f32.mrf.mxu0
  %v512 = vadd.f32 0.0, %v511
  %v513 = vpop.f32.mrf.mxu0
  %v514 = vadd.f32 0.0, %v513
  %515 = vmatprep.mubr.bf16.mxu0 0
  %516 = vmatmul.mubr.bf16.gmra.mxu0 %v364
  %v517 = vpop.f32.mrf.mxu0
  %v518 = vadd.f32 0.0, %v517
  %v519 = vpop.f32.mrf.mxu0
  %v520 = vadd.f32 0.0, %v519
  %v521 = vpop.f32.mrf.mxu0
  %v522 = vadd.f32 0.0, %v521
  %v523 = vpop.f32.mrf.mxu0
  %v524 = vadd.f32 0.0, %v523
  %525 = vmatprep.mubr.bf16.mxu0 0
  %526 = vmatmul.mubr.bf16.gmra.mxu0 %v365
  %v527 = vpop.f32.mrf.mxu0
  %v528 = vadd.f32 0.0, %v527
  %v529 = vpop.f32.mrf.mxu0
  %v530 = vadd.f32 0.0, %v529
  %v531 = vpop.f32.mrf.mxu0
  %v532 = vadd.f32 0.0, %v531
  %v533 = vpop.f32.mrf.mxu0
  %v534 = vadd.f32 0.0, %v533
  %535 = vdwg.mxu0
  %v552 = vunpack.c.l.b16 %v248
  %v553 = vunpack.c.h.b16 %v248
  %v554 = vunpack.c.l.b16 %v249
  %v555 = vunpack.c.h.b16 %v249
  %v556 = vunpack.c.l.b16 %v250
  %v557 = vunpack.c.h.b16 %v250
  %v558 = vunpack.c.l.b16 %v251
  %v559 = vunpack.c.h.b16 %v251
  %v560 = vunpack.c.l.b16 %v252
  %v561 = vunpack.c.h.b16 %v252
  %v562 = vunpack.c.l.b16 %v253
  %v563 = vunpack.c.h.b16 %v253
  %v564 = vunpack.c.l.b16 %v254
  %v565 = vunpack.c.h.b16 %v254
  %v566 = vunpack.c.l.b16 %v255
  %v567 = vunpack.c.h.b16 %v255
  %v568 = vunpack.c.l.b16 %v256
  %v569 = vunpack.c.h.b16 %v256
  %v570 = vunpack.c.l.b16 %v257
  %v571 = vunpack.c.h.b16 %v257
  %v572 = vunpack.c.l.b16 %v258
  %v573 = vunpack.c.h.b16 %v258
  %v574 = vunpack.c.l.b16 %v259
  %v575 = vunpack.c.h.b16 %v259
  %v576 = vunpack.c.l.b16 %v260
  %v577 = vunpack.c.h.b16 %v260
  %v578 = vunpack.c.l.b16 %v261
  %v579 = vunpack.c.h.b16 %v261
  %v580 = vunpack.c.l.b16 %v262
  %v581 = vunpack.c.h.b16 %v262
  %v582 = vunpack.c.l.b16 %v263
  %v583 = vunpack.c.h.b16 %v263
  %v584 = vpack.c.b16 %v554, %v552
  %v585 = vpack.c.b16 %v555, %v553
  %v586 = vpack.c.b16 %v558, %v556
  %v587 = vpack.c.b16 %v559, %v557
  %v588 = vpack.c.b16 %v562, %v560
  %v589 = vpack.c.b16 %v563, %v561
  %v590 = vpack.c.b16 %v566, %v564
  %v591 = vpack.c.b16 %v567, %v565
  %v592 = vpack.c.b16 %v570, %v568
  %v593 = vpack.c.b16 %v571, %v569
  %v594 = vpack.c.b16 %v574, %v572
  %v595 = vpack.c.b16 %v575, %v573
  %v596 = vpack.c.b16 %v578, %v576
  %v597 = vpack.c.b16 %v579, %v577
  %v598 = vpack.c.b16 %v582, %v580
  %v599 = vpack.c.b16 %v583, %v581
  %616 = vmatprep.subr.bf16.mxu0 %v599
  %617 = vmatpush1.bf16.msra.mxu0 %v598
  %618 = vmatprep.subr.bf16.mxu0 %v597
  %619 = vmatpush1.bf16.msra.mxu0 %v596
  %620 = vmatprep.subr.bf16.mxu0 %v595
  %621 = vmatpush1.bf16.msra.mxu0 %v594
  %622 = vmatprep.subr.bf16.mxu0 %v593
  %623 = vmatpush1.bf16.msra.mxu0 %v592
  %624 = vmatprep.subr.bf16.mxu0 %v591
  %625 = vmatpush1.bf16.msra.mxu0 %v590
  %626 = vmatprep.subr.bf16.mxu0 %v589
  %627 = vmatpush1.bf16.msra.mxu0 %v588
  %628 = vmatprep.subr.bf16.mxu0 %v587
  %629 = vmatpush1.bf16.msra.mxu0 %v586
  %630 = vmatprep.subr.bf16.mxu0 %v585
  %631 = vmatpush1.bf16.msra.mxu0 %v584
  %632 = vmatprep.subr.bf16.mxu0 0
  %633 = vmatpush2.bf16.msra.mxu0 0
  %634 = vmatprep.subr.bf16.mxu0 0
  %635 = vmatpush2.bf16.msra.mxu0 0
  %636 = vmatprep.subr.bf16.mxu0 0
  %637 = vmatpush2.bf16.msra.mxu0 0
  %638 = vmatprep.subr.bf16.mxu0 0
  %639 = vmatpush2.bf16.msra.mxu0 0
  %640 = vmatprep.subr.bf16.mxu0 0
  %641 = vmatpush2.bf16.msra.mxu0 0
  %642 = vmatprep.subr.bf16.mxu0 0
  %643 = vmatpush2.bf16.msra.mxu0 0
  %644 = vmatprep.subr.bf16.mxu0 0
  %645 = vmatpush2.bf16.msra.mxu0 0
  %646 = vmatprep.subr.bf16.mxu0 0
  %647 = vmatpush2.bf16.msra.mxu0 0
  %648 = vmatprep.mubr.bf16.mxu0 0
  %649 = vmatmul.mubr.bf16.gmra.mxu0 %v244
  %v650 = vpop.f32.mrf.mxu0
  %v651 = vadd.f32 %v498, %v650
  %v652 = vpop.f32.mrf.mxu0
  %v653 = vadd.f32 %v500, %v652
  %v654 = vpop.f32.mrf.mxu0
  %v655 = vadd.f32 %v502, %v654
  %v656 = vpop.f32.mrf.mxu0
  %v657 = vadd.f32 %v504, %v656
  %658 = vmatprep.mubr.bf16.mxu0 0
  %659 = vmatmul.mubr.bf16.gmra.mxu0 %v245
  %v660 = vpop.f32.mrf.mxu0
  %v661 = vadd.f32 %v508, %v660
  %v662 = vpop.f32.mrf.mxu0
  %v663 = vadd.f32 %v510, %v662
  %v664 = vpop.f32.mrf.mxu0
  %v665 = vadd.f32 %v512, %v664
  %v666 = vpop.f32.mrf.mxu0
  %v667 = vadd.f32 %v514, %v666
  %668 = vmatprep.mubr.bf16.mxu0 0
  %669 = vmatmul.mubr.bf16.gmra.mxu0 %v246
  %v670 = vpop.f32.mrf.mxu0
  %v671 = vadd.f32 %v518, %v670
  %v672 = vpop.f32.mrf.mxu0
  %v673 = vadd.f32 %v520, %v672
  %v674 = vpop.f32.mrf.mxu0
  %v675 = vadd.f32 %v522, %v674
  %v676 = vpop.f32.mrf.mxu0
  %v677 = vadd.f32 %v524, %v676
  %678 = vmatprep.mubr.bf16.mxu0 0
  %679 = vmatmul.mubr.bf16.gmra.mxu0 %v247
  %v680 = vpop.f32.mrf.mxu0
  %v681 = vadd.f32 %v528, %v680
  %v682 = vpop.f32.mrf.mxu0
  %v683 = vadd.f32 %v530, %v682
  %v684 = vpop.f32.mrf.mxu0
  %v685 = vadd.f32 %v532, %v684
  %v686 = vpop.f32.mrf.mxu0
  %v687 = vadd.f32 %v534, %v686
  %688 = vdwg.mxu0
  %s689 = scalar_lea.vmem %s1, 64
  %v690 = vld [vmem:[%s689] sm:$0xf]
  %v691 = vld [vmem:[%s689 + $0x4] sm:$0xf]
  %v692 = vld [vmem:[%s689 + $0x8] sm:$0xf]
  %v693 = vld [vmem:[%s689 + $0xc] sm:$0xf]
  %v694 = vld [vmem:[%s689 + $0x10] sm:$0xf]
  %v695 = vld [vmem:[%s689 + $0x14] sm:$0xf]
  %v696 = vld [vmem:[%s689 + $0x18] sm:$0xf]
  %v697 = vld [vmem:[%s689 + $0x1c] sm:$0xf]
  %v706 = vunpack.c.l.b16 %v690
  %v707 = vunpack.c.l.b16 %v691
  %v708 = vunpack.c.l.b16 %v692
  %v709 = vunpack.c.l.b16 %v693
  %v710 = vunpack.c.l.b16 %v694
  %v711 = vunpack.c.l.b16 %v695
  %v712 = vunpack.c.l.b16 %v696
  %v713 = vunpack.c.l.b16 %v697
  %v714 = vpack.c.b16 %v707, %v706
  %v715 = vpack.c.b16 %v709, %v708
  %v716 = vpack.c.b16 %v711, %v710
  %v717 = vpack.c.b16 %v713, %v712
  %722 = vmatprep.subr.bf16.mxu0 0
  %723 = vmatpush1.bf16.msra.mxu0 %v170
  %724 = vmatprep.subr.bf16.mxu0 0
  %725 = vmatpush1.bf16.msra.mxu0 %v169
  %726 = vmatprep.subr.bf16.mxu0 0
  %727 = vmatpush1.bf16.msra.mxu0 %v168
  %728 = vmatprep.subr.bf16.mxu0 0
  %729 = vmatpush1.bf16.msra.mxu0 %v167
  %730 = vmatprep.subr.bf16.mxu0 0
  %731 = vmatpush1.bf16.msra.mxu0 %v166
  %732 = vmatprep.subr.bf16.mxu0 0
  %733 = vmatpush1.bf16.msra.mxu0 %v165
  %734 = vmatprep.subr.bf16.mxu0 0
  %735 = vmatpush1.bf16.msra.mxu0 %v164
  %736 = vmatprep.subr.bf16.mxu0 0
  %737 = vmatpush1.bf16.msra.mxu0 %v163
  %738 = vmatprep.subr.bf16.mxu0 0
  %739 = vmatpush2.bf16.msra.mxu0 0
  %740 = vmatprep.subr.bf16.mxu0 0
  %741 = vmatpush2.bf16.msra.mxu0 0
  %742 = vmatprep.subr.bf16.mxu0 0
  %743 = vmatpush2.bf16.msra.mxu0 0
  %744 = vmatprep.subr.bf16.mxu0 0
  %745 = vmatpush2.bf16.msra.mxu0 0
  %746 = vmatprep.subr.bf16.mxu0 0
  %747 = vmatpush2.bf16.msra.mxu0 0
  %748 = vmatprep.subr.bf16.mxu0 0
  %749 = vmatpush2.bf16.msra.mxu0 0
  %750 = vmatprep.subr.bf16.mxu0 0
  %751 = vmatpush2.bf16.msra.mxu0 0
  %752 = vmatprep.subr.bf16.mxu0 0
  %753 = vmatpush2.bf16.msra.mxu0 0
  %754 = vmatprep.mubr.bf16.mxu0 0
  %755 = vmatmul.mubr.bf16.gmra.mxu0 %v714
  %v756 = vpop.f32.mrf.mxu0
  %v757 = vadd.f32 0.0, %v756
  %v758 = vpop.f32.mrf.mxu0
  %v759 = vpop.f32.mrf.mxu0
  %v760 = vadd.f32 0.0, %v759
  %v761 = vpop.f32.mrf.mxu0
  %762 = vmatprep.mubr.bf16.mxu0 0
  %763 = vmatmul.mubr.bf16.gmra.mxu0 %v715
  %v764 = vpop.f32.mrf.mxu0
  %v765 = vadd.f32 0.0, %v764
  %v766 = vpop.f32.mrf.mxu0
  %v767 = vpop.f32.mrf.mxu0
  %v768 = vadd.f32 0.0, %v767
  %v769 = vpop.f32.mrf.mxu0
  %770 = vmatprep.mubr.bf16.mxu0 0
  %771 = vmatmul.mubr.bf16.gmra.mxu0 %v716
  %v772 = vpop.f32.mrf.mxu0
  %v773 = vadd.f32 0.0, %v772
  %v774 = vpop.f32.mrf.mxu0
  %v775 = vpop.f32.mrf.mxu0
  %v776 = vadd.f32 0.0, %v775
  %v777 = vpop.f32.mrf.mxu0
  %778 = vmatprep.mubr.bf16.mxu0 0
  %779 = vmatmul.mubr.bf16.gmra.mxu0 %v717
  %v780 = vpop.f32.mrf.mxu0
  %v781 = vadd.f32 0.0, %v780
  %v782 = vpop.f32.mrf.mxu0
  %v783 = vpop.f32.mrf.mxu0
  %v784 = vadd.f32 0.0, %v783
  %v785 = vpop.f32.mrf.mxu0
  %786 = vdwg.mxu0
  %v787 = vpack.c.bf16 %v760, %v757
  %v788 = vpack.c.bf16 %v768, %v765
  %v789 = vpack.c.bf16 %v776, %v773
  %v790 = vpack.c.bf16 %v784, %v781
  %s791 = scalar_lea.vmem %s2, 256
  %v792 = vld [vmem:[%s791] sm:$0xff]
  %v793 = vld [vmem:[%s791 + $0x8] sm:$0xff]
  %v794 = vld [vmem:[%s791 + $0x10] sm:$0xff]
  %v795 = vld [vmem:[%s791 + $0x18] sm:$0xff]
  %v796 = vld [vmem:[%s791 + $0x20] sm:$0xff]
  %v797 = vld [vmem:[%s791 + $0x28] sm:$0xff]
  %v798 = vld [vmem:[%s791 + $0x30] sm:$0xff]
  %v799 = vld [vmem:[%s791 + $0x38] sm:$0xff]
  %v800 = vld [vmem:[%s791 + $0x40] sm:$0xff]
  %v801 = vld [vmem:[%s791 + $0x48] sm:$0xff]
  %v802 = vld [vmem:[%s791 + $0x50] sm:$0xff]
  %v803 = vld [vmem:[%s791 + $0x58] sm:$0xff]
  %v804 = vld [vmem:[%s791 + $0x60] sm:$0xff]
  %v805 = vld [vmem:[%s791 + $0x68] sm:$0xff]
  %v806 = vld [vmem:[%s791 + $0x70] sm:$0xff]
  %v807 = vld [vmem:[%s791 + $0x78] sm:$0xff]
  %v824 = vunpack.c.l.b16 %v792
  %v825 = vunpack.c.h.b16 %v792
  %v826 = vunpack.c.l.b16 %v793
  %v827 = vunpack.c.h.b16 %v793
  %v828 = vunpack.c.l.b16 %v794
  %v829 = vunpack.c.h.b16 %v794
  %v830 = vunpack.c.l.b16 %v795
  %v831 = vunpack.c.h.b16 %v795
  %v832 = vunpack.c.l.b16 %v796
  %v833 = vunpack.c.h.b16 %v796
  %v834 = vunpack.c.l.b16 %v797
  %v835 = vunpack.c.h.b16 %v797
  %v836 = vunpack.c.l.b16 %v798
  %v837 = vunpack.c.h.b16 %v798
  %v838 = vunpack.c.l.b16 %v799
  %v839 = vunpack.c.h.b16 %v799
  %v840 = vunpack.c.l.b16 %v800
  %v841 = vunpack.c.h.b16 %v800
  %v842 = vunpack.c.l.b16 %v801
  %v843 = vunpack.c.h.b16 %v801
  %v844 = vunpack.c.l.b16 %v802
  %v845 = vunpack.c.h.b16 %v802
  %v846 = vunpack.c.l.b16 %v803
  %v847 = vunpack.c.h.b16 %v803
  %v848 = vunpack.c.l.b16 %v804
  %v849 = vunpack.c.h.b16 %v804
  %v850 = vunpack.c.l.b16 %v805
  %v851 = vunpack.c.h.b16 %v805
  %v852 = vunpack.c.l.b16 %v806
  %v853 = vunpack.c.h.b16 %v806
  %v854 = vunpack.c.l.b16 %v807
  %v855 = vunpack.c.h.b16 %v807
  %v856 = vpack.c.b16 %v826, %v824
  %v857 = vpack.c.b16 %v827, %v825
  %v858 = vpack.c.b16 %v830, %v828
  %v859 = vpack.c.b16 %v831, %v829
  %v860 = vpack.c.b16 %v834, %v832
  %v861 = vpack.c.b16 %v835, %v833
  %v862 = vpack.c.b16 %v838, %v836
  %v863 = vpack.c.b16 %v839, %v837
  %v864 = vpack.c.b16 %v842, %v840
  %v865 = vpack.c.b16 %v843, %v841
  %v866 = vpack.c.b16 %v846, %v844
  %v867 = vpack.c.b16 %v847, %v845
  %v868 = vpack.c.b16 %v850, %v848
  %v869 = vpack.c.b16 %v851, %v849
  %v870 = vpack.c.b16 %v854, %v852
  %v871 = vpack.c.b16 %v855, %v853
  %888 = vmatprep.subr.bf16.mxu0 %v871
  %889 = vmatpush1.bf16.msra.mxu0 %v870
  %890 = vmatprep.subr.bf16.mxu0 %v869
  %891 = vmatpush1.bf16.msra.mxu0 %v868
  %892 = vmatprep.subr.bf16.mxu0 %v867
  %893 = vmatpush1.bf16.msra.mxu0 %v866
  %894 = vmatprep.subr.bf16.mxu0 %v865
  %895 = vmatpush1.bf16.msra.mxu0 %v864
  %896 = vmatprep.subr.bf16.mxu0 %v863
  %897 = vmatpush1.bf16.msra.mxu0 %v862
  %898 = vmatprep.subr.bf16.mxu0 %v861
  %899 = vmatpush1.bf16.msra.mxu0 %v860
  %900 = vmatprep.subr.bf16.mxu0 %v859
  %901 = vmatpush1.bf16.msra.mxu0 %v858
  %902 = vmatprep.subr.bf16.mxu0 %v857
  %903 = vmatpush1.bf16.msra.mxu0 %v856
  %904 = vmatprep.subr.bf16.mxu0 0
  %905 = vmatpush2.bf16.msra.mxu0 0
  %906 = vmatprep.subr.bf16.mxu0 0
  %907 = vmatpush2.bf16.msra.mxu0 0
  %908 = vmatprep.subr.bf16.mxu0 0
  %909 = vmatpush2.bf16.msra.mxu0 0
  %910 = vmatprep.subr.bf16.mxu0 0
  %911 = vmatpush2.bf16.msra.mxu0 0
  %912 = vmatprep.subr.bf16.mxu0 0
  %913 = vmatpush2.bf16.msra.mxu0 0
  %914 = vmatprep.subr.bf16.mxu0 0
  %915 = vmatpush2.bf16.msra.mxu0 0
  %916 = vmatprep.subr.bf16.mxu0 0
  %917 = vmatpush2.bf16.msra.mxu0 0
  %918 = vmatprep.subr.bf16.mxu0 0
  %919 = vmatpush2.bf16.msra.mxu0 0
  %920 = vmatprep.mubr.bf16.mxu0 0
  %921 = vmatmul.mubr.bf16.gmra.mxu0 %v787
  %v922 = vpop.f32.mrf.mxu0
  %v923 = vadd.f32 0.0, %v922
  %v924 = vpop.f32.mrf.mxu0
  %v925 = vadd.f32 0.0, %v924
  %v926 = vpop.f32.mrf.mxu0
  %v927 = vadd.f32 0.0, %v926
  %v928 = vpop.f32.mrf.mxu0
  %v929 = vadd.f32 0.0, %v928
  %930 = vmatprep.mubr.bf16.mxu0 0
  %931 = vmatmul.mubr.bf16.gmra.mxu0 %v788
  %v932 = vpop.f32.mrf.mxu0
  %v933 = vadd.f32 0.0, %v932
  %v934 = vpop.f32.mrf.mxu0
  %v935 = vadd.f32 0.0, %v934
  %v936 = vpop.f32.mrf.mxu0
  %v937 = vadd.f32 0.0, %v936
  %v938 = vpop.f32.mrf.mxu0
  %v939 = vadd.f32 0.0, %v938
  %940 = vmatprep.mubr.bf16.mxu0 0
  %941 = vmatmul.mubr.bf16.gmra.mxu0 %v789
  %v942 = vpop.f32.mrf.mxu0
  %v943 = vadd.f32 0.0, %v942
  %v944 = vpop.f32.mrf.mxu0
  %v945 = vadd.f32 0.0, %v944
  %v946 = vpop.f32.mrf.mxu0
  %v947 = vadd.f32 0.0, %v946
  %v948 = vpop.f32.mrf.mxu0
  %v949 = vadd.f32 0.0, %v948
  %950 = vmatprep.mubr.bf16.mxu0 0
  %951 = vmatmul.mubr.bf16.gmra.mxu0 %v790
  %v952 = vpop.f32.mrf.mxu0
  %v953 = vadd.f32 0.0, %v952
  %v954 = vpop.f32.mrf.mxu0
  %v955 = vadd.f32 0.0, %v954
  %v956 = vpop.f32.mrf.mxu0
  %v957 = vadd.f32 0.0, %v956
  %v958 = vpop.f32.mrf.mxu0
  %v959 = vadd.f32 0.0, %v958
  %960 = vdwg.mxu0
  %v961 = vadd.f32 %v651, %v923
  %v962 = vadd.f32 %v653, %v925
  %v963 = vadd.f32 %v655, %v927
  %v964 = vadd.f32 %v657, %v929
  %v965 = vadd.f32 %v661, %v933
  %v966 = vadd.f32 %v663, %v935
  %v967 = vadd.f32 %v665, %v937
  %v968 = vadd.f32 %v667, %v939
  %v969 = vadd.f32 %v671, %v943
  %v970 = vadd.f32 %v673, %v945
  %v971 = vadd.f32 %v675, %v947
  %v972 = vadd.f32 %v677, %v949
  %v973 = vadd.f32 %v681, %v953
  %v974 = vadd.f32 %v683, %v955
  %v975 = vadd.f32 %v685, %v957
  %v976 = vadd.f32 %v687, %v959
  %s977 = scalar_lea.vmem %s1, 96
  %v978 = vld [vmem:[%s977] sm:$0xf]
  %v979 = vld [vmem:[%s977 + $0x4] sm:$0xf]
  %v980 = vld [vmem:[%s977 + $0x8] sm:$0xf]
  %v981 = vld [vmem:[%s977 + $0xc] sm:$0xf]
  %v982 = vld [vmem:[%s977 + $0x10] sm:$0xf]
  %v983 = vld [vmem:[%s977 + $0x14] sm:$0xf]
  %v984 = vld [vmem:[%s977 + $0x18] sm:$0xf]
  %v985 = vld [vmem:[%s977 + $0x1c] sm:$0xf]
  %v994 = vunpack.c.l.b16 %v978
  %v995 = vunpack.c.l.b16 %v979
  %v996 = vunpack.c.l.b16 %v980
  %v997 = vunpack.c.l.b16 %v981
  %v998 = vunpack.c.l.b16 %v982
  %v999 = vunpack.c.l.b16 %v983
  %v1000 = vunpack.c.l.b16 %v984
  %v1001 = vunpack.c.l.b16 %v985
  %v1002 = vpack.c.b16 %v995, %v994
  %v1003 = vpack.c.b16 %v997, %v996
  %v1004 = vpack.c.b16 %v999, %v998
  %v1005 = vpack.c.b16 %v1001, %v1000
  %1010 = vmatprep.subr.bf16.mxu0 0
  %1011 = vmatpush1.bf16.msra.mxu0 %v170
  %1012 = vmatprep.subr.bf16.mxu0 0
  %1013 = vmatpush1.bf16.msra.mxu0 %v169
  %1014 = vmatprep.subr.bf16.mxu0 0
  %1015 = vmatpush1.bf16.msra.mxu0 %v168
  %1016 = vmatprep.subr.bf16.mxu0 0
  %1017 = vmatpush1.bf16.msra.mxu0 %v167
  %1018 = vmatprep.subr.bf16.mxu0 0
  %1019 = vmatpush1.bf16.msra.mxu0 %v166
  %1020 = vmatprep.subr.bf16.mxu0 0
  %1021 = vmatpush1.bf16.msra.mxu0 %v165
  %1022 = vmatprep.subr.bf16.mxu0 0
  %1023 = vmatpush1.bf16.msra.mxu0 %v164
  %1024 = vmatprep.subr.bf16.mxu0 0
  %1025 = vmatpush1.bf16.msra.mxu0 %v163
  %1026 = vmatprep.subr.bf16.mxu0 0
  %1027 = vmatpush2.bf16.msra.mxu0 0
  %1028 = vmatprep.subr.bf16.mxu0 0
  %1029 = vmatpush2.bf16.msra.mxu0 0
  %1030 = vmatprep.subr.bf16.mxu0 0
  %1031 = vmatpush2.bf16.msra.mxu0 0
  %1032 = vmatprep.subr.bf16.mxu0 0
  %1033 = vmatpush2.bf16.msra.mxu0 0
  %1034 = vmatprep.subr.bf16.mxu0 0
  %1035 = vmatpush2.bf16.msra.mxu0 0
  %1036 = vmatprep.subr.bf16.mxu0 0
  %1037 = vmatpush2.bf16.msra.mxu0 0
  %1038 = vmatprep.subr.bf16.mxu0 0
  %1039 = vmatpush2.bf16.msra.mxu0 0
  %1040 = vmatprep.subr.bf16.mxu0 0
  %1041 = vmatpush2.bf16.msra.mxu0 0
  %1042 = vmatprep.mubr.bf16.mxu0 0
  %1043 = vmatmul.mubr.bf16.gmra.mxu0 %v1002
  %v1044 = vpop.f32.mrf.mxu0
  %v1045 = vadd.f32 0.0, %v1044
  %v1046 = vpop.f32.mrf.mxu0
  %v1047 = vpop.f32.mrf.mxu0
  %v1048 = vadd.f32 0.0, %v1047
  %v1049 = vpop.f32.mrf.mxu0
  %1050 = vmatprep.mubr.bf16.mxu0 0
  %1051 = vmatmul.mubr.bf16.gmra.mxu0 %v1003
  %v1052 = vpop.f32.mrf.mxu0
  %v1053 = vadd.f32 0.0, %v1052
  %v1054 = vpop.f32.mrf.mxu0
  %v1055 = vpop.f32.mrf.mxu0
  %v1056 = vadd.f32 0.0, %v1055
  %v1057 = vpop.f32.mrf.mxu0
  %1058 = vmatprep.mubr.bf16.mxu0 0
  %1059 = vmatmul.mubr.bf16.gmra.mxu0 %v1004
  %v1060 = vpop.f32.mrf.mxu0
  %v1061 = vadd.f32 0.0, %v1060
  %v1062 = vpop.f32.mrf.mxu0
  %v1063 = vpop.f32.mrf.mxu0
  %v1064 = vadd.f32 0.0, %v1063
  %v1065 = vpop.f32.mrf.mxu0
  %1066 = vmatprep.mubr.bf16.mxu0 0
  %1067 = vmatmul.mubr.bf16.gmra.mxu0 %v1005
  %v1068 = vpop.f32.mrf.mxu0
  %v1069 = vadd.f32 0.0, %v1068
  %v1070 = vpop.f32.mrf.mxu0
  %v1071 = vpop.f32.mrf.mxu0
  %v1072 = vadd.f32 0.0, %v1071
  %v1073 = vpop.f32.mrf.mxu0
  %1074 = vdwg.mxu0
  %v1075 = vpack.c.bf16 %v1048, %v1045
  %v1076 = vpack.c.bf16 %v1056, %v1053
  %v1077 = vpack.c.bf16 %v1064, %v1061
  %v1078 = vpack.c.bf16 %v1072, %v1069
  %s1079 = scalar_lea.vmem %s2, 384
  %v1080 = vld [vmem:[%s1079] sm:$0xff]
  %v1081 = vld [vmem:[%s1079 + $0x8] sm:$0xff]
  %v1082 = vld [vmem:[%s1079 + $0x10] sm:$0xff]
  %v1083 = vld [vmem:[%s1079 + $0x18] sm:$0xff]
  %v1084 = vld [vmem:[%s1079 + $0x20] sm:$0xff]
  %v1085 = vld [vmem:[%s1079 + $0x28] sm:$0xff]
  %v1086 = vld [vmem:[%s1079 + $0x30] sm:$0xff]
  %v1087 = vld [vmem:[%s1079 + $0x38] sm:$0xff]
  %v1088 = vld [vmem:[%s1079 + $0x40] sm:$0xff]
  %v1089 = vld [vmem:[%s1079 + $0x48] sm:$0xff]
  %v1090 = vld [vmem:[%s1079 + $0x50] sm:$0xff]
  %v1091 = vld [vmem:[%s1079 + $0x58] sm:$0xff]
  %v1092 = vld [vmem:[%s1079 + $0x60] sm:$0xff]
  %v1093 = vld [vmem:[%s1079 + $0x68] sm:$0xff]
  %v1094 = vld [vmem:[%s1079 + $0x70] sm:$0xff]
  %v1095 = vld [vmem:[%s1079 + $0x78] sm:$0xff]
  %v1112 = vunpack.c.l.b16 %v1080
  %v1113 = vunpack.c.h.b16 %v1080
  %v1114 = vunpack.c.l.b16 %v1081
  %v1115 = vunpack.c.h.b16 %v1081
  %v1116 = vunpack.c.l.b16 %v1082
  %v1117 = vunpack.c.h.b16 %v1082
  %v1118 = vunpack.c.l.b16 %v1083
  %v1119 = vunpack.c.h.b16 %v1083
  %v1120 = vunpack.c.l.b16 %v1084
  %v1121 = vunpack.c.h.b16 %v1084
  %v1122 = vunpack.c.l.b16 %v1085
  %v1123 = vunpack.c.h.b16 %v1085
  %v1124 = vunpack.c.l.b16 %v1086
  %v1125 = vunpack.c.h.b16 %v1086
  %v1126 = vunpack.c.l.b16 %v1087
  %v1127 = vunpack.c.h.b16 %v1087
  %v1128 = vunpack.c.l.b16 %v1088
  %v1129 = vunpack.c.h.b16 %v1088
  %v1130 = vunpack.c.l.b16 %v1089
  %v1131 = vunpack.c.h.b16 %v1089
  %v1132 = vunpack.c.l.b16 %v1090
  %v1133 = vunpack.c.h.b16 %v1090
  %v1134 = vunpack.c.l.b16 %v1091
  %v1135 = vunpack.c.h.b16 %v1091
  %v1136 = vunpack.c.l.b16 %v1092
  %v1137 = vunpack.c.h.b16 %v1092
  %v1138 = vunpack.c.l.b16 %v1093
  %v1139 = vunpack.c.h.b16 %v1093
  %v1140 = vunpack.c.l.b16 %v1094
  %v1141 = vunpack.c.h.b16 %v1094
  %v1142 = vunpack.c.l.b16 %v1095
  %v1143 = vunpack.c.h.b16 %v1095
  %v1144 = vpack.c.b16 %v1114, %v1112
  %v1145 = vpack.c.b16 %v1115, %v1113
  %v1146 = vpack.c.b16 %v1118, %v1116
  %v1147 = vpack.c.b16 %v1119, %v1117
  %v1148 = vpack.c.b16 %v1122, %v1120
  %v1149 = vpack.c.b16 %v1123, %v1121
  %v1150 = vpack.c.b16 %v1126, %v1124
  %v1151 = vpack.c.b16 %v1127, %v1125
  %v1152 = vpack.c.b16 %v1130, %v1128
  %v1153 = vpack.c.b16 %v1131, %v1129
  %v1154 = vpack.c.b16 %v1134, %v1132
  %v1155 = vpack.c.b16 %v1135, %v1133
  %v1156 = vpack.c.b16 %v1138, %v1136
  %v1157 = vpack.c.b16 %v1139, %v1137
  %v1158 = vpack.c.b16 %v1142, %v1140
  %v1159 = vpack.c.b16 %v1143, %v1141
  %1176 = vmatprep.subr.bf16.mxu0 %v1159
  %1177 = vmatpush1.bf16.msra.mxu0 %v1158
  %1178 = vmatprep.subr.bf16.mxu0 %v1157
  %1179 = vmatpush1.bf16.msra.mxu0 %v1156
  %1180 = vmatprep.subr.bf16.mxu0 %v1155
  %1181 = vmatpush1.bf16.msra.mxu0 %v1154
  %1182 = vmatprep.subr.bf16.mxu0 %v1153
  %1183 = vmatpush1.bf16.msra.mxu0 %v1152
  %1184 = vmatprep.subr.bf16.mxu0 %v1151
  %1185 = vmatpush1.bf16.msra.mxu0 %v1150
  %1186 = vmatprep.subr.bf16.mxu0 %v1149
  %1187 = vmatpush1.bf16.msra.mxu0 %v1148
  %1188 = vmatprep.subr.bf16.mxu0 %v1147
  %1189 = vmatpush1.bf16.msra.mxu0 %v1146
  %1190 = vmatprep.subr.bf16.mxu0 %v1145
  %1191 = vmatpush1.bf16.msra.mxu0 %v1144
  %1192 = vmatprep.subr.bf16.mxu0 0
  %1193 = vmatpush2.bf16.msra.mxu0 0
  %1194 = vmatprep.subr.bf16.mxu0 0
  %1195 = vmatpush2.bf16.msra.mxu0 0
  %1196 = vmatprep.subr.bf16.mxu0 0
  %1197 = vmatpush2.bf16.msra.mxu0 0
  %1198 = vmatprep.subr.bf16.mxu0 0
  %1199 = vmatpush2.bf16.msra.mxu0 0
  %1200 = vmatprep.subr.bf16.mxu0 0
  %1201 = vmatpush2.bf16.msra.mxu0 0
  %1202 = vmatprep.subr.bf16.mxu0 0
  %1203 = vmatpush2.bf16.msra.mxu0 0
  %1204 = vmatprep.subr.bf16.mxu0 0
  %1205 = vmatpush2.bf16.msra.mxu0 0
  %1206 = vmatprep.subr.bf16.mxu0 0
  %1207 = vmatpush2.bf16.msra.mxu0 0
  %1208 = vmatprep.mubr.bf16.mxu0 0
  %1209 = vmatmul.mubr.bf16.gmra.mxu0 %v1075
  %v1210 = vpop.f32.mrf.mxu0
  %v1211 = vadd.f32 0.0, %v1210
  %v1212 = vpop.f32.mrf.mxu0
  %v1213 = vadd.f32 0.0, %v1212
  %v1214 = vpop.f32.mrf.mxu0
  %v1215 = vadd.f32 0.0, %v1214
  %v1216 = vpop.f32.mrf.mxu0
  %v1217 = vadd.f32 0.0, %v1216
  %1218 = vmatprep.mubr.bf16.mxu0 0
  %1219 = vmatmul.mubr.bf16.gmra.mxu0 %v1076
  %v1220 = vpop.f32.mrf.mxu0
  %v1221 = vadd.f32 0.0, %v1220
  %v1222 = vpop.f32.mrf.mxu0
  %v1223 = vadd.f32 0.0, %v1222
  %v1224 = vpop.f32.mrf.mxu0
  %v1225 = vadd.f32 0.0, %v1224
  %v1226 = vpop.f32.mrf.mxu0
  %v1227 = vadd.f32 0.0, %v1226
  %1228 = vmatprep.mubr.bf16.mxu0 0
  %1229 = vmatmul.mubr.bf16.gmra.mxu0 %v1077
  %v1230 = vpop.f32.mrf.mxu0
  %v1231 = vadd.f32 0.0, %v1230
  %v1232 = vpop.f32.mrf.mxu0
  %v1233 = vadd.f32 0.0, %v1232
  %v1234 = vpop.f32.mrf.mxu0
  %v1235 = vadd.f32 0.0, %v1234
  %v1236 = vpop.f32.mrf.mxu0
  %v1237 = vadd.f32 0.0, %v1236
  %1238 = vmatprep.mubr.bf16.mxu0 0
  %1239 = vmatmul.mubr.bf16.gmra.mxu0 %v1078
  %v1240 = vpop.f32.mrf.mxu0
  %v1241 = vadd.f32 0.0, %v1240
  %v1242 = vpop.f32.mrf.mxu0
  %v1243 = vadd.f32 0.0, %v1242
  %v1244 = vpop.f32.mrf.mxu0
  %v1245 = vadd.f32 0.0, %v1244
  %v1246 = vpop.f32.mrf.mxu0
  %v1247 = vadd.f32 0.0, %v1246
  %1248 = vdwg.mxu0
  %v1249 = vadd.f32 %v961, %v1211
  %v1250 = vadd.f32 %v962, %v1213
  %v1251 = vadd.f32 %v963, %v1215
  %v1252 = vadd.f32 %v964, %v1217
  %v1253 = vadd.f32 %v965, %v1221
  %v1254 = vadd.f32 %v966, %v1223
  %v1255 = vadd.f32 %v967, %v1225
  %v1256 = vadd.f32 %v968, %v1227
  %v1257 = vadd.f32 %v969, %v1231
  %v1258 = vadd.f32 %v970, %v1233
  %v1259 = vadd.f32 %v971, %v1235
  %v1260 = vadd.f32 %v972, %v1237
  %v1261 = vadd.f32 %v973, %v1241
  %v1262 = vadd.f32 %v974, %v1243
  %v1263 = vadd.f32 %v975, %v1245
  %v1264 = vadd.f32 %v976, %v1247
  %v1265 = vld [vmem:[%s3] sm:$0x3]
  %v1267 = vlaneseq
  %v1268 = vshrl.u32 %v1267, 7
  %v1269 = vsub.s32 0, %v1268
  %v1270 = vrot.slane %v1265, %v1269
  %v1271 = vlaneseq
  %v1272 = vshrl.u32 %v1271, 7
  %v1273 = vsub.s32 1, %v1272
  %v1274 = vrot.slane %v1265, %v1273
  %v1277 = vadd.f32 %v1249, %v1270
  %v1278 = vadd.f32 %v1250, %v1274
  %v1279 = vadd.f32 %v1251, %v1270
  %v1280 = vadd.f32 %v1252, %v1274
  %v1281 = vadd.f32 %v1253, %v1270
  %v1282 = vadd.f32 %v1254, %v1274
  %v1283 = vadd.f32 %v1255, %v1270
  %v1284 = vadd.f32 %v1256, %v1274
  %v1285 = vadd.f32 %v1257, %v1270
  %v1286 = vadd.f32 %v1258, %v1274
  %v1287 = vadd.f32 %v1259, %v1270
  %v1288 = vadd.f32 %v1260, %v1274
  %v1289 = vadd.f32 %v1261, %v1270
  %v1290 = vadd.f32 %v1262, %v1274
  %v1291 = vadd.f32 %v1263, %v1270
  %v1292 = vadd.f32 %v1264, %v1274
  %vm1293 = vcmp.ge.f32.partialorder %v1277, 0.0
  %vm1294 = vcmp.ge.f32.partialorder %v1278, 0.0
  %vm1295 = vcmp.ge.f32.partialorder %v1279, 0.0
  %vm1296 = vcmp.ge.f32.partialorder %v1280, 0.0
  %vm1297 = vcmp.ge.f32.partialorder %v1281, 0.0
  %vm1298 = vcmp.ge.f32.partialorder %v1282, 0.0
  %vm1299 = vcmp.ge.f32.partialorder %v1283, 0.0
  %vm1300 = vcmp.ge.f32.partialorder %v1284, 0.0
  %vm1301 = vcmp.ge.f32.partialorder %v1285, 0.0
  %vm1302 = vcmp.ge.f32.partialorder %v1286, 0.0
  %vm1303 = vcmp.ge.f32.partialorder %v1287, 0.0
  %vm1304 = vcmp.ge.f32.partialorder %v1288, 0.0
  %vm1305 = vcmp.ge.f32.partialorder %v1289, 0.0
  %vm1306 = vcmp.ge.f32.partialorder %v1290, 0.0
  %vm1307 = vcmp.ge.f32.partialorder %v1291, 0.0
  %vm1308 = vcmp.ge.f32.partialorder %v1292, 0.0
  %v1309 = vmul.f32 %v1277, 0.2
  %v1310 = vmul.f32 %v1278, 0.2
  %v1311 = vmul.f32 %v1279, 0.2
  %v1312 = vmul.f32 %v1280, 0.2
  %v1313 = vmul.f32 %v1281, 0.2
  %v1314 = vmul.f32 %v1282, 0.2
  %v1315 = vmul.f32 %v1283, 0.2
  %v1316 = vmul.f32 %v1284, 0.2
  %v1317 = vmul.f32 %v1285, 0.2
  %v1318 = vmul.f32 %v1286, 0.2
  %v1319 = vmul.f32 %v1287, 0.2
  %v1320 = vmul.f32 %v1288, 0.2
  %v1321 = vmul.f32 %v1289, 0.2
  %v1322 = vmul.f32 %v1290, 0.2
  %v1323 = vmul.f32 %v1291, 0.2
  %v1324 = vmul.f32 %v1292, 0.2
  %v1325 = vsel %vm1293, %v1277, %v1309
  %v1326 = vsel %vm1294, %v1278, %v1310
  %v1327 = vsel %vm1295, %v1279, %v1311
  %v1328 = vsel %vm1296, %v1280, %v1312
  %v1329 = vsel %vm1297, %v1281, %v1313
  %v1330 = vsel %vm1298, %v1282, %v1314
  %v1331 = vsel %vm1299, %v1283, %v1315
  %v1332 = vsel %vm1300, %v1284, %v1316
  %v1333 = vsel %vm1301, %v1285, %v1317
  %v1334 = vsel %vm1302, %v1286, %v1318
  %v1335 = vsel %vm1303, %v1287, %v1319
  %v1336 = vsel %vm1304, %v1288, %v1320
  %v1337 = vsel %vm1305, %v1289, %v1321
  %v1338 = vsel %vm1306, %v1290, %v1322
  %v1339 = vsel %vm1307, %v1291, %v1323
  %v1340 = vsel %vm1308, %v1292, %v1324
  %v1341 = vpack.c.bf16 %v1327, %v1325
  %v1342 = vpack.c.bf16 %v1328, %v1326
  %v1343 = vpack.c.bf16 %v1331, %v1329
  %v1344 = vpack.c.bf16 %v1332, %v1330
  %v1345 = vpack.c.bf16 %v1335, %v1333
  %v1346 = vpack.c.bf16 %v1336, %v1334
  %v1347 = vpack.c.bf16 %v1339, %v1337
  %v1348 = vpack.c.bf16 %v1340, %v1338
  %v1349 = vld [vmem:[%s4] sm:$0xf]
  %v1350 = vld [vmem:[%s4 + $0x4] sm:$0xf]
  %v1351 = vld [vmem:[%s4 + $0x8] sm:$0xf]
  %v1352 = vld [vmem:[%s4 + $0xc] sm:$0xf]
  %v1357 = vunpack.c.l.b16 %v1349
  %v1358 = vunpack.c.l.b16 %v1350
  %v1359 = vunpack.c.l.b16 %v1351
  %v1360 = vunpack.c.l.b16 %v1352
  %v1361 = vpack.c.b16 %v1358, %v1357
  %v1362 = vpack.c.b16 %v1360, %v1359
  %vm1363 = vcmask 523264
  %v1365 = vsel %vm1363, %v1361, 0
  %v1368 = vsel %vm1363, %v1362, 0
  %1370 = vmatprep.subr.bf16.mxu0 0
  %1371 = vmatpush1.bf16.msra.mxu0 0
  %1372 = vmatprep.subr.bf16.mxu0 0
  %1373 = vmatpush1.bf16.msra.mxu0 0
  %1374 = vmatprep.subr.bf16.mxu0 0
  %1375 = vmatpush1.bf16.msra.mxu0 0
  %1376 = vmatprep.subr.bf16.mxu0 0
  %1377 = vmatpush1.bf16.msra.mxu0 0
  %1378 = vmatprep.subr.bf16.mxu0 %v1348
  %1379 = vmatpush1.bf16.msra.mxu0 %v1347
  %1380 = vmatprep.subr.bf16.mxu0 %v1346
  %1381 = vmatpush1.bf16.msra.mxu0 %v1345
  %1382 = vmatprep.subr.bf16.mxu0 %v1344
  %1383 = vmatpush1.bf16.msra.mxu0 %v1343
  %1384 = vmatprep.subr.bf16.mxu0 %v1342
  %1385 = vmatpush1.bf16.msra.mxu0 %v1341
  %1386 = vmatprep.subr.bf16.mxu0 0
  %1387 = vmatpush2.bf16.msra.mxu0 0
  %1388 = vmatprep.subr.bf16.mxu0 0
  %1389 = vmatpush2.bf16.msra.mxu0 0
  %1390 = vmatprep.subr.bf16.mxu0 0
  %1391 = vmatpush2.bf16.msra.mxu0 0
  %1392 = vmatprep.subr.bf16.mxu0 0
  %1393 = vmatpush2.bf16.msra.mxu0 0
  %1394 = vmatprep.subr.bf16.mxu0 0
  %1395 = vmatpush2.bf16.msra.mxu0 0
  %1396 = vmatprep.subr.bf16.mxu0 0
  %1397 = vmatpush2.bf16.msra.mxu0 0
  %1398 = vmatprep.subr.bf16.mxu0 0
  %1399 = vmatpush2.bf16.msra.mxu0 0
  %1400 = vmatprep.subr.bf16.mxu0 0
  %1401 = vmatpush2.bf16.msra.mxu0 0
  %1402 = vmatprep.mubr.bf16.mxu0 0
  %1403 = vmatmul.mubr.bf16.gmra.mxu0 %v1365
  %v1404 = vpop.f32.mrf.mxu0
  %v1405 = vadd.f32 0.0, %v1404
  %v1406 = vpop.f32.mrf.mxu0
  %v1407 = vadd.f32 0.0, %v1406
  %v1408 = vpop.f32.mrf.mxu0
  %v1409 = vadd.f32 0.0, %v1408
  %v1410 = vpop.f32.mrf.mxu0
  %v1411 = vadd.f32 0.0, %v1410
  %1412 = vmatprep.mubr.bf16.mxu0 0
  %1413 = vmatmul.mubr.bf16.gmra.mxu0 %v1368
  %v1414 = vpop.f32.mrf.mxu0
  %v1415 = vadd.f32 0.0, %v1414
  %v1416 = vpop.f32.mrf.mxu0
  %v1417 = vadd.f32 0.0, %v1416
  %v1418 = vpop.f32.mrf.mxu0
  %v1419 = vadd.f32 0.0, %v1418
  %v1420 = vpop.f32.mrf.mxu0
  %v1421 = vadd.f32 0.0, %v1420
  %1422 = vdwg.mxu0
  %v1423 = vpack.c.bf16 %v1409, %v1405
  %v1424 = vpack.c.bf16 %v1411, %v1407
  %v1425 = vpack.c.bf16 %v1419, %v1415
  %v1426 = vpack.c.bf16 %v1421, %v1417
  %v1427 = vld [vmem:[%s5] sm:$0xff]
  %v1428 = vld [vmem:[%s5 + $0x8] sm:$0xff]
  %v1429 = vld [vmem:[%s5 + $0x10] sm:$0xff]
  %v1430 = vld [vmem:[%s5 + $0x18] sm:$0xff]
  %v1431 = vld [vmem:[%s5 + $0x20] sm:$0xff]
  %v1432 = vld [vmem:[%s5 + $0x28] sm:$0xff]
  %v1433 = vld [vmem:[%s5 + $0x30] sm:$0xff]
  %v1434 = vld [vmem:[%s5 + $0x38] sm:$0xff]
  %v1435 = vld [vmem:[%s5 + $0x40] sm:$0xff]
  %v1436 = vld [vmem:[%s5 + $0x48] sm:$0xff]
  %v1437 = vld [vmem:[%s5 + $0x50] sm:$0xff]
  %v1438 = vld [vmem:[%s5 + $0x58] sm:$0xff]
  %v1439 = vld [vmem:[%s5 + $0x60] sm:$0xff]
  %v1440 = vld [vmem:[%s5 + $0x68] sm:$0xff]
  %v1441 = vld [vmem:[%s5 + $0x70] sm:$0xff]
  %v1442 = vld [vmem:[%s5 + $0x78] sm:$0xff]
  %v1443 = vld [vmem:[%s5 + $0x80] sm:$0xff]
  %v1444 = vld [vmem:[%s5 + $0x88] sm:$0xff]
  %v1445 = vld [vmem:[%s5 + $0x90] sm:$0xff]
  %v1446 = vld [vmem:[%s5 + $0x98] sm:$0xff]
  %v1447 = vld [vmem:[%s5 + $0xa0] sm:$0xff]
  %v1448 = vld [vmem:[%s5 + $0xa8] sm:$0xff]
  %v1449 = vld [vmem:[%s5 + $0xb0] sm:$0xff]
  %v1450 = vld [vmem:[%s5 + $0xb8] sm:$0xff]
  %v1451 = vld [vmem:[%s5 + $0xc0] sm:$0xff]
  %v1452 = vld [vmem:[%s5 + $0xc8] sm:$0xff]
  %v1453 = vld [vmem:[%s5 + $0xd0] sm:$0xff]
  %v1454 = vld [vmem:[%s5 + $0xd8] sm:$0xff]
  %v1455 = vld [vmem:[%s5 + $0xe0] sm:$0xff]
  %v1456 = vld [vmem:[%s5 + $0xe8] sm:$0xff]
  %v1457 = vld [vmem:[%s5 + $0xf0] sm:$0xff]
  %v1458 = vld [vmem:[%s5 + $0xf8] sm:$0xff]
  %s1459 = scalar_lea.vmem %s4, 16
  %v1460 = vld [vmem:[%s1459] sm:$0xf]
  %v1461 = vld [vmem:[%s1459 + $0x4] sm:$0xf]
  %v1462 = vld [vmem:[%s1459 + $0x8] sm:$0xf]
  %v1463 = vld [vmem:[%s1459 + $0xc] sm:$0xf]
  %v1468 = vunpack.c.l.b16 %v1460
  %v1469 = vunpack.c.l.b16 %v1461
  %v1470 = vunpack.c.l.b16 %v1462
  %v1471 = vunpack.c.l.b16 %v1463
  %v1472 = vpack.c.b16 %v1469, %v1468
  %v1473 = vpack.c.b16 %v1471, %v1470
  %v1475 = vsel %vm1363, %v1472, 0
  %v1478 = vsel %vm1363, %v1473, 0
  %1480 = vmatprep.subr.bf16.mxu0 0
  %1481 = vmatpush1.bf16.msra.mxu0 0
  %1482 = vmatprep.subr.bf16.mxu0 0
  %1483 = vmatpush1.bf16.msra.mxu0 0
  %1484 = vmatprep.subr.bf16.mxu0 0
  %1485 = vmatpush1.bf16.msra.mxu0 0
  %1486 = vmatprep.subr.bf16.mxu0 0
  %1487 = vmatpush1.bf16.msra.mxu0 0
  %1488 = vmatprep.subr.bf16.mxu0 %v1348
  %1489 = vmatpush1.bf16.msra.mxu0 %v1347
  %1490 = vmatprep.subr.bf16.mxu0 %v1346
  %1491 = vmatpush1.bf16.msra.mxu0 %v1345
  %1492 = vmatprep.subr.bf16.mxu0 %v1344
  %1493 = vmatpush1.bf16.msra.mxu0 %v1343
  %1494 = vmatprep.subr.bf16.mxu0 %v1342
  %1495 = vmatpush1.bf16.msra.mxu0 %v1341
  %1496 = vmatprep.subr.bf16.mxu0 0
  %1497 = vmatpush2.bf16.msra.mxu0 0
  %1498 = vmatprep.subr.bf16.mxu0 0
  %1499 = vmatpush2.bf16.msra.mxu0 0
  %1500 = vmatprep.subr.bf16.mxu0 0
  %1501 = vmatpush2.bf16.msra.mxu0 0
  %1502 = vmatprep.subr.bf16.mxu0 0
  %1503 = vmatpush2.bf16.msra.mxu0 0
  %1504 = vmatprep.subr.bf16.mxu0 0
  %1505 = vmatpush2.bf16.msra.mxu0 0
  %1506 = vmatprep.subr.bf16.mxu0 0
  %1507 = vmatpush2.bf16.msra.mxu0 0
  %1508 = vmatprep.subr.bf16.mxu0 0
  %1509 = vmatpush2.bf16.msra.mxu0 0
  %1510 = vmatprep.subr.bf16.mxu0 0
  %1511 = vmatpush2.bf16.msra.mxu0 0
  %1512 = vmatprep.mubr.bf16.mxu0 0
  %1513 = vmatmul.mubr.bf16.gmra.mxu0 %v1475
  %v1514 = vpop.f32.mrf.mxu0
  %v1515 = vadd.f32 0.0, %v1514
  %v1516 = vpop.f32.mrf.mxu0
  %v1517 = vadd.f32 0.0, %v1516
  %v1518 = vpop.f32.mrf.mxu0
  %v1519 = vadd.f32 0.0, %v1518
  %v1520 = vpop.f32.mrf.mxu0
  %v1521 = vadd.f32 0.0, %v1520
  %1522 = vmatprep.mubr.bf16.mxu0 0
  %1523 = vmatmul.mubr.bf16.gmra.mxu0 %v1478
  %v1524 = vpop.f32.mrf.mxu0
  %v1525 = vadd.f32 0.0, %v1524
  %v1526 = vpop.f32.mrf.mxu0
  %v1527 = vadd.f32 0.0, %v1526
  %v1528 = vpop.f32.mrf.mxu0
  %v1529 = vadd.f32 0.0, %v1528
  %v1530 = vpop.f32.mrf.mxu0
  %v1531 = vadd.f32 0.0, %v1530
  %1532 = vdwg.mxu0
  %v1533 = vpack.c.bf16 %v1519, %v1515
  %v1534 = vpack.c.bf16 %v1521, %v1517
  %v1535 = vpack.c.bf16 %v1529, %v1525
  %v1536 = vpack.c.bf16 %v1531, %v1527
  %s1537 = scalar_lea.vmem %s5, 256
  %v1538 = vld [vmem:[%s1537] sm:$0xff]
  %v1539 = vld [vmem:[%s1537 + $0x8] sm:$0xff]
  %v1540 = vld [vmem:[%s1537 + $0x10] sm:$0xff]
  %v1541 = vld [vmem:[%s1537 + $0x18] sm:$0xff]
  %v1542 = vld [vmem:[%s1537 + $0x20] sm:$0xff]
  %v1543 = vld [vmem:[%s1537 + $0x28] sm:$0xff]
  %v1544 = vld [vmem:[%s1537 + $0x30] sm:$0xff]
  %v1545 = vld [vmem:[%s1537 + $0x38] sm:$0xff]
  %v1546 = vld [vmem:[%s1537 + $0x40] sm:$0xff]
  %v1547 = vld [vmem:[%s1537 + $0x48] sm:$0xff]
  %v1548 = vld [vmem:[%s1537 + $0x50] sm:$0xff]
  %v1549 = vld [vmem:[%s1537 + $0x58] sm:$0xff]
  %v1550 = vld [vmem:[%s1537 + $0x60] sm:$0xff]
  %v1551 = vld [vmem:[%s1537 + $0x68] sm:$0xff]
  %v1552 = vld [vmem:[%s1537 + $0x70] sm:$0xff]
  %v1553 = vld [vmem:[%s1537 + $0x78] sm:$0xff]
  %v1554 = vld [vmem:[%s1537 + $0x80] sm:$0xff]
  %v1555 = vld [vmem:[%s1537 + $0x88] sm:$0xff]
  %v1556 = vld [vmem:[%s1537 + $0x90] sm:$0xff]
  %v1557 = vld [vmem:[%s1537 + $0x98] sm:$0xff]
  %v1558 = vld [vmem:[%s1537 + $0xa0] sm:$0xff]
  %v1559 = vld [vmem:[%s1537 + $0xa8] sm:$0xff]
  %v1560 = vld [vmem:[%s1537 + $0xb0] sm:$0xff]
  %v1561 = vld [vmem:[%s1537 + $0xb8] sm:$0xff]
  %v1562 = vld [vmem:[%s1537 + $0xc0] sm:$0xff]
  %v1563 = vld [vmem:[%s1537 + $0xc8] sm:$0xff]
  %v1564 = vld [vmem:[%s1537 + $0xd0] sm:$0xff]
  %v1565 = vld [vmem:[%s1537 + $0xd8] sm:$0xff]
  %v1566 = vld [vmem:[%s1537 + $0xe0] sm:$0xff]
  %v1567 = vld [vmem:[%s1537 + $0xe8] sm:$0xff]
  %v1568 = vld [vmem:[%s1537 + $0xf0] sm:$0xff]
  %v1569 = vld [vmem:[%s1537 + $0xf8] sm:$0xff]
  %v1602 = vunpack.c.l.b16 %v1538
  %v1603 = vunpack.c.h.b16 %v1538
  %v1604 = vunpack.c.l.b16 %v1539
  %v1605 = vunpack.c.h.b16 %v1539
  %v1606 = vunpack.c.l.b16 %v1540
  %v1607 = vunpack.c.h.b16 %v1540
  %v1608 = vunpack.c.l.b16 %v1541
  %v1609 = vunpack.c.h.b16 %v1541
  %v1610 = vunpack.c.l.b16 %v1542
  %v1611 = vunpack.c.h.b16 %v1542
  %v1612 = vunpack.c.l.b16 %v1543
  %v1613 = vunpack.c.h.b16 %v1543
  %v1614 = vunpack.c.l.b16 %v1544
  %v1615 = vunpack.c.h.b16 %v1544
  %v1616 = vunpack.c.l.b16 %v1545
  %v1617 = vunpack.c.h.b16 %v1545
  %v1618 = vunpack.c.l.b16 %v1546
  %v1619 = vunpack.c.h.b16 %v1546
  %v1620 = vunpack.c.l.b16 %v1547
  %v1621 = vunpack.c.h.b16 %v1547
  %v1622 = vunpack.c.l.b16 %v1548
  %v1623 = vunpack.c.h.b16 %v1548
  %v1624 = vunpack.c.l.b16 %v1549
  %v1625 = vunpack.c.h.b16 %v1549
  %v1626 = vunpack.c.l.b16 %v1550
  %v1627 = vunpack.c.h.b16 %v1550
  %v1628 = vunpack.c.l.b16 %v1551
  %v1629 = vunpack.c.h.b16 %v1551
  %v1630 = vunpack.c.l.b16 %v1552
  %v1631 = vunpack.c.h.b16 %v1552
  %v1632 = vunpack.c.l.b16 %v1553
  %v1633 = vunpack.c.h.b16 %v1553
  %v1634 = vunpack.c.l.b16 %v1554
  %v1635 = vunpack.c.h.b16 %v1554
  %v1636 = vunpack.c.l.b16 %v1555
  %v1637 = vunpack.c.h.b16 %v1555
  %v1638 = vunpack.c.l.b16 %v1556
  %v1639 = vunpack.c.h.b16 %v1556
  %v1640 = vunpack.c.l.b16 %v1557
  %v1641 = vunpack.c.h.b16 %v1557
  %v1642 = vunpack.c.l.b16 %v1558
  %v1643 = vunpack.c.h.b16 %v1558
  %v1644 = vunpack.c.l.b16 %v1559
  %v1645 = vunpack.c.h.b16 %v1559
  %v1646 = vunpack.c.l.b16 %v1560
  %v1647 = vunpack.c.h.b16 %v1560
  %v1648 = vunpack.c.l.b16 %v1561
  %v1649 = vunpack.c.h.b16 %v1561
  %v1650 = vunpack.c.l.b16 %v1562
  %v1651 = vunpack.c.h.b16 %v1562
  %v1652 = vunpack.c.l.b16 %v1563
  %v1653 = vunpack.c.h.b16 %v1563
  %v1654 = vunpack.c.l.b16 %v1564
  %v1655 = vunpack.c.h.b16 %v1564
  %v1656 = vunpack.c.l.b16 %v1565
  %v1657 = vunpack.c.h.b16 %v1565
  %v1658 = vunpack.c.l.b16 %v1566
  %v1659 = vunpack.c.h.b16 %v1566
  %v1660 = vunpack.c.l.b16 %v1567
  %v1661 = vunpack.c.h.b16 %v1567
  %v1662 = vunpack.c.l.b16 %v1568
  %v1663 = vunpack.c.h.b16 %v1568
  %v1664 = vunpack.c.l.b16 %v1569
  %v1665 = vunpack.c.h.b16 %v1569
  %v1666 = vpack.c.b16 %v1604, %v1602
  %v1667 = vpack.c.b16 %v1605, %v1603
  %v1668 = vpack.c.b16 %v1608, %v1606
  %v1669 = vpack.c.b16 %v1609, %v1607
  %v1670 = vpack.c.b16 %v1612, %v1610
  %v1671 = vpack.c.b16 %v1613, %v1611
  %v1672 = vpack.c.b16 %v1616, %v1614
  %v1673 = vpack.c.b16 %v1617, %v1615
  %v1674 = vpack.c.b16 %v1620, %v1618
  %v1675 = vpack.c.b16 %v1621, %v1619
  %v1676 = vpack.c.b16 %v1624, %v1622
  %v1677 = vpack.c.b16 %v1625, %v1623
  %v1678 = vpack.c.b16 %v1628, %v1626
  %v1679 = vpack.c.b16 %v1629, %v1627
  %v1680 = vpack.c.b16 %v1632, %v1630
  %v1681 = vpack.c.b16 %v1633, %v1631
  %v1682 = vpack.c.b16 %v1636, %v1634
  %v1683 = vpack.c.b16 %v1637, %v1635
  %v1684 = vpack.c.b16 %v1640, %v1638
  %v1685 = vpack.c.b16 %v1641, %v1639
  %v1686 = vpack.c.b16 %v1644, %v1642
  %v1687 = vpack.c.b16 %v1645, %v1643
  %v1688 = vpack.c.b16 %v1648, %v1646
  %v1689 = vpack.c.b16 %v1649, %v1647
  %v1690 = vpack.c.b16 %v1652, %v1650
  %v1691 = vpack.c.b16 %v1653, %v1651
  %v1692 = vpack.c.b16 %v1656, %v1654
  %v1693 = vpack.c.b16 %v1657, %v1655
  %v1694 = vpack.c.b16 %v1660, %v1658
  %v1695 = vpack.c.b16 %v1661, %v1659
  %v1696 = vpack.c.b16 %v1664, %v1662
  %v1697 = vpack.c.b16 %v1665, %v1663
  %1730 = vmatprep.subr.bf16.mxu0 %v1681
  %1731 = vmatpush1.bf16.msra.mxu0 %v1680
  %1732 = vmatprep.subr.bf16.mxu0 %v1679
  %1733 = vmatpush1.bf16.msra.mxu0 %v1678
  %1734 = vmatprep.subr.bf16.mxu0 %v1677
  %1735 = vmatpush1.bf16.msra.mxu0 %v1676
  %1736 = vmatprep.subr.bf16.mxu0 %v1675
  %1737 = vmatpush1.bf16.msra.mxu0 %v1674
  %1738 = vmatprep.subr.bf16.mxu0 %v1673
  %1739 = vmatpush1.bf16.msra.mxu0 %v1672
  %1740 = vmatprep.subr.bf16.mxu0 %v1671
  %1741 = vmatpush1.bf16.msra.mxu0 %v1670
  %1742 = vmatprep.subr.bf16.mxu0 %v1669
  %1743 = vmatpush1.bf16.msra.mxu0 %v1668
  %1744 = vmatprep.subr.bf16.mxu0 %v1667
  %1745 = vmatpush1.bf16.msra.mxu0 %v1666
  %1746 = vmatprep.subr.bf16.mxu0 %v1697
  %1747 = vmatpush2.bf16.msra.mxu0 %v1696
  %1748 = vmatprep.subr.bf16.mxu0 %v1695
  %1749 = vmatpush2.bf16.msra.mxu0 %v1694
  %1750 = vmatprep.subr.bf16.mxu0 %v1693
  %1751 = vmatpush2.bf16.msra.mxu0 %v1692
  %1752 = vmatprep.subr.bf16.mxu0 %v1691
  %1753 = vmatpush2.bf16.msra.mxu0 %v1690
  %1754 = vmatprep.subr.bf16.mxu0 %v1689
  %1755 = vmatpush2.bf16.msra.mxu0 %v1688
  %1756 = vmatprep.subr.bf16.mxu0 %v1687
  %1757 = vmatpush2.bf16.msra.mxu0 %v1686
  %1758 = vmatprep.subr.bf16.mxu0 %v1685
  %1759 = vmatpush2.bf16.msra.mxu0 %v1684
  %1760 = vmatprep.subr.bf16.mxu0 %v1683
  %1761 = vmatpush2.bf16.msra.mxu0 %v1682
  %1762 = vmatprep.mubr.bf16.mxu0 %v1534
  %1763 = vmatmul.mubr.bf16.gmra.mxu0 %v1533
  %v1764 = vpop.f32.mrf.mxu0
  %v1765 = vadd.f32 0.0, %v1764
  %v1766 = vpop.f32.mrf.mxu0
  %v1767 = vadd.f32 0.0, %v1766
  %v1768 = vpop.f32.mrf.mxu0
  %v1769 = vadd.f32 0.0, %v1768
  %v1770 = vpop.f32.mrf.mxu0
  %v1771 = vadd.f32 0.0, %v1770
  %1772 = vmatprep.mubr.bf16.mxu0 %v1536
  %1773 = vmatmul.mubr.bf16.gmra.mxu0 %v1535
  %v1774 = vpop.f32.mrf.mxu0
  %v1775 = vadd.f32 0.0, %v1774
  %v1776 = vpop.f32.mrf.mxu0
  %v1777 = vadd.f32 0.0, %v1776
  %v1778 = vpop.f32.mrf.mxu0
  %v1779 = vadd.f32 0.0, %v1778
  %v1780 = vpop.f32.mrf.mxu0
  %v1781 = vadd.f32 0.0, %v1780
  %1782 = vdwg.mxu0
  %v1815 = vunpack.c.l.b16 %v1427
  %v1816 = vunpack.c.h.b16 %v1427
  %v1817 = vunpack.c.l.b16 %v1428
  %v1818 = vunpack.c.h.b16 %v1428
  %v1819 = vunpack.c.l.b16 %v1429
  %v1820 = vunpack.c.h.b16 %v1429
  %v1821 = vunpack.c.l.b16 %v1430
  %v1822 = vunpack.c.h.b16 %v1430
  %v1823 = vunpack.c.l.b16 %v1431
  %v1824 = vunpack.c.h.b16 %v1431
  %v1825 = vunpack.c.l.b16 %v1432
  %v1826 = vunpack.c.h.b16 %v1432
  %v1827 = vunpack.c.l.b16 %v1433
  %v1828 = vunpack.c.h.b16 %v1433
  %v1829 = vunpack.c.l.b16 %v1434
  %v1830 = vunpack.c.h.b16 %v1434
  %v1831 = vunpack.c.l.b16 %v1435
  %v1832 = vunpack.c.h.b16 %v1435
  %v1833 = vunpack.c.l.b16 %v1436
  %v1834 = vunpack.c.h.b16 %v1436
  %v1835 = vunpack.c.l.b16 %v1437
  %v1836 = vunpack.c.h.b16 %v1437
  %v1837 = vunpack.c.l.b16 %v1438
  %v1838 = vunpack.c.h.b16 %v1438
  %v1839 = vunpack.c.l.b16 %v1439
  %v1840 = vunpack.c.h.b16 %v1439
  %v1841 = vunpack.c.l.b16 %v1440
  %v1842 = vunpack.c.h.b16 %v1440
  %v1843 = vunpack.c.l.b16 %v1441
  %v1844 = vunpack.c.h.b16 %v1441
  %v1845 = vunpack.c.l.b16 %v1442
  %v1846 = vunpack.c.h.b16 %v1442
  %v1847 = vunpack.c.l.b16 %v1443
  %v1848 = vunpack.c.h.b16 %v1443
  %v1849 = vunpack.c.l.b16 %v1444
  %v1850 = vunpack.c.h.b16 %v1444
  %v1851 = vunpack.c.l.b16 %v1445
  %v1852 = vunpack.c.h.b16 %v1445
  %v1853 = vunpack.c.l.b16 %v1446
  %v1854 = vunpack.c.h.b16 %v1446
  %v1855 = vunpack.c.l.b16 %v1447
  %v1856 = vunpack.c.h.b16 %v1447
  %v1857 = vunpack.c.l.b16 %v1448
  %v1858 = vunpack.c.h.b16 %v1448
  %v1859 = vunpack.c.l.b16 %v1449
  %v1860 = vunpack.c.h.b16 %v1449
  %v1861 = vunpack.c.l.b16 %v1450
  %v1862 = vunpack.c.h.b16 %v1450
  %v1863 = vunpack.c.l.b16 %v1451
  %v1864 = vunpack.c.h.b16 %v1451
  %v1865 = vunpack.c.l.b16 %v1452
  %v1866 = vunpack.c.h.b16 %v1452
  %v1867 = vunpack.c.l.b16 %v1453
  %v1868 = vunpack.c.h.b16 %v1453
  %v1869 = vunpack.c.l.b16 %v1454
  %v1870 = vunpack.c.h.b16 %v1454
  %v1871 = vunpack.c.l.b16 %v1455
  %v1872 = vunpack.c.h.b16 %v1455
  %v1873 = vunpack.c.l.b16 %v1456
  %v1874 = vunpack.c.h.b16 %v1456
  %v1875 = vunpack.c.l.b16 %v1457
  %v1876 = vunpack.c.h.b16 %v1457
  %v1877 = vunpack.c.l.b16 %v1458
  %v1878 = vunpack.c.h.b16 %v1458
  %v1879 = vpack.c.b16 %v1817, %v1815
  %v1880 = vpack.c.b16 %v1818, %v1816
  %v1881 = vpack.c.b16 %v1821, %v1819
  %v1882 = vpack.c.b16 %v1822, %v1820
  %v1883 = vpack.c.b16 %v1825, %v1823
  %v1884 = vpack.c.b16 %v1826, %v1824
  %v1885 = vpack.c.b16 %v1829, %v1827
  %v1886 = vpack.c.b16 %v1830, %v1828
  %v1887 = vpack.c.b16 %v1833, %v1831
  %v1888 = vpack.c.b16 %v1834, %v1832
  %v1889 = vpack.c.b16 %v1837, %v1835
  %v1890 = vpack.c.b16 %v1838, %v1836
  %v1891 = vpack.c.b16 %v1841, %v1839
  %v1892 = vpack.c.b16 %v1842, %v1840
  %v1893 = vpack.c.b16 %v1845, %v1843
  %v1894 = vpack.c.b16 %v1846, %v1844
  %v1895 = vpack.c.b16 %v1849, %v1847
  %v1896 = vpack.c.b16 %v1850, %v1848
  %v1897 = vpack.c.b16 %v1853, %v1851
  %v1898 = vpack.c.b16 %v1854, %v1852
  %v1899 = vpack.c.b16 %v1857, %v1855
  %v1900 = vpack.c.b16 %v1858, %v1856
  %v1901 = vpack.c.b16 %v1861, %v1859
  %v1902 = vpack.c.b16 %v1862, %v1860
  %v1903 = vpack.c.b16 %v1865, %v1863
  %v1904 = vpack.c.b16 %v1866, %v1864
  %v1905 = vpack.c.b16 %v1869, %v1867
  %v1906 = vpack.c.b16 %v1870, %v1868
  %v1907 = vpack.c.b16 %v1873, %v1871
  %v1908 = vpack.c.b16 %v1874, %v1872
  %v1909 = vpack.c.b16 %v1877, %v1875
  %v1910 = vpack.c.b16 %v1878, %v1876
  %1943 = vmatprep.subr.bf16.mxu0 %v1894
  %1944 = vmatpush1.bf16.msra.mxu0 %v1893
  %1945 = vmatprep.subr.bf16.mxu0 %v1892
  %1946 = vmatpush1.bf16.msra.mxu0 %v1891
  %1947 = vmatprep.subr.bf16.mxu0 %v1890
  %1948 = vmatpush1.bf16.msra.mxu0 %v1889
  %1949 = vmatprep.subr.bf16.mxu0 %v1888
  %1950 = vmatpush1.bf16.msra.mxu0 %v1887
  %1951 = vmatprep.subr.bf16.mxu0 %v1886
  %1952 = vmatpush1.bf16.msra.mxu0 %v1885
  %1953 = vmatprep.subr.bf16.mxu0 %v1884
  %1954 = vmatpush1.bf16.msra.mxu0 %v1883
  %1955 = vmatprep.subr.bf16.mxu0 %v1882
  %1956 = vmatpush1.bf16.msra.mxu0 %v1881
  %1957 = vmatprep.subr.bf16.mxu0 %v1880
  %1958 = vmatpush1.bf16.msra.mxu0 %v1879
  %1959 = vmatprep.subr.bf16.mxu0 %v1910
  %1960 = vmatpush2.bf16.msra.mxu0 %v1909
  %1961 = vmatprep.subr.bf16.mxu0 %v1908
  %1962 = vmatpush2.bf16.msra.mxu0 %v1907
  %1963 = vmatprep.subr.bf16.mxu0 %v1906
  %1964 = vmatpush2.bf16.msra.mxu0 %v1905
  %1965 = vmatprep.subr.bf16.mxu0 %v1904
  %1966 = vmatpush2.bf16.msra.mxu0 %v1903
  %1967 = vmatprep.subr.bf16.mxu0 %v1902
  %1968 = vmatpush2.bf16.msra.mxu0 %v1901
  %1969 = vmatprep.subr.bf16.mxu0 %v1900
  %1970 = vmatpush2.bf16.msra.mxu0 %v1899
  %1971 = vmatprep.subr.bf16.mxu0 %v1898
  %1972 = vmatpush2.bf16.msra.mxu0 %v1897
  %1973 = vmatprep.subr.bf16.mxu0 %v1896
  %1974 = vmatpush2.bf16.msra.mxu0 %v1895
  %1975 = vmatprep.mubr.bf16.mxu0 %v1424
  %1976 = vmatmul.mubr.bf16.gmra.mxu0 %v1423
  %v1977 = vpop.f32.mrf.mxu0
  %v1978 = vadd.f32 %v1765, %v1977
  %v1979 = vpop.f32.mrf.mxu0
  %v1980 = vadd.f32 %v1767, %v1979
  %v1981 = vpop.f32.mrf.mxu0
  %v1982 = vadd.f32 %v1769, %v1981
  %v1983 = vpop.f32.mrf.mxu0
  %v1984 = vadd.f32 %v1771, %v1983
  %1985 = vmatprep.mubr.bf16.mxu0 %v1426
  %1986 = vmatmul.mubr.bf16.gmra.mxu0 %v1425
  %v1987 = vpop.f32.mrf.mxu0
  %v1988 = vadd.f32 %v1775, %v1987
  %v1989 = vpop.f32.mrf.mxu0
  %v1990 = vadd.f32 %v1777, %v1989
  %v1991 = vpop.f32.mrf.mxu0
  %v1992 = vadd.f32 %v1779, %v1991
  %v1993 = vpop.f32.mrf.mxu0
  %v1994 = vadd.f32 %v1781, %v1993
  %1995 = vdwg.mxu0
  %s1996 = scalar_lea.vmem %s4, 32
  %v1997 = vld [vmem:[%s1996] sm:$0xf]
  %v1998 = vld [vmem:[%s1996 + $0x4] sm:$0xf]
  %v1999 = vld [vmem:[%s1996 + $0x8] sm:$0xf]
  %v2000 = vld [vmem:[%s1996 + $0xc] sm:$0xf]
  %v2005 = vunpack.c.l.b16 %v1997
  %v2006 = vunpack.c.l.b16 %v1998
  %v2007 = vunpack.c.l.b16 %v1999
  %v2008 = vunpack.c.l.b16 %v2000
  %v2009 = vpack.c.b16 %v2006, %v2005
  %v2010 = vpack.c.b16 %v2008, %v2007
  %v2012 = vsel %vm1363, %v2009, 0
  %v2015 = vsel %vm1363, %v2010, 0
  %2017 = vmatprep.subr.bf16.mxu0 0
  %2018 = vmatpush1.bf16.msra.mxu0 0
  %2019 = vmatprep.subr.bf16.mxu0 0
  %2020 = vmatpush1.bf16.msra.mxu0 0
  %2021 = vmatprep.subr.bf16.mxu0 0
  %2022 = vmatpush1.bf16.msra.mxu0 0
  %2023 = vmatprep.subr.bf16.mxu0 0
  %2024 = vmatpush1.bf16.msra.mxu0 0
  %2025 = vmatprep.subr.bf16.mxu0 %v1348
  %2026 = vmatpush1.bf16.msra.mxu0 %v1347
  %2027 = vmatprep.subr.bf16.mxu0 %v1346
  %2028 = vmatpush1.bf16.msra.mxu0 %v1345
  %2029 = vmatprep.subr.bf16.mxu0 %v1344
  %2030 = vmatpush1.bf16.msra.mxu0 %v1343
  %2031 = vmatprep.subr.bf16.mxu0 %v1342
  %2032 = vmatpush1.bf16.msra.mxu0 %v1341
  %2033 = vmatprep.subr.bf16.mxu0 0
  %2034 = vmatpush2.bf16.msra.mxu0 0
  %2035 = vmatprep.subr.bf16.mxu0 0
  %2036 = vmatpush2.bf16.msra.mxu0 0
  %2037 = vmatprep.subr.bf16.mxu0 0
  %2038 = vmatpush2.bf16.msra.mxu0 0
  %2039 = vmatprep.subr.bf16.mxu0 0
  %2040 = vmatpush2.bf16.msra.mxu0 0
  %2041 = vmatprep.subr.bf16.mxu0 0
  %2042 = vmatpush2.bf16.msra.mxu0 0
  %2043 = vmatprep.subr.bf16.mxu0 0
  %2044 = vmatpush2.bf16.msra.mxu0 0
  %2045 = vmatprep.subr.bf16.mxu0 0
  %2046 = vmatpush2.bf16.msra.mxu0 0
  %2047 = vmatprep.subr.bf16.mxu0 0
  %2048 = vmatpush2.bf16.msra.mxu0 0
  %2049 = vmatprep.mubr.bf16.mxu0 0
  %2050 = vmatmul.mubr.bf16.gmra.mxu0 %v2012
  %v2051 = vpop.f32.mrf.mxu0
  %v2052 = vadd.f32 0.0, %v2051
  %v2053 = vpop.f32.mrf.mxu0
  %v2054 = vadd.f32 0.0, %v2053
  %v2055 = vpop.f32.mrf.mxu0
  %v2056 = vadd.f32 0.0, %v2055
  %v2057 = vpop.f32.mrf.mxu0
  %v2058 = vadd.f32 0.0, %v2057
  %2059 = vmatprep.mubr.bf16.mxu0 0
  %2060 = vmatmul.mubr.bf16.gmra.mxu0 %v2015
  %v2061 = vpop.f32.mrf.mxu0
  %v2062 = vadd.f32 0.0, %v2061
  %v2063 = vpop.f32.mrf.mxu0
  %v2064 = vadd.f32 0.0, %v2063
  %v2065 = vpop.f32.mrf.mxu0
  %v2066 = vadd.f32 0.0, %v2065
  %v2067 = vpop.f32.mrf.mxu0
  %v2068 = vadd.f32 0.0, %v2067
  %2069 = vdwg.mxu0
  %v2070 = vpack.c.bf16 %v2056, %v2052
  %v2071 = vpack.c.bf16 %v2058, %v2054
  %v2072 = vpack.c.bf16 %v2066, %v2062
  %v2073 = vpack.c.bf16 %v2068, %v2064
  %s2074 = scalar_lea.vmem %s5, 512
  %v2075 = vld [vmem:[%s2074] sm:$0xff]
  %v2076 = vld [vmem:[%s2074 + $0x8] sm:$0xff]
  %v2077 = vld [vmem:[%s2074 + $0x10] sm:$0xff]
  %v2078 = vld [vmem:[%s2074 + $0x18] sm:$0xff]
  %v2079 = vld [vmem:[%s2074 + $0x20] sm:$0xff]
  %v2080 = vld [vmem:[%s2074 + $0x28] sm:$0xff]
  %v2081 = vld [vmem:[%s2074 + $0x30] sm:$0xff]
  %v2082 = vld [vmem:[%s2074 + $0x38] sm:$0xff]
  %v2083 = vld [vmem:[%s2074 + $0x40] sm:$0xff]
  %v2084 = vld [vmem:[%s2074 + $0x48] sm:$0xff]
  %v2085 = vld [vmem:[%s2074 + $0x50] sm:$0xff]
  %v2086 = vld [vmem:[%s2074 + $0x58] sm:$0xff]
  %v2087 = vld [vmem:[%s2074 + $0x60] sm:$0xff]
  %v2088 = vld [vmem:[%s2074 + $0x68] sm:$0xff]
  %v2089 = vld [vmem:[%s2074 + $0x70] sm:$0xff]
  %v2090 = vld [vmem:[%s2074 + $0x78] sm:$0xff]
  %v2091 = vld [vmem:[%s2074 + $0x80] sm:$0xff]
  %v2092 = vld [vmem:[%s2074 + $0x88] sm:$0xff]
  %v2093 = vld [vmem:[%s2074 + $0x90] sm:$0xff]
  %v2094 = vld [vmem:[%s2074 + $0x98] sm:$0xff]
  %v2095 = vld [vmem:[%s2074 + $0xa0] sm:$0xff]
  %v2096 = vld [vmem:[%s2074 + $0xa8] sm:$0xff]
  %v2097 = vld [vmem:[%s2074 + $0xb0] sm:$0xff]
  %v2098 = vld [vmem:[%s2074 + $0xb8] sm:$0xff]
  %v2099 = vld [vmem:[%s2074 + $0xc0] sm:$0xff]
  %v2100 = vld [vmem:[%s2074 + $0xc8] sm:$0xff]
  %v2101 = vld [vmem:[%s2074 + $0xd0] sm:$0xff]
  %v2102 = vld [vmem:[%s2074 + $0xd8] sm:$0xff]
  %v2103 = vld [vmem:[%s2074 + $0xe0] sm:$0xff]
  %v2104 = vld [vmem:[%s2074 + $0xe8] sm:$0xff]
  %v2105 = vld [vmem:[%s2074 + $0xf0] sm:$0xff]
  %v2106 = vld [vmem:[%s2074 + $0xf8] sm:$0xff]
  %v2139 = vunpack.c.l.b16 %v2075
  %v2140 = vunpack.c.h.b16 %v2075
  %v2141 = vunpack.c.l.b16 %v2076
  %v2142 = vunpack.c.h.b16 %v2076
  %v2143 = vunpack.c.l.b16 %v2077
  %v2144 = vunpack.c.h.b16 %v2077
  %v2145 = vunpack.c.l.b16 %v2078
  %v2146 = vunpack.c.h.b16 %v2078
  %v2147 = vunpack.c.l.b16 %v2079
  %v2148 = vunpack.c.h.b16 %v2079
  %v2149 = vunpack.c.l.b16 %v2080
  %v2150 = vunpack.c.h.b16 %v2080
  %v2151 = vunpack.c.l.b16 %v2081
  %v2152 = vunpack.c.h.b16 %v2081
  %v2153 = vunpack.c.l.b16 %v2082
  %v2154 = vunpack.c.h.b16 %v2082
  %v2155 = vunpack.c.l.b16 %v2083
  %v2156 = vunpack.c.h.b16 %v2083
  %v2157 = vunpack.c.l.b16 %v2084
  %v2158 = vunpack.c.h.b16 %v2084
  %v2159 = vunpack.c.l.b16 %v2085
  %v2160 = vunpack.c.h.b16 %v2085
  %v2161 = vunpack.c.l.b16 %v2086
  %v2162 = vunpack.c.h.b16 %v2086
  %v2163 = vunpack.c.l.b16 %v2087
  %v2164 = vunpack.c.h.b16 %v2087
  %v2165 = vunpack.c.l.b16 %v2088
  %v2166 = vunpack.c.h.b16 %v2088
  %v2167 = vunpack.c.l.b16 %v2089
  %v2168 = vunpack.c.h.b16 %v2089
  %v2169 = vunpack.c.l.b16 %v2090
  %v2170 = vunpack.c.h.b16 %v2090
  %v2171 = vunpack.c.l.b16 %v2091
  %v2172 = vunpack.c.h.b16 %v2091
  %v2173 = vunpack.c.l.b16 %v2092
  %v2174 = vunpack.c.h.b16 %v2092
  %v2175 = vunpack.c.l.b16 %v2093
  %v2176 = vunpack.c.h.b16 %v2093
  %v2177 = vunpack.c.l.b16 %v2094
  %v2178 = vunpack.c.h.b16 %v2094
  %v2179 = vunpack.c.l.b16 %v2095
  %v2180 = vunpack.c.h.b16 %v2095
  %v2181 = vunpack.c.l.b16 %v2096
  %v2182 = vunpack.c.h.b16 %v2096
  %v2183 = vunpack.c.l.b16 %v2097
  %v2184 = vunpack.c.h.b16 %v2097
  %v2185 = vunpack.c.l.b16 %v2098
  %v2186 = vunpack.c.h.b16 %v2098
  %v2187 = vunpack.c.l.b16 %v2099
  %v2188 = vunpack.c.h.b16 %v2099
  %v2189 = vunpack.c.l.b16 %v2100
  %v2190 = vunpack.c.h.b16 %v2100
  %v2191 = vunpack.c.l.b16 %v2101
  %v2192 = vunpack.c.h.b16 %v2101
  %v2193 = vunpack.c.l.b16 %v2102
  %v2194 = vunpack.c.h.b16 %v2102
  %v2195 = vunpack.c.l.b16 %v2103
  %v2196 = vunpack.c.h.b16 %v2103
  %v2197 = vunpack.c.l.b16 %v2104
  %v2198 = vunpack.c.h.b16 %v2104
  %v2199 = vunpack.c.l.b16 %v2105
  %v2200 = vunpack.c.h.b16 %v2105
  %v2201 = vunpack.c.l.b16 %v2106
  %v2202 = vunpack.c.h.b16 %v2106
  %v2203 = vpack.c.b16 %v2141, %v2139
  %v2204 = vpack.c.b16 %v2142, %v2140
  %v2205 = vpack.c.b16 %v2145, %v2143
  %v2206 = vpack.c.b16 %v2146, %v2144
  %v2207 = vpack.c.b16 %v2149, %v2147
  %v2208 = vpack.c.b16 %v2150, %v2148
  %v2209 = vpack.c.b16 %v2153, %v2151
  %v2210 = vpack.c.b16 %v2154, %v2152
  %v2211 = vpack.c.b16 %v2157, %v2155
  %v2212 = vpack.c.b16 %v2158, %v2156
  %v2213 = vpack.c.b16 %v2161, %v2159
  %v2214 = vpack.c.b16 %v2162, %v2160
  %v2215 = vpack.c.b16 %v2165, %v2163
  %v2216 = vpack.c.b16 %v2166, %v2164
  %v2217 = vpack.c.b16 %v2169, %v2167
  %v2218 = vpack.c.b16 %v2170, %v2168
  %v2219 = vpack.c.b16 %v2173, %v2171
  %v2220 = vpack.c.b16 %v2174, %v2172
  %v2221 = vpack.c.b16 %v2177, %v2175
  %v2222 = vpack.c.b16 %v2178, %v2176
  %v2223 = vpack.c.b16 %v2181, %v2179
  %v2224 = vpack.c.b16 %v2182, %v2180
  %v2225 = vpack.c.b16 %v2185, %v2183
  %v2226 = vpack.c.b16 %v2186, %v2184
  %v2227 = vpack.c.b16 %v2189, %v2187
  %v2228 = vpack.c.b16 %v2190, %v2188
  %v2229 = vpack.c.b16 %v2193, %v2191
  %v2230 = vpack.c.b16 %v2194, %v2192
  %v2231 = vpack.c.b16 %v2197, %v2195
  %v2232 = vpack.c.b16 %v2198, %v2196
  %v2233 = vpack.c.b16 %v2201, %v2199
  %v2234 = vpack.c.b16 %v2202, %v2200
  %2267 = vmatprep.subr.bf16.mxu0 %v2218
  %2268 = vmatpush1.bf16.msra.mxu0 %v2217
  %2269 = vmatprep.subr.bf16.mxu0 %v2216
  %2270 = vmatpush1.bf16.msra.mxu0 %v2215
  %2271 = vmatprep.subr.bf16.mxu0 %v2214
  %2272 = vmatpush1.bf16.msra.mxu0 %v2213
  %2273 = vmatprep.subr.bf16.mxu0 %v2212
  %2274 = vmatpush1.bf16.msra.mxu0 %v2211
  %2275 = vmatprep.subr.bf16.mxu0 %v2210
  %2276 = vmatpush1.bf16.msra.mxu0 %v2209
  %2277 = vmatprep.subr.bf16.mxu0 %v2208
  %2278 = vmatpush1.bf16.msra.mxu0 %v2207
  %2279 = vmatprep.subr.bf16.mxu0 %v2206
  %2280 = vmatpush1.bf16.msra.mxu0 %v2205
  %2281 = vmatprep.subr.bf16.mxu0 %v2204
  %2282 = vmatpush1.bf16.msra.mxu0 %v2203
  %2283 = vmatprep.subr.bf16.mxu0 %v2234
  %2284 = vmatpush2.bf16.msra.mxu0 %v2233
  %2285 = vmatprep.subr.bf16.mxu0 %v2232
  %2286 = vmatpush2.bf16.msra.mxu0 %v2231
  %2287 = vmatprep.subr.bf16.mxu0 %v2230
  %2288 = vmatpush2.bf16.msra.mxu0 %v2229
  %2289 = vmatprep.subr.bf16.mxu0 %v2228
  %2290 = vmatpush2.bf16.msra.mxu0 %v2227
  %2291 = vmatprep.subr.bf16.mxu0 %v2226
  %2292 = vmatpush2.bf16.msra.mxu0 %v2225
  %2293 = vmatprep.subr.bf16.mxu0 %v2224
  %2294 = vmatpush2.bf16.msra.mxu0 %v2223
  %2295 = vmatprep.subr.bf16.mxu0 %v2222
  %2296 = vmatpush2.bf16.msra.mxu0 %v2221
  %2297 = vmatprep.subr.bf16.mxu0 %v2220
  %2298 = vmatpush2.bf16.msra.mxu0 %v2219
  %2299 = vmatprep.mubr.bf16.mxu0 %v2071
  %2300 = vmatmul.mubr.bf16.gmra.mxu0 %v2070
  %v2301 = vpop.f32.mrf.mxu0
  %v2302 = vadd.f32 0.0, %v2301
  %v2303 = vpop.f32.mrf.mxu0
  %v2304 = vadd.f32 0.0, %v2303
  %v2305 = vpop.f32.mrf.mxu0
  %v2306 = vadd.f32 0.0, %v2305
  %v2307 = vpop.f32.mrf.mxu0
  %v2308 = vadd.f32 0.0, %v2307
  %2309 = vmatprep.mubr.bf16.mxu0 %v2073
  %2310 = vmatmul.mubr.bf16.gmra.mxu0 %v2072
  %v2311 = vpop.f32.mrf.mxu0
  %v2312 = vadd.f32 0.0, %v2311
  %v2313 = vpop.f32.mrf.mxu0
  %v2314 = vadd.f32 0.0, %v2313
  %v2315 = vpop.f32.mrf.mxu0
  %v2316 = vadd.f32 0.0, %v2315
  %v2317 = vpop.f32.mrf.mxu0
  %v2318 = vadd.f32 0.0, %v2317
  %2319 = vdwg.mxu0
  %v2320 = vadd.f32 %v1978, %v2302
  %v2321 = vadd.f32 %v1980, %v2304
  %v2322 = vadd.f32 %v1982, %v2306
  %v2323 = vadd.f32 %v1984, %v2308
  %v2324 = vadd.f32 %v1988, %v2312
  %v2325 = vadd.f32 %v1990, %v2314
  %v2326 = vadd.f32 %v1992, %v2316
  %v2327 = vadd.f32 %v1994, %v2318
  %s2328 = scalar_lea.vmem %s4, 48
  %v2329 = vld [vmem:[%s2328] sm:$0xf]
  %v2330 = vld [vmem:[%s2328 + $0x4] sm:$0xf]
  %v2331 = vld [vmem:[%s2328 + $0x8] sm:$0xf]
  %v2332 = vld [vmem:[%s2328 + $0xc] sm:$0xf]
  %v2337 = vunpack.c.l.b16 %v2329
  %v2338 = vunpack.c.l.b16 %v2330
  %v2339 = vunpack.c.l.b16 %v2331
  %v2340 = vunpack.c.l.b16 %v2332
  %v2341 = vpack.c.b16 %v2338, %v2337
  %v2342 = vpack.c.b16 %v2340, %v2339
  %v2344 = vsel %vm1363, %v2341, 0
  %v2347 = vsel %vm1363, %v2342, 0
  %2349 = vmatprep.subr.bf16.mxu0 0
  %2350 = vmatpush1.bf16.msra.mxu0 0
  %2351 = vmatprep.subr.bf16.mxu0 0
  %2352 = vmatpush1.bf16.msra.mxu0 0
  %2353 = vmatprep.subr.bf16.mxu0 0
  %2354 = vmatpush1.bf16.msra.mxu0 0
  %2355 = vmatprep.subr.bf16.mxu0 0
  %2356 = vmatpush1.bf16.msra.mxu0 0
  %2357 = vmatprep.subr.bf16.mxu0 %v1348
  %2358 = vmatpush1.bf16.msra.mxu0 %v1347
  %2359 = vmatprep.subr.bf16.mxu0 %v1346
  %2360 = vmatpush1.bf16.msra.mxu0 %v1345
  %2361 = vmatprep.subr.bf16.mxu0 %v1344
  %2362 = vmatpush1.bf16.msra.mxu0 %v1343
  %2363 = vmatprep.subr.bf16.mxu0 %v1342
  %2364 = vmatpush1.bf16.msra.mxu0 %v1341
  %2365 = vmatprep.subr.bf16.mxu0 0
  %2366 = vmatpush2.bf16.msra.mxu0 0
  %2367 = vmatprep.subr.bf16.mxu0 0
  %2368 = vmatpush2.bf16.msra.mxu0 0
  %2369 = vmatprep.subr.bf16.mxu0 0
  %2370 = vmatpush2.bf16.msra.mxu0 0
  %2371 = vmatprep.subr.bf16.mxu0 0
  %2372 = vmatpush2.bf16.msra.mxu0 0
  %2373 = vmatprep.subr.bf16.mxu0 0
  %2374 = vmatpush2.bf16.msra.mxu0 0
  %2375 = vmatprep.subr.bf16.mxu0 0
  %2376 = vmatpush2.bf16.msra.mxu0 0
  %2377 = vmatprep.subr.bf16.mxu0 0
  %2378 = vmatpush2.bf16.msra.mxu0 0
  %2379 = vmatprep.subr.bf16.mxu0 0
  %2380 = vmatpush2.bf16.msra.mxu0 0
  %2381 = vmatprep.mubr.bf16.mxu0 0
  %2382 = vmatmul.mubr.bf16.gmra.mxu0 %v2344
  %v2383 = vpop.f32.mrf.mxu0
  %v2384 = vadd.f32 0.0, %v2383
  %v2385 = vpop.f32.mrf.mxu0
  %v2386 = vadd.f32 0.0, %v2385
  %v2387 = vpop.f32.mrf.mxu0
  %v2388 = vadd.f32 0.0, %v2387
  %v2389 = vpop.f32.mrf.mxu0
  %v2390 = vadd.f32 0.0, %v2389
  %2391 = vmatprep.mubr.bf16.mxu0 0
  %2392 = vmatmul.mubr.bf16.gmra.mxu0 %v2347
  %v2393 = vpop.f32.mrf.mxu0
  %v2394 = vadd.f32 0.0, %v2393
  %v2395 = vpop.f32.mrf.mxu0
  %v2396 = vadd.f32 0.0, %v2395
  %v2397 = vpop.f32.mrf.mxu0
  %v2398 = vadd.f32 0.0, %v2397
  %v2399 = vpop.f32.mrf.mxu0
  %v2400 = vadd.f32 0.0, %v2399
  %2401 = vdwg.mxu0
  %v2402 = vpack.c.bf16 %v2388, %v2384
  %v2403 = vpack.c.bf16 %v2390, %v2386
  %v2404 = vpack.c.bf16 %v2398, %v2394
  %v2405 = vpack.c.bf16 %v2400, %v2396
  %s2406 = scalar_lea.vmem %s5, 768
  %v2407 = vld [vmem:[%s2406] sm:$0xff]
  %v2408 = vld [vmem:[%s2406 + $0x8] sm:$0xff]
  %v2409 = vld [vmem:[%s2406 + $0x10] sm:$0xff]
  %v2410 = vld [vmem:[%s2406 + $0x18] sm:$0xff]
  %v2411 = vld [vmem:[%s2406 + $0x20] sm:$0xff]
  %v2412 = vld [vmem:[%s2406 + $0x28] sm:$0xff]
  %v2413 = vld [vmem:[%s2406 + $0x30] sm:$0xff]
  %v2414 = vld [vmem:[%s2406 + $0x38] sm:$0xff]
  %v2415 = vld [vmem:[%s2406 + $0x40] sm:$0xff]
  %v2416 = vld [vmem:[%s2406 + $0x48] sm:$0xff]
  %v2417 = vld [vmem:[%s2406 + $0x50] sm:$0xff]
  %v2418 = vld [vmem:[%s2406 + $0x58] sm:$0xff]
  %v2419 = vld [vmem:[%s2406 + $0x60] sm:$0xff]
  %v2420 = vld [vmem:[%s2406 + $0x68] sm:$0xff]
  %v2421 = vld [vmem:[%s2406 + $0x70] sm:$0xff]
  %v2422 = vld [vmem:[%s2406 + $0x78] sm:$0xff]
  %v2423 = vld [vmem:[%s2406 + $0x80] sm:$0xff]
  %v2424 = vld [vmem:[%s2406 + $0x88] sm:$0xff]
  %v2425 = vld [vmem:[%s2406 + $0x90] sm:$0xff]
  %v2426 = vld [vmem:[%s2406 + $0x98] sm:$0xff]
  %v2427 = vld [vmem:[%s2406 + $0xa0] sm:$0xff]
  %v2428 = vld [vmem:[%s2406 + $0xa8] sm:$0xff]
  %v2429 = vld [vmem:[%s2406 + $0xb0] sm:$0xff]
  %v2430 = vld [vmem:[%s2406 + $0xb8] sm:$0xff]
  %v2431 = vld [vmem:[%s2406 + $0xc0] sm:$0xff]
  %v2432 = vld [vmem:[%s2406 + $0xc8] sm:$0xff]
  %v2433 = vld [vmem:[%s2406 + $0xd0] sm:$0xff]
  %v2434 = vld [vmem:[%s2406 + $0xd8] sm:$0xff]
  %v2435 = vld [vmem:[%s2406 + $0xe0] sm:$0xff]
  %v2436 = vld [vmem:[%s2406 + $0xe8] sm:$0xff]
  %v2437 = vld [vmem:[%s2406 + $0xf0] sm:$0xff]
  %v2438 = vld [vmem:[%s2406 + $0xf8] sm:$0xff]
  %v2471 = vunpack.c.l.b16 %v2407
  %v2472 = vunpack.c.h.b16 %v2407
  %v2473 = vunpack.c.l.b16 %v2408
  %v2474 = vunpack.c.h.b16 %v2408
  %v2475 = vunpack.c.l.b16 %v2409
  %v2476 = vunpack.c.h.b16 %v2409
  %v2477 = vunpack.c.l.b16 %v2410
  %v2478 = vunpack.c.h.b16 %v2410
  %v2479 = vunpack.c.l.b16 %v2411
  %v2480 = vunpack.c.h.b16 %v2411
  %v2481 = vunpack.c.l.b16 %v2412
  %v2482 = vunpack.c.h.b16 %v2412
  %v2483 = vunpack.c.l.b16 %v2413
  %v2484 = vunpack.c.h.b16 %v2413
  %v2485 = vunpack.c.l.b16 %v2414
  %v2486 = vunpack.c.h.b16 %v2414
  %v2487 = vunpack.c.l.b16 %v2415
  %v2488 = vunpack.c.h.b16 %v2415
  %v2489 = vunpack.c.l.b16 %v2416
  %v2490 = vunpack.c.h.b16 %v2416
  %v2491 = vunpack.c.l.b16 %v2417
  %v2492 = vunpack.c.h.b16 %v2417
  %v2493 = vunpack.c.l.b16 %v2418
  %v2494 = vunpack.c.h.b16 %v2418
  %v2495 = vunpack.c.l.b16 %v2419
  %v2496 = vunpack.c.h.b16 %v2419
  %v2497 = vunpack.c.l.b16 %v2420
  %v2498 = vunpack.c.h.b16 %v2420
  %v2499 = vunpack.c.l.b16 %v2421
  %v2500 = vunpack.c.h.b16 %v2421
  %v2501 = vunpack.c.l.b16 %v2422
  %v2502 = vunpack.c.h.b16 %v2422
  %v2503 = vunpack.c.l.b16 %v2423
  %v2504 = vunpack.c.h.b16 %v2423
  %v2505 = vunpack.c.l.b16 %v2424
  %v2506 = vunpack.c.h.b16 %v2424
  %v2507 = vunpack.c.l.b16 %v2425
  %v2508 = vunpack.c.h.b16 %v2425
  %v2509 = vunpack.c.l.b16 %v2426
  %v2510 = vunpack.c.h.b16 %v2426
  %v2511 = vunpack.c.l.b16 %v2427
  %v2512 = vunpack.c.h.b16 %v2427
  %v2513 = vunpack.c.l.b16 %v2428
  %v2514 = vunpack.c.h.b16 %v2428
  %v2515 = vunpack.c.l.b16 %v2429
  %v2516 = vunpack.c.h.b16 %v2429
  %v2517 = vunpack.c.l.b16 %v2430
  %v2518 = vunpack.c.h.b16 %v2430
  %v2519 = vunpack.c.l.b16 %v2431
  %v2520 = vunpack.c.h.b16 %v2431
  %v2521 = vunpack.c.l.b16 %v2432
  %v2522 = vunpack.c.h.b16 %v2432
  %v2523 = vunpack.c.l.b16 %v2433
  %v2524 = vunpack.c.h.b16 %v2433
  %v2525 = vunpack.c.l.b16 %v2434
  %v2526 = vunpack.c.h.b16 %v2434
  %v2527 = vunpack.c.l.b16 %v2435
  %v2528 = vunpack.c.h.b16 %v2435
  %v2529 = vunpack.c.l.b16 %v2436
  %v2530 = vunpack.c.h.b16 %v2436
  %v2531 = vunpack.c.l.b16 %v2437
  %v2532 = vunpack.c.h.b16 %v2437
  %v2533 = vunpack.c.l.b16 %v2438
  %v2534 = vunpack.c.h.b16 %v2438
  %v2535 = vpack.c.b16 %v2473, %v2471
  %v2536 = vpack.c.b16 %v2474, %v2472
  %v2537 = vpack.c.b16 %v2477, %v2475
  %v2538 = vpack.c.b16 %v2478, %v2476
  %v2539 = vpack.c.b16 %v2481, %v2479
  %v2540 = vpack.c.b16 %v2482, %v2480
  %v2541 = vpack.c.b16 %v2485, %v2483
  %v2542 = vpack.c.b16 %v2486, %v2484
  %v2543 = vpack.c.b16 %v2489, %v2487
  %v2544 = vpack.c.b16 %v2490, %v2488
  %v2545 = vpack.c.b16 %v2493, %v2491
  %v2546 = vpack.c.b16 %v2494, %v2492
  %v2547 = vpack.c.b16 %v2497, %v2495
  %v2548 = vpack.c.b16 %v2498, %v2496
  %v2549 = vpack.c.b16 %v2501, %v2499
  %v2550 = vpack.c.b16 %v2502, %v2500
  %v2551 = vpack.c.b16 %v2505, %v2503
  %v2552 = vpack.c.b16 %v2506, %v2504
  %v2553 = vpack.c.b16 %v2509, %v2507
  %v2554 = vpack.c.b16 %v2510, %v2508
  %v2555 = vpack.c.b16 %v2513, %v2511
  %v2556 = vpack.c.b16 %v2514, %v2512
  %v2557 = vpack.c.b16 %v2517, %v2515
  %v2558 = vpack.c.b16 %v2518, %v2516
  %v2559 = vpack.c.b16 %v2521, %v2519
  %v2560 = vpack.c.b16 %v2522, %v2520
  %v2561 = vpack.c.b16 %v2525, %v2523
  %v2562 = vpack.c.b16 %v2526, %v2524
  %v2563 = vpack.c.b16 %v2529, %v2527
  %v2564 = vpack.c.b16 %v2530, %v2528
  %v2565 = vpack.c.b16 %v2533, %v2531
  %v2566 = vpack.c.b16 %v2534, %v2532
  %2599 = vmatprep.subr.bf16.mxu0 %v2550
  %2600 = vmatpush1.bf16.msra.mxu0 %v2549
  %2601 = vmatprep.subr.bf16.mxu0 %v2548
  %2602 = vmatpush1.bf16.msra.mxu0 %v2547
  %2603 = vmatprep.subr.bf16.mxu0 %v2546
  %2604 = vmatpush1.bf16.msra.mxu0 %v2545
  %2605 = vmatprep.subr.bf16.mxu0 %v2544
  %2606 = vmatpush1.bf16.msra.mxu0 %v2543
  %2607 = vmatprep.subr.bf16.mxu0 %v2542
  %2608 = vmatpush1.bf16.msra.mxu0 %v2541
  %2609 = vmatprep.subr.bf16.mxu0 %v2540
  %2610 = vmatpush1.bf16.msra.mxu0 %v2539
  %2611 = vmatprep.subr.bf16.mxu0 %v2538
  %2612 = vmatpush1.bf16.msra.mxu0 %v2537
  %2613 = vmatprep.subr.bf16.mxu0 %v2536
  %2614 = vmatpush1.bf16.msra.mxu0 %v2535
  %2615 = vmatprep.subr.bf16.mxu0 %v2566
  %2616 = vmatpush2.bf16.msra.mxu0 %v2565
  %2617 = vmatprep.subr.bf16.mxu0 %v2564
  %2618 = vmatpush2.bf16.msra.mxu0 %v2563
  %2619 = vmatprep.subr.bf16.mxu0 %v2562
  %2620 = vmatpush2.bf16.msra.mxu0 %v2561
  %2621 = vmatprep.subr.bf16.mxu0 %v2560
  %2622 = vmatpush2.bf16.msra.mxu0 %v2559
  %2623 = vmatprep.subr.bf16.mxu0 %v2558
  %2624 = vmatpush2.bf16.msra.mxu0 %v2557
  %2625 = vmatprep.subr.bf16.mxu0 %v2556
  %2626 = vmatpush2.bf16.msra.mxu0 %v2555
  %2627 = vmatprep.subr.bf16.mxu0 %v2554
  %2628 = vmatpush2.bf16.msra.mxu0 %v2553
  %2629 = vmatprep.subr.bf16.mxu0 %v2552
  %2630 = vmatpush2.bf16.msra.mxu0 %v2551
  %2631 = vmatprep.mubr.bf16.mxu0 %v2403
  %2632 = vmatmul.mubr.bf16.gmra.mxu0 %v2402
  %v2633 = vpop.f32.mrf.mxu0
  %v2634 = vadd.f32 0.0, %v2633
  %v2635 = vpop.f32.mrf.mxu0
  %v2636 = vadd.f32 0.0, %v2635
  %v2637 = vpop.f32.mrf.mxu0
  %v2638 = vadd.f32 0.0, %v2637
  %v2639 = vpop.f32.mrf.mxu0
  %v2640 = vadd.f32 0.0, %v2639
  %2641 = vmatprep.mubr.bf16.mxu0 %v2405
  %2642 = vmatmul.mubr.bf16.gmra.mxu0 %v2404
  %v2643 = vpop.f32.mrf.mxu0
  %v2644 = vadd.f32 0.0, %v2643
  %v2645 = vpop.f32.mrf.mxu0
  %v2646 = vadd.f32 0.0, %v2645
  %v2647 = vpop.f32.mrf.mxu0
  %v2648 = vadd.f32 0.0, %v2647
  %v2649 = vpop.f32.mrf.mxu0
  %v2650 = vadd.f32 0.0, %v2649
  %2651 = vdwg.mxu0
  %v2652 = vadd.f32 %v2320, %v2634
  %v2653 = vadd.f32 %v2321, %v2636
  %v2654 = vadd.f32 %v2322, %v2638
  %v2655 = vadd.f32 %v2323, %v2640
  %v2656 = vadd.f32 %v2324, %v2644
  %v2657 = vadd.f32 %v2325, %v2646
  %v2658 = vadd.f32 %v2326, %v2648
  %v2659 = vadd.f32 %v2327, %v2650
  %v2660 = vadd.f32 %v2652, %v2654
  %v2661 = vadd.f32 %v2660, %v2656
  %v2662 = vadd.f32 %v2661, %v2658
  %v2663 = vrot.slane %v2662, 4
  %v2664 = vadd.f32 %v2662, %v2663
  %v2665 = vrot.slane %v2664, 2
  %v2666 = vadd.f32 %v2664, %v2665
  %v2667 = vrot.slane %v2666, 1
  %v2668 = vadd.f32 %v2666, %v2667
  %v2669 = vadd.f32 %v2653, %v2655
  %v2670 = vadd.f32 %v2669, %v2657
  %v2671 = vadd.f32 %v2670, %v2659
  %v2672 = vrot.slane %v2671, 4
  %v2673 = vadd.f32 %v2671, %v2672
  %v2674 = vrot.slane %v2673, 2
  %v2675 = vadd.f32 %v2673, %v2674
  %v2676 = vrot.slane %v2675, 1
  %v2677 = vadd.f32 %v2675, %v2676
  %v2678 = vmul.f32 %v2652, %v2652
  %v2679 = vmul.f32 %v2653, %v2653
  %v2680 = vmul.f32 %v2654, %v2654
  %v2681 = vmul.f32 %v2655, %v2655
  %v2682 = vmul.f32 %v2656, %v2656
  %v2683 = vmul.f32 %v2657, %v2657
  %v2684 = vmul.f32 %v2658, %v2658
  %v2685 = vmul.f32 %v2659, %v2659
  %v2686 = vadd.f32 %v2678, %v2680
  %v2687 = vadd.f32 %v2686, %v2682
  %v2688 = vadd.f32 %v2687, %v2684
  %v2689 = vrot.slane %v2688, 4
  %v2690 = vadd.f32 %v2688, %v2689
  %v2691 = vrot.slane %v2690, 2
  %v2692 = vadd.f32 %v2690, %v2691
  %v2693 = vrot.slane %v2692, 1
  %v2694 = vadd.f32 %v2692, %v2693
  %v2695 = vadd.f32 %v2679, %v2681
  %v2696 = vadd.f32 %v2695, %v2683
  %v2697 = vadd.f32 %v2696, %v2685
  %v2698 = vrot.slane %v2697, 4
  %v2699 = vadd.f32 %v2697, %v2698
  %v2700 = vrot.slane %v2699, 2
  %v2701 = vadd.f32 %v2699, %v2700
  %v2702 = vrot.slane %v2701, 1
  %v2703 = vadd.f32 %v2701, %v2702
  %v2704 = vld [vmem:[%s8] sm:$0xff]
  %v2705 = vld [vmem:[%s8 + $0x8] sm:$0xff]
  %v2706 = vld [vmem:[%s8 + $0x10] sm:$0xff]
  %v2707 = vld [vmem:[%s8 + $0x18] sm:$0xff]
  %v2708 = vld [vmem:[%s8 + $0x20] sm:$0xff]
  %v2709 = vld [vmem:[%s8 + $0x28] sm:$0xff]
  %v2710 = vld [vmem:[%s8 + $0x30] sm:$0xff]
  %v2711 = vld [vmem:[%s8 + $0x38] sm:$0xff]
  %v2712 = vld [vmem:[%s8 + $0x40] sm:$0xff]
  %v2713 = vld [vmem:[%s8 + $0x48] sm:$0xff]
  %v2714 = vld [vmem:[%s8 + $0x50] sm:$0xff]
  %v2715 = vld [vmem:[%s8 + $0x58] sm:$0xff]
  %v2716 = vld [vmem:[%s8 + $0x60] sm:$0xff]
  %v2717 = vld [vmem:[%s8 + $0x68] sm:$0xff]
  %v2718 = vld [vmem:[%s8 + $0x70] sm:$0xff]
  %v2719 = vld [vmem:[%s8 + $0x78] sm:$0xff]
  %v2720 = vld [vmem:[%s8 + $0x80] sm:$0xff]
  %v2721 = vld [vmem:[%s8 + $0x88] sm:$0xff]
  %v2722 = vld [vmem:[%s8 + $0x90] sm:$0xff]
  %v2723 = vld [vmem:[%s8 + $0x98] sm:$0xff]
  %v2724 = vld [vmem:[%s8 + $0xa0] sm:$0xff]
  %v2725 = vld [vmem:[%s8 + $0xa8] sm:$0xff]
  %v2726 = vld [vmem:[%s8 + $0xb0] sm:$0xff]
  %v2727 = vld [vmem:[%s8 + $0xb8] sm:$0xff]
  %v2728 = vld [vmem:[%s8 + $0xc0] sm:$0xff]
  %v2729 = vld [vmem:[%s8 + $0xc8] sm:$0xff]
  %v2730 = vld [vmem:[%s8 + $0xd0] sm:$0xff]
  %v2731 = vld [vmem:[%s8 + $0xd8] sm:$0xff]
  %v2732 = vld [vmem:[%s8 + $0xe0] sm:$0xff]
  %v2733 = vld [vmem:[%s8 + $0xe8] sm:$0xff]
  %v2734 = vld [vmem:[%s8 + $0xf0] sm:$0xff]
  %v2735 = vld [vmem:[%s8 + $0xf8] sm:$0xff]
  %2736 = vmatprep.subr.mxu0 0.0
  %2737 = vmatpush1.msra.mxu0 %v2719
  %2738 = vmatprep.subr.mxu0 0.0
  %2739 = vmatpush1.msra.mxu0 %v2718
  %2740 = vmatprep.subr.mxu0 0.0
  %2741 = vmatpush1.msra.mxu0 %v2717
  %2742 = vmatprep.subr.mxu0 0.0
  %2743 = vmatpush1.msra.mxu0 %v2716
  %2744 = vmatprep.subr.mxu0 0.0
  %2745 = vmatpush1.msra.mxu0 %v2715
  %2746 = vmatprep.subr.mxu0 0.0
  %2747 = vmatpush1.msra.mxu0 %v2714
  %2748 = vmatprep.subr.mxu0 0.0
  %2749 = vmatpush1.msra.mxu0 %v2713
  %2750 = vmatprep.subr.mxu0 0.0
  %2751 = vmatpush1.msra.mxu0 %v2712
  %2752 = vmatprep.subr.mxu0 0.0
  %2753 = vmatpush1.msra.mxu0 %v2711
  %2754 = vmatprep.subr.mxu0 0.0
  %2755 = vmatpush1.msra.mxu0 %v2710
  %2756 = vmatprep.subr.mxu0 0.0
  %2757 = vmatpush1.msra.mxu0 %v2709
  %2758 = vmatprep.subr.mxu0 0.0
  %2759 = vmatpush1.msra.mxu0 %v2708
  %2760 = vmatprep.subr.mxu0 0.0
  %2761 = vmatpush1.msra.mxu0 %v2707
  %2762 = vmatprep.subr.mxu0 0.0
  %2763 = vmatpush1.msra.mxu0 %v2706
  %2764 = vmatprep.subr.mxu0 0.0
  %2765 = vmatpush1.msra.mxu0 %v2705
  %2766 = vmatprep.subr.mxu0 0.0
  %2767 = vmatpush1.msra.mxu0 %v2704
  %2768 = vmatprep.subr.mxu0 0.0
  %2769 = vmatpush2.msra.mxu0 %v2735
  %2770 = vmatprep.subr.mxu0 0.0
  %2771 = vmatpush2.msra.mxu0 %v2734
  %2772 = vmatprep.subr.mxu0 0.0
  %2773 = vmatpush2.msra.mxu0 %v2733
  %2774 = vmatprep.subr.mxu0 0.0
  %2775 = vmatpush2.msra.mxu0 %v2732
  %2776 = vmatprep.subr.mxu0 0.0
  %2777 = vmatpush2.msra.mxu0 %v2731
  %2778 = vmatprep.subr.mxu0 0.0
  %2779 = vmatpush2.msra.mxu0 %v2730
  %2780 = vmatprep.subr.mxu0 0.0
  %2781 = vmatpush2.msra.mxu0 %v2729
  %2782 = vmatprep.subr.mxu0 0.0
  %2783 = vmatpush2.msra.mxu0 %v2728
  %2784 = vmatprep.subr.mxu0 0.0
  %2785 = vmatpush2.msra.mxu0 %v2727
  %2786 = vmatprep.subr.mxu0 0.0
  %2787 = vmatpush2.msra.mxu0 %v2726
  %2788 = vmatprep.subr.mxu0 0.0
  %2789 = vmatpush2.msra.mxu0 %v2725
  %2790 = vmatprep.subr.mxu0 0.0
  %2791 = vmatpush2.msra.mxu0 %v2724
  %2792 = vmatprep.subr.mxu0 0.0
  %2793 = vmatpush2.msra.mxu0 %v2723
  %2794 = vmatprep.subr.mxu0 0.0
  %2795 = vmatpush2.msra.mxu0 %v2722
  %2796 = vmatprep.subr.mxu0 0.0
  %2797 = vmatpush2.msra.mxu0 %v2721
  %2798 = vmatprep.subr.mxu0 0.0
  %2799 = vmatpush2.msra.mxu0 %v2720
  %2800 = vmatprep.mubr.f32.mxu0 %v2677
  %2801 = vmatmul.mubr.f32.gmra.mxu0 %v2668
  %v2802 = vpop.f32.mrf.mxu0
  %v2803 = vadd.f32 0.0, %v2802
  %v2804 = vpop.f32.mrf.mxu0
  %2805 = vdwg.mxu0
  %2806 = vmatprep.subr.mxu0 0.0
  %2807 = vmatpush1.msra.mxu0 %v2719
  %2808 = vmatprep.subr.mxu0 0.0
  %2809 = vmatpush1.msra.mxu0 %v2718
  %2810 = vmatprep.subr.mxu0 0.0
  %2811 = vmatpush1.msra.mxu0 %v2717
  %2812 = vmatprep.subr.mxu0 0.0
  %2813 = vmatpush1.msra.mxu0 %v2716
  %2814 = vmatprep.subr.mxu0 0.0
  %2815 = vmatpush1.msra.mxu0 %v2715
  %2816 = vmatprep.subr.mxu0 0.0
  %2817 = vmatpush1.msra.mxu0 %v2714
  %2818 = vmatprep.subr.mxu0 0.0
  %2819 = vmatpush1.msra.mxu0 %v2713
  %2820 = vmatprep.subr.mxu0 0.0
  %2821 = vmatpush1.msra.mxu0 %v2712
  %2822 = vmatprep.subr.mxu0 0.0
  %2823 = vmatpush1.msra.mxu0 %v2711
  %2824 = vmatprep.subr.mxu0 0.0
  %2825 = vmatpush1.msra.mxu0 %v2710
  %2826 = vmatprep.subr.mxu0 0.0
  %2827 = vmatpush1.msra.mxu0 %v2709
  %2828 = vmatprep.subr.mxu0 0.0
  %2829 = vmatpush1.msra.mxu0 %v2708
  %2830 = vmatprep.subr.mxu0 0.0
  %2831 = vmatpush1.msra.mxu0 %v2707
  %2832 = vmatprep.subr.mxu0 0.0
  %2833 = vmatpush1.msra.mxu0 %v2706
  %2834 = vmatprep.subr.mxu0 0.0
  %2835 = vmatpush1.msra.mxu0 %v2705
  %2836 = vmatprep.subr.mxu0 0.0
  %2837 = vmatpush1.msra.mxu0 %v2704
  %2838 = vmatprep.subr.mxu0 0.0
  %2839 = vmatpush2.msra.mxu0 %v2735
  %2840 = vmatprep.subr.mxu0 0.0
  %2841 = vmatpush2.msra.mxu0 %v2734
  %2842 = vmatprep.subr.mxu0 0.0
  %2843 = vmatpush2.msra.mxu0 %v2733
  %2844 = vmatprep.subr.mxu0 0.0
  %2845 = vmatpush2.msra.mxu0 %v2732
  %2846 = vmatprep.subr.mxu0 0.0
  %2847 = vmatpush2.msra.mxu0 %v2731
  %2848 = vmatprep.subr.mxu0 0.0
  %2849 = vmatpush2.msra.mxu0 %v2730
  %2850 = vmatprep.subr.mxu0 0.0
  %2851 = vmatpush2.msra.mxu0 %v2729
  %2852 = vmatprep.subr.mxu0 0.0
  %2853 = vmatpush2.msra.mxu0 %v2728
  %2854 = vmatprep.subr.mxu0 0.0
  %2855 = vmatpush2.msra.mxu0 %v2727
  %2856 = vmatprep.subr.mxu0 0.0
  %2857 = vmatpush2.msra.mxu0 %v2726
  %2858 = vmatprep.subr.mxu0 0.0
  %2859 = vmatpush2.msra.mxu0 %v2725
  %2860 = vmatprep.subr.mxu0 0.0
  %2861 = vmatpush2.msra.mxu0 %v2724
  %2862 = vmatprep.subr.mxu0 0.0
  %2863 = vmatpush2.msra.mxu0 %v2723
  %2864 = vmatprep.subr.mxu0 0.0
  %2865 = vmatpush2.msra.mxu0 %v2722
  %2866 = vmatprep.subr.mxu0 0.0
  %2867 = vmatpush2.msra.mxu0 %v2721
  %2868 = vmatprep.subr.mxu0 0.0
  %2869 = vmatpush2.msra.mxu0 %v2720
  %2870 = vmatprep.mubr.f32.mxu0 %v2703
  %2871 = vmatmul.mubr.f32.gmra.mxu0 %v2694
  %v2872 = vpop.f32.mrf.mxu0
  %v2873 = vadd.f32 0.0, %v2872
  %v2874 = vpop.f32.mrf.mxu0
  %2875 = vdwg.mxu0
  %v2876 = vmul.f32 %v2803, 0.001953125
  %v2877 = vmul.f32 %v2873, 0.001953125
  %v2878 = vmul.f32 %v2876, %v2876
  %v2879 = vsub.f32 %v2877, %v2878
  %v2880 = vadd.f32 %v2879, 1e-05
  %v2881 = vrsqrt.pop %v2880
  %v2882 = vld [vmem:[%s6] sm:$0x1]
  %v2883 = vmul.f32 %v2882, %v2881
  %v2884 = vld [vmem:[%s7] sm:$0x1]
  %v2885 = vmul.f32 %v2876, %v2883
  %v2886 = vsub.f32 %v2884, %v2885
  %v2887 = vld [vmem:[%s9] sm:$0xff]
  %v2888 = vld [vmem:[%s9 + $0x8] sm:$0xff]
  %v2889 = vld [vmem:[%s9 + $0x10] sm:$0xff]
  %v2890 = vld [vmem:[%s9 + $0x18] sm:$0xff]
  %vm2891 = vcmask 130048
  %v2893 = vsel %vm2891, %v2883, 0
  %2895 = vmatprep.subr.mxu0 0.0
  %2896 = vmatpush1.msra.mxu0 0.0
  %2897 = vmatprep.subr.mxu0 0.0
  %2898 = vmatpush1.msra.mxu0 0.0
  %2899 = vmatprep.subr.mxu0 0.0
  %2900 = vmatpush1.msra.mxu0 0.0
  %2901 = vmatprep.subr.mxu0 0.0
  %2902 = vmatpush1.msra.mxu0 0.0
  %2903 = vmatprep.subr.mxu0 0.0
  %2904 = vmatpush1.msra.mxu0 0.0
  %2905 = vmatprep.subr.mxu0 0.0
  %2906 = vmatpush1.msra.mxu0 0.0
  %2907 = vmatprep.subr.mxu0 0.0
  %2908 = vmatpush1.msra.mxu0 0.0
  %2909 = vmatprep.subr.mxu0 0.0
  %2910 = vmatpush1.msra.mxu0 0.0
  %2911 = vmatprep.subr.mxu0 0.0
  %2912 = vmatpush1.msra.mxu0 0.0
  %2913 = vmatprep.subr.mxu0 0.0
  %2914 = vmatpush1.msra.mxu0 0.0
  %2915 = vmatprep.subr.mxu0 0.0
  %2916 = vmatpush1.msra.mxu0 0.0
  %2917 = vmatprep.subr.mxu0 0.0
  %2918 = vmatpush1.msra.mxu0 0.0
  %2919 = vmatprep.subr.mxu0 0.0
  %2920 = vmatpush1.msra.mxu0 0.0
  %2921 = vmatprep.subr.mxu0 0.0
  %2922 = vmatpush1.msra.mxu0 0.0
  %2923 = vmatprep.subr.mxu0 %v2890
  %2924 = vmatpush1.msra.mxu0 %v2889
  %2925 = vmatprep.subr.mxu0 %v2888
  %2926 = vmatpush1.msra.mxu0 %v2887
  %2927 = vmatprep.subr.mxu0 0.0
  %2928 = vmatpush2.msra.mxu0 0.0
  %2929 = vmatprep.subr.mxu0 0.0
  %2930 = vmatpush2.msra.mxu0 0.0
  %2931 = vmatprep.subr.mxu0 0.0
  %2932 = vmatpush2.msra.mxu0 0.0
  %2933 = vmatprep.subr.mxu0 0.0
  %2934 = vmatpush2.msra.mxu0 0.0
  %2935 = vmatprep.subr.mxu0 0.0
  %2936 = vmatpush2.msra.mxu0 0.0
  %2937 = vmatprep.subr.mxu0 0.0
  %2938 = vmatpush2.msra.mxu0 0.0
  %2939 = vmatprep.subr.mxu0 0.0
  %2940 = vmatpush2.msra.mxu0 0.0
  %2941 = vmatprep.subr.mxu0 0.0
  %2942 = vmatpush2.msra.mxu0 0.0
  %2943 = vmatprep.subr.mxu0 0.0
  %2944 = vmatpush2.msra.mxu0 0.0
  %2945 = vmatprep.subr.mxu0 0.0
  %2946 = vmatpush2.msra.mxu0 0.0
  %2947 = vmatprep.subr.mxu0 0.0
  %2948 = vmatpush2.msra.mxu0 0.0
  %2949 = vmatprep.subr.mxu0 0.0
  %2950 = vmatpush2.msra.mxu0 0.0
  %2951 = vmatprep.subr.mxu0 0.0
  %2952 = vmatpush2.msra.mxu0 0.0
  %2953 = vmatprep.subr.mxu0 0.0
  %2954 = vmatpush2.msra.mxu0 0.0
  %2955 = vmatprep.subr.mxu0 0.0
  %2956 = vmatpush2.msra.mxu0 0.0
  %2957 = vmatprep.subr.mxu0 0.0
  %2958 = vmatpush2.msra.mxu0 0.0
  %2959 = vmatprep.mubr.f32.mxu0 0.0
  %2960 = vmatmul.mubr.f32.gmra.mxu0 %v2893
  %v2961 = vpop.f32.mrf.mxu0
  %v2962 = vadd.f32 0.0, %v2961
  %v2963 = vpop.f32.mrf.mxu0
  %v2964 = vadd.f32 0.0, %v2963
  %2965 = vdwg.mxu0
  %v2967 = vsel %vm2891, %v2886, 0
  %2969 = vmatprep.subr.mxu0 0.0
  %2970 = vmatpush1.msra.mxu0 0.0
  %2971 = vmatprep.subr.mxu0 0.0
  %2972 = vmatpush1.msra.mxu0 0.0
  %2973 = vmatprep.subr.mxu0 0.0
  %2974 = vmatpush1.msra.mxu0 0.0
  %2975 = vmatprep.subr.mxu0 0.0
  %2976 = vmatpush1.msra.mxu0 0.0
  %2977 = vmatprep.subr.mxu0 0.0
  %2978 = vmatpush1.msra.mxu0 0.0
  %2979 = vmatprep.subr.mxu0 0.0
  %2980 = vmatpush1.msra.mxu0 0.0
  %2981 = vmatprep.subr.mxu0 0.0
  %2982 = vmatpush1.msra.mxu0 0.0
  %2983 = vmatprep.subr.mxu0 0.0
  %2984 = vmatpush1.msra.mxu0 0.0
  %2985 = vmatprep.subr.mxu0 0.0
  %2986 = vmatpush1.msra.mxu0 0.0
  %2987 = vmatprep.subr.mxu0 0.0
  %2988 = vmatpush1.msra.mxu0 0.0
  %2989 = vmatprep.subr.mxu0 0.0
  %2990 = vmatpush1.msra.mxu0 0.0
  %2991 = vmatprep.subr.mxu0 0.0
  %2992 = vmatpush1.msra.mxu0 0.0
  %2993 = vmatprep.subr.mxu0 0.0
  %2994 = vmatpush1.msra.mxu0 0.0
  %2995 = vmatprep.subr.mxu0 0.0
  %2996 = vmatpush1.msra.mxu0 0.0
  %2997 = vmatprep.subr.mxu0 %v2890
  %2998 = vmatpush1.msra.mxu0 %v2889
  %2999 = vmatprep.subr.mxu0 %v2888
  %3000 = vmatpush1.msra.mxu0 %v2887
  %3001 = vmatprep.subr.mxu0 0.0
  %3002 = vmatpush2.msra.mxu0 0.0
  %3003 = vmatprep.subr.mxu0 0.0
  %3004 = vmatpush2.msra.mxu0 0.0
  %3005 = vmatprep.subr.mxu0 0.0
  %3006 = vmatpush2.msra.mxu0 0.0
  %3007 = vmatprep.subr.mxu0 0.0
  %3008 = vmatpush2.msra.mxu0 0.0
  %3009 = vmatprep.subr.mxu0 0.0
  %3010 = vmatpush2.msra.mxu0 0.0
  %3011 = vmatprep.subr.mxu0 0.0
  %3012 = vmatpush2.msra.mxu0 0.0
  %3013 = vmatprep.subr.mxu0 0.0
  %3014 = vmatpush2.msra.mxu0 0.0
  %3015 = vmatprep.subr.mxu0 0.0
  %3016 = vmatpush2.msra.mxu0 0.0
  %3017 = vmatprep.subr.mxu0 0.0
  %3018 = vmatpush2.msra.mxu0 0.0
  %3019 = vmatprep.subr.mxu0 0.0
  %3020 = vmatpush2.msra.mxu0 0.0
  %3021 = vmatprep.subr.mxu0 0.0
  %3022 = vmatpush2.msra.mxu0 0.0
  %3023 = vmatprep.subr.mxu0 0.0
  %3024 = vmatpush2.msra.mxu0 0.0
  %3025 = vmatprep.subr.mxu0 0.0
  %3026 = vmatpush2.msra.mxu0 0.0
  %3027 = vmatprep.subr.mxu0 0.0
  %3028 = vmatpush2.msra.mxu0 0.0
  %3029 = vmatprep.subr.mxu0 0.0
  %3030 = vmatpush2.msra.mxu0 0.0
  %3031 = vmatprep.subr.mxu0 0.0
  %3032 = vmatpush2.msra.mxu0 0.0
  %3033 = vmatprep.mubr.f32.mxu0 0.0
  %3034 = vmatmul.mubr.f32.gmra.mxu0 %v2967
  %v3035 = vpop.f32.mrf.mxu0
  %v3036 = vadd.f32 0.0, %v3035
  %v3037 = vpop.f32.mrf.mxu0
  %v3038 = vadd.f32 0.0, %v3037
  %3039 = vdwg.mxu0
  %v3040 = vlaneseq
  %v3041 = vshrl.u32 %v3040, 7
  %v3042 = vsub.s32 0, %v3041
  %v3043 = vrot.slane %v2962, %v3042
  %v3044 = vlaneseq
  %v3045 = vshrl.u32 %v3044, 7
  %v3046 = vsub.s32 0, %v3045
  %v3047 = vrot.slane %v2964, %v3046
  %v3048 = vmul.f32 %v2652, %v3043
  %v3049 = vmul.f32 %v2653, %v3047
  %v3050 = vmul.f32 %v2654, %v3043
  %v3051 = vmul.f32 %v2655, %v3047
  %v3052 = vmul.f32 %v2656, %v3043
  %v3053 = vmul.f32 %v2657, %v3047
  %v3054 = vmul.f32 %v2658, %v3043
  %v3055 = vmul.f32 %v2659, %v3047
  %v3056 = vlaneseq
  %v3057 = vshrl.u32 %v3056, 7
  %v3058 = vsub.s32 0, %v3057
  %v3059 = vrot.slane %v3036, %v3058
  %v3060 = vlaneseq
  %v3061 = vshrl.u32 %v3060, 7
  %v3062 = vsub.s32 0, %v3061
  %v3063 = vrot.slane %v3038, %v3062
  %v3064 = vadd.f32 %v3048, %v3059
  %v3065 = vadd.f32 %v3049, %v3063
  %v3066 = vadd.f32 %v3050, %v3059
  %v3067 = vadd.f32 %v3051, %v3063
  %v3068 = vadd.f32 %v3052, %v3059
  %v3069 = vadd.f32 %v3053, %v3063
  %v3070 = vadd.f32 %v3054, %v3059
  %v3071 = vadd.f32 %v3055, %v3063
  %vm3072 = vcmp.ge.f32.partialorder %v3064, 0.0
  %vm3073 = vcmp.ge.f32.partialorder %v3065, 0.0
  %vm3074 = vcmp.ge.f32.partialorder %v3066, 0.0
  %vm3075 = vcmp.ge.f32.partialorder %v3067, 0.0
  %vm3076 = vcmp.ge.f32.partialorder %v3068, 0.0
  %vm3077 = vcmp.ge.f32.partialorder %v3069, 0.0
  %vm3078 = vcmp.ge.f32.partialorder %v3070, 0.0
  %vm3079 = vcmp.ge.f32.partialorder %v3071, 0.0
  %v3080 = vmul.f32 %v3064, 0.2
  %v3081 = vmul.f32 %v3065, 0.2
  %v3082 = vmul.f32 %v3066, 0.2
  %v3083 = vmul.f32 %v3067, 0.2
  %v3084 = vmul.f32 %v3068, 0.2
  %v3085 = vmul.f32 %v3069, 0.2
  %v3086 = vmul.f32 %v3070, 0.2
  %v3087 = vmul.f32 %v3071, 0.2
  %v3088 = vsel %vm3072, %v3064, %v3080
  %v3089 = vsel %vm3073, %v3065, %v3081
  %v3090 = vsel %vm3074, %v3066, %v3082
  %v3091 = vsel %vm3075, %v3067, %v3083
  %v3092 = vsel %vm3076, %v3068, %v3084
  %v3093 = vsel %vm3077, %v3069, %v3085
  %v3094 = vsel %vm3078, %v3070, %v3086
  %v3095 = vsel %vm3079, %v3071, %v3087
  %v3096 = vpack.c.bf16 %v3090, %v3088
  %v3097 = vpack.c.bf16 %v3091, %v3089
  %v3098 = vpack.c.bf16 %v3094, %v3092
  %v3099 = vpack.c.bf16 %v3095, %v3093
  %v3100 = vld [vmem:[%s10] sm:$0xf]
  %v3101 = vld [vmem:[%s10 + $0x4] sm:$0xf]
  %v3104 = vunpack.c.l.b16 %v3100
  %v3105 = vunpack.c.l.b16 %v3101
  %v3106 = vpack.c.b16 %v3105, %v3104
  %vm3107 = vcmask 261120
  %v3109 = vsel %vm3107, %v3106, 0
  %3111 = vmatprep.subr.bf16.mxu0 0
  %3112 = vmatpush1.bf16.msra.mxu0 0
  %3113 = vmatprep.subr.bf16.mxu0 0
  %3114 = vmatpush1.bf16.msra.mxu0 0
  %3115 = vmatprep.subr.bf16.mxu0 0
  %3116 = vmatpush1.bf16.msra.mxu0 0
  %3117 = vmatprep.subr.bf16.mxu0 0
  %3118 = vmatpush1.bf16.msra.mxu0 0
  %3119 = vmatprep.subr.bf16.mxu0 0
  %3120 = vmatpush1.bf16.msra.mxu0 0
  %3121 = vmatprep.subr.bf16.mxu0 0
  %3122 = vmatpush1.bf16.msra.mxu0 0
  %3123 = vmatprep.subr.bf16.mxu0 %v3099
  %3124 = vmatpush1.bf16.msra.mxu0 %v3098
  %3125 = vmatprep.subr.bf16.mxu0 %v3097
  %3126 = vmatpush1.bf16.msra.mxu0 %v3096
  %3127 = vmatprep.subr.bf16.mxu0 0
  %3128 = vmatpush2.bf16.msra.mxu0 0
  %3129 = vmatprep.subr.bf16.mxu0 0
  %3130 = vmatpush2.bf16.msra.mxu0 0
  %3131 = vmatprep.subr.bf16.mxu0 0
  %3132 = vmatpush2.bf16.msra.mxu0 0
  %3133 = vmatprep.subr.bf16.mxu0 0
  %3134 = vmatpush2.bf16.msra.mxu0 0
  %3135 = vmatprep.subr.bf16.mxu0 0
  %3136 = vmatpush2.bf16.msra.mxu0 0
  %3137 = vmatprep.subr.bf16.mxu0 0
  %3138 = vmatpush2.bf16.msra.mxu0 0
  %3139 = vmatprep.subr.bf16.mxu0 0
  %3140 = vmatpush2.bf16.msra.mxu0 0
  %3141 = vmatprep.subr.bf16.mxu0 0
  %3142 = vmatpush2.bf16.msra.mxu0 0
  %3143 = vmatprep.mubr.bf16.mxu0 0
  %3144 = vmatmul.mubr.bf16.gmra.mxu0 %v3109
  %v3145 = vpop.f32.mrf.mxu0
  %v3146 = vadd.f32 0.0, %v3145
  %v3147 = vpop.f32.mrf.mxu0
  %v3148 = vadd.f32 0.0, %v3147
  %v3149 = vpop.f32.mrf.mxu0
  %v3150 = vadd.f32 0.0, %v3149
  %v3151 = vpop.f32.mrf.mxu0
  %v3152 = vadd.f32 0.0, %v3151
  %3153 = vdwg.mxu0
  %v3154 = vpack.c.bf16 %v3150, %v3146
  %v3155 = vpack.c.bf16 %v3152, %v3148
  %v3156 = vld [vmem:[%s11] sm:$0xff]
  %v3157 = vld [vmem:[%s11 + $0x8] sm:$0xff]
  %v3158 = vld [vmem:[%s11 + $0x10] sm:$0xff]
  %v3159 = vld [vmem:[%s11 + $0x18] sm:$0xff]
  %v3160 = vld [vmem:[%s11 + $0x20] sm:$0xff]
  %v3161 = vld [vmem:[%s11 + $0x28] sm:$0xff]
  %v3162 = vld [vmem:[%s11 + $0x30] sm:$0xff]
  %v3163 = vld [vmem:[%s11 + $0x38] sm:$0xff]
  %v3164 = vld [vmem:[%s11 + $0x40] sm:$0xff]
  %v3165 = vld [vmem:[%s11 + $0x48] sm:$0xff]
  %v3166 = vld [vmem:[%s11 + $0x50] sm:$0xff]
  %v3167 = vld [vmem:[%s11 + $0x58] sm:$0xff]
  %v3168 = vld [vmem:[%s11 + $0x60] sm:$0xff]
  %v3169 = vld [vmem:[%s11 + $0x68] sm:$0xff]
  %v3170 = vld [vmem:[%s11 + $0x70] sm:$0xff]
  %v3171 = vld [vmem:[%s11 + $0x78] sm:$0xff]
  %v3172 = vld [vmem:[%s11 + $0x80] sm:$0xff]
  %v3173 = vld [vmem:[%s11 + $0x88] sm:$0xff]
  %v3174 = vld [vmem:[%s11 + $0x90] sm:$0xff]
  %v3175 = vld [vmem:[%s11 + $0x98] sm:$0xff]
  %v3176 = vld [vmem:[%s11 + $0xa0] sm:$0xff]
  %v3177 = vld [vmem:[%s11 + $0xa8] sm:$0xff]
  %v3178 = vld [vmem:[%s11 + $0xb0] sm:$0xff]
  %v3179 = vld [vmem:[%s11 + $0xb8] sm:$0xff]
  %v3180 = vld [vmem:[%s11 + $0xc0] sm:$0xff]
  %v3181 = vld [vmem:[%s11 + $0xc8] sm:$0xff]
  %v3182 = vld [vmem:[%s11 + $0xd0] sm:$0xff]
  %v3183 = vld [vmem:[%s11 + $0xd8] sm:$0xff]
  %v3184 = vld [vmem:[%s11 + $0xe0] sm:$0xff]
  %v3185 = vld [vmem:[%s11 + $0xe8] sm:$0xff]
  %v3186 = vld [vmem:[%s11 + $0xf0] sm:$0xff]
  %v3187 = vld [vmem:[%s11 + $0xf8] sm:$0xff]
  %s3188 = scalar_lea.vmem %s10, 8
  %v3189 = vld [vmem:[%s3188] sm:$0xf]
  %v3190 = vld [vmem:[%s3188 + $0x4] sm:$0xf]
  %v3193 = vunpack.c.l.b16 %v3189
  %v3194 = vunpack.c.l.b16 %v3190
  %v3195 = vpack.c.b16 %v3194, %v3193
  %v3197 = vsel %vm3107, %v3195, 0
  %3199 = vmatprep.subr.bf16.mxu0 0
  %3200 = vmatpush1.bf16.msra.mxu0 0
  %3201 = vmatprep.subr.bf16.mxu0 0
  %3202 = vmatpush1.bf16.msra.mxu0 0
  %3203 = vmatprep.subr.bf16.mxu0 0
  %3204 = vmatpush1.bf16.msra.mxu0 0
  %3205 = vmatprep.subr.bf16.mxu0 0
  %3206 = vmatpush1.bf16.msra.mxu0 0
  %3207 = vmatprep.subr.bf16.mxu0 0
  %3208 = vmatpush1.bf16.msra.mxu0 0
  %3209 = vmatprep.subr.bf16.mxu0 0
  %3210 = vmatpush1.bf16.msra.mxu0 0
  %3211 = vmatprep.subr.bf16.mxu0 %v3099
  %3212 = vmatpush1.bf16.msra.mxu0 %v3098
  %3213 = vmatprep.subr.bf16.mxu0 %v3097
  %3214 = vmatpush1.bf16.msra.mxu0 %v3096
  %3215 = vmatprep.subr.bf16.mxu0 0
  %3216 = vmatpush2.bf16.msra.mxu0 0
  %3217 = vmatprep.subr.bf16.mxu0 0
  %3218 = vmatpush2.bf16.msra.mxu0 0
  %3219 = vmatprep.subr.bf16.mxu0 0
  %3220 = vmatpush2.bf16.msra.mxu0 0
  %3221 = vmatprep.subr.bf16.mxu0 0
  %3222 = vmatpush2.bf16.msra.mxu0 0
  %3223 = vmatprep.subr.bf16.mxu0 0
  %3224 = vmatpush2.bf16.msra.mxu0 0
  %3225 = vmatprep.subr.bf16.mxu0 0
  %3226 = vmatpush2.bf16.msra.mxu0 0
  %3227 = vmatprep.subr.bf16.mxu0 0
  %3228 = vmatpush2.bf16.msra.mxu0 0
  %3229 = vmatprep.subr.bf16.mxu0 0
  %3230 = vmatpush2.bf16.msra.mxu0 0
  %3231 = vmatprep.mubr.bf16.mxu0 0
  %3232 = vmatmul.mubr.bf16.gmra.mxu0 %v3197
  %v3233 = vpop.f32.mrf.mxu0
  %v3234 = vadd.f32 0.0, %v3233
  %v3235 = vpop.f32.mrf.mxu0
  %v3236 = vadd.f32 0.0, %v3235
  %v3237 = vpop.f32.mrf.mxu0
  %v3238 = vadd.f32 0.0, %v3237
  %v3239 = vpop.f32.mrf.mxu0
  %v3240 = vadd.f32 0.0, %v3239
  %3241 = vdwg.mxu0
  %v3242 = vpack.c.bf16 %v3238, %v3234
  %v3243 = vpack.c.bf16 %v3240, %v3236
  %s3244 = scalar_lea.vmem %s11, 256
  %v3245 = vld [vmem:[%s3244] sm:$0xff]
  %v3246 = vld [vmem:[%s3244 + $0x8] sm:$0xff]
  %v3247 = vld [vmem:[%s3244 + $0x10] sm:$0xff]
  %v3248 = vld [vmem:[%s3244 + $0x18] sm:$0xff]
  %v3249 = vld [vmem:[%s3244 + $0x20] sm:$0xff]
  %v3250 = vld [vmem:[%s3244 + $0x28] sm:$0xff]
  %v3251 = vld [vmem:[%s3244 + $0x30] sm:$0xff]
  %v3252 = vld [vmem:[%s3244 + $0x38] sm:$0xff]
  %v3253 = vld [vmem:[%s3244 + $0x40] sm:$0xff]
  %v3254 = vld [vmem:[%s3244 + $0x48] sm:$0xff]
  %v3255 = vld [vmem:[%s3244 + $0x50] sm:$0xff]
  %v3256 = vld [vmem:[%s3244 + $0x58] sm:$0xff]
  %v3257 = vld [vmem:[%s3244 + $0x60] sm:$0xff]
  %v3258 = vld [vmem:[%s3244 + $0x68] sm:$0xff]
  %v3259 = vld [vmem:[%s3244 + $0x70] sm:$0xff]
  %v3260 = vld [vmem:[%s3244 + $0x78] sm:$0xff]
  %v3261 = vld [vmem:[%s3244 + $0x80] sm:$0xff]
  %v3262 = vld [vmem:[%s3244 + $0x88] sm:$0xff]
  %v3263 = vld [vmem:[%s3244 + $0x90] sm:$0xff]
  %v3264 = vld [vmem:[%s3244 + $0x98] sm:$0xff]
  %v3265 = vld [vmem:[%s3244 + $0xa0] sm:$0xff]
  %v3266 = vld [vmem:[%s3244 + $0xa8] sm:$0xff]
  %v3267 = vld [vmem:[%s3244 + $0xb0] sm:$0xff]
  %v3268 = vld [vmem:[%s3244 + $0xb8] sm:$0xff]
  %v3269 = vld [vmem:[%s3244 + $0xc0] sm:$0xff]
  %v3270 = vld [vmem:[%s3244 + $0xc8] sm:$0xff]
  %v3271 = vld [vmem:[%s3244 + $0xd0] sm:$0xff]
  %v3272 = vld [vmem:[%s3244 + $0xd8] sm:$0xff]
  %v3273 = vld [vmem:[%s3244 + $0xe0] sm:$0xff]
  %v3274 = vld [vmem:[%s3244 + $0xe8] sm:$0xff]
  %v3275 = vld [vmem:[%s3244 + $0xf0] sm:$0xff]
  %v3276 = vld [vmem:[%s3244 + $0xf8] sm:$0xff]
  %v3309 = vunpack.c.l.b16 %v3245
  %v3310 = vunpack.c.h.b16 %v3245
  %v3311 = vunpack.c.l.b16 %v3246
  %v3312 = vunpack.c.h.b16 %v3246
  %v3313 = vunpack.c.l.b16 %v3247
  %v3314 = vunpack.c.h.b16 %v3247
  %v3315 = vunpack.c.l.b16 %v3248
  %v3316 = vunpack.c.h.b16 %v3248
  %v3317 = vunpack.c.l.b16 %v3249
  %v3318 = vunpack.c.h.b16 %v3249
  %v3319 = vunpack.c.l.b16 %v3250
  %v3320 = vunpack.c.h.b16 %v3250
  %v3321 = vunpack.c.l.b16 %v3251
  %v3322 = vunpack.c.h.b16 %v3251
  %v3323 = vunpack.c.l.b16 %v3252
  %v3324 = vunpack.c.h.b16 %v3252
  %v3325 = vunpack.c.l.b16 %v3253
  %v3326 = vunpack.c.h.b16 %v3253
  %v3327 = vunpack.c.l.b16 %v3254
  %v3328 = vunpack.c.h.b16 %v3254
  %v3329 = vunpack.c.l.b16 %v3255
  %v3330 = vunpack.c.h.b16 %v3255
  %v3331 = vunpack.c.l.b16 %v3256
  %v3332 = vunpack.c.h.b16 %v3256
  %v3333 = vunpack.c.l.b16 %v3257
  %v3334 = vunpack.c.h.b16 %v3257
  %v3335 = vunpack.c.l.b16 %v3258
  %v3336 = vunpack.c.h.b16 %v3258
  %v3337 = vunpack.c.l.b16 %v3259
  %v3338 = vunpack.c.h.b16 %v3259
  %v3339 = vunpack.c.l.b16 %v3260
  %v3340 = vunpack.c.h.b16 %v3260
  %v3341 = vunpack.c.l.b16 %v3261
  %v3342 = vunpack.c.h.b16 %v3261
  %v3343 = vunpack.c.l.b16 %v3262
  %v3344 = vunpack.c.h.b16 %v3262
  %v3345 = vunpack.c.l.b16 %v3263
  %v3346 = vunpack.c.h.b16 %v3263
  %v3347 = vunpack.c.l.b16 %v3264
  %v3348 = vunpack.c.h.b16 %v3264
  %v3349 = vunpack.c.l.b16 %v3265
  %v3350 = vunpack.c.h.b16 %v3265
  %v3351 = vunpack.c.l.b16 %v3266
  %v3352 = vunpack.c.h.b16 %v3266
  %v3353 = vunpack.c.l.b16 %v3267
  %v3354 = vunpack.c.h.b16 %v3267
  %v3355 = vunpack.c.l.b16 %v3268
  %v3356 = vunpack.c.h.b16 %v3268
  %v3357 = vunpack.c.l.b16 %v3269
  %v3358 = vunpack.c.h.b16 %v3269
  %v3359 = vunpack.c.l.b16 %v3270
  %v3360 = vunpack.c.h.b16 %v3270
  %v3361 = vunpack.c.l.b16 %v3271
  %v3362 = vunpack.c.h.b16 %v3271
  %v3363 = vunpack.c.l.b16 %v3272
  %v3364 = vunpack.c.h.b16 %v3272
  %v3365 = vunpack.c.l.b16 %v3273
  %v3366 = vunpack.c.h.b16 %v3273
  %v3367 = vunpack.c.l.b16 %v3274
  %v3368 = vunpack.c.h.b16 %v3274
  %v3369 = vunpack.c.l.b16 %v3275
  %v3370 = vunpack.c.h.b16 %v3275
  %v3371 = vunpack.c.l.b16 %v3276
  %v3372 = vunpack.c.h.b16 %v3276
  %v3373 = vpack.c.b16 %v3311, %v3309
  %v3374 = vpack.c.b16 %v3312, %v3310
  %v3375 = vpack.c.b16 %v3315, %v3313
  %v3376 = vpack.c.b16 %v3316, %v3314
  %v3377 = vpack.c.b16 %v3319, %v3317
  %v3378 = vpack.c.b16 %v3320, %v3318
  %v3379 = vpack.c.b16 %v3323, %v3321
  %v3380 = vpack.c.b16 %v3324, %v3322
  %v3381 = vpack.c.b16 %v3327, %v3325
  %v3382 = vpack.c.b16 %v3328, %v3326
  %v3383 = vpack.c.b16 %v3331, %v3329
  %v3384 = vpack.c.b16 %v3332, %v3330
  %v3385 = vpack.c.b16 %v3335, %v3333
  %v3386 = vpack.c.b16 %v3336, %v3334
  %v3387 = vpack.c.b16 %v3339, %v3337
  %v3388 = vpack.c.b16 %v3340, %v3338
  %v3389 = vpack.c.b16 %v3343, %v3341
  %v3390 = vpack.c.b16 %v3344, %v3342
  %v3391 = vpack.c.b16 %v3347, %v3345
  %v3392 = vpack.c.b16 %v3348, %v3346
  %v3393 = vpack.c.b16 %v3351, %v3349
  %v3394 = vpack.c.b16 %v3352, %v3350
  %v3395 = vpack.c.b16 %v3355, %v3353
  %v3396 = vpack.c.b16 %v3356, %v3354
  %v3397 = vpack.c.b16 %v3359, %v3357
  %v3398 = vpack.c.b16 %v3360, %v3358
  %v3399 = vpack.c.b16 %v3363, %v3361
  %v3400 = vpack.c.b16 %v3364, %v3362
  %v3401 = vpack.c.b16 %v3367, %v3365
  %v3402 = vpack.c.b16 %v3368, %v3366
  %v3403 = vpack.c.b16 %v3371, %v3369
  %v3404 = vpack.c.b16 %v3372, %v3370
  %3437 = vmatprep.subr.bf16.mxu0 %v3388
  %3438 = vmatpush1.bf16.msra.mxu0 %v3387
  %3439 = vmatprep.subr.bf16.mxu0 %v3386
  %3440 = vmatpush1.bf16.msra.mxu0 %v3385
  %3441 = vmatprep.subr.bf16.mxu0 %v3384
  %3442 = vmatpush1.bf16.msra.mxu0 %v3383
  %3443 = vmatprep.subr.bf16.mxu0 %v3382
  %3444 = vmatpush1.bf16.msra.mxu0 %v3381
  %3445 = vmatprep.subr.bf16.mxu0 %v3380
  %3446 = vmatpush1.bf16.msra.mxu0 %v3379
  %3447 = vmatprep.subr.bf16.mxu0 %v3378
  %3448 = vmatpush1.bf16.msra.mxu0 %v3377
  %3449 = vmatprep.subr.bf16.mxu0 %v3376
  %3450 = vmatpush1.bf16.msra.mxu0 %v3375
  %3451 = vmatprep.subr.bf16.mxu0 %v3374
  %3452 = vmatpush1.bf16.msra.mxu0 %v3373
  %3453 = vmatprep.subr.bf16.mxu0 %v3404
  %3454 = vmatpush2.bf16.msra.mxu0 %v3403
  %3455 = vmatprep.subr.bf16.mxu0 %v3402
  %3456 = vmatpush2.bf16.msra.mxu0 %v3401
  %3457 = vmatprep.subr.bf16.mxu0 %v3400
  %3458 = vmatpush2.bf16.msra.mxu0 %v3399
  %3459 = vmatprep.subr.bf16.mxu0 %v3398
  %3460 = vmatpush2.bf16.msra.mxu0 %v3397
  %3461 = vmatprep.subr.bf16.mxu0 %v3396
  %3462 = vmatpush2.bf16.msra.mxu0 %v3395
  %3463 = vmatprep.subr.bf16.mxu0 %v3394
  %3464 = vmatpush2.bf16.msra.mxu0 %v3393
  %3465 = vmatprep.subr.bf16.mxu0 %v3392
  %3466 = vmatpush2.bf16.msra.mxu0 %v3391
  %3467 = vmatprep.subr.bf16.mxu0 %v3390
  %3468 = vmatpush2.bf16.msra.mxu0 %v3389
  %3469 = vmatprep.mubr.bf16.mxu0 %v3243
  %3470 = vmatmul.mubr.bf16.gmra.mxu0 %v3242
  %v3471 = vpop.f32.mrf.mxu0
  %v3472 = vadd.f32 0.0, %v3471
  %v3473 = vpop.f32.mrf.mxu0
  %v3474 = vadd.f32 0.0, %v3473
  %v3475 = vpop.f32.mrf.mxu0
  %v3476 = vadd.f32 0.0, %v3475
  %v3477 = vpop.f32.mrf.mxu0
  %v3478 = vadd.f32 0.0, %v3477
  %3479 = vdwg.mxu0
  %v3512 = vunpack.c.l.b16 %v3156
  %v3513 = vunpack.c.h.b16 %v3156
  %v3514 = vunpack.c.l.b16 %v3157
  %v3515 = vunpack.c.h.b16 %v3157
  %v3516 = vunpack.c.l.b16 %v3158
  %v3517 = vunpack.c.h.b16 %v3158
  %v3518 = vunpack.c.l.b16 %v3159
  %v3519 = vunpack.c.h.b16 %v3159
  %v3520 = vunpack.c.l.b16 %v3160
  %v3521 = vunpack.c.h.b16 %v3160
  %v3522 = vunpack.c.l.b16 %v3161
  %v3523 = vunpack.c.h.b16 %v3161
  %v3524 = vunpack.c.l.b16 %v3162
  %v3525 = vunpack.c.h.b16 %v3162
  %v3526 = vunpack.c.l.b16 %v3163
  %v3527 = vunpack.c.h.b16 %v3163
  %v3528 = vunpack.c.l.b16 %v3164
  %v3529 = vunpack.c.h.b16 %v3164
  %v3530 = vunpack.c.l.b16 %v3165
  %v3531 = vunpack.c.h.b16 %v3165
  %v3532 = vunpack.c.l.b16 %v3166
  %v3533 = vunpack.c.h.b16 %v3166
  %v3534 = vunpack.c.l.b16 %v3167
  %v3535 = vunpack.c.h.b16 %v3167
  %v3536 = vunpack.c.l.b16 %v3168
  %v3537 = vunpack.c.h.b16 %v3168
  %v3538 = vunpack.c.l.b16 %v3169
  %v3539 = vunpack.c.h.b16 %v3169
  %v3540 = vunpack.c.l.b16 %v3170
  %v3541 = vunpack.c.h.b16 %v3170
  %v3542 = vunpack.c.l.b16 %v3171
  %v3543 = vunpack.c.h.b16 %v3171
  %v3544 = vunpack.c.l.b16 %v3172
  %v3545 = vunpack.c.h.b16 %v3172
  %v3546 = vunpack.c.l.b16 %v3173
  %v3547 = vunpack.c.h.b16 %v3173
  %v3548 = vunpack.c.l.b16 %v3174
  %v3549 = vunpack.c.h.b16 %v3174
  %v3550 = vunpack.c.l.b16 %v3175
  %v3551 = vunpack.c.h.b16 %v3175
  %v3552 = vunpack.c.l.b16 %v3176
  %v3553 = vunpack.c.h.b16 %v3176
  %v3554 = vunpack.c.l.b16 %v3177
  %v3555 = vunpack.c.h.b16 %v3177
  %v3556 = vunpack.c.l.b16 %v3178
  %v3557 = vunpack.c.h.b16 %v3178
  %v3558 = vunpack.c.l.b16 %v3179
  %v3559 = vunpack.c.h.b16 %v3179
  %v3560 = vunpack.c.l.b16 %v3180
  %v3561 = vunpack.c.h.b16 %v3180
  %v3562 = vunpack.c.l.b16 %v3181
  %v3563 = vunpack.c.h.b16 %v3181
  %v3564 = vunpack.c.l.b16 %v3182
  %v3565 = vunpack.c.h.b16 %v3182
  %v3566 = vunpack.c.l.b16 %v3183
  %v3567 = vunpack.c.h.b16 %v3183
  %v3568 = vunpack.c.l.b16 %v3184
  %v3569 = vunpack.c.h.b16 %v3184
  %v3570 = vunpack.c.l.b16 %v3185
  %v3571 = vunpack.c.h.b16 %v3185
  %v3572 = vunpack.c.l.b16 %v3186
  %v3573 = vunpack.c.h.b16 %v3186
  %v3574 = vunpack.c.l.b16 %v3187
  %v3575 = vunpack.c.h.b16 %v3187
  %v3576 = vpack.c.b16 %v3514, %v3512
  %v3577 = vpack.c.b16 %v3515, %v3513
  %v3578 = vpack.c.b16 %v3518, %v3516
  %v3579 = vpack.c.b16 %v3519, %v3517
  %v3580 = vpack.c.b16 %v3522, %v3520
  %v3581 = vpack.c.b16 %v3523, %v3521
  %v3582 = vpack.c.b16 %v3526, %v3524
  %v3583 = vpack.c.b16 %v3527, %v3525
  %v3584 = vpack.c.b16 %v3530, %v3528
  %v3585 = vpack.c.b16 %v3531, %v3529
  %v3586 = vpack.c.b16 %v3534, %v3532
  %v3587 = vpack.c.b16 %v3535, %v3533
  %v3588 = vpack.c.b16 %v3538, %v3536
  %v3589 = vpack.c.b16 %v3539, %v3537
  %v3590 = vpack.c.b16 %v3542, %v3540
  %v3591 = vpack.c.b16 %v3543, %v3541
  %v3592 = vpack.c.b16 %v3546, %v3544
  %v3593 = vpack.c.b16 %v3547, %v3545
  %v3594 = vpack.c.b16 %v3550, %v3548
  %v3595 = vpack.c.b16 %v3551, %v3549
  %v3596 = vpack.c.b16 %v3554, %v3552
  %v3597 = vpack.c.b16 %v3555, %v3553
  %v3598 = vpack.c.b16 %v3558, %v3556
  %v3599 = vpack.c.b16 %v3559, %v3557
  %v3600 = vpack.c.b16 %v3562, %v3560
  %v3601 = vpack.c.b16 %v3563, %v3561
  %v3602 = vpack.c.b16 %v3566, %v3564
  %v3603 = vpack.c.b16 %v3567, %v3565
  %v3604 = vpack.c.b16 %v3570, %v3568
  %v3605 = vpack.c.b16 %v3571, %v3569
  %v3606 = vpack.c.b16 %v3574, %v3572
  %v3607 = vpack.c.b16 %v3575, %v3573
  %3640 = vmatprep.subr.bf16.mxu0 %v3591
  %3641 = vmatpush1.bf16.msra.mxu0 %v3590
  %3642 = vmatprep.subr.bf16.mxu0 %v3589
  %3643 = vmatpush1.bf16.msra.mxu0 %v3588
  %3644 = vmatprep.subr.bf16.mxu0 %v3587
  %3645 = vmatpush1.bf16.msra.mxu0 %v3586
  %3646 = vmatprep.subr.bf16.mxu0 %v3585
  %3647 = vmatpush1.bf16.msra.mxu0 %v3584
  %3648 = vmatprep.subr.bf16.mxu0 %v3583
  %3649 = vmatpush1.bf16.msra.mxu0 %v3582
  %3650 = vmatprep.subr.bf16.mxu0 %v3581
  %3651 = vmatpush1.bf16.msra.mxu0 %v3580
  %3652 = vmatprep.subr.bf16.mxu0 %v3579
  %3653 = vmatpush1.bf16.msra.mxu0 %v3578
  %3654 = vmatprep.subr.bf16.mxu0 %v3577
  %3655 = vmatpush1.bf16.msra.mxu0 %v3576
  %3656 = vmatprep.subr.bf16.mxu0 %v3607
  %3657 = vmatpush2.bf16.msra.mxu0 %v3606
  %3658 = vmatprep.subr.bf16.mxu0 %v3605
  %3659 = vmatpush2.bf16.msra.mxu0 %v3604
  %3660 = vmatprep.subr.bf16.mxu0 %v3603
  %3661 = vmatpush2.bf16.msra.mxu0 %v3602
  %3662 = vmatprep.subr.bf16.mxu0 %v3601
  %3663 = vmatpush2.bf16.msra.mxu0 %v3600
  %3664 = vmatprep.subr.bf16.mxu0 %v3599
  %3665 = vmatpush2.bf16.msra.mxu0 %v3598
  %3666 = vmatprep.subr.bf16.mxu0 %v3597
  %3667 = vmatpush2.bf16.msra.mxu0 %v3596
  %3668 = vmatprep.subr.bf16.mxu0 %v3595
  %3669 = vmatpush2.bf16.msra.mxu0 %v3594
  %3670 = vmatprep.subr.bf16.mxu0 %v3593
  %3671 = vmatpush2.bf16.msra.mxu0 %v3592
  %3672 = vmatprep.mubr.bf16.mxu0 %v3155
  %3673 = vmatmul.mubr.bf16.gmra.mxu0 %v3154
  %v3674 = vpop.f32.mrf.mxu0
  %v3675 = vadd.f32 %v3472, %v3674
  %v3676 = vpop.f32.mrf.mxu0
  %v3677 = vadd.f32 %v3474, %v3676
  %v3678 = vpop.f32.mrf.mxu0
  %v3679 = vadd.f32 %v3476, %v3678
  %v3680 = vpop.f32.mrf.mxu0
  %v3681 = vadd.f32 %v3478, %v3680
  %3682 = vdwg.mxu0
  %s3683 = scalar_lea.vmem %s10, 16
  %v3684 = vld [vmem:[%s3683] sm:$0xf]
  %v3685 = vld [vmem:[%s3683 + $0x4] sm:$0xf]
  %v3688 = vunpack.c.l.b16 %v3684
  %v3689 = vunpack.c.l.b16 %v3685
  %v3690 = vpack.c.b16 %v3689, %v3688
  %v3692 = vsel %vm3107, %v3690, 0
  %3694 = vmatprep.subr.bf16.mxu0 0
  %3695 = vmatpush1.bf16.msra.mxu0 0
  %3696 = vmatprep.subr.bf16.mxu0 0
  %3697 = vmatpush1.bf16.msra.mxu0 0
  %3698 = vmatprep.subr.bf16.mxu0 0
  %3699 = vmatpush1.bf16.msra.mxu0 0
  %3700 = vmatprep.subr.bf16.mxu0 0
  %3701 = vmatpush1.bf16.msra.mxu0 0
  %3702 = vmatprep.subr.bf16.mxu0 0
  %3703 = vmatpush1.bf16.msra.mxu0 0
  %3704 = vmatprep.subr.bf16.mxu0 0
  %3705 = vmatpush1.bf16.msra.mxu0 0
  %3706 = vmatprep.subr.bf16.mxu0 %v3099
  %3707 = vmatpush1.bf16.msra.mxu0 %v3098
  %3708 = vmatprep.subr.bf16.mxu0 %v3097
  %3709 = vmatpush1.bf16.msra.mxu0 %v3096
  %3710 = vmatprep.subr.bf16.mxu0 0
  %3711 = vmatpush2.bf16.msra.mxu0 0
  %3712 = vmatprep.subr.bf16.mxu0 0
  %3713 = vmatpush2.bf16.msra.mxu0 0
  %3714 = vmatprep.subr.bf16.mxu0 0
  %3715 = vmatpush2.bf16.msra.mxu0 0
  %3716 = vmatprep.subr.bf16.mxu0 0
  %3717 = vmatpush2.bf16.msra.mxu0 0
  %3718 = vmatprep.subr.bf16.mxu0 0
  %3719 = vmatpush2.bf16.msra.mxu0 0
  %3720 = vmatprep.subr.bf16.mxu0 0
  %3721 = vmatpush2.bf16.msra.mxu0 0
  %3722 = vmatprep.subr.bf16.mxu0 0
  %3723 = vmatpush2.bf16.msra.mxu0 0
  %3724 = vmatprep.subr.bf16.mxu0 0
  %3725 = vmatpush2.bf16.msra.mxu0 0
  %3726 = vmatprep.mubr.bf16.mxu0 0
  %3727 = vmatmul.mubr.bf16.gmra.mxu0 %v3692
  %v3728 = vpop.f32.mrf.mxu0
  %v3729 = vadd.f32 0.0, %v3728
  %v3730 = vpop.f32.mrf.mxu0
  %v3731 = vadd.f32 0.0, %v3730
  %v3732 = vpop.f32.mrf.mxu0
  %v3733 = vadd.f32 0.0, %v3732
  %v3734 = vpop.f32.mrf.mxu0
  %v3735 = vadd.f32 0.0, %v3734
  %3736 = vdwg.mxu0
  %v3737 = vpack.c.bf16 %v3733, %v3729
  %v3738 = vpack.c.bf16 %v3735, %v3731
  %s3739 = scalar_lea.vmem %s11, 512
  %v3740 = vld [vmem:[%s3739] sm:$0xff]
  %v3741 = vld [vmem:[%s3739 + $0x8] sm:$0xff]
  %v3742 = vld [vmem:[%s3739 + $0x10] sm:$0xff]
  %v3743 = vld [vmem:[%s3739 + $0x18] sm:$0xff]
  %v3744 = vld [vmem:[%s3739 + $0x20] sm:$0xff]
  %v3745 = vld [vmem:[%s3739 + $0x28] sm:$0xff]
  %v3746 = vld [vmem:[%s3739 + $0x30] sm:$0xff]
  %v3747 = vld [vmem:[%s3739 + $0x38] sm:$0xff]
  %v3748 = vld [vmem:[%s3739 + $0x40] sm:$0xff]
  %v3749 = vld [vmem:[%s3739 + $0x48] sm:$0xff]
  %v3750 = vld [vmem:[%s3739 + $0x50] sm:$0xff]
  %v3751 = vld [vmem:[%s3739 + $0x58] sm:$0xff]
  %v3752 = vld [vmem:[%s3739 + $0x60] sm:$0xff]
  %v3753 = vld [vmem:[%s3739 + $0x68] sm:$0xff]
  %v3754 = vld [vmem:[%s3739 + $0x70] sm:$0xff]
  %v3755 = vld [vmem:[%s3739 + $0x78] sm:$0xff]
  %v3756 = vld [vmem:[%s3739 + $0x80] sm:$0xff]
  %v3757 = vld [vmem:[%s3739 + $0x88] sm:$0xff]
  %v3758 = vld [vmem:[%s3739 + $0x90] sm:$0xff]
  %v3759 = vld [vmem:[%s3739 + $0x98] sm:$0xff]
  %v3760 = vld [vmem:[%s3739 + $0xa0] sm:$0xff]
  %v3761 = vld [vmem:[%s3739 + $0xa8] sm:$0xff]
  %v3762 = vld [vmem:[%s3739 + $0xb0] sm:$0xff]
  %v3763 = vld [vmem:[%s3739 + $0xb8] sm:$0xff]
  %v3764 = vld [vmem:[%s3739 + $0xc0] sm:$0xff]
  %v3765 = vld [vmem:[%s3739 + $0xc8] sm:$0xff]
  %v3766 = vld [vmem:[%s3739 + $0xd0] sm:$0xff]
  %v3767 = vld [vmem:[%s3739 + $0xd8] sm:$0xff]
  %v3768 = vld [vmem:[%s3739 + $0xe0] sm:$0xff]
  %v3769 = vld [vmem:[%s3739 + $0xe8] sm:$0xff]
  %v3770 = vld [vmem:[%s3739 + $0xf0] sm:$0xff]
  %v3771 = vld [vmem:[%s3739 + $0xf8] sm:$0xff]
  %v3804 = vunpack.c.l.b16 %v3740
  %v3805 = vunpack.c.h.b16 %v3740
  %v3806 = vunpack.c.l.b16 %v3741
  %v3807 = vunpack.c.h.b16 %v3741
  %v3808 = vunpack.c.l.b16 %v3742
  %v3809 = vunpack.c.h.b16 %v3742
  %v3810 = vunpack.c.l.b16 %v3743
  %v3811 = vunpack.c.h.b16 %v3743
  %v3812 = vunpack.c.l.b16 %v3744
  %v3813 = vunpack.c.h.b16 %v3744
  %v3814 = vunpack.c.l.b16 %v3745
  %v3815 = vunpack.c.h.b16 %v3745
  %v3816 = vunpack.c.l.b16 %v3746
  %v3817 = vunpack.c.h.b16 %v3746
  %v3818 = vunpack.c.l.b16 %v3747
  %v3819 = vunpack.c.h.b16 %v3747
  %v3820 = vunpack.c.l.b16 %v3748
  %v3821 = vunpack.c.h.b16 %v3748
  %v3822 = vunpack.c.l.b16 %v3749
  %v3823 = vunpack.c.h.b16 %v3749
  %v3824 = vunpack.c.l.b16 %v3750
  %v3825 = vunpack.c.h.b16 %v3750
  %v3826 = vunpack.c.l.b16 %v3751
  %v3827 = vunpack.c.h.b16 %v3751
  %v3828 = vunpack.c.l.b16 %v3752
  %v3829 = vunpack.c.h.b16 %v3752
  %v3830 = vunpack.c.l.b16 %v3753
  %v3831 = vunpack.c.h.b16 %v3753
  %v3832 = vunpack.c.l.b16 %v3754
  %v3833 = vunpack.c.h.b16 %v3754
  %v3834 = vunpack.c.l.b16 %v3755
  %v3835 = vunpack.c.h.b16 %v3755
  %v3836 = vunpack.c.l.b16 %v3756
  %v3837 = vunpack.c.h.b16 %v3756
  %v3838 = vunpack.c.l.b16 %v3757
  %v3839 = vunpack.c.h.b16 %v3757
  %v3840 = vunpack.c.l.b16 %v3758
  %v3841 = vunpack.c.h.b16 %v3758
  %v3842 = vunpack.c.l.b16 %v3759
  %v3843 = vunpack.c.h.b16 %v3759
  %v3844 = vunpack.c.l.b16 %v3760
  %v3845 = vunpack.c.h.b16 %v3760
  %v3846 = vunpack.c.l.b16 %v3761
  %v3847 = vunpack.c.h.b16 %v3761
  %v3848 = vunpack.c.l.b16 %v3762
  %v3849 = vunpack.c.h.b16 %v3762
  %v3850 = vunpack.c.l.b16 %v3763
  %v3851 = vunpack.c.h.b16 %v3763
  %v3852 = vunpack.c.l.b16 %v3764
  %v3853 = vunpack.c.h.b16 %v3764
  %v3854 = vunpack.c.l.b16 %v3765
  %v3855 = vunpack.c.h.b16 %v3765
  %v3856 = vunpack.c.l.b16 %v3766
  %v3857 = vunpack.c.h.b16 %v3766
  %v3858 = vunpack.c.l.b16 %v3767
  %v3859 = vunpack.c.h.b16 %v3767
  %v3860 = vunpack.c.l.b16 %v3768
  %v3861 = vunpack.c.h.b16 %v3768
  %v3862 = vunpack.c.l.b16 %v3769
  %v3863 = vunpack.c.h.b16 %v3769
  %v3864 = vunpack.c.l.b16 %v3770
  %v3865 = vunpack.c.h.b16 %v3770
  %v3866 = vunpack.c.l.b16 %v3771
  %v3867 = vunpack.c.h.b16 %v3771
  %v3868 = vpack.c.b16 %v3806, %v3804
  %v3869 = vpack.c.b16 %v3807, %v3805
  %v3870 = vpack.c.b16 %v3810, %v3808
  %v3871 = vpack.c.b16 %v3811, %v3809
  %v3872 = vpack.c.b16 %v3814, %v3812
  %v3873 = vpack.c.b16 %v3815, %v3813
  %v3874 = vpack.c.b16 %v3818, %v3816
  %v3875 = vpack.c.b16 %v3819, %v3817
  %v3876 = vpack.c.b16 %v3822, %v3820
  %v3877 = vpack.c.b16 %v3823, %v3821
  %v3878 = vpack.c.b16 %v3826, %v3824
  %v3879 = vpack.c.b16 %v3827, %v3825
  %v3880 = vpack.c.b16 %v3830, %v3828
  %v3881 = vpack.c.b16 %v3831, %v3829
  %v3882 = vpack.c.b16 %v3834, %v3832
  %v3883 = vpack.c.b16 %v3835, %v3833
  %v3884 = vpack.c.b16 %v3838, %v3836
  %v3885 = vpack.c.b16 %v3839, %v3837
  %v3886 = vpack.c.b16 %v3842, %v3840
  %v3887 = vpack.c.b16 %v3843, %v3841
  %v3888 = vpack.c.b16 %v3846, %v3844
  %v3889 = vpack.c.b16 %v3847, %v3845
  %v3890 = vpack.c.b16 %v3850, %v3848
  %v3891 = vpack.c.b16 %v3851, %v3849
  %v3892 = vpack.c.b16 %v3854, %v3852
  %v3893 = vpack.c.b16 %v3855, %v3853
  %v3894 = vpack.c.b16 %v3858, %v3856
  %v3895 = vpack.c.b16 %v3859, %v3857
  %v3896 = vpack.c.b16 %v3862, %v3860
  %v3897 = vpack.c.b16 %v3863, %v3861
  %v3898 = vpack.c.b16 %v3866, %v3864
  %v3899 = vpack.c.b16 %v3867, %v3865
  %3932 = vmatprep.subr.bf16.mxu0 %v3883
  %3933 = vmatpush1.bf16.msra.mxu0 %v3882
  %3934 = vmatprep.subr.bf16.mxu0 %v3881
  %3935 = vmatpush1.bf16.msra.mxu0 %v3880
  %3936 = vmatprep.subr.bf16.mxu0 %v3879
  %3937 = vmatpush1.bf16.msra.mxu0 %v3878
  %3938 = vmatprep.subr.bf16.mxu0 %v3877
  %3939 = vmatpush1.bf16.msra.mxu0 %v3876
  %3940 = vmatprep.subr.bf16.mxu0 %v3875
  %3941 = vmatpush1.bf16.msra.mxu0 %v3874
  %3942 = vmatprep.subr.bf16.mxu0 %v3873
  %3943 = vmatpush1.bf16.msra.mxu0 %v3872
  %3944 = vmatprep.subr.bf16.mxu0 %v3871
  %3945 = vmatpush1.bf16.msra.mxu0 %v3870
  %3946 = vmatprep.subr.bf16.mxu0 %v3869
  %3947 = vmatpush1.bf16.msra.mxu0 %v3868
  %3948 = vmatprep.subr.bf16.mxu0 %v3899
  %3949 = vmatpush2.bf16.msra.mxu0 %v3898
  %3950 = vmatprep.subr.bf16.mxu0 %v3897
  %3951 = vmatpush2.bf16.msra.mxu0 %v3896
  %3952 = vmatprep.subr.bf16.mxu0 %v3895
  %3953 = vmatpush2.bf16.msra.mxu0 %v3894
  %3954 = vmatprep.subr.bf16.mxu0 %v3893
  %3955 = vmatpush2.bf16.msra.mxu0 %v3892
  %3956 = vmatprep.subr.bf16.mxu0 %v3891
  %3957 = vmatpush2.bf16.msra.mxu0 %v3890
  %3958 = vmatprep.subr.bf16.mxu0 %v3889
  %3959 = vmatpush2.bf16.msra.mxu0 %v3888
  %3960 = vmatprep.subr.bf16.mxu0 %v3887
  %3961 = vmatpush2.bf16.msra.mxu0 %v3886
  %3962 = vmatprep.subr.bf16.mxu0 %v3885
  %3963 = vmatpush2.bf16.msra.mxu0 %v3884
  %3964 = vmatprep.mubr.bf16.mxu0 %v3738
  %3965 = vmatmul.mubr.bf16.gmra.mxu0 %v3737
  %v3966 = vpop.f32.mrf.mxu0
  %v3967 = vadd.f32 0.0, %v3966
  %v3968 = vpop.f32.mrf.mxu0
  %v3969 = vadd.f32 0.0, %v3968
  %v3970 = vpop.f32.mrf.mxu0
  %v3971 = vadd.f32 0.0, %v3970
  %v3972 = vpop.f32.mrf.mxu0
  %v3973 = vadd.f32 0.0, %v3972
  %3974 = vdwg.mxu0
  %v3975 = vadd.f32 %v3675, %v3967
  %v3976 = vadd.f32 %v3677, %v3969
  %v3977 = vadd.f32 %v3679, %v3971
  %v3978 = vadd.f32 %v3681, %v3973
  %s3979 = scalar_lea.vmem %s10, 24
  %v3980 = vld [vmem:[%s3979] sm:$0xf]
  %v3981 = vld [vmem:[%s3979 + $0x4] sm:$0xf]
  %v3984 = vunpack.c.l.b16 %v3980
  %v3985 = vunpack.c.l.b16 %v3981
  %v3986 = vpack.c.b16 %v3985, %v3984
  %v3988 = vsel %vm3107, %v3986, 0
  %3990 = vmatprep.subr.bf16.mxu0 0
  %3991 = vmatpush1.bf16.msra.mxu0 0
  %3992 = vmatprep.subr.bf16.mxu0 0
  %3993 = vmatpush1.bf16.msra.mxu0 0
  %3994 = vmatprep.subr.bf16.mxu0 0
  %3995 = vmatpush1.bf16.msra.mxu0 0
  %3996 = vmatprep.subr.bf16.mxu0 0
  %3997 = vmatpush1.bf16.msra.mxu0 0
  %3998 = vmatprep.subr.bf16.mxu0 0
  %3999 = vmatpush1.bf16.msra.mxu0 0
  %4000 = vmatprep.subr.bf16.mxu0 0
  %4001 = vmatpush1.bf16.msra.mxu0 0
  %4002 = vmatprep.subr.bf16.mxu0 %v3099
  %4003 = vmatpush1.bf16.msra.mxu0 %v3098
  %4004 = vmatprep.subr.bf16.mxu0 %v3097
  %4005 = vmatpush1.bf16.msra.mxu0 %v3096
  %4006 = vmatprep.subr.bf16.mxu0 0
  %4007 = vmatpush2.bf16.msra.mxu0 0
  %4008 = vmatprep.subr.bf16.mxu0 0
  %4009 = vmatpush2.bf16.msra.mxu0 0
  %4010 = vmatprep.subr.bf16.mxu0 0
  %4011 = vmatpush2.bf16.msra.mxu0 0
  %4012 = vmatprep.subr.bf16.mxu0 0
  %4013 = vmatpush2.bf16.msra.mxu0 0
  %4014 = vmatprep.subr.bf16.mxu0 0
  %4015 = vmatpush2.bf16.msra.mxu0 0
  %4016 = vmatprep.subr.bf16.mxu0 0
  %4017 = vmatpush2.bf16.msra.mxu0 0
  %4018 = vmatprep.subr.bf16.mxu0 0
  %4019 = vmatpush2.bf16.msra.mxu0 0
  %4020 = vmatprep.subr.bf16.mxu0 0
  %4021 = vmatpush2.bf16.msra.mxu0 0
  %4022 = vmatprep.mubr.bf16.mxu0 0
  %4023 = vmatmul.mubr.bf16.gmra.mxu0 %v3988
  %v4024 = vpop.f32.mrf.mxu0
  %v4025 = vadd.f32 0.0, %v4024
  %v4026 = vpop.f32.mrf.mxu0
  %v4027 = vadd.f32 0.0, %v4026
  %v4028 = vpop.f32.mrf.mxu0
  %v4029 = vadd.f32 0.0, %v4028
  %v4030 = vpop.f32.mrf.mxu0
  %v4031 = vadd.f32 0.0, %v4030
  %4032 = vdwg.mxu0
  %v4033 = vpack.c.bf16 %v4029, %v4025
  %v4034 = vpack.c.bf16 %v4031, %v4027
  %s4035 = scalar_lea.vmem %s11, 768
  %v4036 = vld [vmem:[%s4035] sm:$0xff]
  %v4037 = vld [vmem:[%s4035 + $0x8] sm:$0xff]
  %v4038 = vld [vmem:[%s4035 + $0x10] sm:$0xff]
  %v4039 = vld [vmem:[%s4035 + $0x18] sm:$0xff]
  %v4040 = vld [vmem:[%s4035 + $0x20] sm:$0xff]
  %v4041 = vld [vmem:[%s4035 + $0x28] sm:$0xff]
  %v4042 = vld [vmem:[%s4035 + $0x30] sm:$0xff]
  %v4043 = vld [vmem:[%s4035 + $0x38] sm:$0xff]
  %v4044 = vld [vmem:[%s4035 + $0x40] sm:$0xff]
  %v4045 = vld [vmem:[%s4035 + $0x48] sm:$0xff]
  %v4046 = vld [vmem:[%s4035 + $0x50] sm:$0xff]
  %v4047 = vld [vmem:[%s4035 + $0x58] sm:$0xff]
  %v4048 = vld [vmem:[%s4035 + $0x60] sm:$0xff]
  %v4049 = vld [vmem:[%s4035 + $0x68] sm:$0xff]
  %v4050 = vld [vmem:[%s4035 + $0x70] sm:$0xff]
  %v4051 = vld [vmem:[%s4035 + $0x78] sm:$0xff]
  %v4052 = vld [vmem:[%s4035 + $0x80] sm:$0xff]
  %v4053 = vld [vmem:[%s4035 + $0x88] sm:$0xff]
  %v4054 = vld [vmem:[%s4035 + $0x90] sm:$0xff]
  %v4055 = vld [vmem:[%s4035 + $0x98] sm:$0xff]
  %v4056 = vld [vmem:[%s4035 + $0xa0] sm:$0xff]
  %v4057 = vld [vmem:[%s4035 + $0xa8] sm:$0xff]
  %v4058 = vld [vmem:[%s4035 + $0xb0] sm:$0xff]
  %v4059 = vld [vmem:[%s4035 + $0xb8] sm:$0xff]
  %v4060 = vld [vmem:[%s4035 + $0xc0] sm:$0xff]
  %v4061 = vld [vmem:[%s4035 + $0xc8] sm:$0xff]
  %v4062 = vld [vmem:[%s4035 + $0xd0] sm:$0xff]
  %v4063 = vld [vmem:[%s4035 + $0xd8] sm:$0xff]
  %v4064 = vld [vmem:[%s4035 + $0xe0] sm:$0xff]
  %v4065 = vld [vmem:[%s4035 + $0xe8] sm:$0xff]
  %v4066 = vld [vmem:[%s4035 + $0xf0] sm:$0xff]
  %v4067 = vld [vmem:[%s4035 + $0xf8] sm:$0xff]
  %v4100 = vunpack.c.l.b16 %v4036
  %v4101 = vunpack.c.h.b16 %v4036
  %v4102 = vunpack.c.l.b16 %v4037
  %v4103 = vunpack.c.h.b16 %v4037
  %v4104 = vunpack.c.l.b16 %v4038
  %v4105 = vunpack.c.h.b16 %v4038
  %v4106 = vunpack.c.l.b16 %v4039
  %v4107 = vunpack.c.h.b16 %v4039
  %v4108 = vunpack.c.l.b16 %v4040
  %v4109 = vunpack.c.h.b16 %v4040
  %v4110 = vunpack.c.l.b16 %v4041
  %v4111 = vunpack.c.h.b16 %v4041
  %v4112 = vunpack.c.l.b16 %v4042
  %v4113 = vunpack.c.h.b16 %v4042
  %v4114 = vunpack.c.l.b16 %v4043
  %v4115 = vunpack.c.h.b16 %v4043
  %v4116 = vunpack.c.l.b16 %v4044
  %v4117 = vunpack.c.h.b16 %v4044
  %v4118 = vunpack.c.l.b16 %v4045
  %v4119 = vunpack.c.h.b16 %v4045
  %v4120 = vunpack.c.l.b16 %v4046
  %v4121 = vunpack.c.h.b16 %v4046
  %v4122 = vunpack.c.l.b16 %v4047
  %v4123 = vunpack.c.h.b16 %v4047
  %v4124 = vunpack.c.l.b16 %v4048
  %v4125 = vunpack.c.h.b16 %v4048
  %v4126 = vunpack.c.l.b16 %v4049
  %v4127 = vunpack.c.h.b16 %v4049
  %v4128 = vunpack.c.l.b16 %v4050
  %v4129 = vunpack.c.h.b16 %v4050
  %v4130 = vunpack.c.l.b16 %v4051
  %v4131 = vunpack.c.h.b16 %v4051
  %v4132 = vunpack.c.l.b16 %v4052
  %v4133 = vunpack.c.h.b16 %v4052
  %v4134 = vunpack.c.l.b16 %v4053
  %v4135 = vunpack.c.h.b16 %v4053
  %v4136 = vunpack.c.l.b16 %v4054
  %v4137 = vunpack.c.h.b16 %v4054
  %v4138 = vunpack.c.l.b16 %v4055
  %v4139 = vunpack.c.h.b16 %v4055
  %v4140 = vunpack.c.l.b16 %v4056
  %v4141 = vunpack.c.h.b16 %v4056
  %v4142 = vunpack.c.l.b16 %v4057
  %v4143 = vunpack.c.h.b16 %v4057
  %v4144 = vunpack.c.l.b16 %v4058
  %v4145 = vunpack.c.h.b16 %v4058
  %v4146 = vunpack.c.l.b16 %v4059
  %v4147 = vunpack.c.h.b16 %v4059
  %v4148 = vunpack.c.l.b16 %v4060
  %v4149 = vunpack.c.h.b16 %v4060
  %v4150 = vunpack.c.l.b16 %v4061
  %v4151 = vunpack.c.h.b16 %v4061
  %v4152 = vunpack.c.l.b16 %v4062
  %v4153 = vunpack.c.h.b16 %v4062
  %v4154 = vunpack.c.l.b16 %v4063
  %v4155 = vunpack.c.h.b16 %v4063
  %v4156 = vunpack.c.l.b16 %v4064
  %v4157 = vunpack.c.h.b16 %v4064
  %v4158 = vunpack.c.l.b16 %v4065
  %v4159 = vunpack.c.h.b16 %v4065
  %v4160 = vunpack.c.l.b16 %v4066
  %v4161 = vunpack.c.h.b16 %v4066
  %v4162 = vunpack.c.l.b16 %v4067
  %v4163 = vunpack.c.h.b16 %v4067
  %v4164 = vpack.c.b16 %v4102, %v4100
  %v4165 = vpack.c.b16 %v4103, %v4101
  %v4166 = vpack.c.b16 %v4106, %v4104
  %v4167 = vpack.c.b16 %v4107, %v4105
  %v4168 = vpack.c.b16 %v4110, %v4108
  %v4169 = vpack.c.b16 %v4111, %v4109
  %v4170 = vpack.c.b16 %v4114, %v4112
  %v4171 = vpack.c.b16 %v4115, %v4113
  %v4172 = vpack.c.b16 %v4118, %v4116
  %v4173 = vpack.c.b16 %v4119, %v4117
  %v4174 = vpack.c.b16 %v4122, %v4120
  %v4175 = vpack.c.b16 %v4123, %v4121
  %v4176 = vpack.c.b16 %v4126, %v4124
  %v4177 = vpack.c.b16 %v4127, %v4125
  %v4178 = vpack.c.b16 %v4130, %v4128
  %v4179 = vpack.c.b16 %v4131, %v4129
  %v4180 = vpack.c.b16 %v4134, %v4132
  %v4181 = vpack.c.b16 %v4135, %v4133
  %v4182 = vpack.c.b16 %v4138, %v4136
  %v4183 = vpack.c.b16 %v4139, %v4137
  %v4184 = vpack.c.b16 %v4142, %v4140
  %v4185 = vpack.c.b16 %v4143, %v4141
  %v4186 = vpack.c.b16 %v4146, %v4144
  %v4187 = vpack.c.b16 %v4147, %v4145
  %v4188 = vpack.c.b16 %v4150, %v4148
  %v4189 = vpack.c.b16 %v4151, %v4149
  %v4190 = vpack.c.b16 %v4154, %v4152
  %v4191 = vpack.c.b16 %v4155, %v4153
  %v4192 = vpack.c.b16 %v4158, %v4156
  %v4193 = vpack.c.b16 %v4159, %v4157
  %v4194 = vpack.c.b16 %v4162, %v4160
  %v4195 = vpack.c.b16 %v4163, %v4161
  %4228 = vmatprep.subr.bf16.mxu0 %v4179
  %4229 = vmatpush1.bf16.msra.mxu0 %v4178
  %4230 = vmatprep.subr.bf16.mxu0 %v4177
  %4231 = vmatpush1.bf16.msra.mxu0 %v4176
  %4232 = vmatprep.subr.bf16.mxu0 %v4175
  %4233 = vmatpush1.bf16.msra.mxu0 %v4174
  %4234 = vmatprep.subr.bf16.mxu0 %v4173
  %4235 = vmatpush1.bf16.msra.mxu0 %v4172
  %4236 = vmatprep.subr.bf16.mxu0 %v4171
  %4237 = vmatpush1.bf16.msra.mxu0 %v4170
  %4238 = vmatprep.subr.bf16.mxu0 %v4169
  %4239 = vmatpush1.bf16.msra.mxu0 %v4168
  %4240 = vmatprep.subr.bf16.mxu0 %v4167
  %4241 = vmatpush1.bf16.msra.mxu0 %v4166
  %4242 = vmatprep.subr.bf16.mxu0 %v4165
  %4243 = vmatpush1.bf16.msra.mxu0 %v4164
  %4244 = vmatprep.subr.bf16.mxu0 %v4195
  %4245 = vmatpush2.bf16.msra.mxu0 %v4194
  %4246 = vmatprep.subr.bf16.mxu0 %v4193
  %4247 = vmatpush2.bf16.msra.mxu0 %v4192
  %4248 = vmatprep.subr.bf16.mxu0 %v4191
  %4249 = vmatpush2.bf16.msra.mxu0 %v4190
  %4250 = vmatprep.subr.bf16.mxu0 %v4189
  %4251 = vmatpush2.bf16.msra.mxu0 %v4188
  %4252 = vmatprep.subr.bf16.mxu0 %v4187
  %4253 = vmatpush2.bf16.msra.mxu0 %v4186
  %4254 = vmatprep.subr.bf16.mxu0 %v4185
  %4255 = vmatpush2.bf16.msra.mxu0 %v4184
  %4256 = vmatprep.subr.bf16.mxu0 %v4183
  %4257 = vmatpush2.bf16.msra.mxu0 %v4182
  %4258 = vmatprep.subr.bf16.mxu0 %v4181
  %4259 = vmatpush2.bf16.msra.mxu0 %v4180
  %4260 = vmatprep.mubr.bf16.mxu0 %v4034
  %4261 = vmatmul.mubr.bf16.gmra.mxu0 %v4033
  %v4262 = vpop.f32.mrf.mxu0
  %v4263 = vadd.f32 0.0, %v4262
  %v4264 = vpop.f32.mrf.mxu0
  %v4265 = vadd.f32 0.0, %v4264
  %v4266 = vpop.f32.mrf.mxu0
  %v4267 = vadd.f32 0.0, %v4266
  %v4268 = vpop.f32.mrf.mxu0
  %v4269 = vadd.f32 0.0, %v4268
  %4270 = vdwg.mxu0
  %v4271 = vadd.f32 %v3975, %v4263
  %v4272 = vadd.f32 %v3976, %v4265
  %v4273 = vadd.f32 %v3977, %v4267
  %v4274 = vadd.f32 %v3978, %v4269
  %v4275 = vadd.f32 %v4271, %v4273
  %v4276 = vrot.slane %v4275, 4
  %v4277 = vadd.f32 %v4275, %v4276
  %v4278 = vrot.slane %v4277, 2
  %v4279 = vadd.f32 %v4277, %v4278
  %v4280 = vrot.slane %v4279, 1
  %v4281 = vadd.f32 %v4279, %v4280
  %v4282 = vadd.f32 %v4272, %v4274
  %v4283 = vrot.slane %v4282, 4
  %v4284 = vadd.f32 %v4282, %v4283
  %v4285 = vrot.slane %v4284, 2
  %v4286 = vadd.f32 %v4284, %v4285
  %v4287 = vrot.slane %v4286, 1
  %v4288 = vadd.f32 %v4286, %v4287
  %v4289 = vmul.f32 %v4271, %v4271
  %v4290 = vmul.f32 %v4272, %v4272
  %v4291 = vmul.f32 %v4273, %v4273
  %v4292 = vmul.f32 %v4274, %v4274
  %v4293 = vadd.f32 %v4289, %v4291
  %v4294 = vrot.slane %v4293, 4
  %v4295 = vadd.f32 %v4293, %v4294
  %v4296 = vrot.slane %v4295, 2
  %v4297 = vadd.f32 %v4295, %v4296
  %v4298 = vrot.slane %v4297, 1
  %v4299 = vadd.f32 %v4297, %v4298
  %v4300 = vadd.f32 %v4290, %v4292
  %v4301 = vrot.slane %v4300, 4
  %v4302 = vadd.f32 %v4300, %v4301
  %v4303 = vrot.slane %v4302, 2
  %v4304 = vadd.f32 %v4302, %v4303
  %v4305 = vrot.slane %v4304, 1
  %v4306 = vadd.f32 %v4304, %v4305
  %v4307 = vld [vmem:[%s14] sm:$0xff]
  %v4308 = vld [vmem:[%s14 + $0x8] sm:$0xff]
  %v4309 = vld [vmem:[%s14 + $0x10] sm:$0xff]
  %v4310 = vld [vmem:[%s14 + $0x18] sm:$0xff]
  %v4311 = vld [vmem:[%s14 + $0x20] sm:$0xff]
  %v4312 = vld [vmem:[%s14 + $0x28] sm:$0xff]
  %v4313 = vld [vmem:[%s14 + $0x30] sm:$0xff]
  %v4314 = vld [vmem:[%s14 + $0x38] sm:$0xff]
  %v4315 = vld [vmem:[%s14 + $0x40] sm:$0xff]
  %v4316 = vld [vmem:[%s14 + $0x48] sm:$0xff]
  %v4317 = vld [vmem:[%s14 + $0x50] sm:$0xff]
  %v4318 = vld [vmem:[%s14 + $0x58] sm:$0xff]
  %v4319 = vld [vmem:[%s14 + $0x60] sm:$0xff]
  %v4320 = vld [vmem:[%s14 + $0x68] sm:$0xff]
  %v4321 = vld [vmem:[%s14 + $0x70] sm:$0xff]
  %v4322 = vld [vmem:[%s14 + $0x78] sm:$0xff]
  %v4323 = vld [vmem:[%s14 + $0x80] sm:$0xff]
  %v4324 = vld [vmem:[%s14 + $0x88] sm:$0xff]
  %v4325 = vld [vmem:[%s14 + $0x90] sm:$0xff]
  %v4326 = vld [vmem:[%s14 + $0x98] sm:$0xff]
  %v4327 = vld [vmem:[%s14 + $0xa0] sm:$0xff]
  %v4328 = vld [vmem:[%s14 + $0xa8] sm:$0xff]
  %v4329 = vld [vmem:[%s14 + $0xb0] sm:$0xff]
  %v4330 = vld [vmem:[%s14 + $0xb8] sm:$0xff]
  %v4331 = vld [vmem:[%s14 + $0xc0] sm:$0xff]
  %v4332 = vld [vmem:[%s14 + $0xc8] sm:$0xff]
  %v4333 = vld [vmem:[%s14 + $0xd0] sm:$0xff]
  %v4334 = vld [vmem:[%s14 + $0xd8] sm:$0xff]
  %v4335 = vld [vmem:[%s14 + $0xe0] sm:$0xff]
  %v4336 = vld [vmem:[%s14 + $0xe8] sm:$0xff]
  %v4337 = vld [vmem:[%s14 + $0xf0] sm:$0xff]
  %v4338 = vld [vmem:[%s14 + $0xf8] sm:$0xff]
  %4339 = vmatprep.subr.mxu0 0.0
  %4340 = vmatpush1.msra.mxu0 %v4322
  %4341 = vmatprep.subr.mxu0 0.0
  %4342 = vmatpush1.msra.mxu0 %v4321
  %4343 = vmatprep.subr.mxu0 0.0
  %4344 = vmatpush1.msra.mxu0 %v4320
  %4345 = vmatprep.subr.mxu0 0.0
  %4346 = vmatpush1.msra.mxu0 %v4319
  %4347 = vmatprep.subr.mxu0 0.0
  %4348 = vmatpush1.msra.mxu0 %v4318
  %4349 = vmatprep.subr.mxu0 0.0
  %4350 = vmatpush1.msra.mxu0 %v4317
  %4351 = vmatprep.subr.mxu0 0.0
  %4352 = vmatpush1.msra.mxu0 %v4316
  %4353 = vmatprep.subr.mxu0 0.0
  %4354 = vmatpush1.msra.mxu0 %v4315
  %4355 = vmatprep.subr.mxu0 0.0
  %4356 = vmatpush1.msra.mxu0 %v4314
  %4357 = vmatprep.subr.mxu0 0.0
  %4358 = vmatpush1.msra.mxu0 %v4313
  %4359 = vmatprep.subr.mxu0 0.0
  %4360 = vmatpush1.msra.mxu0 %v4312
  %4361 = vmatprep.subr.mxu0 0.0
  %4362 = vmatpush1.msra.mxu0 %v4311
  %4363 = vmatprep.subr.mxu0 0.0
  %4364 = vmatpush1.msra.mxu0 %v4310
  %4365 = vmatprep.subr.mxu0 0.0
  %4366 = vmatpush1.msra.mxu0 %v4309
  %4367 = vmatprep.subr.mxu0 0.0
  %4368 = vmatpush1.msra.mxu0 %v4308
  %4369 = vmatprep.subr.mxu0 0.0
  %4370 = vmatpush1.msra.mxu0 %v4307
  %4371 = vmatprep.subr.mxu0 0.0
  %4372 = vmatpush2.msra.mxu0 %v4338
  %4373 = vmatprep.subr.mxu0 0.0
  %4374 = vmatpush2.msra.mxu0 %v4337
  %4375 = vmatprep.subr.mxu0 0.0
  %4376 = vmatpush2.msra.mxu0 %v4336
  %4377 = vmatprep.subr.mxu0 0.0
  %4378 = vmatpush2.msra.mxu0 %v4335
  %4379 = vmatprep.subr.mxu0 0.0
  %4380 = vmatpush2.msra.mxu0 %v4334
  %4381 = vmatprep.subr.mxu0 0.0
  %4382 = vmatpush2.msra.mxu0 %v4333
  %4383 = vmatprep.subr.mxu0 0.0
  %4384 = vmatpush2.msra.mxu0 %v4332
  %4385 = vmatprep.subr.mxu0 0.0
  %4386 = vmatpush2.msra.mxu0 %v4331
  %4387 = vmatprep.subr.mxu0 0.0
  %4388 = vmatpush2.msra.mxu0 %v4330
  %4389 = vmatprep.subr.mxu0 0.0
  %4390 = vmatpush2.msra.mxu0 %v4329
  %4391 = vmatprep.subr.mxu0 0.0
  %4392 = vmatpush2.msra.mxu0 %v4328
  %4393 = vmatprep.subr.mxu0 0.0
  %4394 = vmatpush2.msra.mxu0 %v4327
  %4395 = vmatprep.subr.mxu0 0.0
  %4396 = vmatpush2.msra.mxu0 %v4326
  %4397 = vmatprep.subr.mxu0 0.0
  %4398 = vmatpush2.msra.mxu0 %v4325
  %4399 = vmatprep.subr.mxu0 0.0
  %4400 = vmatpush2.msra.mxu0 %v4324
  %4401 = vmatprep.subr.mxu0 0.0
  %4402 = vmatpush2.msra.mxu0 %v4323
  %4403 = vmatprep.mubr.f32.mxu0 %v4288
  %4404 = vmatmul.mubr.f32.gmra.mxu0 %v4281
  %v4405 = vpop.f32.mrf.mxu0
  %v4406 = vadd.f32 0.0, %v4405
  %v4407 = vpop.f32.mrf.mxu0
  %4408 = vdwg.mxu0
  %4409 = vmatprep.subr.mxu0 0.0
  %4410 = vmatpush1.msra.mxu0 %v4322
  %4411 = vmatprep.subr.mxu0 0.0
  %4412 = vmatpush1.msra.mxu0 %v4321
  %4413 = vmatprep.subr.mxu0 0.0
  %4414 = vmatpush1.msra.mxu0 %v4320
  %4415 = vmatprep.subr.mxu0 0.0
  %4416 = vmatpush1.msra.mxu0 %v4319
  %4417 = vmatprep.subr.mxu0 0.0
  %4418 = vmatpush1.msra.mxu0 %v4318
  %4419 = vmatprep.subr.mxu0 0.0
  %4420 = vmatpush1.msra.mxu0 %v4317
  %4421 = vmatprep.subr.mxu0 0.0
  %4422 = vmatpush1.msra.mxu0 %v4316
  %4423 = vmatprep.subr.mxu0 0.0
  %4424 = vmatpush1.msra.mxu0 %v4315
  %4425 = vmatprep.subr.mxu0 0.0
  %4426 = vmatpush1.msra.mxu0 %v4314
  %4427 = vmatprep.subr.mxu0 0.0
  %4428 = vmatpush1.msra.mxu0 %v4313
  %4429 = vmatprep.subr.mxu0 0.0
  %4430 = vmatpush1.msra.mxu0 %v4312
  %4431 = vmatprep.subr.mxu0 0.0
  %4432 = vmatpush1.msra.mxu0 %v4311
  %4433 = vmatprep.subr.mxu0 0.0
  %4434 = vmatpush1.msra.mxu0 %v4310
  %4435 = vmatprep.subr.mxu0 0.0
  %4436 = vmatpush1.msra.mxu0 %v4309
  %4437 = vmatprep.subr.mxu0 0.0
  %4438 = vmatpush1.msra.mxu0 %v4308
  %4439 = vmatprep.subr.mxu0 0.0
  %4440 = vmatpush1.msra.mxu0 %v4307
  %4441 = vmatprep.subr.mxu0 0.0
  %4442 = vmatpush2.msra.mxu0 %v4338
  %4443 = vmatprep.subr.mxu0 0.0
  %4444 = vmatpush2.msra.mxu0 %v4337
  %4445 = vmatprep.subr.mxu0 0.0
  %4446 = vmatpush2.msra.mxu0 %v4336
  %4447 = vmatprep.subr.mxu0 0.0
  %4448 = vmatpush2.msra.mxu0 %v4335
  %4449 = vmatprep.subr.mxu0 0.0
  %4450 = vmatpush2.msra.mxu0 %v4334
  %4451 = vmatprep.subr.mxu0 0.0
  %4452 = vmatpush2.msra.mxu0 %v4333
  %4453 = vmatprep.subr.mxu0 0.0
  %4454 = vmatpush2.msra.mxu0 %v4332
  %4455 = vmatprep.subr.mxu0 0.0
  %4456 = vmatpush2.msra.mxu0 %v4331
  %4457 = vmatprep.subr.mxu0 0.0
  %4458 = vmatpush2.msra.mxu0 %v4330
  %4459 = vmatprep.subr.mxu0 0.0
  %4460 = vmatpush2.msra.mxu0 %v4329
  %4461 = vmatprep.subr.mxu0 0.0
  %4462 = vmatpush2.msra.mxu0 %v4328
  %4463 = vmatprep.subr.mxu0 0.0
  %4464 = vmatpush2.msra.mxu0 %v4327
  %4465 = vmatprep.subr.mxu0 0.0
  %4466 = vmatpush2.msra.mxu0 %v4326
  %4467 = vmatprep.subr.mxu0 0.0
  %4468 = vmatpush2.msra.mxu0 %v4325
  %4469 = vmatprep.subr.mxu0 0.0
  %4470 = vmatpush2.msra.mxu0 %v4324
  %4471 = vmatprep.subr.mxu0 0.0
  %4472 = vmatpush2.msra.mxu0 %v4323
  %4473 = vmatprep.mubr.f32.mxu0 %v4306
  %4474 = vmatmul.mubr.f32.gmra.mxu0 %v4299
  %v4475 = vpop.f32.mrf.mxu0
  %v4476 = vadd.f32 0.0, %v4475
  %v4477 = vpop.f32.mrf.mxu0
  %4478 = vdwg.mxu0
  %v4479 = vmul.f32 %v4406, 0.0078125
  %v4480 = vmul.f32 %v4476, 0.0078125
  %v4481 = vmul.f32 %v4479, %v4479
  %v4482 = vsub.f32 %v4480, %v4481
  %v4483 = vadd.f32 %v4482, 1e-05
  %v4484 = vrsqrt.pop %v4483
  %v4485 = vld [vmem:[%s12] sm:$0x1]
  %v4486 = vmul.f32 %v4485, %v4484
  %v4487 = vld [vmem:[%s13] sm:$0x1]
  %v4488 = vmul.f32 %v4479, %v4486
  %v4489 = vsub.f32 %v4487, %v4488
  %v4490 = vld [vmem:[%s15] sm:$0xff]
  %v4491 = vld [vmem:[%s15 + $0x8] sm:$0xff]
  %v4492 = vld [vmem:[%s15 + $0x10] sm:$0xff]
  %v4493 = vld [vmem:[%s15 + $0x18] sm:$0xff]
  %v4494 = vld [vmem:[%s15 + $0x20] sm:$0xff]
  %v4495 = vld [vmem:[%s15 + $0x28] sm:$0xff]
  %v4496 = vld [vmem:[%s15 + $0x30] sm:$0xff]
  %v4497 = vld [vmem:[%s15 + $0x38] sm:$0xff]
  %v4499 = vsel %vm3107, %v4486, 0
  %4501 = vmatprep.subr.mxu0 0.0
  %4502 = vmatpush1.msra.mxu0 0.0
  %4503 = vmatprep.subr.mxu0 0.0
  %4504 = vmatpush1.msra.mxu0 0.0
  %4505 = vmatprep.subr.mxu0 0.0
  %4506 = vmatpush1.msra.mxu0 0.0
  %4507 = vmatprep.subr.mxu0 0.0
  %4508 = vmatpush1.msra.mxu0 0.0
  %4509 = vmatprep.subr.mxu0 0.0
  %4510 = vmatpush1.msra.mxu0 0.0
  %4511 = vmatprep.subr.mxu0 0.0
  %4512 = vmatpush1.msra.mxu0 0.0
  %4513 = vmatprep.subr.mxu0 0.0
  %4514 = vmatpush1.msra.mxu0 0.0
  %4515 = vmatprep.subr.mxu0 0.0
  %4516 = vmatpush1.msra.mxu0 0.0
  %4517 = vmatprep.subr.mxu0 0.0
  %4518 = vmatpush1.msra.mxu0 0.0
  %4519 = vmatprep.subr.mxu0 0.0
  %4520 = vmatpush1.msra.mxu0 0.0
  %4521 = vmatprep.subr.mxu0 0.0
  %4522 = vmatpush1.msra.mxu0 0.0
  %4523 = vmatprep.subr.mxu0 0.0
  %4524 = vmatpush1.msra.mxu0 0.0
  %4525 = vmatprep.subr.mxu0 %v4497
  %4526 = vmatpush1.msra.mxu0 %v4496
  %4527 = vmatprep.subr.mxu0 %v4495
  %4528 = vmatpush1.msra.mxu0 %v4494
  %4529 = vmatprep.subr.mxu0 %v4493
  %4530 = vmatpush1.msra.mxu0 %v4492
  %4531 = vmatprep.subr.mxu0 %v4491
  %4532 = vmatpush1.msra.mxu0 %v4490
  %4533 = vmatprep.subr.mxu0 0.0
  %4534 = vmatpush2.msra.mxu0 0.0
  %4535 = vmatprep.subr.mxu0 0.0
  %4536 = vmatpush2.msra.mxu0 0.0
  %4537 = vmatprep.subr.mxu0 0.0
  %4538 = vmatpush2.msra.mxu0 0.0
  %4539 = vmatprep.subr.mxu0 0.0
  %4540 = vmatpush2.msra.mxu0 0.0
  %4541 = vmatprep.subr.mxu0 0.0
  %4542 = vmatpush2.msra.mxu0 0.0
  %4543 = vmatprep.subr.mxu0 0.0
  %4544 = vmatpush2.msra.mxu0 0.0
  %4545 = vmatprep.subr.mxu0 0.0
  %4546 = vmatpush2.msra.mxu0 0.0
  %4547 = vmatprep.subr.mxu0 0.0
  %4548 = vmatpush2.msra.mxu0 0.0
  %4549 = vmatprep.subr.mxu0 0.0
  %4550 = vmatpush2.msra.mxu0 0.0
  %4551 = vmatprep.subr.mxu0 0.0
  %4552 = vmatpush2.msra.mxu0 0.0
  %4553 = vmatprep.subr.mxu0 0.0
  %4554 = vmatpush2.msra.mxu0 0.0
  %4555 = vmatprep.subr.mxu0 0.0
  %4556 = vmatpush2.msra.mxu0 0.0
  %4557 = vmatprep.subr.mxu0 0.0
  %4558 = vmatpush2.msra.mxu0 0.0
  %4559 = vmatprep.subr.mxu0 0.0
  %4560 = vmatpush2.msra.mxu0 0.0
  %4561 = vmatprep.subr.mxu0 0.0
  %4562 = vmatpush2.msra.mxu0 0.0
  %4563 = vmatprep.subr.mxu0 0.0
  %4564 = vmatpush2.msra.mxu0 0.0
  %4565 = vmatprep.mubr.f32.mxu0 0.0
  %4566 = vmatmul.mubr.f32.gmra.mxu0 %v4499
  %v4567 = vpop.f32.mrf.mxu0
  %v4568 = vadd.f32 0.0, %v4567
  %v4569 = vpop.f32.mrf.mxu0
  %v4570 = vadd.f32 0.0, %v4569
  %4571 = vdwg.mxu0
  %v4573 = vsel %vm3107, %v4489, 0
  %4575 = vmatprep.subr.mxu0 0.0
  %4576 = vmatpush1.msra.mxu0 0.0
  %4577 = vmatprep.subr.mxu0 0.0
  %4578 = vmatpush1.msra.mxu0 0.0
  %4579 = vmatprep.subr.mxu0 0.0
  %4580 = vmatpush1.msra.mxu0 0.0
  %4581 = vmatprep.subr.mxu0 0.0
  %4582 = vmatpush1.msra.mxu0 0.0
  %4583 = vmatprep.subr.mxu0 0.0
  %4584 = vmatpush1.msra.mxu0 0.0
  %4585 = vmatprep.subr.mxu0 0.0
  %4586 = vmatpush1.msra.mxu0 0.0
  %4587 = vmatprep.subr.mxu0 0.0
  %4588 = vmatpush1.msra.mxu0 0.0
  %4589 = vmatprep.subr.mxu0 0.0
  %4590 = vmatpush1.msra.mxu0 0.0
  %4591 = vmatprep.subr.mxu0 0.0
  %4592 = vmatpush1.msra.mxu0 0.0
  %4593 = vmatprep.subr.mxu0 0.0
  %4594 = vmatpush1.msra.mxu0 0.0
  %4595 = vmatprep.subr.mxu0 0.0
  %4596 = vmatpush1.msra.mxu0 0.0
  %4597 = vmatprep.subr.mxu0 0.0
  %4598 = vmatpush1.msra.mxu0 0.0
  %4599 = vmatprep.subr.mxu0 %v4497
  %4600 = vmatpush1.msra.mxu0 %v4496
  %4601 = vmatprep.subr.mxu0 %v4495
  %4602 = vmatpush1.msra.mxu0 %v4494
  %4603 = vmatprep.subr.mxu0 %v4493
  %4604 = vmatpush1.msra.mxu0 %v4492
  %4605 = vmatprep.subr.mxu0 %v4491
  %4606 = vmatpush1.msra.mxu0 %v4490
  %4607 = vmatprep.subr.mxu0 0.0
  %4608 = vmatpush2.msra.mxu0 0.0
  %4609 = vmatprep.subr.mxu0 0.0
  %4610 = vmatpush2.msra.mxu0 0.0
  %4611 = vmatprep.subr.mxu0 0.0
  %4612 = vmatpush2.msra.mxu0 0.0
  %4613 = vmatprep.subr.mxu0 0.0
  %4614 = vmatpush2.msra.mxu0 0.0
  %4615 = vmatprep.subr.mxu0 0.0
  %4616 = vmatpush2.msra.mxu0 0.0
  %4617 = vmatprep.subr.mxu0 0.0
  %4618 = vmatpush2.msra.mxu0 0.0
  %4619 = vmatprep.subr.mxu0 0.0
  %4620 = vmatpush2.msra.mxu0 0.0
  %4621 = vmatprep.subr.mxu0 0.0
  %4622 = vmatpush2.msra.mxu0 0.0
  %4623 = vmatprep.subr.mxu0 0.0
  %4624 = vmatpush2.msra.mxu0 0.0
  %4625 = vmatprep.subr.mxu0 0.0
  %4626 = vmatpush2.msra.mxu0 0.0
  %4627 = vmatprep.subr.mxu0 0.0
  %4628 = vmatpush2.msra.mxu0 0.0
  %4629 = vmatprep.subr.mxu0 0.0
  %4630 = vmatpush2.msra.mxu0 0.0
  %4631 = vmatprep.subr.mxu0 0.0
  %4632 = vmatpush2.msra.mxu0 0.0
  %4633 = vmatprep.subr.mxu0 0.0
  %4634 = vmatpush2.msra.mxu0 0.0
  %4635 = vmatprep.subr.mxu0 0.0
  %4636 = vmatpush2.msra.mxu0 0.0
  %4637 = vmatprep.subr.mxu0 0.0
  %4638 = vmatpush2.msra.mxu0 0.0
  %4639 = vmatprep.mubr.f32.mxu0 0.0
  %4640 = vmatmul.mubr.f32.gmra.mxu0 %v4573
  %v4641 = vpop.f32.mrf.mxu0
  %v4642 = vadd.f32 0.0, %v4641
  %v4643 = vpop.f32.mrf.mxu0
  %v4644 = vadd.f32 0.0, %v4643
  %4645 = vdwg.mxu0
  %v4646 = vlaneseq
  %v4647 = vshrl.u32 %v4646, 7
  %v4648 = vsub.s32 0, %v4647
  %v4649 = vrot.slane %v4568, %v4648
  %v4650 = vlaneseq
  %v4651 = vshrl.u32 %v4650, 7
  %v4652 = vsub.s32 0, %v4651
  %v4653 = vrot.slane %v4570, %v4652
  %v4654 = vmul.f32 %v4271, %v4649
  %v4655 = vmul.f32 %v4272, %v4653
  %v4656 = vmul.f32 %v4273, %v4649
  %v4657 = vmul.f32 %v4274, %v4653
  %v4658 = vlaneseq
  %v4659 = vshrl.u32 %v4658, 7
  %v4660 = vsub.s32 0, %v4659
  %v4661 = vrot.slane %v4642, %v4660
  %v4662 = vlaneseq
  %v4663 = vshrl.u32 %v4662, 7
  %v4664 = vsub.s32 0, %v4663
  %v4665 = vrot.slane %v4644, %v4664
  %v4666 = vadd.f32 %v4654, %v4661
  %v4667 = vadd.f32 %v4655, %v4665
  %v4668 = vadd.f32 %v4656, %v4661
  %v4669 = vadd.f32 %v4657, %v4665
  %vm4670 = vcmp.ge.f32.partialorder %v4666, 0.0
  %vm4671 = vcmp.ge.f32.partialorder %v4667, 0.0
  %vm4672 = vcmp.ge.f32.partialorder %v4668, 0.0
  %vm4673 = vcmp.ge.f32.partialorder %v4669, 0.0
  %v4674 = vmul.f32 %v4666, 0.2
  %v4675 = vmul.f32 %v4667, 0.2
  %v4676 = vmul.f32 %v4668, 0.2
  %v4677 = vmul.f32 %v4669, 0.2
  %v4678 = vsel %vm4670, %v4666, %v4674
  %v4679 = vsel %vm4671, %v4667, %v4675
  %v4680 = vsel %vm4672, %v4668, %v4676
  %v4681 = vsel %vm4673, %v4669, %v4677
  %v4682 = vpack.c.bf16 %v4680, %v4678
  %v4683 = vpack.c.bf16 %v4681, %v4679
  %v4684 = vld [vmem:[%s16] sm:$0xf]
  %v4686 = vsel %vm2891, %v4684, 0
  %4688 = vmatprep.subr.bf16.mxu0 0
  %4689 = vmatpush1.bf16.msra.mxu0 0
  %4690 = vmatprep.subr.bf16.mxu0 0
  %4691 = vmatpush1.bf16.msra.mxu0 0
  %4692 = vmatprep.subr.bf16.mxu0 0
  %4693 = vmatpush1.bf16.msra.mxu0 0
  %4694 = vmatprep.subr.bf16.mxu0 0
  %4695 = vmatpush1.bf16.msra.mxu0 0
  %4696 = vmatprep.subr.bf16.mxu0 0
  %4697 = vmatpush1.bf16.msra.mxu0 0
  %4698 = vmatprep.subr.bf16.mxu0 0
  %4699 = vmatpush1.bf16.msra.mxu0 0
  %4700 = vmatprep.subr.bf16.mxu0 0
  %4701 = vmatpush1.bf16.msra.mxu0 0
  %4702 = vmatprep.subr.bf16.mxu0 %v4683
  %4703 = vmatpush1.bf16.msra.mxu0 %v4682
  %4704 = vmatprep.subr.bf16.mxu0 0
  %4705 = vmatpush2.bf16.msra.mxu0 0
  %4706 = vmatprep.subr.bf16.mxu0 0
  %4707 = vmatpush2.bf16.msra.mxu0 0
  %4708 = vmatprep.subr.bf16.mxu0 0
  %4709 = vmatpush2.bf16.msra.mxu0 0
  %4710 = vmatprep.subr.bf16.mxu0 0
  %4711 = vmatpush2.bf16.msra.mxu0 0
  %4712 = vmatprep.subr.bf16.mxu0 0
  %4713 = vmatpush2.bf16.msra.mxu0 0
  %4714 = vmatprep.subr.bf16.mxu0 0
  %4715 = vmatpush2.bf16.msra.mxu0 0
  %4716 = vmatprep.subr.bf16.mxu0 0
  %4717 = vmatpush2.bf16.msra.mxu0 0
  %4718 = vmatprep.subr.bf16.mxu0 0
  %4719 = vmatpush2.bf16.msra.mxu0 0
  %4720 = vmatprep.mubr.bf16.mxu0 0
  %4721 = vmatmul.mubr.bf16.gmra.mxu0 %v4686
  %v4722 = vpop.f32.mrf.mxu0
  %v4723 = vadd.f32 0.0, %v4722
  %v4724 = vpop.f32.mrf.mxu0
  %v4725 = vadd.f32 0.0, %v4724
  %v4726 = vpop.f32.mrf.mxu0
  %v4727 = vpop.f32.mrf.mxu0
  %4728 = vdwg.mxu0
  %v4729 = vpack.c.bf16 %v4723, %v4723
  %v4730 = vpack.c.bf16 %v4725, %v4725
  %v4731 = vld [vmem:[%s17] sm:$0xff]
  %v4732 = vld [vmem:[%s17 + $0x8] sm:$0xff]
  %v4733 = vld [vmem:[%s17 + $0x10] sm:$0xff]
  %v4734 = vld [vmem:[%s17 + $0x18] sm:$0xff]
  %v4735 = vld [vmem:[%s17 + $0x20] sm:$0xff]
  %v4736 = vld [vmem:[%s17 + $0x28] sm:$0xff]
  %v4737 = vld [vmem:[%s17 + $0x30] sm:$0xff]
  %v4738 = vld [vmem:[%s17 + $0x38] sm:$0xff]
  %v4739 = vld [vmem:[%s17 + $0x40] sm:$0xff]
  %v4740 = vld [vmem:[%s17 + $0x48] sm:$0xff]
  %v4741 = vld [vmem:[%s17 + $0x50] sm:$0xff]
  %v4742 = vld [vmem:[%s17 + $0x58] sm:$0xff]
  %v4743 = vld [vmem:[%s17 + $0x60] sm:$0xff]
  %v4744 = vld [vmem:[%s17 + $0x68] sm:$0xff]
  %v4745 = vld [vmem:[%s17 + $0x70] sm:$0xff]
  %v4746 = vld [vmem:[%s17 + $0x78] sm:$0xff]
  %v4747 = vld [vmem:[%s17 + $0x80] sm:$0xff]
  %v4748 = vld [vmem:[%s17 + $0x88] sm:$0xff]
  %v4749 = vld [vmem:[%s17 + $0x90] sm:$0xff]
  %v4750 = vld [vmem:[%s17 + $0x98] sm:$0xff]
  %v4751 = vld [vmem:[%s17 + $0xa0] sm:$0xff]
  %v4752 = vld [vmem:[%s17 + $0xa8] sm:$0xff]
  %v4753 = vld [vmem:[%s17 + $0xb0] sm:$0xff]
  %v4754 = vld [vmem:[%s17 + $0xb8] sm:$0xff]
  %v4755 = vld [vmem:[%s17 + $0xc0] sm:$0xff]
  %v4756 = vld [vmem:[%s17 + $0xc8] sm:$0xff]
  %v4757 = vld [vmem:[%s17 + $0xd0] sm:$0xff]
  %v4758 = vld [vmem:[%s17 + $0xd8] sm:$0xff]
  %v4759 = vld [vmem:[%s17 + $0xe0] sm:$0xff]
  %v4760 = vld [vmem:[%s17 + $0xe8] sm:$0xff]
  %v4761 = vld [vmem:[%s17 + $0xf0] sm:$0xff]
  %v4762 = vld [vmem:[%s17 + $0xf8] sm:$0xff]
  %s4763 = scalar_lea.vmem %s16, 4
  %v4764 = vld [vmem:[%s4763] sm:$0xf]
  %v4766 = vsel %vm2891, %v4764, 0
  %4768 = vmatprep.subr.bf16.mxu0 0
  %4769 = vmatpush1.bf16.msra.mxu0 0
  %4770 = vmatprep.subr.bf16.mxu0 0
  %4771 = vmatpush1.bf16.msra.mxu0 0
  %4772 = vmatprep.subr.bf16.mxu0 0
  %4773 = vmatpush1.bf16.msra.mxu0 0
  %4774 = vmatprep.subr.bf16.mxu0 0
  %4775 = vmatpush1.bf16.msra.mxu0 0
  %4776 = vmatprep.subr.bf16.mxu0 0
  %4777 = vmatpush1.bf16.msra.mxu0 0
  %4778 = vmatprep.subr.bf16.mxu0 0
  %4779 = vmatpush1.bf16.msra.mxu0 0
  %4780 = vmatprep.subr.bf16.mxu0 0
  %4781 = vmatpush1.bf16.msra.mxu0 0
  %4782 = vmatprep.subr.bf16.mxu0 %v4683
  %4783 = vmatpush1.bf16.msra.mxu0 %v4682
  %4784 = vmatprep.subr.bf16.mxu0 0
  %4785 = vmatpush2.bf16.msra.mxu0 0
  %4786 = vmatprep.subr.bf16.mxu0 0
  %4787 = vmatpush2.bf16.msra.mxu0 0
  %4788 = vmatprep.subr.bf16.mxu0 0
  %4789 = vmatpush2.bf16.msra.mxu0 0
  %4790 = vmatprep.subr.bf16.mxu0 0
  %4791 = vmatpush2.bf16.msra.mxu0 0
  %4792 = vmatprep.subr.bf16.mxu0 0
  %4793 = vmatpush2.bf16.msra.mxu0 0
  %4794 = vmatprep.subr.bf16.mxu0 0
  %4795 = vmatpush2.bf16.msra.mxu0 0
  %4796 = vmatprep.subr.bf16.mxu0 0
  %4797 = vmatpush2.bf16.msra.mxu0 0
  %4798 = vmatprep.subr.bf16.mxu0 0
  %4799 = vmatpush2.bf16.msra.mxu0 0
  %4800 = vmatprep.mubr.bf16.mxu0 0
  %4801 = vmatmul.mubr.bf16.gmra.mxu0 %v4766
  %v4802 = vpop.f32.mrf.mxu0
  %v4803 = vadd.f32 0.0, %v4802
  %v4804 = vpop.f32.mrf.mxu0
  %v4805 = vadd.f32 0.0, %v4804
  %v4806 = vpop.f32.mrf.mxu0
  %v4807 = vpop.f32.mrf.mxu0
  %4808 = vdwg.mxu0
  %v4809 = vpack.c.bf16 %v4803, %v4803
  %v4810 = vpack.c.bf16 %v4805, %v4805
  %s4811 = scalar_lea.vmem %s17, 256
  %v4812 = vld [vmem:[%s4811] sm:$0xff]
  %v4813 = vld [vmem:[%s4811 + $0x8] sm:$0xff]
  %v4814 = vld [vmem:[%s4811 + $0x10] sm:$0xff]
  %v4815 = vld [vmem:[%s4811 + $0x18] sm:$0xff]
  %v4816 = vld [vmem:[%s4811 + $0x20] sm:$0xff]
  %v4817 = vld [vmem:[%s4811 + $0x28] sm:$0xff]
  %v4818 = vld [vmem:[%s4811 + $0x30] sm:$0xff]
  %v4819 = vld [vmem:[%s4811 + $0x38] sm:$0xff]
  %v4820 = vld [vmem:[%s4811 + $0x40] sm:$0xff]
  %v4821 = vld [vmem:[%s4811 + $0x48] sm:$0xff]
  %v4822 = vld [vmem:[%s4811 + $0x50] sm:$0xff]
  %v4823 = vld [vmem:[%s4811 + $0x58] sm:$0xff]
  %v4824 = vld [vmem:[%s4811 + $0x60] sm:$0xff]
  %v4825 = vld [vmem:[%s4811 + $0x68] sm:$0xff]
  %v4826 = vld [vmem:[%s4811 + $0x70] sm:$0xff]
  %v4827 = vld [vmem:[%s4811 + $0x78] sm:$0xff]
  %v4828 = vld [vmem:[%s4811 + $0x80] sm:$0xff]
  %v4829 = vld [vmem:[%s4811 + $0x88] sm:$0xff]
  %v4830 = vld [vmem:[%s4811 + $0x90] sm:$0xff]
  %v4831 = vld [vmem:[%s4811 + $0x98] sm:$0xff]
  %v4832 = vld [vmem:[%s4811 + $0xa0] sm:$0xff]
  %v4833 = vld [vmem:[%s4811 + $0xa8] sm:$0xff]
  %v4834 = vld [vmem:[%s4811 + $0xb0] sm:$0xff]
  %v4835 = vld [vmem:[%s4811 + $0xb8] sm:$0xff]
  %v4836 = vld [vmem:[%s4811 + $0xc0] sm:$0xff]
  %v4837 = vld [vmem:[%s4811 + $0xc8] sm:$0xff]
  %v4838 = vld [vmem:[%s4811 + $0xd0] sm:$0xff]
  %v4839 = vld [vmem:[%s4811 + $0xd8] sm:$0xff]
  %v4840 = vld [vmem:[%s4811 + $0xe0] sm:$0xff]
  %v4841 = vld [vmem:[%s4811 + $0xe8] sm:$0xff]
  %v4842 = vld [vmem:[%s4811 + $0xf0] sm:$0xff]
  %v4843 = vld [vmem:[%s4811 + $0xf8] sm:$0xff]
  %v4876 = vunpack.c.l.b16 %v4812
  %v4877 = vunpack.c.h.b16 %v4812
  %v4878 = vunpack.c.l.b16 %v4813
  %v4879 = vunpack.c.h.b16 %v4813
  %v4880 = vunpack.c.l.b16 %v4814
  %v4881 = vunpack.c.h.b16 %v4814
  %v4882 = vunpack.c.l.b16 %v4815
  %v4883 = vunpack.c.h.b16 %v4815
  %v4884 = vunpack.c.l.b16 %v4816
  %v4885 = vunpack.c.h.b16 %v4816
  %v4886 = vunpack.c.l.b16 %v4817
  %v4887 = vunpack.c.h.b16 %v4817
  %v4888 = vunpack.c.l.b16 %v4818
  %v4889 = vunpack.c.h.b16 %v4818
  %v4890 = vunpack.c.l.b16 %v4819
  %v4891 = vunpack.c.h.b16 %v4819
  %v4892 = vunpack.c.l.b16 %v4820
  %v4893 = vunpack.c.h.b16 %v4820
  %v4894 = vunpack.c.l.b16 %v4821
  %v4895 = vunpack.c.h.b16 %v4821
  %v4896 = vunpack.c.l.b16 %v4822
  %v4897 = vunpack.c.h.b16 %v4822
  %v4898 = vunpack.c.l.b16 %v4823
  %v4899 = vunpack.c.h.b16 %v4823
  %v4900 = vunpack.c.l.b16 %v4824
  %v4901 = vunpack.c.h.b16 %v4824
  %v4902 = vunpack.c.l.b16 %v4825
  %v4903 = vunpack.c.h.b16 %v4825
  %v4904 = vunpack.c.l.b16 %v4826
  %v4905 = vunpack.c.h.b16 %v4826
  %v4906 = vunpack.c.l.b16 %v4827
  %v4907 = vunpack.c.h.b16 %v4827
  %v4908 = vunpack.c.l.b16 %v4828
  %v4909 = vunpack.c.h.b16 %v4828
  %v4910 = vunpack.c.l.b16 %v4829
  %v4911 = vunpack.c.h.b16 %v4829
  %v4912 = vunpack.c.l.b16 %v4830
  %v4913 = vunpack.c.h.b16 %v4830
  %v4914 = vunpack.c.l.b16 %v4831
  %v4915 = vunpack.c.h.b16 %v4831
  %v4916 = vunpack.c.l.b16 %v4832
  %v4917 = vunpack.c.h.b16 %v4832
  %v4918 = vunpack.c.l.b16 %v4833
  %v4919 = vunpack.c.h.b16 %v4833
  %v4920 = vunpack.c.l.b16 %v4834
  %v4921 = vunpack.c.h.b16 %v4834
  %v4922 = vunpack.c.l.b16 %v4835
  %v4923 = vunpack.c.h.b16 %v4835
  %v4924 = vunpack.c.l.b16 %v4836
  %v4925 = vunpack.c.h.b16 %v4836
  %v4926 = vunpack.c.l.b16 %v4837
  %v4927 = vunpack.c.h.b16 %v4837
  %v4928 = vunpack.c.l.b16 %v4838
  %v4929 = vunpack.c.h.b16 %v4838
  %v4930 = vunpack.c.l.b16 %v4839
  %v4931 = vunpack.c.h.b16 %v4839
  %v4932 = vunpack.c.l.b16 %v4840
  %v4933 = vunpack.c.h.b16 %v4840
  %v4934 = vunpack.c.l.b16 %v4841
  %v4935 = vunpack.c.h.b16 %v4841
  %v4936 = vunpack.c.l.b16 %v4842
  %v4937 = vunpack.c.h.b16 %v4842
  %v4938 = vunpack.c.l.b16 %v4843
  %v4939 = vunpack.c.h.b16 %v4843
  %v4940 = vpack.c.b16 %v4878, %v4876
  %v4941 = vpack.c.b16 %v4879, %v4877
  %v4942 = vpack.c.b16 %v4882, %v4880
  %v4943 = vpack.c.b16 %v4883, %v4881
  %v4944 = vpack.c.b16 %v4886, %v4884
  %v4945 = vpack.c.b16 %v4887, %v4885
  %v4946 = vpack.c.b16 %v4890, %v4888
  %v4947 = vpack.c.b16 %v4891, %v4889
  %v4948 = vpack.c.b16 %v4894, %v4892
  %v4949 = vpack.c.b16 %v4895, %v4893
  %v4950 = vpack.c.b16 %v4898, %v4896
  %v4951 = vpack.c.b16 %v4899, %v4897
  %v4952 = vpack.c.b16 %v4902, %v4900
  %v4953 = vpack.c.b16 %v4903, %v4901
  %v4954 = vpack.c.b16 %v4906, %v4904
  %v4955 = vpack.c.b16 %v4907, %v4905
  %v4956 = vpack.c.b16 %v4910, %v4908
  %v4957 = vpack.c.b16 %v4911, %v4909
  %v4958 = vpack.c.b16 %v4914, %v4912
  %v4959 = vpack.c.b16 %v4915, %v4913
  %v4960 = vpack.c.b16 %v4918, %v4916
  %v4961 = vpack.c.b16 %v4919, %v4917
  %v4962 = vpack.c.b16 %v4922, %v4920
  %v4963 = vpack.c.b16 %v4923, %v4921
  %v4964 = vpack.c.b16 %v4926, %v4924
  %v4965 = vpack.c.b16 %v4927, %v4925
  %v4966 = vpack.c.b16 %v4930, %v4928
  %v4967 = vpack.c.b16 %v4931, %v4929
  %v4968 = vpack.c.b16 %v4934, %v4932
  %v4969 = vpack.c.b16 %v4935, %v4933
  %v4970 = vpack.c.b16 %v4938, %v4936
  %v4971 = vpack.c.b16 %v4939, %v4937
  %5004 = vmatprep.subr.bf16.mxu0 %v4955
  %5005 = vmatpush1.bf16.msra.mxu0 %v4954
  %5006 = vmatprep.subr.bf16.mxu0 %v4953
  %5007 = vmatpush1.bf16.msra.mxu0 %v4952
  %5008 = vmatprep.subr.bf16.mxu0 %v4951
  %5009 = vmatpush1.bf16.msra.mxu0 %v4950
  %5010 = vmatprep.subr.bf16.mxu0 %v4949
  %5011 = vmatpush1.bf16.msra.mxu0 %v4948
  %5012 = vmatprep.subr.bf16.mxu0 %v4947
  %5013 = vmatpush1.bf16.msra.mxu0 %v4946
  %5014 = vmatprep.subr.bf16.mxu0 %v4945
  %5015 = vmatpush1.bf16.msra.mxu0 %v4944
  %5016 = vmatprep.subr.bf16.mxu0 %v4943
  %5017 = vmatpush1.bf16.msra.mxu0 %v4942
  %5018 = vmatprep.subr.bf16.mxu0 %v4941
  %5019 = vmatpush1.bf16.msra.mxu0 %v4940
  %5020 = vmatprep.subr.bf16.mxu0 %v4971
  %5021 = vmatpush2.bf16.msra.mxu0 %v4970
  %5022 = vmatprep.subr.bf16.mxu0 %v4969
  %5023 = vmatpush2.bf16.msra.mxu0 %v4968
  %5024 = vmatprep.subr.bf16.mxu0 %v4967
  %5025 = vmatpush2.bf16.msra.mxu0 %v4966
  %5026 = vmatprep.subr.bf16.mxu0 %v4965
  %5027 = vmatpush2.bf16.msra.mxu0 %v4964
  %5028 = vmatprep.subr.bf16.mxu0 %v4963
  %5029 = vmatpush2.bf16.msra.mxu0 %v4962
  %5030 = vmatprep.subr.bf16.mxu0 %v4961
  %5031 = vmatpush2.bf16.msra.mxu0 %v4960
  %5032 = vmatprep.subr.bf16.mxu0 %v4959
  %5033 = vmatpush2.bf16.msra.mxu0 %v4958
  %5034 = vmatprep.subr.bf16.mxu0 %v4957
  %5035 = vmatpush2.bf16.msra.mxu0 %v4956
  %5036 = vmatprep.mubr.bf16.mxu0 %v4810
  %5037 = vmatmul.mubr.bf16.gmra.mxu0 %v4809
  %v5038 = vpop.f32.mrf.mxu0
  %v5039 = vadd.f32 0.0, %v5038
  %v5040 = vpop.f32.mrf.mxu0
  %v5041 = vadd.f32 0.0, %v5040
  %v5042 = vpop.f32.mrf.mxu0
  %v5043 = vpop.f32.mrf.mxu0
  %5044 = vdwg.mxu0
  %v5077 = vunpack.c.l.b16 %v4731
  %v5078 = vunpack.c.h.b16 %v4731
  %v5079 = vunpack.c.l.b16 %v4732
  %v5080 = vunpack.c.h.b16 %v4732
  %v5081 = vunpack.c.l.b16 %v4733
  %v5082 = vunpack.c.h.b16 %v4733
  %v5083 = vunpack.c.l.b16 %v4734
  %v5084 = vunpack.c.h.b16 %v4734
  %v5085 = vunpack.c.l.b16 %v4735
  %v5086 = vunpack.c.h.b16 %v4735
  %v5087 = vunpack.c.l.b16 %v4736
  %v5088 = vunpack.c.h.b16 %v4736
  %v5089 = vunpack.c.l.b16 %v4737
  %v5090 = vunpack.c.h.b16 %v4737
  %v5091 = vunpack.c.l.b16 %v4738
  %v5092 = vunpack.c.h.b16 %v4738
  %v5093 = vunpack.c.l.b16 %v4739
  %v5094 = vunpack.c.h.b16 %v4739
  %v5095 = vunpack.c.l.b16 %v4740
  %v5096 = vunpack.c.h.b16 %v4740
  %v5097 = vunpack.c.l.b16 %v4741
  %v5098 = vunpack.c.h.b16 %v4741
  %v5099 = vunpack.c.l.b16 %v4742
  %v5100 = vunpack.c.h.b16 %v4742
  %v5101 = vunpack.c.l.b16 %v4743
  %v5102 = vunpack.c.h.b16 %v4743
  %v5103 = vunpack.c.l.b16 %v4744
  %v5104 = vunpack.c.h.b16 %v4744
  %v5105 = vunpack.c.l.b16 %v4745
  %v5106 = vunpack.c.h.b16 %v4745
  %v5107 = vunpack.c.l.b16 %v4746
  %v5108 = vunpack.c.h.b16 %v4746
  %v5109 = vunpack.c.l.b16 %v4747
  %v5110 = vunpack.c.h.b16 %v4747
  %v5111 = vunpack.c.l.b16 %v4748
  %v5112 = vunpack.c.h.b16 %v4748
  %v5113 = vunpack.c.l.b16 %v4749
  %v5114 = vunpack.c.h.b16 %v4749
  %v5115 = vunpack.c.l.b16 %v4750
  %v5116 = vunpack.c.h.b16 %v4750
  %v5117 = vunpack.c.l.b16 %v4751
  %v5118 = vunpack.c.h.b16 %v4751
  %v5119 = vunpack.c.l.b16 %v4752
  %v5120 = vunpack.c.h.b16 %v4752
  %v5121 = vunpack.c.l.b16 %v4753
  %v5122 = vunpack.c.h.b16 %v4753
  %v5123 = vunpack.c.l.b16 %v4754
  %v5124 = vunpack.c.h.b16 %v4754
  %v5125 = vunpack.c.l.b16 %v4755
  %v5126 = vunpack.c.h.b16 %v4755
  %v5127 = vunpack.c.l.b16 %v4756
  %v5128 = vunpack.c.h.b16 %v4756
  %v5129 = vunpack.c.l.b16 %v4757
  %v5130 = vunpack.c.h.b16 %v4757
  %v5131 = vunpack.c.l.b16 %v4758
  %v5132 = vunpack.c.h.b16 %v4758
  %v5133 = vunpack.c.l.b16 %v4759
  %v5134 = vunpack.c.h.b16 %v4759
  %v5135 = vunpack.c.l.b16 %v4760
  %v5136 = vunpack.c.h.b16 %v4760
  %v5137 = vunpack.c.l.b16 %v4761
  %v5138 = vunpack.c.h.b16 %v4761
  %v5139 = vunpack.c.l.b16 %v4762
  %v5140 = vunpack.c.h.b16 %v4762
  %v5141 = vpack.c.b16 %v5079, %v5077
  %v5142 = vpack.c.b16 %v5080, %v5078
  %v5143 = vpack.c.b16 %v5083, %v5081
  %v5144 = vpack.c.b16 %v5084, %v5082
  %v5145 = vpack.c.b16 %v5087, %v5085
  %v5146 = vpack.c.b16 %v5088, %v5086
  %v5147 = vpack.c.b16 %v5091, %v5089
  %v5148 = vpack.c.b16 %v5092, %v5090
  %v5149 = vpack.c.b16 %v5095, %v5093
  %v5150 = vpack.c.b16 %v5096, %v5094
  %v5151 = vpack.c.b16 %v5099, %v5097
  %v5152 = vpack.c.b16 %v5100, %v5098
  %v5153 = vpack.c.b16 %v5103, %v5101
  %v5154 = vpack.c.b16 %v5104, %v5102
  %v5155 = vpack.c.b16 %v5107, %v5105
  %v5156 = vpack.c.b16 %v5108, %v5106
  %v5157 = vpack.c.b16 %v5111, %v5109
  %v5158 = vpack.c.b16 %v5112, %v5110
  %v5159 = vpack.c.b16 %v5115, %v5113
  %v5160 = vpack.c.b16 %v5116, %v5114
  %v5161 = vpack.c.b16 %v5119, %v5117
  %v5162 = vpack.c.b16 %v5120, %v5118
  %v5163 = vpack.c.b16 %v5123, %v5121
  %v5164 = vpack.c.b16 %v5124, %v5122
  %v5165 = vpack.c.b16 %v5127, %v5125
  %v5166 = vpack.c.b16 %v5128, %v5126
  %v5167 = vpack.c.b16 %v5131, %v5129
  %v5168 = vpack.c.b16 %v5132, %v5130
  %v5169 = vpack.c.b16 %v5135, %v5133
  %v5170 = vpack.c.b16 %v5136, %v5134
  %v5171 = vpack.c.b16 %v5139, %v5137
  %v5172 = vpack.c.b16 %v5140, %v5138
  %5205 = vmatprep.subr.bf16.mxu0 %v5156
  %5206 = vmatpush1.bf16.msra.mxu0 %v5155
  %5207 = vmatprep.subr.bf16.mxu0 %v5154
  %5208 = vmatpush1.bf16.msra.mxu0 %v5153
  %5209 = vmatprep.subr.bf16.mxu0 %v5152
  %5210 = vmatpush1.bf16.msra.mxu0 %v5151
  %5211 = vmatprep.subr.bf16.mxu0 %v5150
  %5212 = vmatpush1.bf16.msra.mxu0 %v5149
  %5213 = vmatprep.subr.bf16.mxu0 %v5148
  %5214 = vmatpush1.bf16.msra.mxu0 %v5147
  %5215 = vmatprep.subr.bf16.mxu0 %v5146
  %5216 = vmatpush1.bf16.msra.mxu0 %v5145
  %5217 = vmatprep.subr.bf16.mxu0 %v5144
  %5218 = vmatpush1.bf16.msra.mxu0 %v5143
  %5219 = vmatprep.subr.bf16.mxu0 %v5142
  %5220 = vmatpush1.bf16.msra.mxu0 %v5141
  %5221 = vmatprep.subr.bf16.mxu0 %v5172
  %5222 = vmatpush2.bf16.msra.mxu0 %v5171
  %5223 = vmatprep.subr.bf16.mxu0 %v5170
  %5224 = vmatpush2.bf16.msra.mxu0 %v5169
  %5225 = vmatprep.subr.bf16.mxu0 %v5168
  %5226 = vmatpush2.bf16.msra.mxu0 %v5167
  %5227 = vmatprep.subr.bf16.mxu0 %v5166
  %5228 = vmatpush2.bf16.msra.mxu0 %v5165
  %5229 = vmatprep.subr.bf16.mxu0 %v5164
  %5230 = vmatpush2.bf16.msra.mxu0 %v5163
  %5231 = vmatprep.subr.bf16.mxu0 %v5162
  %5232 = vmatpush2.bf16.msra.mxu0 %v5161
  %5233 = vmatprep.subr.bf16.mxu0 %v5160
  %5234 = vmatpush2.bf16.msra.mxu0 %v5159
  %5235 = vmatprep.subr.bf16.mxu0 %v5158
  %5236 = vmatpush2.bf16.msra.mxu0 %v5157
  %5237 = vmatprep.mubr.bf16.mxu0 %v4730
  %5238 = vmatmul.mubr.bf16.gmra.mxu0 %v4729
  %v5239 = vpop.f32.mrf.mxu0
  %v5240 = vadd.f32 %v5039, %v5239
  %v5241 = vpop.f32.mrf.mxu0
  %v5242 = vadd.f32 %v5041, %v5241
  %v5243 = vpop.f32.mrf.mxu0
  %v5244 = vpop.f32.mrf.mxu0
  %5245 = vdwg.mxu0
  %s5246 = scalar_lea.vmem %s16, 8
  %v5247 = vld [vmem:[%s5246] sm:$0xf]
  %v5249 = vsel %vm2891, %v5247, 0
  %5251 = vmatprep.subr.bf16.mxu0 0
  %5252 = vmatpush1.bf16.msra.mxu0 0
  %5253 = vmatprep.subr.bf16.mxu0 0
  %5254 = vmatpush1.bf16.msra.mxu0 0
  %5255 = vmatprep.subr.bf16.mxu0 0
  %5256 = vmatpush1.bf16.msra.mxu0 0
  %5257 = vmatprep.subr.bf16.mxu0 0
  %5258 = vmatpush1.bf16.msra.mxu0 0
  %5259 = vmatprep.subr.bf16.mxu0 0
  %5260 = vmatpush1.bf16.msra.mxu0 0
  %5261 = vmatprep.subr.bf16.mxu0 0
  %5262 = vmatpush1.bf16.msra.mxu0 0
  %5263 = vmatprep.subr.bf16.mxu0 0
  %5264 = vmatpush1.bf16.msra.mxu0 0
  %5265 = vmatprep.subr.bf16.mxu0 %v4683
  %5266 = vmatpush1.bf16.msra.mxu0 %v4682
  %5267 = vmatprep.subr.bf16.mxu0 0
  %5268 = vmatpush2.bf16.msra.mxu0 0
  %5269 = vmatprep.subr.bf16.mxu0 0
  %5270 = vmatpush2.bf16.msra.mxu0 0
  %5271 = vmatprep.subr.bf16.mxu0 0
  %5272 = vmatpush2.bf16.msra.mxu0 0
  %5273 = vmatprep.subr.bf16.mxu0 0
  %5274 = vmatpush2.bf16.msra.mxu0 0
  %5275 = vmatprep.subr.bf16.mxu0 0
  %5276 = vmatpush2.bf16.msra.mxu0 0
  %5277 = vmatprep.subr.bf16.mxu0 0
  %5278 = vmatpush2.bf16.msra.mxu0 0
  %5279 = vmatprep.subr.bf16.mxu0 0
  %5280 = vmatpush2.bf16.msra.mxu0 0
  %5281 = vmatprep.subr.bf16.mxu0 0
  %5282 = vmatpush2.bf16.msra.mxu0 0
  %5283 = vmatprep.mubr.bf16.mxu0 0
  %5284 = vmatmul.mubr.bf16.gmra.mxu0 %v5249
  %v5285 = vpop.f32.mrf.mxu0
  %v5286 = vadd.f32 0.0, %v5285
  %v5287 = vpop.f32.mrf.mxu0
  %v5288 = vadd.f32 0.0, %v5287
  %v5289 = vpop.f32.mrf.mxu0
  %v5290 = vpop.f32.mrf.mxu0
  %5291 = vdwg.mxu0
  %v5292 = vpack.c.bf16 %v5286, %v5286
  %v5293 = vpack.c.bf16 %v5288, %v5288
  %s5294 = scalar_lea.vmem %s17, 512
  %v5295 = vld [vmem:[%s5294] sm:$0xff]
  %v5296 = vld [vmem:[%s5294 + $0x8] sm:$0xff]
  %v5297 = vld [vmem:[%s5294 + $0x10] sm:$0xff]
  %v5298 = vld [vmem:[%s5294 + $0x18] sm:$0xff]
  %v5299 = vld [vmem:[%s5294 + $0x20] sm:$0xff]
  %v5300 = vld [vmem:[%s5294 + $0x28] sm:$0xff]
  %v5301 = vld [vmem:[%s5294 + $0x30] sm:$0xff]
  %v5302 = vld [vmem:[%s5294 + $0x38] sm:$0xff]
  %v5303 = vld [vmem:[%s5294 + $0x40] sm:$0xff]
  %v5304 = vld [vmem:[%s5294 + $0x48] sm:$0xff]
  %v5305 = vld [vmem:[%s5294 + $0x50] sm:$0xff]
  %v5306 = vld [vmem:[%s5294 + $0x58] sm:$0xff]
  %v5307 = vld [vmem:[%s5294 + $0x60] sm:$0xff]
  %v5308 = vld [vmem:[%s5294 + $0x68] sm:$0xff]
  %v5309 = vld [vmem:[%s5294 + $0x70] sm:$0xff]
  %v5310 = vld [vmem:[%s5294 + $0x78] sm:$0xff]
  %v5311 = vld [vmem:[%s5294 + $0x80] sm:$0xff]
  %v5312 = vld [vmem:[%s5294 + $0x88] sm:$0xff]
  %v5313 = vld [vmem:[%s5294 + $0x90] sm:$0xff]
  %v5314 = vld [vmem:[%s5294 + $0x98] sm:$0xff]
  %v5315 = vld [vmem:[%s5294 + $0xa0] sm:$0xff]
  %v5316 = vld [vmem:[%s5294 + $0xa8] sm:$0xff]
  %v5317 = vld [vmem:[%s5294 + $0xb0] sm:$0xff]
  %v5318 = vld [vmem:[%s5294 + $0xb8] sm:$0xff]
  %v5319 = vld [vmem:[%s5294 + $0xc0] sm:$0xff]
  %v5320 = vld [vmem:[%s5294 + $0xc8] sm:$0xff]
  %v5321 = vld [vmem:[%s5294 + $0xd0] sm:$0xff]
  %v5322 = vld [vmem:[%s5294 + $0xd8] sm:$0xff]
  %v5323 = vld [vmem:[%s5294 + $0xe0] sm:$0xff]
  %v5324 = vld [vmem:[%s5294 + $0xe8] sm:$0xff]
  %v5325 = vld [vmem:[%s5294 + $0xf0] sm:$0xff]
  %v5326 = vld [vmem:[%s5294 + $0xf8] sm:$0xff]
  %v5359 = vunpack.c.l.b16 %v5295
  %v5360 = vunpack.c.h.b16 %v5295
  %v5361 = vunpack.c.l.b16 %v5296
  %v5362 = vunpack.c.h.b16 %v5296
  %v5363 = vunpack.c.l.b16 %v5297
  %v5364 = vunpack.c.h.b16 %v5297
  %v5365 = vunpack.c.l.b16 %v5298
  %v5366 = vunpack.c.h.b16 %v5298
  %v5367 = vunpack.c.l.b16 %v5299
  %v5368 = vunpack.c.h.b16 %v5299
  %v5369 = vunpack.c.l.b16 %v5300
  %v5370 = vunpack.c.h.b16 %v5300
  %v5371 = vunpack.c.l.b16 %v5301
  %v5372 = vunpack.c.h.b16 %v5301
  %v5373 = vunpack.c.l.b16 %v5302
  %v5374 = vunpack.c.h.b16 %v5302
  %v5375 = vunpack.c.l.b16 %v5303
  %v5376 = vunpack.c.h.b16 %v5303
  %v5377 = vunpack.c.l.b16 %v5304
  %v5378 = vunpack.c.h.b16 %v5304
  %v5379 = vunpack.c.l.b16 %v5305
  %v5380 = vunpack.c.h.b16 %v5305
  %v5381 = vunpack.c.l.b16 %v5306
  %v5382 = vunpack.c.h.b16 %v5306
  %v5383 = vunpack.c.l.b16 %v5307
  %v5384 = vunpack.c.h.b16 %v5307
  %v5385 = vunpack.c.l.b16 %v5308
  %v5386 = vunpack.c.h.b16 %v5308
  %v5387 = vunpack.c.l.b16 %v5309
  %v5388 = vunpack.c.h.b16 %v5309
  %v5389 = vunpack.c.l.b16 %v5310
  %v5390 = vunpack.c.h.b16 %v5310
  %v5391 = vunpack.c.l.b16 %v5311
  %v5392 = vunpack.c.h.b16 %v5311
  %v5393 = vunpack.c.l.b16 %v5312
  %v5394 = vunpack.c.h.b16 %v5312
  %v5395 = vunpack.c.l.b16 %v5313
  %v5396 = vunpack.c.h.b16 %v5313
  %v5397 = vunpack.c.l.b16 %v5314
  %v5398 = vunpack.c.h.b16 %v5314
  %v5399 = vunpack.c.l.b16 %v5315
  %v5400 = vunpack.c.h.b16 %v5315
  %v5401 = vunpack.c.l.b16 %v5316
  %v5402 = vunpack.c.h.b16 %v5316
  %v5403 = vunpack.c.l.b16 %v5317
  %v5404 = vunpack.c.h.b16 %v5317
  %v5405 = vunpack.c.l.b16 %v5318
  %v5406 = vunpack.c.h.b16 %v5318
  %v5407 = vunpack.c.l.b16 %v5319
  %v5408 = vunpack.c.h.b16 %v5319
  %v5409 = vunpack.c.l.b16 %v5320
  %v5410 = vunpack.c.h.b16 %v5320
  %v5411 = vunpack.c.l.b16 %v5321
  %v5412 = vunpack.c.h.b16 %v5321
  %v5413 = vunpack.c.l.b16 %v5322
  %v5414 = vunpack.c.h.b16 %v5322
  %v5415 = vunpack.c.l.b16 %v5323
  %v5416 = vunpack.c.h.b16 %v5323
  %v5417 = vunpack.c.l.b16 %v5324
  %v5418 = vunpack.c.h.b16 %v5324
  %v5419 = vunpack.c.l.b16 %v5325
  %v5420 = vunpack.c.h.b16 %v5325
  %v5421 = vunpack.c.l.b16 %v5326
  %v5422 = vunpack.c.h.b16 %v5326
  %v5423 = vpack.c.b16 %v5361, %v5359
  %v5424 = vpack.c.b16 %v5362, %v5360
  %v5425 = vpack.c.b16 %v5365, %v5363
  %v5426 = vpack.c.b16 %v5366, %v5364
  %v5427 = vpack.c.b16 %v5369, %v5367
  %v5428 = vpack.c.b16 %v5370, %v5368
  %v5429 = vpack.c.b16 %v5373, %v5371
  %v5430 = vpack.c.b16 %v5374, %v5372
  %v5431 = vpack.c.b16 %v5377, %v5375
  %v5432 = vpack.c.b16 %v5378, %v5376
  %v5433 = vpack.c.b16 %v5381, %v5379
  %v5434 = vpack.c.b16 %v5382, %v5380
  %v5435 = vpack.c.b16 %v5385, %v5383
  %v5436 = vpack.c.b16 %v5386, %v5384
  %v5437 = vpack.c.b16 %v5389, %v5387
  %v5438 = vpack.c.b16 %v5390, %v5388
  %v5439 = vpack.c.b16 %v5393, %v5391
  %v5440 = vpack.c.b16 %v5394, %v5392
  %v5441 = vpack.c.b16 %v5397, %v5395
  %v5442 = vpack.c.b16 %v5398, %v5396
  %v5443 = vpack.c.b16 %v5401, %v5399
  %v5444 = vpack.c.b16 %v5402, %v5400
  %v5445 = vpack.c.b16 %v5405, %v5403
  %v5446 = vpack.c.b16 %v5406, %v5404
  %v5447 = vpack.c.b16 %v5409, %v5407
  %v5448 = vpack.c.b16 %v5410, %v5408
  %v5449 = vpack.c.b16 %v5413, %v5411
  %v5450 = vpack.c.b16 %v5414, %v5412
  %v5451 = vpack.c.b16 %v5417, %v5415
  %v5452 = vpack.c.b16 %v5418, %v5416
  %v5453 = vpack.c.b16 %v5421, %v5419
  %v5454 = vpack.c.b16 %v5422, %v5420
  %5487 = vmatprep.subr.bf16.mxu0 %v5438
  %5488 = vmatpush1.bf16.msra.mxu0 %v5437
  %5489 = vmatprep.subr.bf16.mxu0 %v5436
  %5490 = vmatpush1.bf16.msra.mxu0 %v5435
  %5491 = vmatprep.subr.bf16.mxu0 %v5434
  %5492 = vmatpush1.bf16.msra.mxu0 %v5433
  %5493 = vmatprep.subr.bf16.mxu0 %v5432
  %5494 = vmatpush1.bf16.msra.mxu0 %v5431
  %5495 = vmatprep.subr.bf16.mxu0 %v5430
  %5496 = vmatpush1.bf16.msra.mxu0 %v5429
  %5497 = vmatprep.subr.bf16.mxu0 %v5428
  %5498 = vmatpush1.bf16.msra.mxu0 %v5427
  %5499 = vmatprep.subr.bf16.mxu0 %v5426
  %5500 = vmatpush1.bf16.msra.mxu0 %v5425
  %5501 = vmatprep.subr.bf16.mxu0 %v5424
  %5502 = vmatpush1.bf16.msra.mxu0 %v5423
  %5503 = vmatprep.subr.bf16.mxu0 %v5454
  %5504 = vmatpush2.bf16.msra.mxu0 %v5453
  %5505 = vmatprep.subr.bf16.mxu0 %v5452
  %5506 = vmatpush2.bf16.msra.mxu0 %v5451
  %5507 = vmatprep.subr.bf16.mxu0 %v5450
  %5508 = vmatpush2.bf16.msra.mxu0 %v5449
  %5509 = vmatprep.subr.bf16.mxu0 %v5448
  %5510 = vmatpush2.bf16.msra.mxu0 %v5447
  %5511 = vmatprep.subr.bf16.mxu0 %v5446
  %5512 = vmatpush2.bf16.msra.mxu0 %v5445
  %5513 = vmatprep.subr.bf16.mxu0 %v5444
  %5514 = vmatpush2.bf16.msra.mxu0 %v5443
  %5515 = vmatprep.subr.bf16.mxu0 %v5442
  %5516 = vmatpush2.bf16.msra.mxu0 %v5441
  %5517 = vmatprep.subr.bf16.mxu0 %v5440
  %5518 = vmatpush2.bf16.msra.mxu0 %v5439
  %5519 = vmatprep.mubr.bf16.mxu0 %v5293
  %5520 = vmatmul.mubr.bf16.gmra.mxu0 %v5292
  %v5521 = vpop.f32.mrf.mxu0
  %v5522 = vadd.f32 0.0, %v5521
  %v5523 = vpop.f32.mrf.mxu0
  %v5524 = vadd.f32 0.0, %v5523
  %v5525 = vpop.f32.mrf.mxu0
  %v5526 = vpop.f32.mrf.mxu0
  %5527 = vdwg.mxu0
  %v5528 = vadd.f32 %v5240, %v5522
  %v5529 = vadd.f32 %v5242, %v5524
  %s5530 = scalar_lea.vmem %s16, 12
  %v5531 = vld [vmem:[%s5530] sm:$0xf]
  %v5533 = vsel %vm2891, %v5531, 0
  %5535 = vmatprep.subr.bf16.mxu0 0
  %5536 = vmatpush1.bf16.msra.mxu0 0
  %5537 = vmatprep.subr.bf16.mxu0 0
  %5538 = vmatpush1.bf16.msra.mxu0 0
  %5539 = vmatprep.subr.bf16.mxu0 0
  %5540 = vmatpush1.bf16.msra.mxu0 0
  %5541 = vmatprep.subr.bf16.mxu0 0
  %5542 = vmatpush1.bf16.msra.mxu0 0
  %5543 = vmatprep.subr.bf16.mxu0 0
  %5544 = vmatpush1.bf16.msra.mxu0 0
  %5545 = vmatprep.subr.bf16.mxu0 0
  %5546 = vmatpush1.bf16.msra.mxu0 0
  %5547 = vmatprep.subr.bf16.mxu0 0
  %5548 = vmatpush1.bf16.msra.mxu0 0
  %5549 = vmatprep.subr.bf16.mxu0 %v4683
  %5550 = vmatpush1.bf16.msra.mxu0 %v4682
  %5551 = vmatprep.subr.bf16.mxu0 0
  %5552 = vmatpush2.bf16.msra.mxu0 0
  %5553 = vmatprep.subr.bf16.mxu0 0
  %5554 = vmatpush2.bf16.msra.mxu0 0
  %5555 = vmatprep.subr.bf16.mxu0 0
  %5556 = vmatpush2.bf16.msra.mxu0 0
  %5557 = vmatprep.subr.bf16.mxu0 0
  %5558 = vmatpush2.bf16.msra.mxu0 0
  %5559 = vmatprep.subr.bf16.mxu0 0
  %5560 = vmatpush2.bf16.msra.mxu0 0
  %5561 = vmatprep.subr.bf16.mxu0 0
  %5562 = vmatpush2.bf16.msra.mxu0 0
  %5563 = vmatprep.subr.bf16.mxu0 0
  %5564 = vmatpush2.bf16.msra.mxu0 0
  %5565 = vmatprep.subr.bf16.mxu0 0
  %5566 = vmatpush2.bf16.msra.mxu0 0
  %5567 = vmatprep.mubr.bf16.mxu0 0
  %5568 = vmatmul.mubr.bf16.gmra.mxu0 %v5533
  %v5569 = vpop.f32.mrf.mxu0
  %v5570 = vadd.f32 0.0, %v5569
  %v5571 = vpop.f32.mrf.mxu0
  %v5572 = vadd.f32 0.0, %v5571
  %v5573 = vpop.f32.mrf.mxu0
  %v5574 = vpop.f32.mrf.mxu0
  %5575 = vdwg.mxu0
  %v5576 = vpack.c.bf16 %v5570, %v5570
  %v5577 = vpack.c.bf16 %v5572, %v5572
  %s5578 = scalar_lea.vmem %s17, 768
  %v5579 = vld [vmem:[%s5578] sm:$0xff]
  %v5580 = vld [vmem:[%s5578 + $0x8] sm:$0xff]
  %v5581 = vld [vmem:[%s5578 + $0x10] sm:$0xff]
  %v5582 = vld [vmem:[%s5578 + $0x18] sm:$0xff]
  %v5583 = vld [vmem:[%s5578 + $0x20] sm:$0xff]
  %v5584 = vld [vmem:[%s5578 + $0x28] sm:$0xff]
  %v5585 = vld [vmem:[%s5578 + $0x30] sm:$0xff]
  %v5586 = vld [vmem:[%s5578 + $0x38] sm:$0xff]
  %v5587 = vld [vmem:[%s5578 + $0x40] sm:$0xff]
  %v5588 = vld [vmem:[%s5578 + $0x48] sm:$0xff]
  %v5589 = vld [vmem:[%s5578 + $0x50] sm:$0xff]
  %v5590 = vld [vmem:[%s5578 + $0x58] sm:$0xff]
  %v5591 = vld [vmem:[%s5578 + $0x60] sm:$0xff]
  %v5592 = vld [vmem:[%s5578 + $0x68] sm:$0xff]
  %v5593 = vld [vmem:[%s5578 + $0x70] sm:$0xff]
  %v5594 = vld [vmem:[%s5578 + $0x78] sm:$0xff]
  %v5595 = vld [vmem:[%s5578 + $0x80] sm:$0xff]
  %v5596 = vld [vmem:[%s5578 + $0x88] sm:$0xff]
  %v5597 = vld [vmem:[%s5578 + $0x90] sm:$0xff]
  %v5598 = vld [vmem:[%s5578 + $0x98] sm:$0xff]
  %v5599 = vld [vmem:[%s5578 + $0xa0] sm:$0xff]
  %v5600 = vld [vmem:[%s5578 + $0xa8] sm:$0xff]
  %v5601 = vld [vmem:[%s5578 + $0xb0] sm:$0xff]
  %v5602 = vld [vmem:[%s5578 + $0xb8] sm:$0xff]
  %v5603 = vld [vmem:[%s5578 + $0xc0] sm:$0xff]
  %v5604 = vld [vmem:[%s5578 + $0xc8] sm:$0xff]
  %v5605 = vld [vmem:[%s5578 + $0xd0] sm:$0xff]
  %v5606 = vld [vmem:[%s5578 + $0xd8] sm:$0xff]
  %v5607 = vld [vmem:[%s5578 + $0xe0] sm:$0xff]
  %v5608 = vld [vmem:[%s5578 + $0xe8] sm:$0xff]
  %v5609 = vld [vmem:[%s5578 + $0xf0] sm:$0xff]
  %v5610 = vld [vmem:[%s5578 + $0xf8] sm:$0xff]
  %v5643 = vunpack.c.l.b16 %v5579
  %v5644 = vunpack.c.h.b16 %v5579
  %v5645 = vunpack.c.l.b16 %v5580
  %v5646 = vunpack.c.h.b16 %v5580
  %v5647 = vunpack.c.l.b16 %v5581
  %v5648 = vunpack.c.h.b16 %v5581
  %v5649 = vunpack.c.l.b16 %v5582
  %v5650 = vunpack.c.h.b16 %v5582
  %v5651 = vunpack.c.l.b16 %v5583
  %v5652 = vunpack.c.h.b16 %v5583
  %v5653 = vunpack.c.l.b16 %v5584
  %v5654 = vunpack.c.h.b16 %v5584
  %v5655 = vunpack.c.l.b16 %v5585
  %v5656 = vunpack.c.h.b16 %v5585
  %v5657 = vunpack.c.l.b16 %v5586
  %v5658 = vunpack.c.h.b16 %v5586
  %v5659 = vunpack.c.l.b16 %v5587
  %v5660 = vunpack.c.h.b16 %v5587
  %v5661 = vunpack.c.l.b16 %v5588
  %v5662 = vunpack.c.h.b16 %v5588
  %v5663 = vunpack.c.l.b16 %v5589
  %v5664 = vunpack.c.h.b16 %v5589
  %v5665 = vunpack.c.l.b16 %v5590
  %v5666 = vunpack.c.h.b16 %v5590
  %v5667 = vunpack.c.l.b16 %v5591
  %v5668 = vunpack.c.h.b16 %v5591
  %v5669 = vunpack.c.l.b16 %v5592
  %v5670 = vunpack.c.h.b16 %v5592
  %v5671 = vunpack.c.l.b16 %v5593
  %v5672 = vunpack.c.h.b16 %v5593
  %v5673 = vunpack.c.l.b16 %v5594
  %v5674 = vunpack.c.h.b16 %v5594
  %v5675 = vunpack.c.l.b16 %v5595
  %v5676 = vunpack.c.h.b16 %v5595
  %v5677 = vunpack.c.l.b16 %v5596
  %v5678 = vunpack.c.h.b16 %v5596
  %v5679 = vunpack.c.l.b16 %v5597
  %v5680 = vunpack.c.h.b16 %v5597
  %v5681 = vunpack.c.l.b16 %v5598
  %v5682 = vunpack.c.h.b16 %v5598
  %v5683 = vunpack.c.l.b16 %v5599
  %v5684 = vunpack.c.h.b16 %v5599
  %v5685 = vunpack.c.l.b16 %v5600
  %v5686 = vunpack.c.h.b16 %v5600
  %v5687 = vunpack.c.l.b16 %v5601
  %v5688 = vunpack.c.h.b16 %v5601
  %v5689 = vunpack.c.l.b16 %v5602
  %v5690 = vunpack.c.h.b16 %v5602
  %v5691 = vunpack.c.l.b16 %v5603
  %v5692 = vunpack.c.h.b16 %v5603
  %v5693 = vunpack.c.l.b16 %v5604
  %v5694 = vunpack.c.h.b16 %v5604
  %v5695 = vunpack.c.l.b16 %v5605
  %v5696 = vunpack.c.h.b16 %v5605
  %v5697 = vunpack.c.l.b16 %v5606
  %v5698 = vunpack.c.h.b16 %v5606
  %v5699 = vunpack.c.l.b16 %v5607
  %v5700 = vunpack.c.h.b16 %v5607
  %v5701 = vunpack.c.l.b16 %v5608
  %v5702 = vunpack.c.h.b16 %v5608
  %v5703 = vunpack.c.l.b16 %v5609
  %v5704 = vunpack.c.h.b16 %v5609
  %v5705 = vunpack.c.l.b16 %v5610
  %v5706 = vunpack.c.h.b16 %v5610
  %v5707 = vpack.c.b16 %v5645, %v5643
  %v5708 = vpack.c.b16 %v5646, %v5644
  %v5709 = vpack.c.b16 %v5649, %v5647
  %v5710 = vpack.c.b16 %v5650, %v5648
  %v5711 = vpack.c.b16 %v5653, %v5651
  %v5712 = vpack.c.b16 %v5654, %v5652
  %v5713 = vpack.c.b16 %v5657, %v5655
  %v5714 = vpack.c.b16 %v5658, %v5656
  %v5715 = vpack.c.b16 %v5661, %v5659
  %v5716 = vpack.c.b16 %v5662, %v5660
  %v5717 = vpack.c.b16 %v5665, %v5663
  %v5718 = vpack.c.b16 %v5666, %v5664
  %v5719 = vpack.c.b16 %v5669, %v5667
  %v5720 = vpack.c.b16 %v5670, %v5668
  %v5721 = vpack.c.b16 %v5673, %v5671
  %v5722 = vpack.c.b16 %v5674, %v5672
  %v5723 = vpack.c.b16 %v5677, %v5675
  %v5724 = vpack.c.b16 %v5678, %v5676
  %v5725 = vpack.c.b16 %v5681, %v5679
  %v5726 = vpack.c.b16 %v5682, %v5680
  %v5727 = vpack.c.b16 %v5685, %v5683
  %v5728 = vpack.c.b16 %v5686, %v5684
  %v5729 = vpack.c.b16 %v5689, %v5687
  %v5730 = vpack.c.b16 %v5690, %v5688
  %v5731 = vpack.c.b16 %v5693, %v5691
  %v5732 = vpack.c.b16 %v5694, %v5692
  %v5733 = vpack.c.b16 %v5697, %v5695
  %v5734 = vpack.c.b16 %v5698, %v5696
  %v5735 = vpack.c.b16 %v5701, %v5699
  %v5736 = vpack.c.b16 %v5702, %v5700
  %v5737 = vpack.c.b16 %v5705, %v5703
  %v5738 = vpack.c.b16 %v5706, %v5704
  %5771 = vmatprep.subr.bf16.mxu0 %v5722
  %5772 = vmatpush1.bf16.msra.mxu0 %v5721
  %5773 = vmatprep.subr.bf16.mxu0 %v5720
  %5774 = vmatpush1.bf16.msra.mxu0 %v5719
  %5775 = vmatprep.subr.bf16.mxu0 %v5718
  %5776 = vmatpush1.bf16.msra.mxu0 %v5717
  %5777 = vmatprep.subr.bf16.mxu0 %v5716
  %5778 = vmatpush1.bf16.msra.mxu0 %v5715
  %5779 = vmatprep.subr.bf16.mxu0 %v5714
  %5780 = vmatpush1.bf16.msra.mxu0 %v5713
  %5781 = vmatprep.subr.bf16.mxu0 %v5712
  %5782 = vmatpush1.bf16.msra.mxu0 %v5711
  %5783 = vmatprep.subr.bf16.mxu0 %v5710
  %5784 = vmatpush1.bf16.msra.mxu0 %v5709
  %5785 = vmatprep.subr.bf16.mxu0 %v5708
  %5786 = vmatpush1.bf16.msra.mxu0 %v5707
  %5787 = vmatprep.subr.bf16.mxu0 %v5738
  %5788 = vmatpush2.bf16.msra.mxu0 %v5737
  %5789 = vmatprep.subr.bf16.mxu0 %v5736
  %5790 = vmatpush2.bf16.msra.mxu0 %v5735
  %5791 = vmatprep.subr.bf16.mxu0 %v5734
  %5792 = vmatpush2.bf16.msra.mxu0 %v5733
  %5793 = vmatprep.subr.bf16.mxu0 %v5732
  %5794 = vmatpush2.bf16.msra.mxu0 %v5731
  %5795 = vmatprep.subr.bf16.mxu0 %v5730
  %5796 = vmatpush2.bf16.msra.mxu0 %v5729
  %5797 = vmatprep.subr.bf16.mxu0 %v5728
  %5798 = vmatpush2.bf16.msra.mxu0 %v5727
  %5799 = vmatprep.subr.bf16.mxu0 %v5726
  %5800 = vmatpush2.bf16.msra.mxu0 %v5725
  %5801 = vmatprep.subr.bf16.mxu0 %v5724
  %5802 = vmatpush2.bf16.msra.mxu0 %v5723
  %5803 = vmatprep.mubr.bf16.mxu0 %v5577
  %5804 = vmatmul.mubr.bf16.gmra.mxu0 %v5576
  %v5805 = vpop.f32.mrf.mxu0
  %v5806 = vadd.f32 0.0, %v5805
  %v5807 = vpop.f32.mrf.mxu0
  %v5808 = vadd.f32 0.0, %v5807
  %v5809 = vpop.f32.mrf.mxu0
  %v5810 = vpop.f32.mrf.mxu0
  %5811 = vdwg.mxu0
  %v5812 = vadd.f32 %v5528, %v5806
  %v5813 = vadd.f32 %v5529, %v5808
  %v5814 = vrot.slane %v5812, 4
  %v5815 = vadd.f32 %v5812, %v5814
  %v5816 = vrot.slane %v5815, 2
  %v5817 = vadd.f32 %v5815, %v5816
  %v5818 = vrot.slane %v5817, 1
  %v5819 = vadd.f32 %v5817, %v5818
  %v5820 = vrot.slane %v5813, 4
  %v5821 = vadd.f32 %v5813, %v5820
  %v5822 = vrot.slane %v5821, 2
  %v5823 = vadd.f32 %v5821, %v5822
  %v5824 = vrot.slane %v5823, 1
  %v5825 = vadd.f32 %v5823, %v5824
  %v5826 = vmul.f32 %v5812, %v5812
  %v5827 = vmul.f32 %v5813, %v5813
  %v5828 = vrot.slane %v5826, 4
  %v5829 = vadd.f32 %v5826, %v5828
  %v5830 = vrot.slane %v5829, 2
  %v5831 = vadd.f32 %v5829, %v5830
  %v5832 = vrot.slane %v5831, 1
  %v5833 = vadd.f32 %v5831, %v5832
  %v5834 = vrot.slane %v5827, 4
  %v5835 = vadd.f32 %v5827, %v5834
  %v5836 = vrot.slane %v5835, 2
  %v5837 = vadd.f32 %v5835, %v5836
  %v5838 = vrot.slane %v5837, 1
  %v5839 = vadd.f32 %v5837, %v5838
  %v5840 = vld [vmem:[%s20] sm:$0xff]
  %v5841 = vld [vmem:[%s20 + $0x8] sm:$0xff]
  %v5842 = vld [vmem:[%s20 + $0x10] sm:$0xff]
  %v5843 = vld [vmem:[%s20 + $0x18] sm:$0xff]
  %v5844 = vld [vmem:[%s20 + $0x20] sm:$0xff]
  %v5845 = vld [vmem:[%s20 + $0x28] sm:$0xff]
  %v5846 = vld [vmem:[%s20 + $0x30] sm:$0xff]
  %v5847 = vld [vmem:[%s20 + $0x38] sm:$0xff]
  %v5848 = vld [vmem:[%s20 + $0x40] sm:$0xff]
  %v5849 = vld [vmem:[%s20 + $0x48] sm:$0xff]
  %v5850 = vld [vmem:[%s20 + $0x50] sm:$0xff]
  %v5851 = vld [vmem:[%s20 + $0x58] sm:$0xff]
  %v5852 = vld [vmem:[%s20 + $0x60] sm:$0xff]
  %v5853 = vld [vmem:[%s20 + $0x68] sm:$0xff]
  %v5854 = vld [vmem:[%s20 + $0x70] sm:$0xff]
  %v5855 = vld [vmem:[%s20 + $0x78] sm:$0xff]
  %v5856 = vld [vmem:[%s20 + $0x80] sm:$0xff]
  %v5857 = vld [vmem:[%s20 + $0x88] sm:$0xff]
  %v5858 = vld [vmem:[%s20 + $0x90] sm:$0xff]
  %v5859 = vld [vmem:[%s20 + $0x98] sm:$0xff]
  %v5860 = vld [vmem:[%s20 + $0xa0] sm:$0xff]
  %v5861 = vld [vmem:[%s20 + $0xa8] sm:$0xff]
  %v5862 = vld [vmem:[%s20 + $0xb0] sm:$0xff]
  %v5863 = vld [vmem:[%s20 + $0xb8] sm:$0xff]
  %v5864 = vld [vmem:[%s20 + $0xc0] sm:$0xff]
  %v5865 = vld [vmem:[%s20 + $0xc8] sm:$0xff]
  %v5866 = vld [vmem:[%s20 + $0xd0] sm:$0xff]
  %v5867 = vld [vmem:[%s20 + $0xd8] sm:$0xff]
  %v5868 = vld [vmem:[%s20 + $0xe0] sm:$0xff]
  %v5869 = vld [vmem:[%s20 + $0xe8] sm:$0xff]
  %v5870 = vld [vmem:[%s20 + $0xf0] sm:$0xff]
  %v5871 = vld [vmem:[%s20 + $0xf8] sm:$0xff]
  %5872 = vmatprep.subr.mxu0 0.0
  %5873 = vmatpush1.msra.mxu0 %v5855
  %5874 = vmatprep.subr.mxu0 0.0
  %5875 = vmatpush1.msra.mxu0 %v5854
  %5876 = vmatprep.subr.mxu0 0.0
  %5877 = vmatpush1.msra.mxu0 %v5853
  %5878 = vmatprep.subr.mxu0 0.0
  %5879 = vmatpush1.msra.mxu0 %v5852
  %5880 = vmatprep.subr.mxu0 0.0
  %5881 = vmatpush1.msra.mxu0 %v5851
  %5882 = vmatprep.subr.mxu0 0.0
  %5883 = vmatpush1.msra.mxu0 %v5850
  %5884 = vmatprep.subr.mxu0 0.0
  %5885 = vmatpush1.msra.mxu0 %v5849
  %5886 = vmatprep.subr.mxu0 0.0
  %5887 = vmatpush1.msra.mxu0 %v5848
  %5888 = vmatprep.subr.mxu0 0.0
  %5889 = vmatpush1.msra.mxu0 %v5847
  %5890 = vmatprep.subr.mxu0 0.0
  %5891 = vmatpush1.msra.mxu0 %v5846
  %5892 = vmatprep.subr.mxu0 0.0
  %5893 = vmatpush1.msra.mxu0 %v5845
  %5894 = vmatprep.subr.mxu0 0.0
  %5895 = vmatpush1.msra.mxu0 %v5844
  %5896 = vmatprep.subr.mxu0 0.0
  %5897 = vmatpush1.msra.mxu0 %v5843
  %5898 = vmatprep.subr.mxu0 0.0
  %5899 = vmatpush1.msra.mxu0 %v5842
  %5900 = vmatprep.subr.mxu0 0.0
  %5901 = vmatpush1.msra.mxu0 %v5841
  %5902 = vmatprep.subr.mxu0 0.0
  %5903 = vmatpush1.msra.mxu0 %v5840
  %5904 = vmatprep.subr.mxu0 0.0
  %5905 = vmatpush2.msra.mxu0 %v5871
  %5906 = vmatprep.subr.mxu0 0.0
  %5907 = vmatpush2.msra.mxu0 %v5870
  %5908 = vmatprep.subr.mxu0 0.0
  %5909 = vmatpush2.msra.mxu0 %v5869
  %5910 = vmatprep.subr.mxu0 0.0
  %5911 = vmatpush2.msra.mxu0 %v5868
  %5912 = vmatprep.subr.mxu0 0.0
  %5913 = vmatpush2.msra.mxu0 %v5867
  %5914 = vmatprep.subr.mxu0 0.0
  %5915 = vmatpush2.msra.mxu0 %v5866
  %5916 = vmatprep.subr.mxu0 0.0
  %5917 = vmatpush2.msra.mxu0 %v5865
  %5918 = vmatprep.subr.mxu0 0.0
  %5919 = vmatpush2.msra.mxu0 %v5864
  %5920 = vmatprep.subr.mxu0 0.0
  %5921 = vmatpush2.msra.mxu0 %v5863
  %5922 = vmatprep.subr.mxu0 0.0
  %5923 = vmatpush2.msra.mxu0 %v5862
  %5924 = vmatprep.subr.mxu0 0.0
  %5925 = vmatpush2.msra.mxu0 %v5861
  %5926 = vmatprep.subr.mxu0 0.0
  %5927 = vmatpush2.msra.mxu0 %v5860
  %5928 = vmatprep.subr.mxu0 0.0
  %5929 = vmatpush2.msra.mxu0 %v5859
  %5930 = vmatprep.subr.mxu0 0.0
  %5931 = vmatpush2.msra.mxu0 %v5858
  %5932 = vmatprep.subr.mxu0 0.0
  %5933 = vmatpush2.msra.mxu0 %v5857
  %5934 = vmatprep.subr.mxu0 0.0
  %5935 = vmatpush2.msra.mxu0 %v5856
  %5936 = vmatprep.mubr.f32.mxu0 %v5825
  %5937 = vmatmul.mubr.f32.gmra.mxu0 %v5819
  %v5938 = vpop.f32.mrf.mxu0
  %v5939 = vadd.f32 0.0, %v5938
  %v5940 = vpop.f32.mrf.mxu0
  %5941 = vdwg.mxu0
  %5942 = vmatprep.subr.mxu0 0.0
  %5943 = vmatpush1.msra.mxu0 %v5855
  %5944 = vmatprep.subr.mxu0 0.0
  %5945 = vmatpush1.msra.mxu0 %v5854
  %5946 = vmatprep.subr.mxu0 0.0
  %5947 = vmatpush1.msra.mxu0 %v5853
  %5948 = vmatprep.subr.mxu0 0.0
  %5949 = vmatpush1.msra.mxu0 %v5852
  %5950 = vmatprep.subr.mxu0 0.0
  %5951 = vmatpush1.msra.mxu0 %v5851
  %5952 = vmatprep.subr.mxu0 0.0
  %5953 = vmatpush1.msra.mxu0 %v5850
  %5954 = vmatprep.subr.mxu0 0.0
  %5955 = vmatpush1.msra.mxu0 %v5849
  %5956 = vmatprep.subr.mxu0 0.0
  %5957 = vmatpush1.msra.mxu0 %v5848
  %5958 = vmatprep.subr.mxu0 0.0
  %5959 = vmatpush1.msra.mxu0 %v5847
  %5960 = vmatprep.subr.mxu0 0.0
  %5961 = vmatpush1.msra.mxu0 %v5846
  %5962 = vmatprep.subr.mxu0 0.0
  %5963 = vmatpush1.msra.mxu0 %v5845
  %5964 = vmatprep.subr.mxu0 0.0
  %5965 = vmatpush1.msra.mxu0 %v5844
  %5966 = vmatprep.subr.mxu0 0.0
  %5967 = vmatpush1.msra.mxu0 %v5843
  %5968 = vmatprep.subr.mxu0 0.0
  %5969 = vmatpush1.msra.mxu0 %v5842
  %5970 = vmatprep.subr.mxu0 0.0
  %5971 = vmatpush1.msra.mxu0 %v5841
  %5972 = vmatprep.subr.mxu0 0.0
  %5973 = vmatpush1.msra.mxu0 %v5840
  %5974 = vmatprep.subr.mxu0 0.0
  %5975 = vmatpush2.msra.mxu0 %v5871
  %5976 = vmatprep.subr.mxu0 0.0
  %5977 = vmatpush2.msra.mxu0 %v5870
  %5978 = vmatprep.subr.mxu0 0.0
  %5979 = vmatpush2.msra.mxu0 %v5869
  %5980 = vmatprep.subr.mxu0 0.0
  %5981 = vmatpush2.msra.mxu0 %v5868
  %5982 = vmatprep.subr.mxu0 0.0
  %5983 = vmatpush2.msra.mxu0 %v5867
  %5984 = vmatprep.subr.mxu0 0.0
  %5985 = vmatpush2.msra.mxu0 %v5866
  %5986 = vmatprep.subr.mxu0 0.0
  %5987 = vmatpush2.msra.mxu0 %v5865
  %5988 = vmatprep.subr.mxu0 0.0
  %5989 = vmatpush2.msra.mxu0 %v5864
  %5990 = vmatprep.subr.mxu0 0.0
  %5991 = vmatpush2.msra.mxu0 %v5863
  %5992 = vmatprep.subr.mxu0 0.0
  %5993 = vmatpush2.msra.mxu0 %v5862
  %5994 = vmatprep.subr.mxu0 0.0
  %5995 = vmatpush2.msra.mxu0 %v5861
  %5996 = vmatprep.subr.mxu0 0.0
  %5997 = vmatpush2.msra.mxu0 %v5860
  %5998 = vmatprep.subr.mxu0 0.0
  %5999 = vmatpush2.msra.mxu0 %v5859
  %6000 = vmatprep.subr.mxu0 0.0
  %6001 = vmatpush2.msra.mxu0 %v5858
  %6002 = vmatprep.subr.mxu0 0.0
  %6003 = vmatpush2.msra.mxu0 %v5857
  %6004 = vmatprep.subr.mxu0 0.0
  %6005 = vmatpush2.msra.mxu0 %v5856
  %6006 = vmatprep.mubr.f32.mxu0 %v5839
  %6007 = vmatmul.mubr.f32.gmra.mxu0 %v5833
  %v6008 = vpop.f32.mrf.mxu0
  %v6009 = vadd.f32 0.0, %v6008
  %v6010 = vpop.f32.mrf.mxu0
  %6011 = vdwg.mxu0
  %v6012 = vmul.f32 %v5939, 0.03125
  %v6013 = vmul.f32 %v6009, 0.03125
  %v6014 = vmul.f32 %v6012, %v6012
  %v6015 = vsub.f32 %v6013, %v6014
  %v6016 = vadd.f32 %v6015, 1e-05
  %v6017 = vrsqrt.pop %v6016
  %v6018 = vld [vmem:[%s18] sm:$0x1]
  %v6019 = vmul.f32 %v6018, %v6017
  %v6020 = vld [vmem:[%s19] sm:$0x1]
  %v6021 = vmul.f32 %v6012, %v6019
  %v6022 = vsub.f32 %v6020, %v6021
  %v6023 = vld [vmem:[%s21] sm:$0xff]
  %v6024 = vld [vmem:[%s21 + $0x8] sm:$0xff]
  %v6025 = vld [vmem:[%s21 + $0x10] sm:$0xff]
  %v6026 = vld [vmem:[%s21 + $0x18] sm:$0xff]
  %v6027 = vld [vmem:[%s21 + $0x20] sm:$0xff]
  %v6028 = vld [vmem:[%s21 + $0x28] sm:$0xff]
  %v6029 = vld [vmem:[%s21 + $0x30] sm:$0xff]
  %v6030 = vld [vmem:[%s21 + $0x38] sm:$0xff]
  %v6031 = vld [vmem:[%s21 + $0x40] sm:$0xff]
  %v6032 = vld [vmem:[%s21 + $0x48] sm:$0xff]
  %v6033 = vld [vmem:[%s21 + $0x50] sm:$0xff]
  %v6034 = vld [vmem:[%s21 + $0x58] sm:$0xff]
  %v6035 = vld [vmem:[%s21 + $0x60] sm:$0xff]
  %v6036 = vld [vmem:[%s21 + $0x68] sm:$0xff]
  %v6037 = vld [vmem:[%s21 + $0x70] sm:$0xff]
  %v6038 = vld [vmem:[%s21 + $0x78] sm:$0xff]
  %v6040 = vsel %vm1363, %v6019, 0
  %6042 = vmatprep.subr.mxu0 0.0
  %6043 = vmatpush1.msra.mxu0 0.0
  %6044 = vmatprep.subr.mxu0 0.0
  %6045 = vmatpush1.msra.mxu0 0.0
  %6046 = vmatprep.subr.mxu0 0.0
  %6047 = vmatpush1.msra.mxu0 0.0
  %6048 = vmatprep.subr.mxu0 0.0
  %6049 = vmatpush1.msra.mxu0 0.0
  %6050 = vmatprep.subr.mxu0 0.0
  %6051 = vmatpush1.msra.mxu0 0.0
  %6052 = vmatprep.subr.mxu0 0.0
  %6053 = vmatpush1.msra.mxu0 0.0
  %6054 = vmatprep.subr.mxu0 0.0
  %6055 = vmatpush1.msra.mxu0 0.0
  %6056 = vmatprep.subr.mxu0 0.0
  %6057 = vmatpush1.msra.mxu0 0.0
  %6058 = vmatprep.subr.mxu0 %v6038
  %6059 = vmatpush1.msra.mxu0 %v6037
  %6060 = vmatprep.subr.mxu0 %v6036
  %6061 = vmatpush1.msra.mxu0 %v6035
  %6062 = vmatprep.subr.mxu0 %v6034
  %6063 = vmatpush1.msra.mxu0 %v6033
  %6064 = vmatprep.subr.mxu0 %v6032
  %6065 = vmatpush1.msra.mxu0 %v6031
  %6066 = vmatprep.subr.mxu0 %v6030
  %6067 = vmatpush1.msra.mxu0 %v6029
  %6068 = vmatprep.subr.mxu0 %v6028
  %6069 = vmatpush1.msra.mxu0 %v6027
  %6070 = vmatprep.subr.mxu0 %v6026
  %6071 = vmatpush1.msra.mxu0 %v6025
  %6072 = vmatprep.subr.mxu0 %v6024
  %6073 = vmatpush1.msra.mxu0 %v6023
  %6074 = vmatprep.subr.mxu0 0.0
  %6075 = vmatpush2.msra.mxu0 0.0
  %6076 = vmatprep.subr.mxu0 0.0
  %6077 = vmatpush2.msra.mxu0 0.0
  %6078 = vmatprep.subr.mxu0 0.0
  %6079 = vmatpush2.msra.mxu0 0.0
  %6080 = vmatprep.subr.mxu0 0.0
  %6081 = vmatpush2.msra.mxu0 0.0
  %6082 = vmatprep.subr.mxu0 0.0
  %6083 = vmatpush2.msra.mxu0 0.0
  %6084 = vmatprep.subr.mxu0 0.0
  %6085 = vmatpush2.msra.mxu0 0.0
  %6086 = vmatprep.subr.mxu0 0.0
  %6087 = vmatpush2.msra.mxu0 0.0
  %6088 = vmatprep.subr.mxu0 0.0
  %6089 = vmatpush2.msra.mxu0 0.0
  %6090 = vmatprep.subr.mxu0 0.0
  %6091 = vmatpush2.msra.mxu0 0.0
  %6092 = vmatprep.subr.mxu0 0.0
  %6093 = vmatpush2.msra.mxu0 0.0
  %6094 = vmatprep.subr.mxu0 0.0
  %6095 = vmatpush2.msra.mxu0 0.0
  %6096 = vmatprep.subr.mxu0 0.0
  %6097 = vmatpush2.msra.mxu0 0.0
  %6098 = vmatprep.subr.mxu0 0.0
  %6099 = vmatpush2.msra.mxu0 0.0
  %6100 = vmatprep.subr.mxu0 0.0
  %6101 = vmatpush2.msra.mxu0 0.0
  %6102 = vmatprep.subr.mxu0 0.0
  %6103 = vmatpush2.msra.mxu0 0.0
  %6104 = vmatprep.subr.mxu0 0.0
  %6105 = vmatpush2.msra.mxu0 0.0
  %6106 = vmatprep.mubr.f32.mxu0 0.0
  %6107 = vmatmul.mubr.f32.gmra.mxu0 %v6040
  %v6108 = vpop.f32.mrf.mxu0
  %v6109 = vadd.f32 0.0, %v6108
  %v6110 = vpop.f32.mrf.mxu0
  %v6111 = vadd.f32 0.0, %v6110
  %6112 = vdwg.mxu0
  %v6114 = vsel %vm1363, %v6022, 0
  %6116 = vmatprep.subr.mxu0 0.0
  %6117 = vmatpush1.msra.mxu0 0.0
  %6118 = vmatprep.subr.mxu0 0.0
  %6119 = vmatpush1.msra.mxu0 0.0
  %6120 = vmatprep.subr.mxu0 0.0
  %6121 = vmatpush1.msra.mxu0 0.0
  %6122 = vmatprep.subr.mxu0 0.0
  %6123 = vmatpush1.msra.mxu0 0.0
  %6124 = vmatprep.subr.mxu0 0.0
  %6125 = vmatpush1.msra.mxu0 0.0
  %6126 = vmatprep.subr.mxu0 0.0
  %6127 = vmatpush1.msra.mxu0 0.0
  %6128 = vmatprep.subr.mxu0 0.0
  %6129 = vmatpush1.msra.mxu0 0.0
  %6130 = vmatprep.subr.mxu0 0.0
  %6131 = vmatpush1.msra.mxu0 0.0
  %6132 = vmatprep.subr.mxu0 %v6038
  %6133 = vmatpush1.msra.mxu0 %v6037
  %6134 = vmatprep.subr.mxu0 %v6036
  %6135 = vmatpush1.msra.mxu0 %v6035
  %6136 = vmatprep.subr.mxu0 %v6034
  %6137 = vmatpush1.msra.mxu0 %v6033
  %6138 = vmatprep.subr.mxu0 %v6032
  %6139 = vmatpush1.msra.mxu0 %v6031
  %6140 = vmatprep.subr.mxu0 %v6030
  %6141 = vmatpush1.msra.mxu0 %v6029
  %6142 = vmatprep.subr.mxu0 %v6028
  %6143 = vmatpush1.msra.mxu0 %v6027
  %6144 = vmatprep.subr.mxu0 %v6026
  %6145 = vmatpush1.msra.mxu0 %v6025
  %6146 = vmatprep.subr.mxu0 %v6024
  %6147 = vmatpush1.msra.mxu0 %v6023
  %6148 = vmatprep.subr.mxu0 0.0
  %6149 = vmatpush2.msra.mxu0 0.0
  %6150 = vmatprep.subr.mxu0 0.0
  %6151 = vmatpush2.msra.mxu0 0.0
  %6152 = vmatprep.subr.mxu0 0.0
  %6153 = vmatpush2.msra.mxu0 0.0
  %6154 = vmatprep.subr.mxu0 0.0
  %6155 = vmatpush2.msra.mxu0 0.0
  %6156 = vmatprep.subr.mxu0 0.0
  %6157 = vmatpush2.msra.mxu0 0.0
  %6158 = vmatprep.subr.mxu0 0.0
  %6159 = vmatpush2.msra.mxu0 0.0
  %6160 = vmatprep.subr.mxu0 0.0
  %6161 = vmatpush2.msra.mxu0 0.0
  %6162 = vmatprep.subr.mxu0 0.0
  %6163 = vmatpush2.msra.mxu0 0.0
  %6164 = vmatprep.subr.mxu0 0.0
  %6165 = vmatpush2.msra.mxu0 0.0
  %6166 = vmatprep.subr.mxu0 0.0
  %6167 = vmatpush2.msra.mxu0 0.0
  %6168 = vmatprep.subr.mxu0 0.0
  %6169 = vmatpush2.msra.mxu0 0.0
  %6170 = vmatprep.subr.mxu0 0.0
  %6171 = vmatpush2.msra.mxu0 0.0
  %6172 = vmatprep.subr.mxu0 0.0
  %6173 = vmatpush2.msra.mxu0 0.0
  %6174 = vmatprep.subr.mxu0 0.0
  %6175 = vmatpush2.msra.mxu0 0.0
  %6176 = vmatprep.subr.mxu0 0.0
  %6177 = vmatpush2.msra.mxu0 0.0
  %6178 = vmatprep.subr.mxu0 0.0
  %6179 = vmatpush2.msra.mxu0 0.0
  %6180 = vmatprep.mubr.f32.mxu0 0.0
  %6181 = vmatmul.mubr.f32.gmra.mxu0 %v6114
  %v6182 = vpop.f32.mrf.mxu0
  %v6183 = vadd.f32 0.0, %v6182
  %v6184 = vpop.f32.mrf.mxu0
  %v6185 = vadd.f32 0.0, %v6184
  %6186 = vdwg.mxu0
  %v6187 = vlaneseq
  %v6188 = vshrl.u32 %v6187, 7
  %v6189 = vsub.s32 0, %v6188
  %v6190 = vrot.slane %v6109, %v6189
  %v6191 = vlaneseq
  %v6192 = vshrl.u32 %v6191, 7
  %v6193 = vsub.s32 0, %v6192
  %v6194 = vrot.slane %v6111, %v6193
  %v6195 = vmul.f32 %v5812, %v6190
  %v6196 = vmul.f32 %v5813, %v6194
  %v6197 = vlaneseq
  %v6198 = vshrl.u32 %v6197, 7
  %v6199 = vsub.s32 0, %v6198
  %v6200 = vrot.slane %v6183, %v6199
  %v6201 = vlaneseq
  %v6202 = vshrl.u32 %v6201, 7
  %v6203 = vsub.s32 0, %v6202
  %v6204 = vrot.slane %v6185, %v6203
  %v6205 = vadd.f32 %v6195, %v6200
  %v6206 = vadd.f32 %v6196, %v6204
  %vm6207 = vcmp.ge.f32.partialorder %v6205, 0.0
  %vm6208 = vcmp.ge.f32.partialorder %v6206, 0.0
  %v6209 = vmul.f32 %v6205, 0.2
  %v6210 = vmul.f32 %v6206, 0.2
  %v6211 = vsel %vm6207, %v6205, %v6209
  %v6212 = vsel %vm6208, %v6206, %v6210
  %v6213 = vpack.c.bf16 %v6211, %v6211
  %v6214 = vpack.c.bf16 %v6212, %v6212
  %v6215 = vld [vmem:[%s22] sm:$0x1]
  %vm6216 = vcmask 64512
  %v6218 = vsel %vm6216, %v6215, 0
  %vm6220 = vcmask 1043456
  %v6222 = vsel %vm6220, %v6213, 0
  %v6225 = vsel %vm6220, %v6214, 0
  %6227 = vmatprep.subr.bf16.mxu0 0
  %6228 = vmatpush1.bf16.msra.mxu0 0
  %6229 = vmatprep.subr.bf16.mxu0 0
  %6230 = vmatpush1.bf16.msra.mxu0 0
  %6231 = vmatprep.subr.bf16.mxu0 0
  %6232 = vmatpush1.bf16.msra.mxu0 0
  %6233 = vmatprep.subr.bf16.mxu0 0
  %6234 = vmatpush1.bf16.msra.mxu0 0
  %6235 = vmatprep.subr.bf16.mxu0 0
  %6236 = vmatpush1.bf16.msra.mxu0 0
  %6237 = vmatprep.subr.bf16.mxu0 0
  %6238 = vmatpush1.bf16.msra.mxu0 0
  %6239 = vmatprep.subr.bf16.mxu0 0
  %6240 = vmatpush1.bf16.msra.mxu0 0
  %6241 = vmatprep.subr.bf16.mxu0 %v6225
  %6242 = vmatpush1.bf16.msra.mxu0 %v6222
  %6243 = vmatprep.subr.bf16.mxu0 0
  %6244 = vmatpush2.bf16.msra.mxu0 0
  %6245 = vmatprep.subr.bf16.mxu0 0
  %6246 = vmatpush2.bf16.msra.mxu0 0
  %6247 = vmatprep.subr.bf16.mxu0 0
  %6248 = vmatpush2.bf16.msra.mxu0 0
  %6249 = vmatprep.subr.bf16.mxu0 0
  %6250 = vmatpush2.bf16.msra.mxu0 0
  %6251 = vmatprep.subr.bf16.mxu0 0
  %6252 = vmatpush2.bf16.msra.mxu0 0
  %6253 = vmatprep.subr.bf16.mxu0 0
  %6254 = vmatpush2.bf16.msra.mxu0 0
  %6255 = vmatprep.subr.bf16.mxu0 0
  %6256 = vmatpush2.bf16.msra.mxu0 0
  %6257 = vmatprep.subr.bf16.mxu0 0
  %6258 = vmatpush2.bf16.msra.mxu0 0
  %6259 = vmatprep.mubr.bf16.mxu0 0
  %6260 = vmatmul.mubr.bf16.gmra.mxu0 %v6218
  %v6261 = vpop.f32.mrf.mxu0
  %v6262 = vadd.f32 0.0, %v6261
  %v6263 = vpop.f32.mrf.mxu0
  %v6264 = vadd.f32 0.0, %v6263
  %v6265 = vpop.f32.mrf.mxu0
  %v6266 = vpop.f32.mrf.mxu0
  %6267 = vdwg.mxu0
  %v6268 = vpack.c.bf16 %v6262, %v6262
  %v6269 = vpack.c.bf16 %v6264, %v6264
  %v6270 = vld [vmem:[%s23] sm:$0xf]
  %v6271 = vld [vmem:[%s23 + $0x4] sm:$0xf]
  %v6272 = vld [vmem:[%s23 + $0x8] sm:$0xf]
  %v6273 = vld [vmem:[%s23 + $0xc] sm:$0xf]
  %v6274 = vld [vmem:[%s23 + $0x10] sm:$0xf]
  %v6275 = vld [vmem:[%s23 + $0x14] sm:$0xf]
  %v6276 = vld [vmem:[%s23 + $0x18] sm:$0xf]
  %v6277 = vld [vmem:[%s23 + $0x1c] sm:$0xf]
  %v6278 = vld [vmem:[%s23 + $0x20] sm:$0xf]
  %v6279 = vld [vmem:[%s23 + $0x24] sm:$0xf]
  %v6280 = vld [vmem:[%s23 + $0x28] sm:$0xf]
  %v6281 = vld [vmem:[%s23 + $0x2c] sm:$0xf]
  %v6282 = vld [vmem:[%s23 + $0x30] sm:$0xf]
  %v6283 = vld [vmem:[%s23 + $0x34] sm:$0xf]
  %v6284 = vld [vmem:[%s23 + $0x38] sm:$0xf]
  %v6285 = vld [vmem:[%s23 + $0x3c] sm:$0xf]
  %v6286 = vld [vmem:[%s23 + $0x40] sm:$0xf]
  %v6287 = vld [vmem:[%s23 + $0x44] sm:$0xf]
  %v6288 = vld [vmem:[%s23 + $0x48] sm:$0xf]
  %v6289 = vld [vmem:[%s23 + $0x4c] sm:$0xf]
  %v6290 = vld [vmem:[%s23 + $0x50] sm:$0xf]
  %v6291 = vld [vmem:[%s23 + $0x54] sm:$0xf]
  %v6292 = vld [vmem:[%s23 + $0x58] sm:$0xf]
  %v6293 = vld [vmem:[%s23 + $0x5c] sm:$0xf]
  %v6294 = vld [vmem:[%s23 + $0x60] sm:$0xf]
  %v6295 = vld [vmem:[%s23 + $0x64] sm:$0xf]
  %v6296 = vld [vmem:[%s23 + $0x68] sm:$0xf]
  %v6297 = vld [vmem:[%s23 + $0x6c] sm:$0xf]
  %v6298 = vld [vmem:[%s23 + $0x70] sm:$0xf]
  %v6299 = vld [vmem:[%s23 + $0x74] sm:$0xf]
  %v6300 = vld [vmem:[%s23 + $0x78] sm:$0xf]
  %v6301 = vld [vmem:[%s23 + $0x7c] sm:$0xf]
  %s6302 = scalar_lea.vmem %s22, 1
  %v6303 = vld [vmem:[%s6302] sm:$0x1]
  %v6305 = vsel %vm6216, %v6303, 0
  %6307 = vmatprep.subr.bf16.mxu0 0
  %6308 = vmatpush1.bf16.msra.mxu0 0
  %6309 = vmatprep.subr.bf16.mxu0 0
  %6310 = vmatpush1.bf16.msra.mxu0 0
  %6311 = vmatprep.subr.bf16.mxu0 0
  %6312 = vmatpush1.bf16.msra.mxu0 0
  %6313 = vmatprep.subr.bf16.mxu0 0
  %6314 = vmatpush1.bf16.msra.mxu0 0
  %6315 = vmatprep.subr.bf16.mxu0 0
  %6316 = vmatpush1.bf16.msra.mxu0 0
  %6317 = vmatprep.subr.bf16.mxu0 0
  %6318 = vmatpush1.bf16.msra.mxu0 0
  %6319 = vmatprep.subr.bf16.mxu0 0
  %6320 = vmatpush1.bf16.msra.mxu0 0
  %6321 = vmatprep.subr.bf16.mxu0 %v6225
  %6322 = vmatpush1.bf16.msra.mxu0 %v6222
  %6323 = vmatprep.subr.bf16.mxu0 0
  %6324 = vmatpush2.bf16.msra.mxu0 0
  %6325 = vmatprep.subr.bf16.mxu0 0
  %6326 = vmatpush2.bf16.msra.mxu0 0
  %6327 = vmatprep.subr.bf16.mxu0 0
  %6328 = vmatpush2.bf16.msra.mxu0 0
  %6329 = vmatprep.subr.bf16.mxu0 0
  %6330 = vmatpush2.bf16.msra.mxu0 0
  %6331 = vmatprep.subr.bf16.mxu0 0
  %6332 = vmatpush2.bf16.msra.mxu0 0
  %6333 = vmatprep.subr.bf16.mxu0 0
  %6334 = vmatpush2.bf16.msra.mxu0 0
  %6335 = vmatprep.subr.bf16.mxu0 0
  %6336 = vmatpush2.bf16.msra.mxu0 0
  %6337 = vmatprep.subr.bf16.mxu0 0
  %6338 = vmatpush2.bf16.msra.mxu0 0
  %6339 = vmatprep.mubr.bf16.mxu0 0
  %6340 = vmatmul.mubr.bf16.gmra.mxu0 %v6305
  %v6341 = vpop.f32.mrf.mxu0
  %v6342 = vadd.f32 0.0, %v6341
  %v6343 = vpop.f32.mrf.mxu0
  %v6344 = vadd.f32 0.0, %v6343
  %v6345 = vpop.f32.mrf.mxu0
  %v6346 = vpop.f32.mrf.mxu0
  %6347 = vdwg.mxu0
  %v6348 = vpack.c.bf16 %v6342, %v6342
  %v6349 = vpack.c.bf16 %v6344, %v6344
  %s6350 = scalar_lea.vmem %s23, 128
  %v6351 = vld [vmem:[%s6350] sm:$0xf]
  %v6352 = vld [vmem:[%s6350 + $0x4] sm:$0xf]
  %v6353 = vld [vmem:[%s6350 + $0x8] sm:$0xf]
  %v6354 = vld [vmem:[%s6350 + $0xc] sm:$0xf]
  %v6355 = vld [vmem:[%s6350 + $0x10] sm:$0xf]
  %v6356 = vld [vmem:[%s6350 + $0x14] sm:$0xf]
  %v6357 = vld [vmem:[%s6350 + $0x18] sm:$0xf]
  %v6358 = vld [vmem:[%s6350 + $0x1c] sm:$0xf]
  %v6359 = vld [vmem:[%s6350 + $0x20] sm:$0xf]
  %v6360 = vld [vmem:[%s6350 + $0x24] sm:$0xf]
  %v6361 = vld [vmem:[%s6350 + $0x28] sm:$0xf]
  %v6362 = vld [vmem:[%s6350 + $0x2c] sm:$0xf]
  %v6363 = vld [vmem:[%s6350 + $0x30] sm:$0xf]
  %v6364 = vld [vmem:[%s6350 + $0x34] sm:$0xf]
  %v6365 = vld [vmem:[%s6350 + $0x38] sm:$0xf]
  %v6366 = vld [vmem:[%s6350 + $0x3c] sm:$0xf]
  %v6367 = vld [vmem:[%s6350 + $0x40] sm:$0xf]
  %v6368 = vld [vmem:[%s6350 + $0x44] sm:$0xf]
  %v6369 = vld [vmem:[%s6350 + $0x48] sm:$0xf]
  %v6370 = vld [vmem:[%s6350 + $0x4c] sm:$0xf]
  %v6371 = vld [vmem:[%s6350 + $0x50] sm:$0xf]
  %v6372 = vld [vmem:[%s6350 + $0x54] sm:$0xf]
  %v6373 = vld [vmem:[%s6350 + $0x58] sm:$0xf]
  %v6374 = vld [vmem:[%s6350 + $0x5c] sm:$0xf]
  %v6375 = vld [vmem:[%s6350 + $0x60] sm:$0xf]
  %v6376 = vld [vmem:[%s6350 + $0x64] sm:$0xf]
  %v6377 = vld [vmem:[%s6350 + $0x68] sm:$0xf]
  %v6378 = vld [vmem:[%s6350 + $0x6c] sm:$0xf]
  %v6379 = vld [vmem:[%s6350 + $0x70] sm:$0xf]
  %v6380 = vld [vmem:[%s6350 + $0x74] sm:$0xf]
  %v6381 = vld [vmem:[%s6350 + $0x78] sm:$0xf]
  %v6382 = vld [vmem:[%s6350 + $0x7c] sm:$0xf]
  %v6415 = vunpack.c.l.b16 %v6351
  %v6416 = vunpack.c.l.b16 %v6352
  %v6417 = vunpack.c.l.b16 %v6353
  %v6418 = vunpack.c.l.b16 %v6354
  %v6419 = vunpack.c.l.b16 %v6355
  %v6420 = vunpack.c.l.b16 %v6356
  %v6421 = vunpack.c.l.b16 %v6357
  %v6422 = vunpack.c.l.b16 %v6358
  %v6423 = vunpack.c.l.b16 %v6359
  %v6424 = vunpack.c.l.b16 %v6360
  %v6425 = vunpack.c.l.b16 %v6361
  %v6426 = vunpack.c.l.b16 %v6362
  %v6427 = vunpack.c.l.b16 %v6363
  %v6428 = vunpack.c.l.b16 %v6364
  %v6429 = vunpack.c.l.b16 %v6365
  %v6430 = vunpack.c.l.b16 %v6366
  %v6431 = vunpack.c.l.b16 %v6367
  %v6432 = vunpack.c.l.b16 %v6368
  %v6433 = vunpack.c.l.b16 %v6369
  %v6434 = vunpack.c.l.b16 %v6370
  %v6435 = vunpack.c.l.b16 %v6371
  %v6436 = vunpack.c.l.b16 %v6372
  %v6437 = vunpack.c.l.b16 %v6373
  %v6438 = vunpack.c.l.b16 %v6374
  %v6439 = vunpack.c.l.b16 %v6375
  %v6440 = vunpack.c.l.b16 %v6376
  %v6441 = vunpack.c.l.b16 %v6377
  %v6442 = vunpack.c.l.b16 %v6378
  %v6443 = vunpack.c.l.b16 %v6379
  %v6444 = vunpack.c.l.b16 %v6380
  %v6445 = vunpack.c.l.b16 %v6381
  %v6446 = vunpack.c.l.b16 %v6382
  %v6447 = vpack.c.b16 %v6416, %v6415
  %v6448 = vpack.c.b16 %v6418, %v6417
  %v6449 = vpack.c.b16 %v6420, %v6419
  %v6450 = vpack.c.b16 %v6422, %v6421
  %v6451 = vpack.c.b16 %v6424, %v6423
  %v6452 = vpack.c.b16 %v6426, %v6425
  %v6453 = vpack.c.b16 %v6428, %v6427
  %v6454 = vpack.c.b16 %v6430, %v6429
  %v6455 = vpack.c.b16 %v6432, %v6431
  %v6456 = vpack.c.b16 %v6434, %v6433
  %v6457 = vpack.c.b16 %v6436, %v6435
  %v6458 = vpack.c.b16 %v6438, %v6437
  %v6459 = vpack.c.b16 %v6440, %v6439
  %v6460 = vpack.c.b16 %v6442, %v6441
  %v6461 = vpack.c.b16 %v6444, %v6443
  %v6462 = vpack.c.b16 %v6446, %v6445
  %6479 = vmatprep.subr.bf16.mxu0 0
  %6480 = vmatpush1.bf16.msra.mxu0 %v6454
  %6481 = vmatprep.subr.bf16.mxu0 0
  %6482 = vmatpush1.bf16.msra.mxu0 %v6453
  %6483 = vmatprep.subr.bf16.mxu0 0
  %6484 = vmatpush1.bf16.msra.mxu0 %v6452
  %6485 = vmatprep.subr.bf16.mxu0 0
  %6486 = vmatpush1.bf16.msra.mxu0 %v6451
  %6487 = vmatprep.subr.bf16.mxu0 0
  %6488 = vmatpush1.bf16.msra.mxu0 %v6450
  %6489 = vmatprep.subr.bf16.mxu0 0
  %6490 = vmatpush1.bf16.msra.mxu0 %v6449
  %6491 = vmatprep.subr.bf16.mxu0 0
  %6492 = vmatpush1.bf16.msra.mxu0 %v6448
  %6493 = vmatprep.subr.bf16.mxu0 0
  %6494 = vmatpush1.bf16.msra.mxu0 %v6447
  %6495 = vmatprep.subr.bf16.mxu0 0
  %6496 = vmatpush2.bf16.msra.mxu0 %v6462
  %6497 = vmatprep.subr.bf16.mxu0 0
  %6498 = vmatpush2.bf16.msra.mxu0 %v6461
  %6499 = vmatprep.subr.bf16.mxu0 0
  %6500 = vmatpush2.bf16.msra.mxu0 %v6460
  %6501 = vmatprep.subr.bf16.mxu0 0
  %6502 = vmatpush2.bf16.msra.mxu0 %v6459
  %6503 = vmatprep.subr.bf16.mxu0 0
  %6504 = vmatpush2.bf16.msra.mxu0 %v6458
  %6505 = vmatprep.subr.bf16.mxu0 0
  %6506 = vmatpush2.bf16.msra.mxu0 %v6457
  %6507 = vmatprep.subr.bf16.mxu0 0
  %6508 = vmatpush2.bf16.msra.mxu0 %v6456
  %6509 = vmatprep.subr.bf16.mxu0 0
  %6510 = vmatpush2.bf16.msra.mxu0 %v6455
  %6511 = vmatprep.mubr.bf16.mxu0 %v6349
  %6512 = vmatmul.mubr.bf16.gmra.mxu0 %v6348
  %v6513 = vpop.f32.mrf.mxu0
  %v6514 = vadd.f32 0.0, %v6513
  %v6515 = vpop.f32.mrf.mxu0
  %v6516 = vpop.f32.mrf.mxu0
  %v6517 = vpop.f32.mrf.mxu0
  %6518 = vdwg.mxu0
  %v6551 = vunpack.c.l.b16 %v6270
  %v6552 = vunpack.c.l.b16 %v6271
  %v6553 = vunpack.c.l.b16 %v6272
  %v6554 = vunpack.c.l.b16 %v6273
  %v6555 = vunpack.c.l.b16 %v6274
  %v6556 = vunpack.c.l.b16 %v6275
  %v6557 = vunpack.c.l.b16 %v6276
  %v6558 = vunpack.c.l.b16 %v6277
  %v6559 = vunpack.c.l.b16 %v6278
  %v6560 = vunpack.c.l.b16 %v6279
  %v6561 = vunpack.c.l.b16 %v6280
  %v6562 = vunpack.c.l.b16 %v6281
  %v6563 = vunpack.c.l.b16 %v6282
  %v6564 = vunpack.c.l.b16 %v6283
  %v6565 = vunpack.c.l.b16 %v6284
  %v6566 = vunpack.c.l.b16 %v6285
  %v6567 = vunpack.c.l.b16 %v6286
  %v6568 = vunpack.c.l.b16 %v6287
  %v6569 = vunpack.c.l.b16 %v6288
  %v6570 = vunpack.c.l.b16 %v6289
  %v6571 = vunpack.c.l.b16 %v6290
  %v6572 = vunpack.c.l.b16 %v6291
  %v6573 = vunpack.c.l.b16 %v6292
  %v6574 = vunpack.c.l.b16 %v6293
  %v6575 = vunpack.c.l.b16 %v6294
  %v6576 = vunpack.c.l.b16 %v6295
  %v6577 = vunpack.c.l.b16 %v6296
  %v6578 = vunpack.c.l.b16 %v6297
  %v6579 = vunpack.c.l.b16 %v6298
  %v6580 = vunpack.c.l.b16 %v6299
  %v6581 = vunpack.c.l.b16 %v6300
  %v6582 = vunpack.c.l.b16 %v6301
  %v6583 = vpack.c.b16 %v6552, %v6551
  %v6584 = vpack.c.b16 %v6554, %v6553
  %v6585 = vpack.c.b16 %v6556, %v6555
  %v6586 = vpack.c.b16 %v6558, %v6557
  %v6587 = vpack.c.b16 %v6560, %v6559
  %v6588 = vpack.c.b16 %v6562, %v6561
  %v6589 = vpack.c.b16 %v6564, %v6563
  %v6590 = vpack.c.b16 %v6566, %v6565
  %v6591 = vpack.c.b16 %v6568, %v6567
  %v6592 = vpack.c.b16 %v6570, %v6569
  %v6593 = vpack.c.b16 %v6572, %v6571
  %v6594 = vpack.c.b16 %v6574, %v6573
  %v6595 = vpack.c.b16 %v6576, %v6575
  %v6596 = vpack.c.b16 %v6578, %v6577
  %v6597 = vpack.c.b16 %v6580, %v6579
  %v6598 = vpack.c.b16 %v6582, %v6581
  %6615 = vmatprep.subr.bf16.mxu0 0
  %6616 = vmatpush1.bf16.msra.mxu0 %v6590
  %6617 = vmatprep.subr.bf16.mxu0 0
  %6618 = vmatpush1.bf16.msra.mxu0 %v6589
  %6619 = vmatprep.subr.bf16.mxu0 0
  %6620 = vmatpush1.bf16.msra.mxu0 %v6588
  %6621 = vmatprep.subr.bf16.mxu0 0
  %6622 = vmatpush1.bf16.msra.mxu0 %v6587
  %6623 = vmatprep.subr.bf16.mxu0 0
  %6624 = vmatpush1.bf16.msra.mxu0 %v6586
  %6625 = vmatprep.subr.bf16.mxu0 0
  %6626 = vmatpush1.bf16.msra.mxu0 %v6585
  %6627 = vmatprep.subr.bf16.mxu0 0
  %6628 = vmatpush1.bf16.msra.mxu0 %v6584
  %6629 = vmatprep.subr.bf16.mxu0 0
  %6630 = vmatpush1.bf16.msra.mxu0 %v6583
  %6631 = vmatprep.subr.bf16.mxu0 0
  %6632 = vmatpush2.bf16.msra.mxu0 %v6598
  %6633 = vmatprep.subr.bf16.mxu0 0
  %6634 = vmatpush2.bf16.msra.mxu0 %v6597
  %6635 = vmatprep.subr.bf16.mxu0 0
  %6636 = vmatpush2.bf16.msra.mxu0 %v6596
  %6637 = vmatprep.subr.bf16.mxu0 0
  %6638 = vmatpush2.bf16.msra.mxu0 %v6595
  %6639 = vmatprep.subr.bf16.mxu0 0
  %6640 = vmatpush2.bf16.msra.mxu0 %v6594
  %6641 = vmatprep.subr.bf16.mxu0 0
  %6642 = vmatpush2.bf16.msra.mxu0 %v6593
  %6643 = vmatprep.subr.bf16.mxu0 0
  %6644 = vmatpush2.bf16.msra.mxu0 %v6592
  %6645 = vmatprep.subr.bf16.mxu0 0
  %6646 = vmatpush2.bf16.msra.mxu0 %v6591
  %6647 = vmatprep.mubr.bf16.mxu0 %v6269
  %6648 = vmatmul.mubr.bf16.gmra.mxu0 %v6268
  %v6649 = vpop.f32.mrf.mxu0
  %v6650 = vadd.f32 %v6514, %v6649
  %v6651 = vpop.f32.mrf.mxu0
  %v6652 = vpop.f32.mrf.mxu0
  %v6653 = vpop.f32.mrf.mxu0
  %6654 = vdwg.mxu0
  %s6655 = scalar_lea.vmem %s22, 2
  %v6656 = vld [vmem:[%s6655] sm:$0x1]
  %v6658 = vsel %vm6216, %v6656, 0
  %6660 = vmatprep.subr.bf16.mxu0 0
  %6661 = vmatpush1.bf16.msra.mxu0 0
  %6662 = vmatprep.subr.bf16.mxu0 0
  %6663 = vmatpush1.bf16.msra.mxu0 0
  %6664 = vmatprep.subr.bf16.mxu0 0
  %6665 = vmatpush1.bf16.msra.mxu0 0
  %6666 = vmatprep.subr.bf16.mxu0 0
  %6667 = vmatpush1.bf16.msra.mxu0 0
  %6668 = vmatprep.subr.bf16.mxu0 0
  %6669 = vmatpush1.bf16.msra.mxu0 0
  %6670 = vmatprep.subr.bf16.mxu0 0
  %6671 = vmatpush1.bf16.msra.mxu0 0
  %6672 = vmatprep.subr.bf16.mxu0 0
  %6673 = vmatpush1.bf16.msra.mxu0 0
  %6674 = vmatprep.subr.bf16.mxu0 %v6225
  %6675 = vmatpush1.bf16.msra.mxu0 %v6222
  %6676 = vmatprep.subr.bf16.mxu0 0
  %6677 = vmatpush2.bf16.msra.mxu0 0
  %6678 = vmatprep.subr.bf16.mxu0 0
  %6679 = vmatpush2.bf16.msra.mxu0 0
  %6680 = vmatprep.subr.bf16.mxu0 0
  %6681 = vmatpush2.bf16.msra.mxu0 0
  %6682 = vmatprep.subr.bf16.mxu0 0
  %6683 = vmatpush2.bf16.msra.mxu0 0
  %6684 = vmatprep.subr.bf16.mxu0 0
  %6685 = vmatpush2.bf16.msra.mxu0 0
  %6686 = vmatprep.subr.bf16.mxu0 0
  %6687 = vmatpush2.bf16.msra.mxu0 0
  %6688 = vmatprep.subr.bf16.mxu0 0
  %6689 = vmatpush2.bf16.msra.mxu0 0
  %6690 = vmatprep.subr.bf16.mxu0 0
  %6691 = vmatpush2.bf16.msra.mxu0 0
  %6692 = vmatprep.mubr.bf16.mxu0 0
  %6693 = vmatmul.mubr.bf16.gmra.mxu0 %v6658
  %v6694 = vpop.f32.mrf.mxu0
  %v6695 = vadd.f32 0.0, %v6694
  %v6696 = vpop.f32.mrf.mxu0
  %v6697 = vadd.f32 0.0, %v6696
  %v6698 = vpop.f32.mrf.mxu0
  %v6699 = vpop.f32.mrf.mxu0
  %6700 = vdwg.mxu0
  %v6701 = vpack.c.bf16 %v6695, %v6695
  %v6702 = vpack.c.bf16 %v6697, %v6697
  %s6703 = scalar_lea.vmem %s23, 256
  %v6704 = vld [vmem:[%s6703] sm:$0xf]
  %v6705 = vld [vmem:[%s6703 + $0x4] sm:$0xf]
  %v6706 = vld [vmem:[%s6703 + $0x8] sm:$0xf]
  %v6707 = vld [vmem:[%s6703 + $0xc] sm:$0xf]
  %v6708 = vld [vmem:[%s6703 + $0x10] sm:$0xf]
  %v6709 = vld [vmem:[%s6703 + $0x14] sm:$0xf]
  %v6710 = vld [vmem:[%s6703 + $0x18] sm:$0xf]
  %v6711 = vld [vmem:[%s6703 + $0x1c] sm:$0xf]
  %v6712 = vld [vmem:[%s6703 + $0x20] sm:$0xf]
  %v6713 = vld [vmem:[%s6703 + $0x24] sm:$0xf]
  %v6714 = vld [vmem:[%s6703 + $0x28] sm:$0xf]
  %v6715 = vld [vmem:[%s6703 + $0x2c] sm:$0xf]
  %v6716 = vld [vmem:[%s6703 + $0x30] sm:$0xf]
  %v6717 = vld [vmem:[%s6703 + $0x34] sm:$0xf]
  %v6718 = vld [vmem:[%s6703 + $0x38] sm:$0xf]
  %v6719 = vld [vmem:[%s6703 + $0x3c] sm:$0xf]
  %v6720 = vld [vmem:[%s6703 + $0x40] sm:$0xf]
  %v6721 = vld [vmem:[%s6703 + $0x44] sm:$0xf]
  %v6722 = vld [vmem:[%s6703 + $0x48] sm:$0xf]
  %v6723 = vld [vmem:[%s6703 + $0x4c] sm:$0xf]
  %v6724 = vld [vmem:[%s6703 + $0x50] sm:$0xf]
  %v6725 = vld [vmem:[%s6703 + $0x54] sm:$0xf]
  %v6726 = vld [vmem:[%s6703 + $0x58] sm:$0xf]
  %v6727 = vld [vmem:[%s6703 + $0x5c] sm:$0xf]
  %v6728 = vld [vmem:[%s6703 + $0x60] sm:$0xf]
  %v6729 = vld [vmem:[%s6703 + $0x64] sm:$0xf]
  %v6730 = vld [vmem:[%s6703 + $0x68] sm:$0xf]
  %v6731 = vld [vmem:[%s6703 + $0x6c] sm:$0xf]
  %v6732 = vld [vmem:[%s6703 + $0x70] sm:$0xf]
  %v6733 = vld [vmem:[%s6703 + $0x74] sm:$0xf]
  %v6734 = vld [vmem:[%s6703 + $0x78] sm:$0xf]
  %v6735 = vld [vmem:[%s6703 + $0x7c] sm:$0xf]
  %v6768 = vunpack.c.l.b16 %v6704
  %v6769 = vunpack.c.l.b16 %v6705
  %v6770 = vunpack.c.l.b16 %v6706
  %v6771 = vunpack.c.l.b16 %v6707
  %v6772 = vunpack.c.l.b16 %v6708
  %v6773 = vunpack.c.l.b16 %v6709
  %v6774 = vunpack.c.l.b16 %v6710
  %v6775 = vunpack.c.l.b16 %v6711
  %v6776 = vunpack.c.l.b16 %v6712
  %v6777 = vunpack.c.l.b16 %v6713
  %v6778 = vunpack.c.l.b16 %v6714
  %v6779 = vunpack.c.l.b16 %v6715
  %v6780 = vunpack.c.l.b16 %v6716
  %v6781 = vunpack.c.l.b16 %v6717
  %v6782 = vunpack.c.l.b16 %v6718
  %v6783 = vunpack.c.l.b16 %v6719
  %v6784 = vunpack.c.l.b16 %v6720
  %v6785 = vunpack.c.l.b16 %v6721
  %v6786 = vunpack.c.l.b16 %v6722
  %v6787 = vunpack.c.l.b16 %v6723
  %v6788 = vunpack.c.l.b16 %v6724
  %v6789 = vunpack.c.l.b16 %v6725
  %v6790 = vunpack.c.l.b16 %v6726
  %v6791 = vunpack.c.l.b16 %v6727
  %v6792 = vunpack.c.l.b16 %v6728
  %v6793 = vunpack.c.l.b16 %v6729
  %v6794 = vunpack.c.l.b16 %v6730
  %v6795 = vunpack.c.l.b16 %v6731
  %v6796 = vunpack.c.l.b16 %v6732
  %v6797 = vunpack.c.l.b16 %v6733
  %v6798 = vunpack.c.l.b16 %v6734
  %v6799 = vunpack.c.l.b16 %v6735
  %v6800 = vpack.c.b16 %v6769, %v6768
  %v6801 = vpack.c.b16 %v6771, %v6770
  %v6802 = vpack.c.b16 %v6773, %v6772
  %v6803 = vpack.c.b16 %v6775, %v6774
  %v6804 = vpack.c.b16 %v6777, %v6776
  %v6805 = vpack.c.b16 %v6779, %v6778
  %v6806 = vpack.c.b16 %v6781, %v6780
  %v6807 = vpack.c.b16 %v6783, %v6782
  %v6808 = vpack.c.b16 %v6785, %v6784
  %v6809 = vpack.c.b16 %v6787, %v6786
  %v6810 = vpack.c.b16 %v6789, %v6788
  %v6811 = vpack.c.b16 %v6791, %v6790
  %v6812 = vpack.c.b16 %v6793, %v6792
  %v6813 = vpack.c.b16 %v6795, %v6794
  %v6814 = vpack.c.b16 %v6797, %v6796
  %v6815 = vpack.c.b16 %v6799, %v6798
  %6832 = vmatprep.subr.bf16.mxu0 0
  %6833 = vmatpush1.bf16.msra.mxu0 %v6807
  %6834 = vmatprep.subr.bf16.mxu0 0
  %6835 = vmatpush1.bf16.msra.mxu0 %v6806
  %6836 = vmatprep.subr.bf16.mxu0 0
  %6837 = vmatpush1.bf16.msra.mxu0 %v6805
  %6838 = vmatprep.subr.bf16.mxu0 0
  %6839 = vmatpush1.bf16.msra.mxu0 %v6804
  %6840 = vmatprep.subr.bf16.mxu0 0
  %6841 = vmatpush1.bf16.msra.mxu0 %v6803
  %6842 = vmatprep.subr.bf16.mxu0 0
  %6843 = vmatpush1.bf16.msra.mxu0 %v6802
  %6844 = vmatprep.subr.bf16.mxu0 0
  %6845 = vmatpush1.bf16.msra.mxu0 %v6801
  %6846 = vmatprep.subr.bf16.mxu0 0
  %6847 = vmatpush1.bf16.msra.mxu0 %v6800
  %6848 = vmatprep.subr.bf16.mxu0 0
  %6849 = vmatpush2.bf16.msra.mxu0 %v6815
  %6850 = vmatprep.subr.bf16.mxu0 0
  %6851 = vmatpush2.bf16.msra.mxu0 %v6814
  %6852 = vmatprep.subr.bf16.mxu0 0
  %6853 = vmatpush2.bf16.msra.mxu0 %v6813
  %6854 = vmatprep.subr.bf16.mxu0 0
  %6855 = vmatpush2.bf16.msra.mxu0 %v6812
  %6856 = vmatprep.subr.bf16.mxu0 0
  %6857 = vmatpush2.bf16.msra.mxu0 %v6811
  %6858 = vmatprep.subr.bf16.mxu0 0
  %6859 = vmatpush2.bf16.msra.mxu0 %v6810
  %6860 = vmatprep.subr.bf16.mxu0 0
  %6861 = vmatpush2.bf16.msra.mxu0 %v6809
  %6862 = vmatprep.subr.bf16.mxu0 0
  %6863 = vmatpush2.bf16.msra.mxu0 %v6808
  %6864 = vmatprep.mubr.bf16.mxu0 %v6702
  %6865 = vmatmul.mubr.bf16.gmra.mxu0 %v6701
  %v6866 = vpop.f32.mrf.mxu0
  %v6867 = vadd.f32 0.0, %v6866
  %v6868 = vpop.f32.mrf.mxu0
  %v6869 = vpop.f32.mrf.mxu0
  %v6870 = vpop.f32.mrf.mxu0
  %6871 = vdwg.mxu0
  %v6872 = vadd.f32 %v6650, %v6867
  %s6873 = scalar_lea.vmem %s22, 3
  %v6874 = vld [vmem:[%s6873] sm:$0x1]
  %v6876 = vsel %vm6216, %v6874, 0
  %6878 = vmatprep.subr.bf16.mxu0 0
  %6879 = vmatpush1.bf16.msra.mxu0 0
  %6880 = vmatprep.subr.bf16.mxu0 0
  %6881 = vmatpush1.bf16.msra.mxu0 0
  %6882 = vmatprep.subr.bf16.mxu0 0
  %6883 = vmatpush1.bf16.msra.mxu0 0
  %6884 = vmatprep.subr.bf16.mxu0 0
  %6885 = vmatpush1.bf16.msra.mxu0 0
  %6886 = vmatprep.subr.bf16.mxu0 0
  %6887 = vmatpush1.bf16.msra.mxu0 0
  %6888 = vmatprep.subr.bf16.mxu0 0
  %6889 = vmatpush1.bf16.msra.mxu0 0
  %6890 = vmatprep.subr.bf16.mxu0 0
  %6891 = vmatpush1.bf16.msra.mxu0 0
  %6892 = vmatprep.subr.bf16.mxu0 %v6225
  %6893 = vmatpush1.bf16.msra.mxu0 %v6222
  %6894 = vmatprep.subr.bf16.mxu0 0
  %6895 = vmatpush2.bf16.msra.mxu0 0
  %6896 = vmatprep.subr.bf16.mxu0 0
  %6897 = vmatpush2.bf16.msra.mxu0 0
  %6898 = vmatprep.subr.bf16.mxu0 0
  %6899 = vmatpush2.bf16.msra.mxu0 0
  %6900 = vmatprep.subr.bf16.mxu0 0
  %6901 = vmatpush2.bf16.msra.mxu0 0
  %6902 = vmatprep.subr.bf16.mxu0 0
  %6903 = vmatpush2.bf16.msra.mxu0 0
  %6904 = vmatprep.subr.bf16.mxu0 0
  %6905 = vmatpush2.bf16.msra.mxu0 0
  %6906 = vmatprep.subr.bf16.mxu0 0
  %6907 = vmatpush2.bf16.msra.mxu0 0
  %6908 = vmatprep.subr.bf16.mxu0 0
  %6909 = vmatpush2.bf16.msra.mxu0 0
  %6910 = vmatprep.mubr.bf16.mxu0 0
  %6911 = vmatmul.mubr.bf16.gmra.mxu0 %v6876
  %v6912 = vpop.f32.mrf.mxu0
  %v6913 = vadd.f32 0.0, %v6912
  %v6914 = vpop.f32.mrf.mxu0
  %v6915 = vadd.f32 0.0, %v6914
  %v6916 = vpop.f32.mrf.mxu0
  %v6917 = vpop.f32.mrf.mxu0
  %6918 = vdwg.mxu0
  %v6919 = vpack.c.bf16 %v6913, %v6913
  %v6920 = vpack.c.bf16 %v6915, %v6915
  %s6921 = scalar_lea.vmem %s23, 384
  %v6922 = vld [vmem:[%s6921] sm:$0xf]
  %v6923 = vld [vmem:[%s6921 + $0x4] sm:$0xf]
  %v6924 = vld [vmem:[%s6921 + $0x8] sm:$0xf]
  %v6925 = vld [vmem:[%s6921 + $0xc] sm:$0xf]
  %v6926 = vld [vmem:[%s6921 + $0x10] sm:$0xf]
  %v6927 = vld [vmem:[%s6921 + $0x14] sm:$0xf]
  %v6928 = vld [vmem:[%s6921 + $0x18] sm:$0xf]
  %v6929 = vld [vmem:[%s6921 + $0x1c] sm:$0xf]
  %v6930 = vld [vmem:[%s6921 + $0x20] sm:$0xf]
  %v6931 = vld [vmem:[%s6921 + $0x24] sm:$0xf]
  %v6932 = vld [vmem:[%s6921 + $0x28] sm:$0xf]
  %v6933 = vld [vmem:[%s6921 + $0x2c] sm:$0xf]
  %v6934 = vld [vmem:[%s6921 + $0x30] sm:$0xf]
  %v6935 = vld [vmem:[%s6921 + $0x34] sm:$0xf]
  %v6936 = vld [vmem:[%s6921 + $0x38] sm:$0xf]
  %v6937 = vld [vmem:[%s6921 + $0x3c] sm:$0xf]
  %v6938 = vld [vmem:[%s6921 + $0x40] sm:$0xf]
  %v6939 = vld [vmem:[%s6921 + $0x44] sm:$0xf]
  %v6940 = vld [vmem:[%s6921 + $0x48] sm:$0xf]
  %v6941 = vld [vmem:[%s6921 + $0x4c] sm:$0xf]
  %v6942 = vld [vmem:[%s6921 + $0x50] sm:$0xf]
  %v6943 = vld [vmem:[%s6921 + $0x54] sm:$0xf]
  %v6944 = vld [vmem:[%s6921 + $0x58] sm:$0xf]
  %v6945 = vld [vmem:[%s6921 + $0x5c] sm:$0xf]
  %v6946 = vld [vmem:[%s6921 + $0x60] sm:$0xf]
  %v6947 = vld [vmem:[%s6921 + $0x64] sm:$0xf]
  %v6948 = vld [vmem:[%s6921 + $0x68] sm:$0xf]
  %v6949 = vld [vmem:[%s6921 + $0x6c] sm:$0xf]
  %v6950 = vld [vmem:[%s6921 + $0x70] sm:$0xf]
  %v6951 = vld [vmem:[%s6921 + $0x74] sm:$0xf]
  %v6952 = vld [vmem:[%s6921 + $0x78] sm:$0xf]
  %v6953 = vld [vmem:[%s6921 + $0x7c] sm:$0xf]
  %v6986 = vunpack.c.l.b16 %v6922
  %v6987 = vunpack.c.l.b16 %v6923
  %v6988 = vunpack.c.l.b16 %v6924
  %v6989 = vunpack.c.l.b16 %v6925
  %v6990 = vunpack.c.l.b16 %v6926
  %v6991 = vunpack.c.l.b16 %v6927
  %v6992 = vunpack.c.l.b16 %v6928
  %v6993 = vunpack.c.l.b16 %v6929
  %v6994 = vunpack.c.l.b16 %v6930
  %v6995 = vunpack.c.l.b16 %v6931
  %v6996 = vunpack.c.l.b16 %v6932
  %v6997 = vunpack.c.l.b16 %v6933
  %v6998 = vunpack.c.l.b16 %v6934
  %v6999 = vunpack.c.l.b16 %v6935
  %v7000 = vunpack.c.l.b16 %v6936
  %v7001 = vunpack.c.l.b16 %v6937
  %v7002 = vunpack.c.l.b16 %v6938
  %v7003 = vunpack.c.l.b16 %v6939
  %v7004 = vunpack.c.l.b16 %v6940
  %v7005 = vunpack.c.l.b16 %v6941
  %v7006 = vunpack.c.l.b16 %v6942
  %v7007 = vunpack.c.l.b16 %v6943
  %v7008 = vunpack.c.l.b16 %v6944
  %v7009 = vunpack.c.l.b16 %v6945
  %v7010 = vunpack.c.l.b16 %v6946
  %v7011 = vunpack.c.l.b16 %v6947
  %v7012 = vunpack.c.l.b16 %v6948
  %v7013 = vunpack.c.l.b16 %v6949
  %v7014 = vunpack.c.l.b16 %v6950
  %v7015 = vunpack.c.l.b16 %v6951
  %v7016 = vunpack.c.l.b16 %v6952
  %v7017 = vunpack.c.l.b16 %v6953
  %v7018 = vpack.c.b16 %v6987, %v6986
  %v7019 = vpack.c.b16 %v6989, %v6988
  %v7020 = vpack.c.b16 %v6991, %v6990
  %v7021 = vpack.c.b16 %v6993, %v6992
  %v7022 = vpack.c.b16 %v6995, %v6994
  %v7023 = vpack.c.b16 %v6997, %v6996
  %v7024 = vpack.c.b16 %v6999, %v6998
  %v7025 = vpack.c.b16 %v7001, %v7000
  %v7026 = vpack.c.b16 %v7003, %v7002
  %v7027 = vpack.c.b16 %v7005, %v7004
  %v7028 = vpack.c.b16 %v7007, %v7006
  %v7029 = vpack.c.b16 %v7009, %v7008
  %v7030 = vpack.c.b16 %v7011, %v7010
  %v7031 = vpack.c.b16 %v7013, %v7012
  %v7032 = vpack.c.b16 %v7015, %v7014
  %v7033 = vpack.c.b16 %v7017, %v7016
  %7050 = vmatprep.subr.bf16.mxu0 0
  %7051 = vmatpush1.bf16.msra.mxu0 %v7025
  %7052 = vmatprep.subr.bf16.mxu0 0
  %7053 = vmatpush1.bf16.msra.mxu0 %v7024
  %7054 = vmatprep.subr.bf16.mxu0 0
  %7055 = vmatpush1.bf16.msra.mxu0 %v7023
  %7056 = vmatprep.subr.bf16.mxu0 0
  %7057 = vmatpush1.bf16.msra.mxu0 %v7022
  %7058 = vmatprep.subr.bf16.mxu0 0
  %7059 = vmatpush1.bf16.msra.mxu0 %v7021
  %7060 = vmatprep.subr.bf16.mxu0 0
  %7061 = vmatpush1.bf16.msra.mxu0 %v7020
  %7062 = vmatprep.subr.bf16.mxu0 0
  %7063 = vmatpush1.bf16.msra.mxu0 %v7019
  %7064 = vmatprep.subr.bf16.mxu0 0
  %7065 = vmatpush1.bf16.msra.mxu0 %v7018
  %7066 = vmatprep.subr.bf16.mxu0 0
  %7067 = vmatpush2.bf16.msra.mxu0 %v7033
  %7068 = vmatprep.subr.bf16.mxu0 0
  %7069 = vmatpush2.bf16.msra.mxu0 %v7032
  %7070 = vmatprep.subr.bf16.mxu0 0
  %7071 = vmatpush2.bf16.msra.mxu0 %v7031
  %7072 = vmatprep.subr.bf16.mxu0 0
  %7073 = vmatpush2.bf16.msra.mxu0 %v7030
  %7074 = vmatprep.subr.bf16.mxu0 0
  %7075 = vmatpush2.bf16.msra.mxu0 %v7029
  %7076 = vmatprep.subr.bf16.mxu0 0
  %7077 = vmatpush2.bf16.msra.mxu0 %v7028
  %7078 = vmatprep.subr.bf16.mxu0 0
  %7079 = vmatpush2.bf16.msra.mxu0 %v7027
  %7080 = vmatprep.subr.bf16.mxu0 0
  %7081 = vmatpush2.bf16.msra.mxu0 %v7026
  %7082 = vmatprep.mubr.bf16.mxu0 %v6920
  %7083 = vmatmul.mubr.bf16.gmra.mxu0 %v6919
  %v7084 = vpop.f32.mrf.mxu0
  %v7085 = vadd.f32 0.0, %v7084
  %v7086 = vpop.f32.mrf.mxu0
  %v7087 = vpop.f32.mrf.mxu0
  %v7088 = vpop.f32.mrf.mxu0
  %7089 = vdwg.mxu0
  %v7090 = vadd.f32 %v6872, %v7085
  %v7091 = vld [vmem:[#allocation2] sm:$0x1]
  %v7093 = vlaneseq
  %v7094 = vshrl.u32 %v7093, 7
  %v7095 = vsub.s32 0, %v7094
  %v7096 = vrot.slane %v7091, %v7095
  %v7098 = vadd.f32 %v7090, %v7096
  %v7099 = vxor.u32 %v7098, 2147483648
  %v7100 = vmul.f32 %v7099, 1.442695
  %v7101 = vpow.pop %v7100
  %v7102 = vadd.f32 %v7101, 1.0
  %v7103 = vrcp.pop %v7102
  %v7104 = vmul.f32 1.0, %v7103
  %vm7105 = vcmask 1024
  %7106 = vst.msk [vmem:[%s25] sm:$0x3] %vm7105, %v7104
  // Predicated region
  $region102: #{_lambda_.1} parent=0 // pred_check
    _
  $region103: #{_lambda_.1} parent=0 // pred_check_branch
    %7108 = sbr.rel (0) target = $region105
  $region104: #{_lambda_.1} parent=0 // pred_region
    _
  $region105: #{_lambda_.1} parent=0 // pred_fallthru
    _
  // Predicated region
  $region106: #{_lambda_.1} parent=0 // pred_check
    _
  $region107: #{_lambda_.1} parent=0 // pred_check_branch
    %7110 = sbr.rel (0) target = $region109
  $region108: #{_lambda_.1} parent=0 // pred_region
    _
  $region109: #{_lambda_.1} parent=0 // pred_fallthru
    _

</llo_original>
